<compile_context>
chip_gen: v7x
topology: tpu7x:2x2x1
jax: 0.10.0
libtpu: 0.0.40
codegen_flags: <defaults>
</compile_context>

<pallas_src>
import functools

import jax
import jax.numpy as jnp
from jax import lax
from jax.experimental import pallas as pl
from jax.experimental.pallas import tpu as pltpu


def _identity_block_kernel(*refs, stride, conv_shortcut):
    if conv_shortcut:
        (x_ref, w1_ref, b1_ref, w2_ref, ws_ref, bo_ref,
         o_ref, q_ref, acc1_ref, acc2_ref) = refs
    else:
        (x_ref, w1_ref, b1_ref, w2_ref, bo_ref,
         o_ref, q_ref, acc1_ref, acc2_ref) = refs

    s = stride
    f32 = jnp.float32
    _, Hp, Wp8, Cp = x_ref.shape          # padded input block (halo + 8-aligned W)
    _, Ho, Wo, C1 = o_ref.shape           # output block
    _, Wq8, _ = q_ref.shape               # stage-1 scratch (halo + 8-aligned W)
    H, W = Hp - 2, Wo * s

    # ---- stage 1: conv1 3x3 (stride s, pad=1); BN1 scale pre-folded --------
    if s == 1:
        # Full-width slab conv: per tap row dy one contiguous slab matmul per
        # dx weight; dx alignment via pltpu.roll of the (M, C1) result (XLU),
        # so no per-tap shifted slice/reshape relayout copies of the input.
        M1 = H * Wp8
        for dy in range(3):
            slab = x_ref[0, dy:dy + H, :, :].reshape(M1, Cp)
            part = None
            for dx in range(3):
                r = jnp.dot(slab, w1_ref[3 * dy + dx],
                            preferred_element_type=f32)
                if dx:                       # out row m needs tap row m + dx
                    r = pltpu.roll(r, shift=M1 - dx, axis=0)
                part = r if part is None else part + r
            if dy == 0:                      # 3 accumulator passes total
                acc1_ref[...] = part
            else:
                acc1_ref[...] += part
        h1 = acc1_ref[...].reshape(H, Wp8, C1)[:, :Wo, :]
    else:
        # TODO(synk): stride>1 path gathers each subsampled tap (relayout copy)
        # but does s^2 less MXU work; only taken for strided blocks.
        M1 = Ho * Wo
        for dy in range(3):
            part = None
            for dx in range(3):
                tap = x_ref[0, dy:dy + H, dx:dx + W, :]
                tap = tap.reshape(Ho, s, Wo, s, Cp)[:, 0, :, 0, :]
                r = jnp.dot(tap.reshape(M1, Cp), w1_ref[3 * dy + dx],
                            preferred_element_type=f32)
                part = r if part is None else part + r
            if dy == 0:
                acc1_ref[...] = part
            else:
                acc1_ref[...] += part
        h1 = acc1_ref[...].reshape(Ho, Wo, C1)

    h1 = jnp.maximum(h1 + b1_ref[...], 0.0)              # BN1 shift + ReLU

    # ---- stage-1 activations -> zero-bordered VMEM scratch (bf16) ----------
    # q[r, c] = h1[r-1, c] for 1<=r<=Ho, 0<=c<Wo; every other entry is zero so
    # conv2's rolled taps read zeros exactly where the pad=1 halo is needed.
    q_ref[0:1, :, :] = jnp.zeros((1, Wq8, C1), q_ref.dtype)
    q_ref[Ho + 1:Ho + 2, :, :] = jnp.zeros((1, Wq8, C1), q_ref.dtype)
    q_ref[1:Ho + 1, Wo:Wq8, :] = jnp.zeros((Ho, Wq8 - Wo, C1), q_ref.dtype)
    q_ref[1:Ho + 1, 0:Wo, :] = h1.astype(q_ref.dtype)

    # ---- stage 2: conv2 3x3 (stride 1, pad=1); BN2 scale pre-folded --------
    M2 = Ho * Wq8
    for dy in range(3):
        slab = q_ref[dy:dy + Ho, :, :].reshape(M2, C1)
        part = None
        for dx in range(3):
            r = jnp.dot(slab, w2_ref[3 * dy + dx], preferred_element_type=f32)
            shift = (1 - dx) % M2            # q holds h1 at column offset 0
            if shift:
                r = pltpu.roll(r, shift=shift, axis=0)
            part = r if part is None else part + r
        if dy == 0:
            acc2_ref[...] = part
        else:
            acc2_ref[...] += part

    # ---- shortcut -----------------------------------------------------------
    sc = None
    if conv_shortcut:
        if s == 1:
            # 1x1-conv shortcut (BN scale folded into ws): one more full-width
            # slab matmul rolled into the conv2 accumulator.
            slab = x_ref[0, 1:H + 1, :, :].reshape(M2, Cp)
            r = jnp.dot(slab, ws_ref[...], preferred_element_type=f32)
            acc2_ref[...] += pltpu.roll(r, shift=M2 - 1, axis=0)
        else:
            xs = x_ref[0, 1:H + 1, 1:W + 1, :]
            xs = xs.reshape(Ho, s, Wo, s, Cp)[:, 0, :, 0, :]
            sc = jnp.dot(xs.reshape(Ho * Wo, Cp), ws_ref[...],
                         preferred_element_type=f32).reshape(Ho, Wo, C1)
    else:
        # Identity shortcut (Cin == Cout, stride == 1): add x via the same
        # rolled-slab alignment (no off-by-one interior slice relayout).
        slab = x_ref[0, 1:H + 1, :, :].reshape(M2, Cp).astype(f32)
        acc2_ref[...] += pltpu.roll(slab, shift=M2 - 1, axis=0)

    # ---- bias (BN2 [+ shortcut BN] shift) + final ReLU + lane-dense store ---
    y = acc2_ref[...].reshape(Ho, Wq8, C1)[:, :Wo, :] + bo_ref[...]
    if sc is not None:
        y = y + sc
    o_ref[0] = jnp.maximum(y, 0.0).astype(o_ref.dtype)


def _round_up(x, m):
    return (x + m - 1) // m * m


def _bn_scale_shift(stats, eps):
    gamma, beta, mean, var = stats
    scale = gamma / jnp.sqrt(var + eps)
    return scale, beta - mean * scale


def _prep_conv3x3(w, scale, cin_pad, cout_pad, dtype):
    # PyTorch OIHW (O, I, 3, 3) -> tap-major (9, cin_pad, cout_pad) with the
    # following BN's per-output-channel scale folded in (conv is bias-free).
    o, i = w.shape[0], w.shape[1]
    wk = jnp.transpose(w, (2, 3, 1, 0)).reshape(9, i, o) * scale[None, None, :]
    wk = jnp.pad(wk, ((0, 0), (0, cin_pad - i), (0, cout_pad - o)))
    return wk.astype(dtype)


def _pad_bias(shift, cpad):
    return (jnp.pad(shift, (0, cpad - shift.shape[0]))
            .reshape(1, 1, cpad).astype(jnp.float32))


def identity_block_pallas(x_nchw, params, *, stride, eps=1e-5, lane=128,
                          compute_dtype=jnp.bfloat16):
    (w1, bn1, w2, bn2, shortcut) = params
    N, Cin, H, W = x_nchw.shape
    Cout = w1.shape[0]
    conv_shortcut = shortcut is not None
    if not conv_shortcut:
        assert Cin == Cout and stride == 1, "identity shortcut needs matching shapes"
    if stride > 1:
        # TODO(synk): stride>1 currently requires H, W divisible by stride.
        assert H % stride == 0 and W % stride == 0
    Ho, Wo = H // stride, W // stride

    Cp = _round_up(Cin, lane)
    C1p = _round_up(Cout, lane)
    if not conv_shortcut:
        Cp = C1p = max(Cp, C1p)

    Wp8 = _round_up(W + 2, 8)      # input width + pad=1 halo, sublane-aligned
    Wq8 = _round_up(Wo + 2, 8)     # stage-1 width + pad=1 halo, sublane-aligned

    # NCHW -> NHWC; zero-pad: 1px top/bottom halo, 1px left halo + right halo /
    # sublane alignment, channels to a lane multiple; cast to bf16 for the MXU.
    x = jnp.transpose(x_nchw, (0, 2, 3, 1))
    xpad = jnp.pad(x, ((0, 0), (1, 1), (1, Wp8 - W - 1), (0, Cp - Cin)))
    xpad = xpad.astype(compute_dtype)

    s1, sh1 = _bn_scale_shift(bn1, eps)
    s2, sh2 = _bn_scale_shift(bn2, eps)
    w1k = _prep_conv3x3(w1, s1, Cp, C1p, compute_dtype)
    w2k = _prep_conv3x3(w2, s2, C1p, C1p, compute_dtype)
    b1k = _pad_bias(sh1, C1p)

    def const_spec(a):
        nd = a.ndim
        return pl.BlockSpec(a.shape, lambda n, _nd=nd: (0,) * _nd)

    args = [xpad, w1k, b1k, w2k]
    in_specs = [pl.BlockSpec((1, H + 2, Wp8, Cp), lambda n: (n, 0, 0, 0)),
                const_spec(w1k), const_spec(b1k), const_spec(w2k)]

    bias_out = sh2
    if conv_shortcut:
        ws, bns = shortcut
        ss, shs = _bn_scale_shift(bns, eps)
        wsk = ws[:, :, 0, 0].T * ss[None, :]
        wsk = jnp.pad(wsk, ((0, Cp - Cin), (0, C1p - Cout))).astype(compute_dtype)
        args.append(wsk)
        in_specs.append(const_spec(wsk))
        bias_out = bias_out + shs            # fuse BN2 + shortcut-BN shifts
    boutk = _pad_bias(bias_out, C1p)
    args.append(boutk)
    in_specs.append(const_spec(boutk))

    M1 = (H * Wp8) if stride == 1 else (Ho * Wo)
    M2 = Ho * Wq8

    kernel = functools.partial(_identity_block_kernel,
                               stride=stride, conv_shortcut=conv_shortcut)

    out = pl.pallas_call(
        kernel,
        out_shape=jax.ShapeDtypeStruct((N, Ho, Wo, C1p), jnp.float32),
        grid_spec=pltpu.PrefetchScalarGridSpec(
            num_scalar_prefetch=0,
            grid=(N,),
            in_specs=in_specs,
            out_specs=pl.BlockSpec((1, Ho, Wo, C1p), lambda n: (n, 0, 0, 0)),
            scratch_shapes=[
                pltpu.VMEM((Ho + 2, Wq8, C1p), compute_dtype),  # stage-1 acts (halo'd)
                pltpu.VMEM((M1, C1p), jnp.float32),             # conv1 accumulator
                pltpu.VMEM((M2, C1p), jnp.float32),             # conv2 (+shortcut) acc
            ],
        ),
        compiler_params=pltpu.CompilerParams(
            dimension_semantics=("parallel",),
            vmem_limit_bytes=32 * 1024 * 1024,
        ),
    )(*args)

    out = out[:, :, :, :Cout]                # drop channel padding
    return jnp.transpose(out, (0, 3, 1, 2))  # NHWC -> NCHW


def make_params(key, in_c, out_c):
    ks = jax.random.split(key, 16)

    def bn_stats(i, c):
        gamma = 1.0 + 0.1 * jax.random.normal(ks[i], (c,), jnp.float32)
        beta = 0.1 * jax.random.normal(ks[i + 1], (c,), jnp.float32)
        mean = 0.1 * jax.random.normal(ks[i + 2], (c,), jnp.float32)
        var = 0.5 + jax.random.uniform(ks[i + 3], (c,), jnp.float32)
        return (gamma, beta, mean, var)

    w1 = 0.2 * jax.random.normal(ks[0], (out_c, in_c, 3, 3), jnp.float32)
    w2 = 0.2 * jax.random.normal(ks[1], (out_c, out_c, 3, 3), jnp.float32)
    bn1 = bn_stats(2, out_c)
    bn2 = bn_stats(6, out_c)
    if in_c != out_c:
        ws = 0.2 * jax.random.normal(ks[10], (out_c, in_c, 1, 1), jnp.float32)
        shortcut = (ws, bn_stats(11, out_c))
    else:
        shortcut = None
    return (w1, bn1, w2, bn2, shortcut)


def reference(x, params, *, stride, eps=1e-5):
    """Pure-JAX NCHW reference mirroring the PyTorch module (eval-mode BN)."""
    (w1, bn1, w2, bn2, shortcut) = params

    def conv(z, w, s, p):
        return lax.conv_general_dilated(
            z, w, (s, s), ((p, p), (p, p)),
            dimension_numbers=("NCHW", "OIHW", "NCHW"),
            precision=lax.Precision.HIGHEST)

    def bn(z, stats):
        gamma, beta, mean, var = stats
        sc = gamma / jnp.sqrt(var + eps)
        sh = beta - mean * sc
        return z * sc[None, :, None, None] + sh[None, :, None, None]

    h = jnp.maximum(bn(conv(x, w1, stride, 1), bn1), 0.0)
    h = bn(conv(h, w2, 1, 1), bn2)
    if shortcut is None:
        sc = x
    else:
        ws, bns = shortcut
        sc = bn(conv(x, ws, stride, 0), bns)
    return jnp.maximum(h + sc, 0.0)


def _run_case(name, key, in_c, out_c, stride, N=2, H=16, W=16):
    kx, kp = jax.random.split(key)
    x = jax.random.normal(kx, (N, in_c, H, W), jnp.float32)
    params = make_params(kp, in_c, out_c)

    out = jax.block_until_ready(identity_block_pallas(x, params, stride=stride))
    ref = reference(x, params, stride=stride)
    assert out.shape == ref.shape, (name, out.shape, ref.shape)

    err_max = float(jnp.max(jnp.abs(out - ref)))
    err_mean = float(jnp.mean(jnp.abs(out - ref)))
    # Kernel computes in bf16 (f32 accumulation) vs. f32 HIGHEST reference, so
    # the tolerance is looser than an all-f32 comparison would need.
    assert err_max < 1e-1 and err_mean < 2.5e-2, (name, err_max, err_mean)


if __name__ == "__main__":
    key = jax.random.PRNGKey(0)
    k1, k2 = jax.random.split(key)

    # IdentityBlock(4, 4, stride=1): identity shortcut.
    _run_case("identity_shortcut", k1, in_c=4, out_c=4, stride=1)
    # IdentityBlock(4, 8, stride=1): 1x1 conv + BN shortcut.
    _run_case("conv_shortcut", k2, in_c=4, out_c=8, stride=1)

    print("KERNEL_OK")
</pallas_src>

<mosaic_0001>
module attributes {stable_mosaic.version = 11 : i64} {
  func.func @_identity_block_kernel(%arg0: i32, %arg1: memref<1x18x24x128xbf16, #tpu.memory_space<vmem>>, %arg2: memref<9x128x128xbf16, #tpu.memory_space<vmem>>, %arg3: memref<1x1x128xf32, #tpu.memory_space<vmem>>, %arg4: memref<9x128x128xbf16, #tpu.memory_space<vmem>>, %arg5: memref<1x1x128xf32, #tpu.memory_space<vmem>>, %arg6: memref<1x16x16x128xf32, #tpu.memory_space<vmem>>, %arg7: memref<18x24x128xbf16, #tpu.memory_space<vmem>>, %arg8: memref<384x128xf32, #tpu.memory_space<vmem>>, %arg9: memref<384x128xf32, #tpu.memory_space<vmem>>) attributes {dimension_semantics = [#tpu.dimension_semantics<parallel>], iteration_bounds = array<i64: 2>, scalar_prefetch = 0 : i64, scratch_operands = 3 : i64, tpu.core_type = #tpu.core_type<tc>, window_params = [{transform_indices = @transform_0, window_bounds = array<i64: 1, 18, 24, 128>}, {pipeline_mode = #tpu.pipeline_mode<synchronous>, transform_indices = @transform_1, window_bounds = array<i64: 9, 128, 128>}, {pipeline_mode = #tpu.pipeline_mode<synchronous>, transform_indices = @transform_2, window_bounds = array<i64: 1, 1, 128>}, {pipeline_mode = #tpu.pipeline_mode<synchronous>, transform_indices = @transform_3, window_bounds = array<i64: 9, 128, 128>}, {pipeline_mode = #tpu.pipeline_mode<synchronous>, transform_indices = @transform_4, window_bounds = array<i64: 1, 1, 128>}, {transform_indices = @transform_5, window_bounds = array<i64: 1, 16, 16, 128>}]} {
    %c0 = arith.constant 0 : index
    %c0_0 = arith.constant 0 : index
    %c0_1 = arith.constant 0 : index
    %c0_2 = arith.constant 0 : index
    %0 = vector.load %arg1[%c0, %c0_0, %c0_1, %c0_2] : memref<1x18x24x128xbf16, #tpu.memory_space<vmem>>, vector<1x16x24x128xbf16>
    %1 = vector.shape_cast %0 : vector<1x16x24x128xbf16> to vector<16x24x128xbf16>
    %2 = vector.shape_cast %1 : vector<16x24x128xbf16> to vector<384x128xbf16>
    %c0_3 = arith.constant 0 : index
    %c0_4 = arith.constant 0 : index
    %c0_5 = arith.constant 0 : index
    %3 = vector.load %arg2[%c0_3, %c0_4, %c0_5] : memref<9x128x128xbf16, #tpu.memory_space<vmem>>, vector<1x128x128xbf16>
    %4 = vector.shape_cast %3 : vector<1x128x128xbf16> to vector<128x128xbf16>
    %cst = arith.constant dense<0.000000e+00> : vector<384x128xf32>
    %5 = tpu.matmul %2, %4, %cst {dimension_numbers = #tpu.dot_dimension_numbers<[1], [0], [0], [1], [0, 0, 1, 1], [], []>} : vector<384x128xbf16>, vector<128x128xbf16>, vector<384x128xf32> -> vector<384x128xf32>
    %c1 = arith.constant 1 : index
    %c0_6 = arith.constant 0 : index
    %c0_7 = arith.constant 0 : index
    %6 = vector.load %arg2[%c1, %c0_6, %c0_7] : memref<9x128x128xbf16, #tpu.memory_space<vmem>>, vector<1x128x128xbf16>
    %7 = vector.shape_cast %6 : vector<1x128x128xbf16> to vector<128x128xbf16>
    %cst_8 = arith.constant dense<0.000000e+00> : vector<384x128xf32>
    %8 = tpu.matmul %2, %7, %cst_8 {dimension_numbers = #tpu.dot_dimension_numbers<[1], [0], [0], [1], [0, 0, 1, 1], [], []>} : vector<384x128xbf16>, vector<128x128xbf16>, vector<384x128xf32> -> vector<384x128xf32>
    %c383_i32 = arith.constant 383 : i32
    %9 = tpu.dynamic_rotate %8 by %c383_i32 dim 0 : vector<384x128xf32>, i32 -> vector<384x128xf32>
    %10 = arith.addf %5, %9 : vector<384x128xf32>
    %c2 = arith.constant 2 : index
    %c0_9 = arith.constant 0 : index
    %c0_10 = arith.constant 0 : index
    %11 = vector.load %arg2[%c2, %c0_9, %c0_10] : memref<9x128x128xbf16, #tpu.memory_space<vmem>>, vector<1x128x128xbf16>
    %12 = vector.shape_cast %11 : vector<1x128x128xbf16> to vector<128x128xbf16>
    %cst_11 = arith.constant dense<0.000000e+00> : vector<384x128xf32>
    %13 = tpu.matmul %2, %12, %cst_11 {dimension_numbers = #tpu.dot_dimension_numbers<[1], [0], [0], [1], [0, 0, 1, 1], [], []>} : vector<384x128xbf16>, vector<128x128xbf16>, vector<384x128xf32> -> vector<384x128xf32>
    %c382_i32 = arith.constant 382 : i32
    %14 = tpu.dynamic_rotate %13 by %c382_i32 dim 0 : vector<384x128xf32>, i32 -> vector<384x128xf32>
    %15 = arith.addf %10, %14 : vector<384x128xf32>
    %c0_12 = arith.constant 0 : index
    %c0_13 = arith.constant 0 : index
    %16 = vector.load %arg8[%c0_12, %c0_13] : memref<384x128xf32, #tpu.memory_space<vmem>>, vector<384x128xf32>
    tpu.vector_store %arg8[%c0_12, %c0_13], %15 {strides = array<i32>} : memref<384x128xf32, #tpu.memory_space<vmem>>, vector<384x128xf32>,
    %c0_14 = arith.constant 0 : index
    %c1_15 = arith.constant 1 : index
    %c0_16 = arith.constant 0 : index
    %c0_17 = arith.constant 0 : index
    %17 = vector.load %arg1[%c0_14, %c1_15, %c0_16, %c0_17] : memref<1x18x24x128xbf16, #tpu.memory_space<vmem>>, vector<1x16x24x128xbf16>
    %18 = vector.shape_cast %17 : vector<1x16x24x128xbf16> to vector<16x24x128xbf16>
    %19 = vector.shape_cast %18 : vector<16x24x128xbf16> to vector<384x128xbf16>
    %c3 = arith.constant 3 : index
    %c0_18 = arith.constant 0 : index
    %c0_19 = arith.constant 0 : index
    %20 = vector.load %arg2[%c3, %c0_18, %c0_19] : memref<9x128x128xbf16, #tpu.memory_space<vmem>>, vector<1x128x128xbf16>
    %21 = vector.shape_cast %20 : vector<1x128x128xbf16> to vector<128x128xbf16>
    %cst_20 = arith.constant dense<0.000000e+00> : vector<384x128xf32>
    %22 = tpu.matmul %19, %21, %cst_20 {dimension_numbers = #tpu.dot_dimension_numbers<[1], [0], [0], [1], [0, 0, 1, 1], [], []>} : vector<384x128xbf16>, vector<128x128xbf16>, vector<384x128xf32> -> vector<384x128xf32>
    %c4 = arith.constant 4 : index
    %c0_21 = arith.constant 0 : index
    %c0_22 = arith.constant 0 : index
    %23 = vector.load %arg2[%c4, %c0_21, %c0_22] : memref<9x128x128xbf16, #tpu.memory_space<vmem>>, vector<1x128x128xbf16>
    %24 = vector.shape_cast %23 : vector<1x128x128xbf16> to vector<128x128xbf16>
    %cst_23 = arith.constant dense<0.000000e+00> : vector<384x128xf32>
    %25 = tpu.matmul %19, %24, %cst_23 {dimension_numbers = #tpu.dot_dimension_numbers<[1], [0], [0], [1], [0, 0, 1, 1], [], []>} : vector<384x128xbf16>, vector<128x128xbf16>, vector<384x128xf32> -> vector<384x128xf32>
    %c383_i32_24 = arith.constant 383 : i32
    %26 = tpu.dynamic_rotate %25 by %c383_i32_24 dim 0 : vector<384x128xf32>, i32 -> vector<384x128xf32>
    %27 = arith.addf %22, %26 : vector<384x128xf32>
    %c5 = arith.constant 5 : index
    %c0_25 = arith.constant 0 : index
    %c0_26 = arith.constant 0 : index
    %28 = vector.load %arg2[%c5, %c0_25, %c0_26] : memref<9x128x128xbf16, #tpu.memory_space<vmem>>, vector<1x128x128xbf16>
    %29 = vector.shape_cast %28 : vector<1x128x128xbf16> to vector<128x128xbf16>
    %cst_27 = arith.constant dense<0.000000e+00> : vector<384x128xf32>
    %30 = tpu.matmul %19, %29, %cst_27 {dimension_numbers = #tpu.dot_dimension_numbers<[1], [0], [0], [1], [0, 0, 1, 1], [], []>} : vector<384x128xbf16>, vector<128x128xbf16>, vector<384x128xf32> -> vector<384x128xf32>
    %c382_i32_28 = arith.constant 382 : i32
    %31 = tpu.dynamic_rotate %30 by %c382_i32_28 dim 0 : vector<384x128xf32>, i32 -> vector<384x128xf32>
    %32 = arith.addf %27, %31 : vector<384x128xf32>
    %c0_29 = arith.constant 0 : index
    %c0_30 = arith.constant 0 : index
    %33 = vector.load %arg8[%c0_29, %c0_30] : memref<384x128xf32, #tpu.memory_space<vmem>>, vector<384x128xf32>
    %34 = arith.addf %33, %32 : vector<384x128xf32>
    %c0_31 = arith.constant 0 : index
    %c0_32 = arith.constant 0 : index
    %35 = vector.load %arg8[%c0_31, %c0_32] : memref<384x128xf32, #tpu.memory_space<vmem>>, vector<384x128xf32>
    tpu.vector_store %arg8[%c0_31, %c0_32], %34 {strides = array<i32>} : memref<384x128xf32, #tpu.memory_space<vmem>>, vector<384x128xf32>,
    %c0_33 = arith.constant 0 : index
    %c2_34 = arith.constant 2 : index
    %c0_35 = arith.constant 0 : index
    %c0_36 = arith.constant 0 : index
    %36 = vector.load %arg1[%c0_33, %c2_34, %c0_35, %c0_36] : memref<1x18x24x128xbf16, #tpu.memory_space<vmem>>, vector<1x16x24x128xbf16>
    %37 = vector.shape_cast %36 : vector<1x16x24x128xbf16> to vector<16x24x128xbf16>
    %38 = vector.shape_cast %37 : vector<16x24x128xbf16> to vector<384x128xbf16>
    %c6 = arith.constant 6 : index
    %c0_37 = arith.constant 0 : index
    %c0_38 = arith.constant 0 : index
    %39 = vector.load %arg2[%c6, %c0_37, %c0_38] : memref<9x128x128xbf16, #tpu.memory_space<vmem>>, vector<1x128x128xbf16>
    %40 = vector.shape_cast %39 : vector<1x128x128xbf16> to vector<128x128xbf16>
    %cst_39 = arith.constant dense<0.000000e+00> : vector<384x128xf32>
    %41 = tpu.matmul %38, %40, %cst_39 {dimension_numbers = #tpu.dot_dimension_numbers<[1], [0], [0], [1], [0, 0, 1, 1], [], []>} : vector<384x128xbf16>, vector<128x128xbf16>, vector<384x128xf32> -> vector<384x128xf32>
    %c7 = arith.constant 7 : index
    %c0_40 = arith.constant 0 : index
    %c0_41 = arith.constant 0 : index
    %42 = vector.load %arg2[%c7, %c0_40, %c0_41] : memref<9x128x128xbf16, #tpu.memory_space<vmem>>, vector<1x128x128xbf16>
    %43 = vector.shape_cast %42 : vector<1x128x128xbf16> to vector<128x128xbf16>
    %cst_42 = arith.constant dense<0.000000e+00> : vector<384x128xf32>
    %44 = tpu.matmul %38, %43, %cst_42 {dimension_numbers = #tpu.dot_dimension_numbers<[1], [0], [0], [1], [0, 0, 1, 1], [], []>} : vector<384x128xbf16>, vector<128x128xbf16>, vector<384x128xf32> -> vector<384x128xf32>
    %c383_i32_43 = arith.constant 383 : i32
    %45 = tpu.dynamic_rotate %44 by %c383_i32_43 dim 0 : vector<384x128xf32>, i32 -> vector<384x128xf32>
    %46 = arith.addf %41, %45 : vector<384x128xf32>
    %c8 = arith.constant 8 : index
    %c0_44 = arith.constant 0 : index
    %c0_45 = arith.constant 0 : index
    %47 = vector.load %arg2[%c8, %c0_44, %c0_45] : memref<9x128x128xbf16, #tpu.memory_space<vmem>>, vector<1x128x128xbf16>
    %48 = vector.shape_cast %47 : vector<1x128x128xbf16> to vector<128x128xbf16>
    %cst_46 = arith.constant dense<0.000000e+00> : vector<384x128xf32>
    %49 = tpu.matmul %38, %48, %cst_46 {dimension_numbers = #tpu.dot_dimension_numbers<[1], [0], [0], [1], [0, 0, 1, 1], [], []>} : vector<384x128xbf16>, vector<128x128xbf16>, vector<384x128xf32> -> vector<384x128xf32>
    %c382_i32_47 = arith.constant 382 : i32
    %50 = tpu.dynamic_rotate %49 by %c382_i32_47 dim 0 : vector<384x128xf32>, i32 -> vector<384x128xf32>
    %51 = arith.addf %46, %50 : vector<384x128xf32>
    %c0_48 = arith.constant 0 : index
    %c0_49 = arith.constant 0 : index
    %52 = vector.load %arg8[%c0_48, %c0_49] : memref<384x128xf32, #tpu.memory_space<vmem>>, vector<384x128xf32>
    %53 = arith.addf %52, %51 : vector<384x128xf32>
    %c0_50 = arith.constant 0 : index
    %c0_51 = arith.constant 0 : index
    %54 = vector.load %arg8[%c0_50, %c0_51] : memref<384x128xf32, #tpu.memory_space<vmem>>, vector<384x128xf32>
    tpu.vector_store %arg8[%c0_50, %c0_51], %53 {strides = array<i32>} : memref<384x128xf32, #tpu.memory_space<vmem>>, vector<384x128xf32>,
    %c0_52 = arith.constant 0 : index
    %c0_53 = arith.constant 0 : index
    %55 = vector.load %arg8[%c0_52, %c0_53] : memref<384x128xf32, #tpu.memory_space<vmem>>, vector<384x128xf32>
    %56 = vector.shape_cast %55 : vector<384x128xf32> to vector<16x24x128xf32>
    %57 = vector.extract_strided_slice %56 {offsets = [0, 0, 0], sizes = [16, 16, 128], strides = [1, 1, 1]} : vector<16x24x128xf32> to vector<16x16x128xf32>
    %c0_54 = arith.constant 0 : index
    %c0_55 = arith.constant 0 : index
    %c0_56 = arith.constant 0 : index
    %58 = vector.load %arg3[%c0_54, %c0_55, %c0_56] : memref<1x1x128xf32, #tpu.memory_space<vmem>>, vector<1x1x128xf32>
    %59 = vector.broadcast %58 : vector<1x1x128xf32> to vector<16x16x128xf32>
    %60 = arith.addf %57, %59 : vector<16x16x128xf32>
    %cst_57 = arith.constant 0.000000e+00 : f32
    %61 = vector.broadcast %cst_57 : f32 to vector<16x16x128xf32>
    %62 = arith.maximumf %60, %61 : vector<16x16x128xf32>
    %cst_58 = arith.constant 0.000000e+00 : bf16
    %63 = vector.broadcast %cst_58 : bf16 to vector<1x24x128xbf16>
    %c0_59 = arith.constant 0 : index
    %c0_60 = arith.constant 0 : index
    %c0_61 = arith.constant 0 : index
    %64 = vector.load %arg7[%c0_59, %c0_60, %c0_61] : memref<18x24x128xbf16, #tpu.memory_space<vmem>>, vector<1x24x128xbf16>
    tpu.vector_store %arg7[%c0_59, %c0_60, %c0_61], %63 {strides = array<i32>} : memref<18x24x128xbf16, #tpu.memory_space<vmem>>, vector<1x24x128xbf16>,
    %cst_62 = arith.constant 0.000000e+00 : bf16
    %65 = vector.broadcast %cst_62 : bf16 to vector<1x24x128xbf16>
    %c17 = arith.constant 17 : index
    %c0_63 = arith.constant 0 : index
    %c0_64 = arith.constant 0 : index
    %66 = vector.load %arg7[%c17, %c0_63, %c0_64] : memref<18x24x128xbf16, #tpu.memory_space<vmem>>, vector<1x24x128xbf16>
    tpu.vector_store %arg7[%c17, %c0_63, %c0_64], %65 {strides = array<i32>} : memref<18x24x128xbf16, #tpu.memory_space<vmem>>, vector<1x24x128xbf16>,
    %cst_65 = arith.constant 0.000000e+00 : bf16
    %67 = vector.broadcast %cst_65 : bf16 to vector<16x8x128xbf16>
    %c1_66 = arith.constant 1 : index
    %c16 = arith.constant 16 : index
    %c0_67 = arith.constant 0 : index
    %68 = vector.load %arg7[%c1_66, %c16, %c0_67] : memref<18x24x128xbf16, #tpu.memory_space<vmem>>, vector<16x8x128xbf16>
    tpu.vector_store %arg7[%c1_66, %c16, %c0_67], %67 {strides = array<i32>} : memref<18x24x128xbf16, #tpu.memory_space<vmem>>, vector<16x8x128xbf16>,
    %69 = arith.truncf %62 : vector<16x16x128xf32> to vector<16x16x128xbf16>
    %c1_68 = arith.constant 1 : index
    %c0_69 = arith.constant 0 : index
    %c0_70 = arith.constant 0 : index
    %70 = vector.load %arg7[%c1_68, %c0_69, %c0_70] : memref<18x24x128xbf16, #tpu.memory_space<vmem>>, vector<16x16x128xbf16>
    tpu.vector_store %arg7[%c1_68, %c0_69, %c0_70], %69 {strides = array<i32>} : memref<18x24x128xbf16, #tpu.memory_space<vmem>>, vector<16x16x128xbf16>,
    %c0_71 = arith.constant 0 : index
    %c0_72 = arith.constant 0 : index
    %c0_73 = arith.constant 0 : index
    %71 = vector.load %arg7[%c0_71, %c0_72, %c0_73] : memref<18x24x128xbf16, #tpu.memory_space<vmem>>, vector<16x24x128xbf16>
    %72 = vector.shape_cast %71 : vector<16x24x128xbf16> to vector<384x128xbf16>
    %c0_74 = arith.constant 0 : index
    %c0_75 = arith.constant 0 : index
    %c0_76 = arith.constant 0 : index
    %73 = vector.load %arg4[%c0_74, %c0_75, %c0_76] : memref<9x128x128xbf16, #tpu.memory_space<vmem>>, vector<1x128x128xbf16>
    %74 = vector.shape_cast %73 : vector<1x128x128xbf16> to vector<128x128xbf16>
    %cst_77 = arith.constant dense<0.000000e+00> : vector<384x128xf32>
    %75 = tpu.matmul %72, %74, %cst_77 {dimension_numbers = #tpu.dot_dimension_numbers<[1], [0], [0], [1], [0, 0, 1, 1], [], []>} : vector<384x128xbf16>, vector<128x128xbf16>, vector<384x128xf32> -> vector<384x128xf32>
    %c1_i32 = arith.constant 1 : i32
    %76 = tpu.dynamic_rotate %75 by %c1_i32 dim 0 : vector<384x128xf32>, i32 -> vector<384x128xf32>
    %c1_78 = arith.constant 1 : index
    %c0_79 = arith.constant 0 : index
    %c0_80 = arith.constant 0 : index
    %77 = vector.load %arg4[%c1_78, %c0_79, %c0_80] : memref<9x128x128xbf16, #tpu.memory_space<vmem>>, vector<1x128x128xbf16>
    %78 = vector.shape_cast %77 : vector<1x128x128xbf16> to vector<128x128xbf16>
    %cst_81 = arith.constant dense<0.000000e+00> : vector<384x128xf32>
    %79 = tpu.matmul %72, %78, %cst_81 {dimension_numbers = #tpu.dot_dimension_numbers<[1], [0], [0], [1], [0, 0, 1, 1], [], []>} : vector<384x128xbf16>, vector<128x128xbf16>, vector<384x128xf32> -> vector<384x128xf32>
    %80 = arith.addf %76, %79 : vector<384x128xf32>
    %c2_82 = arith.constant 2 : index
    %c0_83 = arith.constant 0 : index
    %c0_84 = arith.constant 0 : index
    %81 = vector.load %arg4[%c2_82, %c0_83, %c0_84] : memref<9x128x128xbf16, #tpu.memory_space<vmem>>, vector<1x128x128xbf16>
    %82 = vector.shape_cast %81 : vector<1x128x128xbf16> to vector<128x128xbf16>
    %cst_85 = arith.constant dense<0.000000e+00> : vector<384x128xf32>
    %83 = tpu.matmul %72, %82, %cst_85 {dimension_numbers = #tpu.dot_dimension_numbers<[1], [0], [0], [1], [0, 0, 1, 1], [], []>} : vector<384x128xbf16>, vector<128x128xbf16>, vector<384x128xf32> -> vector<384x128xf32>
    %c383_i32_86 = arith.constant 383 : i32
    %84 = tpu.dynamic_rotate %83 by %c383_i32_86 dim 0 : vector<384x128xf32>, i32 -> vector<384x128xf32>
    %85 = arith.addf %80, %84 : vector<384x128xf32>
    %c0_87 = arith.constant 0 : index
    %c0_88 = arith.constant 0 : index
    %86 = vector.load %arg9[%c0_87, %c0_88] : memref<384x128xf32, #tpu.memory_space<vmem>>, vector<384x128xf32>
    tpu.vector_store %arg9[%c0_87, %c0_88], %85 {strides = array<i32>} : memref<384x128xf32, #tpu.memory_space<vmem>>, vector<384x128xf32>,
    %c1_89 = arith.constant 1 : index
    %c0_90 = arith.constant 0 : index
    %c0_91 = arith.constant 0 : index
    %87 = vector.load %arg7[%c1_89, %c0_90, %c0_91] : memref<18x24x128xbf16, #tpu.memory_space<vmem>>, vector<16x24x128xbf16>
    %88 = vector.shape_cast %87 : vector<16x24x128xbf16> to vector<384x128xbf16>
    %c3_92 = arith.constant 3 : index
    %c0_93 = arith.constant 0 : index
    %c0_94 = arith.constant 0 : index
    %89 = vector.load %arg4[%c3_92, %c0_93, %c0_94] : memref<9x128x128xbf16, #tpu.memory_space<vmem>>, vector<1x128x128xbf16>
    %90 = vector.shape_cast %89 : vector<1x128x128xbf16> to vector<128x128xbf16>
    %cst_95 = arith.constant dense<0.000000e+00> : vector<384x128xf32>
    %91 = tpu.matmul %88, %90, %cst_95 {dimension_numbers = #tpu.dot_dimension_numbers<[1], [0], [0], [1], [0, 0, 1, 1], [], []>} : vector<384x128xbf16>, vector<128x128xbf16>, vector<384x128xf32> -> vector<384x128xf32>
    %c1_i32_96 = arith.constant 1 : i32
    %92 = tpu.dynamic_rotate %91 by %c1_i32_96 dim 0 : vector<384x128xf32>, i32 -> vector<384x128xf32>
    %c4_97 = arith.constant 4 : index
    %c0_98 = arith.constant 0 : index
    %c0_99 = arith.constant 0 : index
    %93 = vector.load %arg4[%c4_97, %c0_98, %c0_99] : memref<9x128x128xbf16, #tpu.memory_space<vmem>>, vector<1x128x128xbf16>
    %94 = vector.shape_cast %93 : vector<1x128x128xbf16> to vector<128x128xbf16>
    %cst_100 = arith.constant dense<0.000000e+00> : vector<384x128xf32>
    %95 = tpu.matmul %88, %94, %cst_100 {dimension_numbers = #tpu.dot_dimension_numbers<[1], [0], [0], [1], [0, 0, 1, 1], [], []>} : vector<384x128xbf16>, vector<128x128xbf16>, vector<384x128xf32> -> vector<384x128xf32>
    %96 = arith.addf %92, %95 : vector<384x128xf32>
    %c5_101 = arith.constant 5 : index
    %c0_102 = arith.constant 0 : index
    %c0_103 = arith.constant 0 : index
    %97 = vector.load %arg4[%c5_101, %c0_102, %c0_103] : memref<9x128x128xbf16, #tpu.memory_space<vmem>>, vector<1x128x128xbf16>
    %98 = vector.shape_cast %97 : vector<1x128x128xbf16> to vector<128x128xbf16>
    %cst_104 = arith.constant dense<0.000000e+00> : vector<384x128xf32>
    %99 = tpu.matmul %88, %98, %cst_104 {dimension_numbers = #tpu.dot_dimension_numbers<[1], [0], [0], [1], [0, 0, 1, 1], [], []>} : vector<384x128xbf16>, vector<128x128xbf16>, vector<384x128xf32> -> vector<384x128xf32>
    %c383_i32_105 = arith.constant 383 : i32
    %100 = tpu.dynamic_rotate %99 by %c383_i32_105 dim 0 : vector<384x128xf32>, i32 -> vector<384x128xf32>
    %101 = arith.addf %96, %100 : vector<384x128xf32>
    %c0_106 = arith.constant 0 : index
    %c0_107 = arith.constant 0 : index
    %102 = vector.load %arg9[%c0_106, %c0_107] : memref<384x128xf32, #tpu.memory_space<vmem>>, vector<384x128xf32>
    %103 = arith.addf %102, %101 : vector<384x128xf32>
    %c0_108 = arith.constant 0 : index
    %c0_109 = arith.constant 0 : index
    %104 = vector.load %arg9[%c0_108, %c0_109] : memref<384x128xf32, #tpu.memory_space<vmem>>, vector<384x128xf32>
    tpu.vector_store %arg9[%c0_108, %c0_109], %103 {strides = array<i32>} : memref<384x128xf32, #tpu.memory_space<vmem>>, vector<384x128xf32>,
    %c2_110 = arith.constant 2 : index
    %c0_111 = arith.constant 0 : index
    %c0_112 = arith.constant 0 : index
    %105 = vector.load %arg7[%c2_110, %c0_111, %c0_112] : memref<18x24x128xbf16, #tpu.memory_space<vmem>>, vector<16x24x128xbf16>
    %106 = vector.shape_cast %105 : vector<16x24x128xbf16> to vector<384x128xbf16>
    %c6_113 = arith.constant 6 : index
    %c0_114 = arith.constant 0 : index
    %c0_115 = arith.constant 0 : index
    %107 = vector.load %arg4[%c6_113, %c0_114, %c0_115] : memref<9x128x128xbf16, #tpu.memory_space<vmem>>, vector<1x128x128xbf16>
    %108 = vector.shape_cast %107 : vector<1x128x128xbf16> to vector<128x128xbf16>
    %cst_116 = arith.constant dense<0.000000e+00> : vector<384x128xf32>
    %109 = tpu.matmul %106, %108, %cst_116 {dimension_numbers = #tpu.dot_dimension_numbers<[1], [0], [0], [1], [0, 0, 1, 1], [], []>} : vector<384x128xbf16>, vector<128x128xbf16>, vector<384x128xf32> -> vector<384x128xf32>
    %c1_i32_117 = arith.constant 1 : i32
    %110 = tpu.dynamic_rotate %109 by %c1_i32_117 dim 0 : vector<384x128xf32>, i32 -> vector<384x128xf32>
    %c7_118 = arith.constant 7 : index
    %c0_119 = arith.constant 0 : index
    %c0_120 = arith.constant 0 : index
    %111 = vector.load %arg4[%c7_118, %c0_119, %c0_120] : memref<9x128x128xbf16, #tpu.memory_space<vmem>>, vector<1x128x128xbf16>
    %112 = vector.shape_cast %111 : vector<1x128x128xbf16> to vector<128x128xbf16>
    %cst_121 = arith.constant dense<0.000000e+00> : vector<384x128xf32>
    %113 = tpu.matmul %106, %112, %cst_121 {dimension_numbers = #tpu.dot_dimension_numbers<[1], [0], [0], [1], [0, 0, 1, 1], [], []>} : vector<384x128xbf16>, vector<128x128xbf16>, vector<384x128xf32> -> vector<384x128xf32>
    %114 = arith.addf %110, %113 : vector<384x128xf32>
    %c8_122 = arith.constant 8 : index
    %c0_123 = arith.constant 0 : index
    %c0_124 = arith.constant 0 : index
    %115 = vector.load %arg4[%c8_122, %c0_123, %c0_124] : memref<9x128x128xbf16, #tpu.memory_space<vmem>>, vector<1x128x128xbf16>
    %116 = vector.shape_cast %115 : vector<1x128x128xbf16> to vector<128x128xbf16>
    %cst_125 = arith.constant dense<0.000000e+00> : vector<384x128xf32>
    %117 = tpu.matmul %106, %116, %cst_125 {dimension_numbers = #tpu.dot_dimension_numbers<[1], [0], [0], [1], [0, 0, 1, 1], [], []>} : vector<384x128xbf16>, vector<128x128xbf16>, vector<384x128xf32> -> vector<384x128xf32>
    %c383_i32_126 = arith.constant 383 : i32
    %118 = tpu.dynamic_rotate %117 by %c383_i32_126 dim 0 : vector<384x128xf32>, i32 -> vector<384x128xf32>
    %119 = arith.addf %114, %118 : vector<384x128xf32>
    %c0_127 = arith.constant 0 : index
    %c0_128 = arith.constant 0 : index
    %120 = vector.load %arg9[%c0_127, %c0_128] : memref<384x128xf32, #tpu.memory_space<vmem>>, vector<384x128xf32>
    %121 = arith.addf %120, %119 : vector<384x128xf32>
    %c0_129 = arith.constant 0 : index
    %c0_130 = arith.constant 0 : index
    %122 = vector.load %arg9[%c0_129, %c0_130] : memref<384x128xf32, #tpu.memory_space<vmem>>, vector<384x128xf32>
    tpu.vector_store %arg9[%c0_129, %c0_130], %121 {strides = array<i32>} : memref<384x128xf32, #tpu.memory_space<vmem>>, vector<384x128xf32>,
    %c0_131 = arith.constant 0 : index
    %c1_132 = arith.constant 1 : index
    %c0_133 = arith.constant 0 : index
    %c0_134 = arith.constant 0 : index
    %123 = vector.load %arg1[%c0_131, %c1_132, %c0_133, %c0_134] : memref<1x18x24x128xbf16, #tpu.memory_space<vmem>>, vector<1x16x24x128xbf16>
    %124 = vector.shape_cast %123 : vector<1x16x24x128xbf16> to vector<16x24x128xbf16>
    %125 = vector.shape_cast %124 : vector<16x24x128xbf16> to vector<384x128xbf16>
    %126 = arith.extf %125 : vector<384x128xbf16> to vector<384x128xf32>
    %c0_135 = arith.constant 0 : index
    %c0_136 = arith.constant 0 : index
    %127 = vector.load %arg9[%c0_135, %c0_136] : memref<384x128xf32, #tpu.memory_space<vmem>>, vector<384x128xf32>
    %c383_i32_137 = arith.constant 383 : i32
    %128 = tpu.dynamic_rotate %126 by %c383_i32_137 dim 0 : vector<384x128xf32>, i32 -> vector<384x128xf32>
    %129 = arith.addf %127, %128 : vector<384x128xf32>
    %c0_138 = arith.constant 0 : index
    %c0_139 = arith.constant 0 : index
    %130 = vector.load %arg9[%c0_138, %c0_139] : memref<384x128xf32, #tpu.memory_space<vmem>>, vector<384x128xf32>
    tpu.vector_store %arg9[%c0_138, %c0_139], %129 {strides = array<i32>} : memref<384x128xf32, #tpu.memory_space<vmem>>, vector<384x128xf32>,
    %c0_140 = arith.constant 0 : index
    %c0_141 = arith.constant 0 : index
    %131 = vector.load %arg9[%c0_140, %c0_141] : memref<384x128xf32, #tpu.memory_space<vmem>>, vector<384x128xf32>
    %132 = vector.shape_cast %131 : vector<384x128xf32> to vector<16x24x128xf32>
    %133 = vector.extract_strided_slice %132 {offsets = [0, 0, 0], sizes = [16, 16, 128], strides = [1, 1, 1]} : vector<16x24x128xf32> to vector<16x16x128xf32>
    %c0_142 = arith.constant 0 : index
    %c0_143 = arith.constant 0 : index
    %c0_144 = arith.constant 0 : index
    %134 = vector.load %arg5[%c0_142, %c0_143, %c0_144] : memref<1x1x128xf32, #tpu.memory_space<vmem>>, vector<1x1x128xf32>
    %135 = vector.broadcast %134 : vector<1x1x128xf32> to vector<16x16x128xf32>
    %136 = arith.addf %133, %135 : vector<16x16x128xf32>
    %cst_145 = arith.constant 0.000000e+00 : f32
    %137 = vector.broadcast %cst_145 : f32 to vector<16x16x128xf32>
    %138 = arith.maximumf %136, %137 : vector<16x16x128xf32>
    %c0_146 = arith.constant 0 : index
    %c0_147 = arith.constant 0 : index
    %c0_148 = arith.constant 0 : index
    %c0_149 = arith.constant 0 : index
    %139 = vector.load %arg6[%c0_146, %c0_147, %c0_148, %c0_149] : memref<1x16x16x128xf32, #tpu.memory_space<vmem>>, vector<1x16x16x128xf32>
    %140 = vector.shape_cast %139 : vector<1x16x16x128xf32> to vector<16x16x128xf32>
    %141 = vector.shape_cast %138 : vector<16x16x128xf32> to vector<1x16x16x128xf32>
    tpu.vector_store %arg6[%c0_146, %c0_147, %c0_148, %c0_149], %141 {strides = array<i32>} : memref<1x16x16x128xf32, #tpu.memory_space<vmem>>, vector<1x16x16x128xf32>,
    return
  }
  func.func @transform_0(%arg0: i32) -> (i32, i32, i32, i32) {
    %c0_i32 = arith.constant 0 : i32
    %c0_i32_0 = arith.constant 0 : i32
    %c0_i32_1 = arith.constant 0 : i32
    %c0_i32_2 = arith.constant 0 : i32
    return %arg0, %c0_i32, %c0_i32_0, %c0_i32_1 : i32, i32, i32, i32
  }
  func.func @transform_1(%arg0: i32) -> (i32, i32, i32) {
    %c0_i32 = arith.constant 0 : i32
    %c0_i32_0 = arith.constant 0 : i32
    %c0_i32_1 = arith.constant 0 : i32
    %c0_i32_2 = arith.constant 0 : i32
    return %c0_i32, %c0_i32_0, %c0_i32_1 : i32, i32, i32
  }
  func.func @transform_2(%arg0: i32) -> (i32, i32, i32) {
    %c0_i32 = arith.constant 0 : i32
    %c0_i32_0 = arith.constant 0 : i32
    %c0_i32_1 = arith.constant 0 : i32
    %c0_i32_2 = arith.constant 0 : i32
    return %c0_i32, %c0_i32_0, %c0_i32_1 : i32, i32, i32
  }
  func.func @transform_3(%arg0: i32) -> (i32, i32, i32) {
    %c0_i32 = arith.constant 0 : i32
    %c0_i32_0 = arith.constant 0 : i32
    %c0_i32_1 = arith.constant 0 : i32
    %c0_i32_2 = arith.constant 0 : i32
    return %c0_i32, %c0_i32_0, %c0_i32_1 : i32, i32, i32
  }
  func.func @transform_4(%arg0: i32) -> (i32, i32, i32) {
    %c0_i32 = arith.constant 0 : i32
    %c0_i32_0 = arith.constant 0 : i32
    %c0_i32_1 = arith.constant 0 : i32
    %c0_i32_2 = arith.constant 0 : i32
    return %c0_i32, %c0_i32_0, %c0_i32_1 : i32, i32, i32
  }
  func.func @transform_5(%arg0: i32) -> (i32, i32, i32, i32) {
    %c0_i32 = arith.constant 0 : i32
    %c0_i32_0 = arith.constant 0 : i32
    %c0_i32_1 = arith.constant 0 : i32
    %c0_i32_2 = arith.constant 0 : i32
    return %arg0, %c0_i32, %c0_i32_0, %c0_i32_1 : i32, i32, i32, i32
  }
}

</mosaic_0001>

<llo_original>
// kernel: tpu_custom_call.1
$region0: #{tpu_custom_call.1}
  #allocation0 [shape = 'u32[]', space=smem, size = 0x4, offset = 0x4, fixed_abs, tag = 'smem constant byte address 0x4 - core index']
  #allocation1 [shape = 'u32[144,128]{1,0:T(1,128)}', space=vmem, size = 0x12000, scoped, tag = 'internal scratch']
  #allocation2 [shape = 'bf16[18,24,128]{2,1,0:T(8,128)(2,1)}', space=vmem, size = 0x1b000, scoped, tag = 'scratch operand']
  #allocation3 [shape = 'f32[384,128]{1,0:T(8,128)}', space=vmem, size = 0x30000, scoped, tag = 'scratch operand']
  #allocation4 [shape = 'f32[384,128]{1,0:T(8,128)}', space=vmem, size = 0x30000, scoped, tag = 'scratch operand']
  %s0 = inlined_call_operand.hbm [shape: bf16[2,18,24,128], index: 0, kind: input, shape index: {}]
  %s1 = inlined_call_operand.hbm [shape: bf16[9,128,128], index: 1, kind: input, shape index: {}]
  %s2 = inlined_call_operand.vmem [shape: f32[1,1,128], index: 2, kind: input, shape index: {}]
  %s3 = inlined_call_operand.hbm [shape: bf16[9,128,128], index: 3, kind: input, shape index: {}]
  %s4 = inlined_call_operand.vmem [shape: f32[1,1,128], index: 4, kind: input, shape index: {}]
  %s5 = inlined_call_operand.hbm [shape: f32[2,16,16,128], index: 5, kind: output, shape index: {}]
  %s6 = sld [smem:[#allocation0]]
  $region65: #{tpu_custom_call.1} parent=0
    _
  %s8 = ssub.s32 1, %s6
  %s9 = scalar_select 0, %s8, %s6
  $region1: #{tpu_custom_call.1} parent=0
    #allocation5 [shape = 'u8[221184]{0}', space=vmem, size = 0x36000, scoped, tag = 'input window, operand 0']
    #allocation6 [shape = 's32[2]{0}', space=sflag, size = 0x8, scoped, tag = 'scoped memory for tpu_custom_call.1']
    #allocation7 [shape = 's32[2]{0}', space=sflag, size = 0x8, scoped, tag = 'scoped memory for tpu_custom_call.1']
    #allocation8 [shape = 'u8[294912]{0}', space=vmem, size = 0x48000, scoped, tag = 'input window, operand 1, single buffered']
    #allocation9 [shape = 's32[1]{0}', space=sflag, size = 0x4, scoped, tag = 'scoped memory for tpu_custom_call.1']
    #allocation10 [shape = 'u8[294912]{0}', space=vmem, size = 0x48000, scoped, tag = 'input window, operand 3, single buffered']
    #allocation11 [shape = 'u8[262144]{0}', space=vmem, size = 0x40000, scoped, tag = 'output window, operand 0']
    %10 = vsyncpa [#allocation6], 0
    %s11 = scalar_lea.sflag [#allocation6], 1
    %12 = vsyncpa %s11, 0
    %13 = vsyncpa [#allocation9], 0
    %14 = vsyncpa [#allocation7], 0
    %s15 = scalar_lea.sflag [#allocation7], 1
    %16 = vsyncpa %s15, 0
    loop: start=0, step=1, limit=4
    $region2: #{tpu_custom_call.1} parent=1 // loop_pre_header
      _
    $region3: #{tpu_custom_call.1} parent=1 // loop_header
      %s18 = sphi 0, %s22
      %p19 = scmp.ge.s32.totalorder %s18, 4
      %s28 = sphi 0, %s30
      %s31 = sphi 0, %s28
      %s32 = sphi 0, %s31
      %s48 = sphi 0, %s32
      %s52 = sphi 0, %s52
      %s54 = sphi 0, %s52
      %s55 = sphi 0, %s54
      %s69 = sphi 0, %s55
      %s73 = sphi 0, %s73
      %s75 = sphi 0, %s73
      %s76 = sphi 0, %s75
      %s90 = sphi 0, %s76
      %s94 = sphi 0, %s94
      %s96 = sphi 0, %s94
      %s97 = sphi 0, %s96
      %s111 = sphi 0, %s97
      %s115 = sphi 0, %s115
      %s117 = sphi 0, %s115
      %s118 = sphi 0, %s117
      %s132 = sphi 0, %s118
      %s138 = sphi 0, %s140
      %s141 = sphi 0, %s138
      %s142 = sphi 0, %s141
      %s158 = sphi 0, %s142
    $region4: #{tpu_custom_call.1} parent=1 // loop_header_branch
      %21 = sbr.rel (%p19) target = $region8
    $region5: #{tpu_custom_call.1} parent=1 // loop_body
      %s23 = ssub.s32 %s18, 1
      %s24 = ssub.s32 %s18, 2
      %s25 = sadd.s32 %s18, 1
      %s26 = ssub.s32 %s18, %s25
      %p27 = scmp.eq.s32.totalorder %s26, 0
      %s29 = sadd.s32 %s28, 1
      %s30 = scalar_select %p27, %s28, %s29
      %p33 = pneg %p27
      %p34 = scmp.eq.s32.totalorder %s18, 1
      %p35 = por %p33, %p34
      %p36 = scmp.ne.s32.totalorder %s28, %s31
      %p37 = scmp.eq.s32.totalorder %s18, 0
      %p38 = por %p36, %p37
      %p39 = scmp.ne.s32.totalorder %s28, %s31
      %p40 = scmp.eq.s32.totalorder %s23, 1
      %p41 = por %p39, %p40
      %p42 = scmp.ne.s32.totalorder %s31, %s32
      %p43 = scmp.eq.s32.totalorder %s23, 0
      %p44 = por %p42, %p43
      %p45 = scmp.ne.s32.totalorder %s31, %s32
      %p46 = scmp.eq.s32.totalorder %s24, 1
      %p47 = por %p45, %p46
      %p49 = scmp.ne.s32.totalorder %s32, %s48
      %p50 = scmp.eq.s32.totalorder %s24, 0
      %p51 = por %p49, %p50
      %s53 = sadd.s32 %s52, 1
      %p56 = scmp.eq.s32.totalorder %s18, 1
      %p57 = scmp.ne.s32.totalorder %s52, %s54
      %p58 = scmp.eq.s32.totalorder %s18, 0
      %p59 = por %p57, %p58
      %p60 = scmp.ne.s32.totalorder %s52, %s54
      %p61 = scmp.eq.s32.totalorder %s23, 1
      %p62 = por %p60, %p61
      %p63 = scmp.ne.s32.totalorder %s54, %s55
      %p64 = scmp.eq.s32.totalorder %s23, 0
      %p65 = por %p63, %p64
      %p66 = scmp.ne.s32.totalorder %s54, %s55
      %p67 = scmp.eq.s32.totalorder %s24, 1
      %p68 = por %p66, %p67
      %p70 = scmp.ne.s32.totalorder %s55, %s69
      %p71 = scmp.eq.s32.totalorder %s24, 0
      %p72 = por %p70, %p71
      %s74 = sadd.s32 %s73, 1
      %p77 = scmp.eq.s32.totalorder %s18, 1
      %p78 = scmp.ne.s32.totalorder %s73, %s75
      %p79 = scmp.eq.s32.totalorder %s18, 0
      %p80 = por %p78, %p79
      %p81 = scmp.ne.s32.totalorder %s73, %s75
      %p82 = scmp.eq.s32.totalorder %s23, 1
      %p83 = por %p81, %p82
      %p84 = scmp.ne.s32.totalorder %s75, %s76
      %p85 = scmp.eq.s32.totalorder %s23, 0
      %p86 = por %p84, %p85
      %p87 = scmp.ne.s32.totalorder %s75, %s76
      %p88 = scmp.eq.s32.totalorder %s24, 1
      %p89 = por %p87, %p88
      %p91 = scmp.ne.s32.totalorder %s76, %s90
      %p92 = scmp.eq.s32.totalorder %s24, 0
      %p93 = por %p91, %p92
      %s95 = sadd.s32 %s94, 1
      %p98 = scmp.eq.s32.totalorder %s18, 1
      %p99 = scmp.ne.s32.totalorder %s94, %s96
      %p100 = scmp.eq.s32.totalorder %s18, 0
      %p101 = por %p99, %p100
      %p102 = scmp.ne.s32.totalorder %s94, %s96
      %p103 = scmp.eq.s32.totalorder %s23, 1
      %p104 = por %p102, %p103
      %p105 = scmp.ne.s32.totalorder %s96, %s97
      %p106 = scmp.eq.s32.totalorder %s23, 0
      %p107 = por %p105, %p106
      %p108 = scmp.ne.s32.totalorder %s96, %s97
      %p109 = scmp.eq.s32.totalorder %s24, 1
      %p110 = por %p108, %p109
      %p112 = scmp.ne.s32.totalorder %s97, %s111
      %p113 = scmp.eq.s32.totalorder %s24, 0
      %p114 = por %p112, %p113
      %s116 = sadd.s32 %s115, 1
      %p119 = scmp.eq.s32.totalorder %s18, 1
      %p120 = scmp.ne.s32.totalorder %s115, %s117
      %p121 = scmp.eq.s32.totalorder %s18, 0
      %p122 = por %p120, %p121
      %p123 = scmp.ne.s32.totalorder %s115, %s117
      %p124 = scmp.eq.s32.totalorder %s23, 1
      %p125 = por %p123, %p124
      %p126 = scmp.ne.s32.totalorder %s117, %s118
      %p127 = scmp.eq.s32.totalorder %s23, 0
      %p128 = por %p126, %p127
      %p129 = scmp.ne.s32.totalorder %s117, %s118
      %p130 = scmp.eq.s32.totalorder %s24, 1
      %p131 = por %p129, %p130
      %p133 = scmp.ne.s32.totalorder %s118, %s132
      %p134 = scmp.eq.s32.totalorder %s24, 0
      %p135 = por %p133, %p134
      %s136 = ssub.s32 %s18, %s25
      %p137 = scmp.eq.s32.totalorder %s136, 0
      %s139 = sadd.s32 %s138, 1
      %s140 = scalar_select %p137, %s138, %s139
      %p143 = pneg %p137
      %p144 = scmp.eq.s32.totalorder %s18, 1
      %p145 = por %p143, %p144
      %p146 = scmp.ne.s32.totalorder %s138, %s141
      %p147 = scmp.eq.s32.totalorder %s18, 0
      %p148 = por %p146, %p147
      %p149 = scmp.ne.s32.totalorder %s138, %s141
      %p150 = scmp.eq.s32.totalorder %s23, 1
      %p151 = por %p149, %p150
      %p152 = scmp.ne.s32.totalorder %s141, %s142
      %p153 = scmp.eq.s32.totalorder %s23, 0
      %p154 = por %p152, %p153
      %p155 = scmp.ne.s32.totalorder %s141, %s142
      %p156 = scmp.eq.s32.totalorder %s24, 1
      %p157 = por %p155, %p156
      %p159 = scmp.ne.s32.totalorder %s142, %s158
      %p160 = scmp.eq.s32.totalorder %s24, 0
      %p161 = por %p159, %p160
      %p162 = scmp.le.s32.totalorder 1, %s18
      %p163 = scmp.lt.s32.totalorder %s18, 3
      %p164 = pnand %p162, %p163
      %p165 = pneg %p164
      // Predicated region
      $region9: #{tpu_custom_call.1} parent=5 // pred_check
        _
      $region10: #{tpu_custom_call.1} parent=5 // pred_check_branch
        %167 = sbr.rel (%p164) target = $region12
      $region11: #{tpu_custom_call.1} parent=5 // pred_region
        %s168 = ssub.s32 %s18, 1
        // Predicated region
        $region13: #{tpu_custom_call.1} parent=11 // pred_check
          %p169 = pneg %p65
        $region14: #{tpu_custom_call.1} parent=11 // pred_check_branch
          %171 = sbr.rel (%p169) target = $region16
        $region15: #{tpu_custom_call.1} parent=11 // pred_region
          %s173 = ssub.s32 9216, 9216
          %174 = vsyncadd [#allocation9], %s173
          %s175 = sshll.u32 [#allocation8], 4
          %s176 = int_to_ptr.vmem [resolvable:$true] %s175
          %181 = dma.hbm_to_vmem [thread:$0]  %s1, 9216, %s176, [#allocation9], 64, 64, 4
        $region16: #{tpu_custom_call.1} parent=11 // pred_fallthru
          _
        // Predicated region
        $region17: #{tpu_custom_call.1} parent=11 // pred_check
          %p182 = pneg %p86
        $region18: #{tpu_custom_call.1} parent=11 // pred_check_branch
          %184 = sbr.rel (%p182) target = $region20
        $region19: #{tpu_custom_call.1} parent=11 // pred_region
          _
        $region20: #{tpu_custom_call.1} parent=11 // pred_fallthru
          _
        // Predicated region
        $region21: #{tpu_custom_call.1} parent=11 // pred_check
          %p185 = pneg %p107
        $region22: #{tpu_custom_call.1} parent=11 // pred_check_branch
          %187 = sbr.rel (%p185) target = $region24
        $region23: #{tpu_custom_call.1} parent=11 // pred_region
          %s189 = ssub.s32 9216, 9216
          %190 = vsyncadd [#allocation9], %s189
          %s191 = sshll.u32 [#allocation10], 4
          %s192 = int_to_ptr.vmem [resolvable:$true] %s191
          %197 = dma.hbm_to_vmem [thread:$0]  %s3, 9216, %s192, [#allocation9], 64, 64, 4
        $region24: #{tpu_custom_call.1} parent=11 // pred_fallthru
          _
        // Predicated region
        $region25: #{tpu_custom_call.1} parent=11 // pred_check
          %p198 = pneg %p128
        $region26: #{tpu_custom_call.1} parent=11 // pred_check_branch
          %200 = sbr.rel (%p198) target = $region28
        $region27: #{tpu_custom_call.1} parent=11 // pred_region
          _
        $region28: #{tpu_custom_call.1} parent=11 // pred_fallthru
          _
      $region12: #{tpu_custom_call.1} parent=5 // pred_fallthru
        _
      %p201 = scmp.lt.s32.totalorder %s18, 2
      // Predicated region
      $region29: #{tpu_custom_call.1} parent=5 // pred_check
        %p202 = pneg %p201
      $region30: #{tpu_custom_call.1} parent=5 // pred_check_branch
        %204 = sbr.rel (%p202) target = $region32
      $region31: #{tpu_custom_call.1} parent=5 // pred_region
        // Predicated region
        $region33: #{tpu_custom_call.1} parent=31 // pred_check
          %p205 = pneg %p38
        $region34: #{tpu_custom_call.1} parent=31 // pred_check_branch
          %207 = sbr.rel (%p205) target = $region36
        $region35: #{tpu_custom_call.1} parent=31 // pred_region
          %s208 = sand.u32 %s28, 1
          %s209 = scalar_lea.sflag [#allocation6], %s208
          %s210 = sand.u32 %s28, 1
          %s211 = smul.addr %s210, 216
          %s212 = scalar_lea.vmem [#allocation5], %s211
          %s214 = ssub.s32 3456, 3456
          %215 = vsyncadd %s209, %s214
          %s216 = smul.addr %s18, 54
          %s217 = smul.addr %s216, 64
          %s218 = scalar_lea.hbm %s0, %s217
          %s219 = sshll.u32 %s212, 4
          %s220 = int_to_ptr.vmem [resolvable:$true] %s219
          %225 = dma.hbm_to_vmem [thread:$0]  %s218, 3456, %s220, %s209, 64, 64, 4
        $region36: #{tpu_custom_call.1} parent=31 // pred_fallthru
          _
      $region32: #{tpu_custom_call.1} parent=5 // pred_fallthru
        _
      %p226 = scmp.le.s32.totalorder 1, %s18
      %p227 = scmp.lt.s32.totalorder %s18, 3
      %p228 = pnand %p226, %p227
      %p229 = pneg %p228
      // Predicated region
      $region37: #{tpu_custom_call.1} parent=5 // pred_check
        _
      $region38: #{tpu_custom_call.1} parent=5 // pred_check_branch
        %231 = sbr.rel (%p228) target = $region40
      $region39: #{tpu_custom_call.1} parent=5 // pred_region
        %s232 = ssub.s32 %s18, 1
        %s233 = sand.u32 %s31, 1
        %s234 = scalar_lea.sflag [#allocation6], %s233
        %s235 = sand.u32 %s31, 1
        %s236 = smul.addr %s235, 216
        %s237 = scalar_lea.vmem [#allocation5], %s236
        // Predicated region
        $region41: #{tpu_custom_call.1} parent=39 // pred_check
          %p238 = pneg %p44
        $region42: #{tpu_custom_call.1} parent=39 // pred_check_branch
          %240 = sbr.rel (%p238) target = $region44
        $region43: #{tpu_custom_call.1} parent=39 // pred_region
          %241 = dma.done %s234, 3456
        $region44: #{tpu_custom_call.1} parent=39 // pred_fallthru
          _
        // Predicated region
        $region45: #{tpu_custom_call.1} parent=39 // pred_check
          %p242 = pneg %p65
        $region46: #{tpu_custom_call.1} parent=39 // pred_check_branch
          %244 = sbr.rel (%p242) target = $region48
        $region47: #{tpu_custom_call.1} parent=39 // pred_region
          %245 = dma.done [#allocation9], 9216
        $region48: #{tpu_custom_call.1} parent=39 // pred_fallthru
          _
        // Predicated region
        $region49: #{tpu_custom_call.1} parent=39 // pred_check
          %p246 = pneg %p107
        $region50: #{tpu_custom_call.1} parent=39 // pred_check_branch
          %248 = sbr.rel (%p246) target = $region52
        $region51: #{tpu_custom_call.1} parent=39 // pred_region
          %249 = dma.done [#allocation9], 9216
        $region52: #{tpu_custom_call.1} parent=39 // pred_fallthru
          _
        %s250 = sand.u32 %s31, 1
        %s251 = scalar_lea.sflag [#allocation6], %s250
        %s252 = sand.u32 %s31, 1
        %s253 = smul.addr %s252, 216
        %s254 = scalar_lea.vmem [#allocation5], %s253
        %p255 = pneg %p44
        %p256 = pneg %p41
        %p257 = pneg %p65
        %p258 = pneg %p62
        %p259 = pneg %p86
        %p260 = pneg %p83
        %p261 = pneg %p107
        %p262 = pneg %p104
        %p263 = pneg %p128
        %p264 = pneg %p125
        %p265 = pneg %p154
        %p266 = pneg %p151
        %s267 = sand.u32 %s141, 1
        %s268 = scalar_lea.sflag [#allocation7], %s267
        %s269 = sand.u32 %s141, 1
        %s270 = smul.addr %s269, 256
        %s271 = scalar_lea.vmem [#allocation11], %s270
        %v273 = vld [vmem:[%s237] sm:$0xf]
        %v274 = vld [vmem:[%s237 + $0x4] sm:$0xf]
        %v275 = vld [vmem:[%s237 + $0x8] sm:$0xf]
        %v276 = vld [vmem:[%s237 + $0xc] sm:$0xf]
        %v277 = vld [vmem:[%s237 + $0x10] sm:$0xf]
        %v278 = vld [vmem:[%s237 + $0x14] sm:$0xf]
        %v279 = vld [vmem:[%s237 + $0x18] sm:$0xf]
        %v280 = vld [vmem:[%s237 + $0x1c] sm:$0xf]
        %v281 = vld [vmem:[%s237 + $0x20] sm:$0xf]
        %v282 = vld [vmem:[%s237 + $0x24] sm:$0xf]
        %v283 = vld [vmem:[%s237 + $0x28] sm:$0xf]
        %v284 = vld [vmem:[%s237 + $0x2c] sm:$0xf]
        %v285 = vld [vmem:[%s237 + $0x30] sm:$0xf]
        %v286 = vld [vmem:[%s237 + $0x34] sm:$0xf]
        %v287 = vld [vmem:[%s237 + $0x38] sm:$0xf]
        %v288 = vld [vmem:[%s237 + $0x3c] sm:$0xf]
        %v289 = vld [vmem:[%s237 + $0x40] sm:$0xf]
        %v290 = vld [vmem:[%s237 + $0x44] sm:$0xf]
        %v291 = vld [vmem:[%s237 + $0x48] sm:$0xf]
        %v292 = vld [vmem:[%s237 + $0x4c] sm:$0xf]
        %v293 = vld [vmem:[%s237 + $0x50] sm:$0xf]
        %v294 = vld [vmem:[%s237 + $0x54] sm:$0xf]
        %v295 = vld [vmem:[%s237 + $0x58] sm:$0xf]
        %v296 = vld [vmem:[%s237 + $0x5c] sm:$0xf]
        %v297 = vld [vmem:[%s237 + $0x60] sm:$0xf]
        %v298 = vld [vmem:[%s237 + $0x64] sm:$0xf]
        %v299 = vld [vmem:[%s237 + $0x68] sm:$0xf]
        %v300 = vld [vmem:[%s237 + $0x6c] sm:$0xf]
        %v301 = vld [vmem:[%s237 + $0x70] sm:$0xf]
        %v302 = vld [vmem:[%s237 + $0x74] sm:$0xf]
        %v303 = vld [vmem:[%s237 + $0x78] sm:$0xf]
        %v304 = vld [vmem:[%s237 + $0x7c] sm:$0xf]
        %v305 = vld [vmem:[%s237 + $0x80] sm:$0xf]
        %v306 = vld [vmem:[%s237 + $0x84] sm:$0xf]
        %v307 = vld [vmem:[%s237 + $0x88] sm:$0xf]
        %v308 = vld [vmem:[%s237 + $0x8c] sm:$0xf]
        %v309 = vld [vmem:[%s237 + $0x90] sm:$0xf]
        %v310 = vld [vmem:[%s237 + $0x94] sm:$0xf]
        %v311 = vld [vmem:[%s237 + $0x98] sm:$0xf]
        %v312 = vld [vmem:[%s237 + $0x9c] sm:$0xf]
        %v313 = vld [vmem:[%s237 + $0xa0] sm:$0xf]
        %v314 = vld [vmem:[%s237 + $0xa4] sm:$0xf]
        %v315 = vld [vmem:[%s237 + $0xa8] sm:$0xf]
        %v316 = vld [vmem:[%s237 + $0xac] sm:$0xf]
        %v317 = vld [vmem:[%s237 + $0xb0] sm:$0xf]
        %v318 = vld [vmem:[%s237 + $0xb4] sm:$0xf]
        %v319 = vld [vmem:[%s237 + $0xb8] sm:$0xf]
        %v320 = vld [vmem:[%s237 + $0xbc] sm:$0xf]
        %v321 = vld [vmem:[#allocation8] sm:$0xf]
        %v322 = vld [vmem:[#allocation8 + $0x4] sm:$0xf]
        %v323 = vld [vmem:[#allocation8 + $0x8] sm:$0xf]
        %v324 = vld [vmem:[#allocation8 + $0xc] sm:$0xf]
        %v325 = vld [vmem:[#allocation8 + $0x10] sm:$0xf]
        %v326 = vld [vmem:[#allocation8 + $0x14] sm:$0xf]
        %v327 = vld [vmem:[#allocation8 + $0x18] sm:$0xf]
        %v328 = vld [vmem:[#allocation8 + $0x1c] sm:$0xf]
        %v329 = vld [vmem:[#allocation8 + $0x20] sm:$0xf]
        %v330 = vld [vmem:[#allocation8 + $0x24] sm:$0xf]
        %v331 = vld [vmem:[#allocation8 + $0x28] sm:$0xf]
        %v332 = vld [vmem:[#allocation8 + $0x2c] sm:$0xf]
        %v333 = vld [vmem:[#allocation8 + $0x30] sm:$0xf]
        %v334 = vld [vmem:[#allocation8 + $0x34] sm:$0xf]
        %v335 = vld [vmem:[#allocation8 + $0x38] sm:$0xf]
        %v336 = vld [vmem:[#allocation8 + $0x3c] sm:$0xf]
        %s337 = scalar_lea.vmem [#allocation8], 64
        %v338 = vld [vmem:[%s337] sm:$0xf]
        %v339 = vld [vmem:[%s337 + $0x4] sm:$0xf]
        %v340 = vld [vmem:[%s337 + $0x8] sm:$0xf]
        %v341 = vld [vmem:[%s337 + $0xc] sm:$0xf]
        %v342 = vld [vmem:[%s337 + $0x10] sm:$0xf]
        %v343 = vld [vmem:[%s337 + $0x14] sm:$0xf]
        %v344 = vld [vmem:[%s337 + $0x18] sm:$0xf]
        %v345 = vld [vmem:[%s337 + $0x1c] sm:$0xf]
        %v346 = vld [vmem:[%s337 + $0x20] sm:$0xf]
        %v347 = vld [vmem:[%s337 + $0x24] sm:$0xf]
        %v348 = vld [vmem:[%s337 + $0x28] sm:$0xf]
        %v349 = vld [vmem:[%s337 + $0x2c] sm:$0xf]
        %v350 = vld [vmem:[%s337 + $0x30] sm:$0xf]
        %v351 = vld [vmem:[%s337 + $0x34] sm:$0xf]
        %v352 = vld [vmem:[%s337 + $0x38] sm:$0xf]
        %v353 = vld [vmem:[%s337 + $0x3c] sm:$0xf]
        %v402 = vunpack.c.l.b16 %v273
        %v403 = vunpack.c.l.b16 %v274
        %v404 = vunpack.c.l.b16 %v275
        %v405 = vunpack.c.l.b16 %v276
        %v406 = vunpack.c.l.b16 %v277
        %v407 = vunpack.c.l.b16 %v278
        %v408 = vunpack.c.l.b16 %v279
        %v409 = vunpack.c.l.b16 %v280
        %v410 = vunpack.c.l.b16 %v281
        %v411 = vunpack.c.l.b16 %v282
        %v412 = vunpack.c.l.b16 %v283
        %v413 = vunpack.c.l.b16 %v284
        %v414 = vunpack.c.l.b16 %v285
        %v415 = vunpack.c.l.b16 %v286
        %v416 = vunpack.c.l.b16 %v287
        %v417 = vunpack.c.l.b16 %v288
        %v418 = vunpack.c.l.b16 %v289
        %v419 = vunpack.c.l.b16 %v290
        %v420 = vunpack.c.l.b16 %v291
        %v421 = vunpack.c.l.b16 %v292
        %v422 = vunpack.c.l.b16 %v293
        %v423 = vunpack.c.l.b16 %v294
        %v424 = vunpack.c.l.b16 %v295
        %v425 = vunpack.c.l.b16 %v296
        %v426 = vunpack.c.l.b16 %v297
        %v427 = vunpack.c.l.b16 %v298
        %v428 = vunpack.c.l.b16 %v299
        %v429 = vunpack.c.l.b16 %v300
        %v430 = vunpack.c.l.b16 %v301
        %v431 = vunpack.c.l.b16 %v302
        %v432 = vunpack.c.l.b16 %v303
        %v433 = vunpack.c.l.b16 %v304
        %v434 = vunpack.c.l.b16 %v305
        %v435 = vunpack.c.l.b16 %v306
        %v436 = vunpack.c.l.b16 %v307
        %v437 = vunpack.c.l.b16 %v308
        %v438 = vunpack.c.l.b16 %v309
        %v439 = vunpack.c.l.b16 %v310
        %v440 = vunpack.c.l.b16 %v311
        %v441 = vunpack.c.l.b16 %v312
        %v442 = vunpack.c.l.b16 %v313
        %v443 = vunpack.c.l.b16 %v314
        %v444 = vunpack.c.l.b16 %v315
        %v445 = vunpack.c.l.b16 %v316
        %v446 = vunpack.c.l.b16 %v317
        %v447 = vunpack.c.l.b16 %v318
        %v448 = vunpack.c.l.b16 %v319
        %v449 = vunpack.c.l.b16 %v320
        %v450 = vpack.c.b16 %v403, %v402
        %v451 = vpack.c.b16 %v405, %v404
        %v452 = vpack.c.b16 %v407, %v406
        %v453 = vpack.c.b16 %v409, %v408
        %v454 = vpack.c.b16 %v411, %v410
        %v455 = vpack.c.b16 %v413, %v412
        %v456 = vpack.c.b16 %v415, %v414
        %v457 = vpack.c.b16 %v417, %v416
        %v458 = vpack.c.b16 %v419, %v418
        %v459 = vpack.c.b16 %v421, %v420
        %v460 = vpack.c.b16 %v423, %v422
        %v461 = vpack.c.b16 %v425, %v424
        %v462 = vpack.c.b16 %v427, %v426
        %v463 = vpack.c.b16 %v429, %v428
        %v464 = vpack.c.b16 %v431, %v430
        %v465 = vpack.c.b16 %v433, %v432
        %v466 = vpack.c.b16 %v435, %v434
        %v467 = vpack.c.b16 %v437, %v436
        %v468 = vpack.c.b16 %v439, %v438
        %v469 = vpack.c.b16 %v441, %v440
        %v470 = vpack.c.b16 %v443, %v442
        %v471 = vpack.c.b16 %v445, %v444
        %v472 = vpack.c.b16 %v447, %v446
        %v473 = vpack.c.b16 %v449, %v448
        %v514 = vunpack.c.l.b16 %v338
        %v515 = vunpack.c.l.b16 %v339
        %v516 = vunpack.c.l.b16 %v340
        %v517 = vunpack.c.l.b16 %v341
        %v518 = vunpack.c.l.b16 %v342
        %v519 = vunpack.c.l.b16 %v343
        %v520 = vunpack.c.l.b16 %v344
        %v521 = vunpack.c.l.b16 %v345
        %v522 = vunpack.c.l.b16 %v346
        %v523 = vunpack.c.l.b16 %v347
        %v524 = vunpack.c.l.b16 %v348
        %v525 = vunpack.c.l.b16 %v349
        %v526 = vunpack.c.l.b16 %v350
        %v527 = vunpack.c.l.b16 %v351
        %v528 = vunpack.c.l.b16 %v352
        %v529 = vunpack.c.l.b16 %v353
        %v530 = vpack.c.b16 %v515, %v514
        %v531 = vpack.c.b16 %v517, %v516
        %v532 = vpack.c.b16 %v519, %v518
        %v533 = vpack.c.b16 %v521, %v520
        %v534 = vpack.c.b16 %v523, %v522
        %v535 = vpack.c.b16 %v525, %v524
        %v536 = vpack.c.b16 %v527, %v526
        %v537 = vpack.c.b16 %v529, %v528
        %546 = vmatprep.subr.bf16.mxu0 0
        %547 = vmatpush1.bf16.msra.mxu0 %v530
        %548 = vmatprep.subr.bf16.mxu0 0
        %549 = vmatpush1.bf16.msra.mxu0 %v531
        %550 = vmatprep.subr.bf16.mxu0 0
        %551 = vmatpush1.bf16.msra.mxu0 %v532
        %552 = vmatprep.subr.bf16.mxu0 0
        %553 = vmatpush1.bf16.msra.mxu0 %v533
        %554 = vmatprep.subr.bf16.mxu0 0
        %555 = vmatpush1.bf16.msra.mxu0 %v534
        %556 = vmatprep.subr.bf16.mxu0 0
        %557 = vmatpush1.bf16.msra.mxu0 %v535
        %558 = vmatprep.subr.bf16.mxu0 0
        %559 = vmatpush1.bf16.msra.mxu0 %v536
        %560 = vmatprep.subr.bf16.mxu0 0
        %561 = vmatpush1.bf16.msra.mxu0 %v537
        %562 = vmatprep.subr.bf16.mxu0 0
        %563 = vmatpush1.bf16.msra.mxu0 0
        %564 = vmatprep.subr.bf16.mxu0 0
        %565 = vmatpush1.bf16.msra.mxu0 0
        %566 = vmatprep.subr.bf16.mxu0 0
        %567 = vmatpush1.bf16.msra.mxu0 0
        %568 = vmatprep.subr.bf16.mxu0 0
        %569 = vmatpush1.bf16.msra.mxu0 0
        %570 = vmatprep.subr.bf16.mxu0 0
        %571 = vmatpush1.bf16.msra.mxu0 0
        %572 = vmatprep.subr.bf16.mxu0 0
        %573 = vmatpush1.bf16.msra.mxu0 0
        %574 = vmatprep.subr.bf16.mxu0 0
        %575 = vmatpush1.bf16.msra.mxu0 0
        %576 = vmatprep.subr.bf16.mxu0 0
        %577 = vmatpush1.bf16.msra.mxu0 0
        %578 = vmatprep.mubr.bf16.mxu0 0
        %579 = vmatmul.mubr.bf16.gmra.mrb[0].mxu0 %v450
        %v580 = vpop.f32.mrb[0].mxu0
        %v581 = vadd.f32 0.0, %v580
        %v582 = vpop.f32.mrb[0].mxu0
        %v583 = vpop.f32.mrb[0].mxu0
        %v584 = vadd.f32 0.0, %v583
        %v585 = vpop.f32.mrb[0].mxu0
        %586 = vmatprep.mubr.bf16.mxu0 0
        %587 = vmatmul.mubr.bf16.gmra.mrb[0].mxu0 %v451
        %v588 = vpop.f32.mrb[0].mxu0
        %v589 = vadd.f32 0.0, %v588
        %v590 = vpop.f32.mrb[0].mxu0
        %v591 = vpop.f32.mrb[0].mxu0
        %v592 = vadd.f32 0.0, %v591
        %v593 = vpop.f32.mrb[0].mxu0
        %594 = vmatprep.mubr.bf16.mxu0 0
        %595 = vmatmul.mubr.bf16.gmra.mrb[0].mxu0 %v452
        %v596 = vpop.f32.mrb[0].mxu0
        %v597 = vadd.f32 0.0, %v596
        %v598 = vpop.f32.mrb[0].mxu0
        %v599 = vpop.f32.mrb[0].mxu0
        %v600 = vadd.f32 0.0, %v599
        %v601 = vpop.f32.mrb[0].mxu0
        %602 = vmatprep.mubr.bf16.mxu0 0
        %603 = vmatmul.mubr.bf16.gmra.mrb[0].mxu0 %v453
        %v604 = vpop.f32.mrb[0].mxu0
        %v605 = vadd.f32 0.0, %v604
        %v606 = vpop.f32.mrb[0].mxu0
        %v607 = vpop.f32.mrb[0].mxu0
        %v608 = vadd.f32 0.0, %v607
        %v609 = vpop.f32.mrb[0].mxu0
        %610 = vmatprep.mubr.bf16.mxu0 0
        %611 = vmatmul.mubr.bf16.gmra.mrb[0].mxu0 %v454
        %v612 = vpop.f32.mrb[0].mxu0
        %v613 = vadd.f32 0.0, %v612
        %v614 = vpop.f32.mrb[0].mxu0
        %v615 = vpop.f32.mrb[0].mxu0
        %v616 = vadd.f32 0.0, %v615
        %v617 = vpop.f32.mrb[0].mxu0
        %618 = vmatprep.mubr.bf16.mxu0 0
        %619 = vmatmul.mubr.bf16.gmra.mrb[0].mxu0 %v455
        %v620 = vpop.f32.mrb[0].mxu0
        %v621 = vadd.f32 0.0, %v620
        %v622 = vpop.f32.mrb[0].mxu0
        %v623 = vpop.f32.mrb[0].mxu0
        %v624 = vadd.f32 0.0, %v623
        %v625 = vpop.f32.mrb[0].mxu0
        %626 = vmatprep.mubr.bf16.mxu0 0
        %627 = vmatmul.mubr.bf16.gmra.mrb[0].mxu0 %v456
        %v628 = vpop.f32.mrb[0].mxu0
        %v629 = vadd.f32 0.0, %v628
        %v630 = vpop.f32.mrb[0].mxu0
        %v631 = vpop.f32.mrb[0].mxu0
        %v632 = vadd.f32 0.0, %v631
        %v633 = vpop.f32.mrb[0].mxu0
        %634 = vmatprep.mubr.bf16.mxu0 0
        %635 = vmatmul.mubr.bf16.gmra.mrb[0].mxu0 %v457
        %v636 = vpop.f32.mrb[0].mxu0
        %v637 = vadd.f32 0.0, %v636
        %v638 = vpop.f32.mrb[0].mxu0
        %v639 = vpop.f32.mrb[0].mxu0
        %v640 = vadd.f32 0.0, %v639
        %v641 = vpop.f32.mrb[0].mxu0
        %642 = vmatprep.mubr.bf16.mxu0 0
        %643 = vmatmul.mubr.bf16.gmra.mrb[0].mxu0 %v458
        %v644 = vpop.f32.mrb[0].mxu0
        %v645 = vadd.f32 0.0, %v644
        %v646 = vpop.f32.mrb[0].mxu0
        %v647 = vpop.f32.mrb[0].mxu0
        %v648 = vadd.f32 0.0, %v647
        %v649 = vpop.f32.mrb[0].mxu0
        %650 = vmatprep.mubr.bf16.mxu0 0
        %651 = vmatmul.mubr.bf16.gmra.mrb[0].mxu0 %v459
        %v652 = vpop.f32.mrb[0].mxu0
        %v653 = vadd.f32 0.0, %v652
        %v654 = vpop.f32.mrb[0].mxu0
        %v655 = vpop.f32.mrb[0].mxu0
        %v656 = vadd.f32 0.0, %v655
        %v657 = vpop.f32.mrb[0].mxu0
        %658 = vmatprep.mubr.bf16.mxu0 0
        %659 = vmatmul.mubr.bf16.gmra.mrb[0].mxu0 %v460
        %v660 = vpop.f32.mrb[0].mxu0
        %v661 = vadd.f32 0.0, %v660
        %v662 = vpop.f32.mrb[0].mxu0
        %v663 = vpop.f32.mrb[0].mxu0
        %v664 = vadd.f32 0.0, %v663
        %v665 = vpop.f32.mrb[0].mxu0
        %666 = vmatprep.mubr.bf16.mxu0 0
        %667 = vmatmul.mubr.bf16.gmra.mrb[0].mxu0 %v461
        %v668 = vpop.f32.mrb[0].mxu0
        %v669 = vadd.f32 0.0, %v668
        %v670 = vpop.f32.mrb[0].mxu0
        %v671 = vpop.f32.mrb[0].mxu0
        %v672 = vadd.f32 0.0, %v671
        %v673 = vpop.f32.mrb[0].mxu0
        %674 = vmatprep.mubr.bf16.mxu0 0
        %675 = vmatmul.mubr.bf16.gmra.mrb[0].mxu0 %v462
        %v676 = vpop.f32.mrb[0].mxu0
        %v677 = vadd.f32 0.0, %v676
        %v678 = vpop.f32.mrb[0].mxu0
        %v679 = vpop.f32.mrb[0].mxu0
        %v680 = vadd.f32 0.0, %v679
        %v681 = vpop.f32.mrb[0].mxu0
        %682 = vmatprep.mubr.bf16.mxu0 0
        %683 = vmatmul.mubr.bf16.gmra.mrb[0].mxu0 %v463
        %v684 = vpop.f32.mrb[0].mxu0
        %v685 = vadd.f32 0.0, %v684
        %v686 = vpop.f32.mrb[0].mxu0
        %v687 = vpop.f32.mrb[0].mxu0
        %v688 = vadd.f32 0.0, %v687
        %v689 = vpop.f32.mrb[0].mxu0
        %690 = vmatprep.mubr.bf16.mxu0 0
        %691 = vmatmul.mubr.bf16.gmra.mrb[0].mxu0 %v464
        %v692 = vpop.f32.mrb[0].mxu0
        %v693 = vadd.f32 0.0, %v692
        %v694 = vpop.f32.mrb[0].mxu0
        %v695 = vpop.f32.mrb[0].mxu0
        %v696 = vadd.f32 0.0, %v695
        %v697 = vpop.f32.mrb[0].mxu0
        %698 = vmatprep.mubr.bf16.mxu0 0
        %699 = vmatmul.mubr.bf16.gmra.mrb[0].mxu0 %v465
        %v700 = vpop.f32.mrb[0].mxu0
        %v701 = vadd.f32 0.0, %v700
        %v702 = vpop.f32.mrb[0].mxu0
        %v703 = vpop.f32.mrb[0].mxu0
        %v704 = vadd.f32 0.0, %v703
        %v705 = vpop.f32.mrb[0].mxu0
        %706 = vmatprep.mubr.bf16.mxu0 0
        %707 = vmatmul.mubr.bf16.gmra.mrb[0].mxu0 %v466
        %v708 = vpop.f32.mrb[0].mxu0
        %v709 = vadd.f32 0.0, %v708
        %v710 = vpop.f32.mrb[0].mxu0
        %v711 = vpop.f32.mrb[0].mxu0
        %v712 = vadd.f32 0.0, %v711
        %v713 = vpop.f32.mrb[0].mxu0
        %714 = vmatprep.mubr.bf16.mxu0 0
        %715 = vmatmul.mubr.bf16.gmra.mrb[0].mxu0 %v467
        %v716 = vpop.f32.mrb[0].mxu0
        %v717 = vadd.f32 0.0, %v716
        %v718 = vpop.f32.mrb[0].mxu0
        %v719 = vpop.f32.mrb[0].mxu0
        %v720 = vadd.f32 0.0, %v719
        %v721 = vpop.f32.mrb[0].mxu0
        %722 = vmatprep.mubr.bf16.mxu0 0
        %723 = vmatmul.mubr.bf16.gmra.mrb[0].mxu0 %v468
        %v724 = vpop.f32.mrb[0].mxu0
        %v725 = vadd.f32 0.0, %v724
        %v726 = vpop.f32.mrb[0].mxu0
        %v727 = vpop.f32.mrb[0].mxu0
        %v728 = vadd.f32 0.0, %v727
        %v729 = vpop.f32.mrb[0].mxu0
        %730 = vmatprep.mubr.bf16.mxu0 0
        %731 = vmatmul.mubr.bf16.gmra.mrb[0].mxu0 %v469
        %v732 = vpop.f32.mrb[0].mxu0
        %v733 = vadd.f32 0.0, %v732
        %v734 = vpop.f32.mrb[0].mxu0
        %v735 = vpop.f32.mrb[0].mxu0
        %v736 = vadd.f32 0.0, %v735
        %v737 = vpop.f32.mrb[0].mxu0
        %738 = vmatprep.mubr.bf16.mxu0 0
        %739 = vmatmul.mubr.bf16.gmra.mrb[0].mxu0 %v470
        %v740 = vpop.f32.mrb[0].mxu0
        %v741 = vadd.f32 0.0, %v740
        %v742 = vpop.f32.mrb[0].mxu0
        %v743 = vpop.f32.mrb[0].mxu0
        %v744 = vadd.f32 0.0, %v743
        %v745 = vpop.f32.mrb[0].mxu0
        %746 = vmatprep.mubr.bf16.mxu0 0
        %747 = vmatmul.mubr.bf16.gmra.mrb[0].mxu0 %v471
        %v748 = vpop.f32.mrb[0].mxu0
        %v749 = vadd.f32 0.0, %v748
        %v750 = vpop.f32.mrb[0].mxu0
        %v751 = vpop.f32.mrb[0].mxu0
        %v752 = vadd.f32 0.0, %v751
        %v753 = vpop.f32.mrb[0].mxu0
        %754 = vmatprep.mubr.bf16.mxu0 0
        %755 = vmatmul.mubr.bf16.gmra.mrb[0].mxu0 %v472
        %v756 = vpop.f32.mrb[0].mxu0
        %v757 = vadd.f32 0.0, %v756
        %v758 = vpop.f32.mrb[0].mxu0
        %v759 = vpop.f32.mrb[0].mxu0
        %v760 = vadd.f32 0.0, %v759
        %v761 = vpop.f32.mrb[0].mxu0
        %762 = vmatprep.mubr.bf16.mxu0 0
        %763 = vmatmul.mubr.bf16.gmra.mrb[0].mxu0 %v473
        %v764 = vpop.f32.mrb[0].mxu0
        %v765 = vadd.f32 0.0, %v764
        %v766 = vpop.f32.mrb[0].mxu0
        %v767 = vpop.f32.mrb[0].mxu0
        %v768 = vadd.f32 0.0, %v767
        %v769 = vpop.f32.mrb[0].mxu0
        %770 = vdwg.mxu0
        %v771 = vrot.slane %v581, 1
        %v772 = vrot.slane %v584, 1
        %v773 = vrot.slane %v589, 1
        %v774 = vrot.slane %v592, 1
        %v775 = vrot.slane %v597, 1
        %v776 = vrot.slane %v600, 1
        %v777 = vrot.slane %v605, 1
        %v778 = vrot.slane %v608, 1
        %v779 = vrot.slane %v613, 1
        %v780 = vrot.slane %v616, 1
        %v781 = vrot.slane %v621, 1
        %v782 = vrot.slane %v624, 1
        %v783 = vrot.slane %v629, 1
        %v784 = vrot.slane %v632, 1
        %v785 = vrot.slane %v637, 1
        %v786 = vrot.slane %v640, 1
        %v787 = vrot.slane %v645, 1
        %v788 = vrot.slane %v648, 1
        %v789 = vrot.slane %v653, 1
        %v790 = vrot.slane %v656, 1
        %v791 = vrot.slane %v661, 1
        %v792 = vrot.slane %v664, 1
        %v793 = vrot.slane %v669, 1
        %v794 = vrot.slane %v672, 1
        %v795 = vrot.slane %v677, 1
        %v796 = vrot.slane %v680, 1
        %v797 = vrot.slane %v685, 1
        %v798 = vrot.slane %v688, 1
        %v799 = vrot.slane %v693, 1
        %v800 = vrot.slane %v696, 1
        %v801 = vrot.slane %v701, 1
        %v802 = vrot.slane %v704, 1
        %v803 = vrot.slane %v709, 1
        %v804 = vrot.slane %v712, 1
        %v805 = vrot.slane %v717, 1
        %v806 = vrot.slane %v720, 1
        %v807 = vrot.slane %v725, 1
        %v808 = vrot.slane %v728, 1
        %v809 = vrot.slane %v733, 1
        %v810 = vrot.slane %v736, 1
        %v811 = vrot.slane %v741, 1
        %v812 = vrot.slane %v744, 1
        %v813 = vrot.slane %v749, 1
        %v814 = vrot.slane %v752, 1
        %v815 = vrot.slane %v757, 1
        %v816 = vrot.slane %v760, 1
        %v817 = vrot.slane %v765, 1
        %v818 = vrot.slane %v768, 1
        %v819 = vlaneseq
        %v820 = vshrl.u32 %v819, 7
        %vm821 = vcmp.lt.s32.totalorder %v820, 7
        %v822 = vsel %vm821, %v817, %v818
        %v823 = vsel %vm821, %v816, %v817
        %v824 = vsel %vm821, %v815, %v816
        %v825 = vsel %vm821, %v814, %v815
        %v826 = vsel %vm821, %v813, %v814
        %v827 = vsel %vm821, %v812, %v813
        %v828 = vsel %vm821, %v811, %v812
        %v829 = vsel %vm821, %v810, %v811
        %v830 = vsel %vm821, %v809, %v810
        %v831 = vsel %vm821, %v808, %v809
        %v832 = vsel %vm821, %v807, %v808
        %v833 = vsel %vm821, %v806, %v807
        %v834 = vsel %vm821, %v805, %v806
        %v835 = vsel %vm821, %v804, %v805
        %v836 = vsel %vm821, %v803, %v804
        %v837 = vsel %vm821, %v802, %v803
        %v838 = vsel %vm821, %v801, %v802
        %v839 = vsel %vm821, %v800, %v801
        %v840 = vsel %vm821, %v799, %v800
        %v841 = vsel %vm821, %v798, %v799
        %v842 = vsel %vm821, %v797, %v798
        %v843 = vsel %vm821, %v796, %v797
        %v844 = vsel %vm821, %v795, %v796
        %v845 = vsel %vm821, %v794, %v795
        %v846 = vsel %vm821, %v793, %v794
        %v847 = vsel %vm821, %v792, %v793
        %v848 = vsel %vm821, %v791, %v792
        %v849 = vsel %vm821, %v790, %v791
        %v850 = vsel %vm821, %v789, %v790
        %v851 = vsel %vm821, %v788, %v789
        %v852 = vsel %vm821, %v787, %v788
        %v853 = vsel %vm821, %v786, %v787
        %v854 = vsel %vm821, %v785, %v786
        %v855 = vsel %vm821, %v784, %v785
        %v856 = vsel %vm821, %v783, %v784
        %v857 = vsel %vm821, %v782, %v783
        %v858 = vsel %vm821, %v781, %v782
        %v859 = vsel %vm821, %v780, %v781
        %v860 = vsel %vm821, %v779, %v780
        %v861 = vsel %vm821, %v778, %v779
        %v862 = vsel %vm821, %v777, %v778
        %v863 = vsel %vm821, %v776, %v777
        %v864 = vsel %vm821, %v775, %v776
        %v865 = vsel %vm821, %v774, %v775
        %v866 = vsel %vm821, %v773, %v774
        %v867 = vsel %vm821, %v772, %v773
        %v868 = vsel %vm821, %v771, %v772
        %v869 = vsel %vm821, %v818, %v771
        %v886 = vunpack.c.l.b16 %v321
        %v887 = vunpack.c.l.b16 %v322
        %v888 = vunpack.c.l.b16 %v323
        %v889 = vunpack.c.l.b16 %v324
        %v890 = vunpack.c.l.b16 %v325
        %v891 = vunpack.c.l.b16 %v326
        %v892 = vunpack.c.l.b16 %v327
        %v893 = vunpack.c.l.b16 %v328
        %v894 = vunpack.c.l.b16 %v329
        %v895 = vunpack.c.l.b16 %v330
        %v896 = vunpack.c.l.b16 %v331
        %v897 = vunpack.c.l.b16 %v332
        %v898 = vunpack.c.l.b16 %v333
        %v899 = vunpack.c.l.b16 %v334
        %v900 = vunpack.c.l.b16 %v335
        %v901 = vunpack.c.l.b16 %v336
        %v902 = vpack.c.b16 %v887, %v886
        %v903 = vpack.c.b16 %v889, %v888
        %v904 = vpack.c.b16 %v891, %v890
        %v905 = vpack.c.b16 %v893, %v892
        %v906 = vpack.c.b16 %v895, %v894
        %v907 = vpack.c.b16 %v897, %v896
        %v908 = vpack.c.b16 %v899, %v898
        %v909 = vpack.c.b16 %v901, %v900
        %918 = vmatprep.subr.bf16.mxu0 0
        %919 = vmatpush1.bf16.msra.mxu0 %v902
        %920 = vmatprep.subr.bf16.mxu0 0
        %921 = vmatpush1.bf16.msra.mxu0 %v903
        %922 = vmatprep.subr.bf16.mxu0 0
        %923 = vmatpush1.bf16.msra.mxu0 %v904
        %924 = vmatprep.subr.bf16.mxu0 0
        %925 = vmatpush1.bf16.msra.mxu0 %v905
        %926 = vmatprep.subr.bf16.mxu0 0
        %927 = vmatpush1.bf16.msra.mxu0 %v906
        %928 = vmatprep.subr.bf16.mxu0 0
        %929 = vmatpush1.bf16.msra.mxu0 %v907
        %930 = vmatprep.subr.bf16.mxu0 0
        %931 = vmatpush1.bf16.msra.mxu0 %v908
        %932 = vmatprep.subr.bf16.mxu0 0
        %933 = vmatpush1.bf16.msra.mxu0 %v909
        %934 = vmatprep.subr.bf16.mxu0 0
        %935 = vmatpush1.bf16.msra.mxu0 0
        %936 = vmatprep.subr.bf16.mxu0 0
        %937 = vmatpush1.bf16.msra.mxu0 0
        %938 = vmatprep.subr.bf16.mxu0 0
        %939 = vmatpush1.bf16.msra.mxu0 0
        %940 = vmatprep.subr.bf16.mxu0 0
        %941 = vmatpush1.bf16.msra.mxu0 0
        %942 = vmatprep.subr.bf16.mxu0 0
        %943 = vmatpush1.bf16.msra.mxu0 0
        %944 = vmatprep.subr.bf16.mxu0 0
        %945 = vmatpush1.bf16.msra.mxu0 0
        %946 = vmatprep.subr.bf16.mxu0 0
        %947 = vmatpush1.bf16.msra.mxu0 0
        %948 = vmatprep.subr.bf16.mxu0 0
        %949 = vmatpush1.bf16.msra.mxu0 0
        %950 = vmatprep.mubr.bf16.mxu0 0
        %951 = vmatmul.mubr.bf16.gmra.mrb[0].mxu0 %v450
        %v952 = vpop.f32.mrb[0].mxu0
        %v953 = vadd.f32 %v868, %v952
        %v954 = vpop.f32.mrb[0].mxu0
        %v955 = vpop.f32.mrb[0].mxu0
        %v956 = vadd.f32 %v867, %v955
        %v957 = vpop.f32.mrb[0].mxu0
        %958 = vmatprep.mubr.bf16.mxu0 0
        %959 = vmatmul.mubr.bf16.gmra.mrb[0].mxu0 %v451
        %v960 = vpop.f32.mrb[0].mxu0
        %v961 = vadd.f32 %v866, %v960
        %v962 = vpop.f32.mrb[0].mxu0
        %v963 = vpop.f32.mrb[0].mxu0
        %v964 = vadd.f32 %v865, %v963
        %v965 = vpop.f32.mrb[0].mxu0
        %966 = vmatprep.mubr.bf16.mxu0 0
        %967 = vmatmul.mubr.bf16.gmra.mrb[0].mxu0 %v452
        %v968 = vpop.f32.mrb[0].mxu0
        %v969 = vadd.f32 %v864, %v968
        %v970 = vpop.f32.mrb[0].mxu0
        %v971 = vpop.f32.mrb[0].mxu0
        %v972 = vadd.f32 %v863, %v971
        %v973 = vpop.f32.mrb[0].mxu0
        %974 = vmatprep.mubr.bf16.mxu0 0
        %975 = vmatmul.mubr.bf16.gmra.mrb[0].mxu0 %v453
        %v976 = vpop.f32.mrb[0].mxu0
        %v977 = vadd.f32 %v862, %v976
        %v978 = vpop.f32.mrb[0].mxu0
        %v979 = vpop.f32.mrb[0].mxu0
        %v980 = vadd.f32 %v861, %v979
        %v981 = vpop.f32.mrb[0].mxu0
        %982 = vmatprep.mubr.bf16.mxu0 0
        %983 = vmatmul.mubr.bf16.gmra.mrb[0].mxu0 %v454
        %v984 = vpop.f32.mrb[0].mxu0
        %v985 = vadd.f32 %v860, %v984
        %v986 = vpop.f32.mrb[0].mxu0
        %v987 = vpop.f32.mrb[0].mxu0
        %v988 = vadd.f32 %v859, %v987
        %v989 = vpop.f32.mrb[0].mxu0
        %990 = vmatprep.mubr.bf16.mxu0 0
        %991 = vmatmul.mubr.bf16.gmra.mrb[0].mxu0 %v455
        %v992 = vpop.f32.mrb[0].mxu0
        %v993 = vadd.f32 %v858, %v992
        %v994 = vpop.f32.mrb[0].mxu0
        %v995 = vpop.f32.mrb[0].mxu0
        %v996 = vadd.f32 %v857, %v995
        %v997 = vpop.f32.mrb[0].mxu0
        %998 = vmatprep.mubr.bf16.mxu0 0
        %999 = vmatmul.mubr.bf16.gmra.mrb[0].mxu0 %v456
        %v1000 = vpop.f32.mrb[0].mxu0
        %v1001 = vadd.f32 %v856, %v1000
        %v1002 = vpop.f32.mrb[0].mxu0
        %v1003 = vpop.f32.mrb[0].mxu0
        %v1004 = vadd.f32 %v855, %v1003
        %v1005 = vpop.f32.mrb[0].mxu0
        %1006 = vmatprep.mubr.bf16.mxu0 0
        %1007 = vmatmul.mubr.bf16.gmra.mrb[0].mxu0 %v457
        %v1008 = vpop.f32.mrb[0].mxu0
        %v1009 = vadd.f32 %v854, %v1008
        %v1010 = vpop.f32.mrb[0].mxu0
        %v1011 = vpop.f32.mrb[0].mxu0
        %v1012 = vadd.f32 %v853, %v1011
        %v1013 = vpop.f32.mrb[0].mxu0
        %1014 = vmatprep.mubr.bf16.mxu0 0
        %1015 = vmatmul.mubr.bf16.gmra.mrb[0].mxu0 %v458
        %v1016 = vpop.f32.mrb[0].mxu0
        %v1017 = vadd.f32 %v852, %v1016
        %v1018 = vpop.f32.mrb[0].mxu0
        %v1019 = vpop.f32.mrb[0].mxu0
        %v1020 = vadd.f32 %v851, %v1019
        %v1021 = vpop.f32.mrb[0].mxu0
        %1022 = vmatprep.mubr.bf16.mxu0 0
        %1023 = vmatmul.mubr.bf16.gmra.mrb[0].mxu0 %v459
        %v1024 = vpop.f32.mrb[0].mxu0
        %v1025 = vadd.f32 %v850, %v1024
        %v1026 = vpop.f32.mrb[0].mxu0
        %v1027 = vpop.f32.mrb[0].mxu0
        %v1028 = vadd.f32 %v849, %v1027
        %v1029 = vpop.f32.mrb[0].mxu0
        %1030 = vmatprep.mubr.bf16.mxu0 0
        %1031 = vmatmul.mubr.bf16.gmra.mrb[0].mxu0 %v460
        %v1032 = vpop.f32.mrb[0].mxu0
        %v1033 = vadd.f32 %v848, %v1032
        %v1034 = vpop.f32.mrb[0].mxu0
        %v1035 = vpop.f32.mrb[0].mxu0
        %v1036 = vadd.f32 %v847, %v1035
        %v1037 = vpop.f32.mrb[0].mxu0
        %1038 = vmatprep.mubr.bf16.mxu0 0
        %1039 = vmatmul.mubr.bf16.gmra.mrb[0].mxu0 %v461
        %v1040 = vpop.f32.mrb[0].mxu0
        %v1041 = vadd.f32 %v846, %v1040
        %v1042 = vpop.f32.mrb[0].mxu0
        %v1043 = vpop.f32.mrb[0].mxu0
        %v1044 = vadd.f32 %v845, %v1043
        %v1045 = vpop.f32.mrb[0].mxu0
        %1046 = vmatprep.mubr.bf16.mxu0 0
        %1047 = vmatmul.mubr.bf16.gmra.mrb[0].mxu0 %v462
        %v1048 = vpop.f32.mrb[0].mxu0
        %v1049 = vadd.f32 %v844, %v1048
        %v1050 = vpop.f32.mrb[0].mxu0
        %v1051 = vpop.f32.mrb[0].mxu0
        %v1052 = vadd.f32 %v843, %v1051
        %v1053 = vpop.f32.mrb[0].mxu0
        %1054 = vmatprep.mubr.bf16.mxu0 0
        %1055 = vmatmul.mubr.bf16.gmra.mrb[0].mxu0 %v463
        %v1056 = vpop.f32.mrb[0].mxu0
        %v1057 = vadd.f32 %v842, %v1056
        %v1058 = vpop.f32.mrb[0].mxu0
        %v1059 = vpop.f32.mrb[0].mxu0
        %v1060 = vadd.f32 %v841, %v1059
        %v1061 = vpop.f32.mrb[0].mxu0
        %1062 = vmatprep.mubr.bf16.mxu0 0
        %1063 = vmatmul.mubr.bf16.gmra.mrb[0].mxu0 %v464
        %v1064 = vpop.f32.mrb[0].mxu0
        %v1065 = vadd.f32 %v840, %v1064
        %v1066 = vpop.f32.mrb[0].mxu0
        %v1067 = vpop.f32.mrb[0].mxu0
        %v1068 = vadd.f32 %v839, %v1067
        %v1069 = vpop.f32.mrb[0].mxu0
        %1070 = vmatprep.mubr.bf16.mxu0 0
        %1071 = vmatmul.mubr.bf16.gmra.mrb[0].mxu0 %v465
        %v1072 = vpop.f32.mrb[0].mxu0
        %v1073 = vadd.f32 %v838, %v1072
        %v1074 = vpop.f32.mrb[0].mxu0
        %v1075 = vpop.f32.mrb[0].mxu0
        %v1076 = vadd.f32 %v837, %v1075
        %v1077 = vpop.f32.mrb[0].mxu0
        %1078 = vmatprep.mubr.bf16.mxu0 0
        %1079 = vmatmul.mubr.bf16.gmra.mrb[0].mxu0 %v466
        %v1080 = vpop.f32.mrb[0].mxu0
        %v1081 = vadd.f32 %v836, %v1080
        %v1082 = vpop.f32.mrb[0].mxu0
        %v1083 = vpop.f32.mrb[0].mxu0
        %v1084 = vadd.f32 %v835, %v1083
        %v1085 = vpop.f32.mrb[0].mxu0
        %1086 = vmatprep.mubr.bf16.mxu0 0
        %1087 = vmatmul.mubr.bf16.gmra.mrb[0].mxu0 %v467
        %v1088 = vpop.f32.mrb[0].mxu0
        %v1089 = vadd.f32 %v834, %v1088
        %v1090 = vpop.f32.mrb[0].mxu0
        %v1091 = vpop.f32.mrb[0].mxu0
        %v1092 = vadd.f32 %v833, %v1091
        %v1093 = vpop.f32.mrb[0].mxu0
        %1094 = vmatprep.mubr.bf16.mxu0 0
        %1095 = vmatmul.mubr.bf16.gmra.mrb[0].mxu0 %v468
        %v1096 = vpop.f32.mrb[0].mxu0
        %v1097 = vadd.f32 %v832, %v1096
        %v1098 = vpop.f32.mrb[0].mxu0
        %v1099 = vpop.f32.mrb[0].mxu0
        %v1100 = vadd.f32 %v831, %v1099
        %v1101 = vpop.f32.mrb[0].mxu0
        %1102 = vmatprep.mubr.bf16.mxu0 0
        %1103 = vmatmul.mubr.bf16.gmra.mrb[0].mxu0 %v469
        %v1104 = vpop.f32.mrb[0].mxu0
        %v1105 = vadd.f32 %v830, %v1104
        %v1106 = vpop.f32.mrb[0].mxu0
        %v1107 = vpop.f32.mrb[0].mxu0
        %v1108 = vadd.f32 %v829, %v1107
        %v1109 = vpop.f32.mrb[0].mxu0
        %1110 = vmatprep.mubr.bf16.mxu0 0
        %1111 = vmatmul.mubr.bf16.gmra.mrb[0].mxu0 %v470
        %v1112 = vpop.f32.mrb[0].mxu0
        %v1113 = vadd.f32 %v828, %v1112
        %v1114 = vpop.f32.mrb[0].mxu0
        %v1115 = vpop.f32.mrb[0].mxu0
        %v1116 = vadd.f32 %v827, %v1115
        %v1117 = vpop.f32.mrb[0].mxu0
        %1118 = vmatprep.mubr.bf16.mxu0 0
        %1119 = vmatmul.mubr.bf16.gmra.mrb[0].mxu0 %v471
        %v1120 = vpop.f32.mrb[0].mxu0
        %v1121 = vadd.f32 %v826, %v1120
        %v1122 = vpop.f32.mrb[0].mxu0
        %v1123 = vpop.f32.mrb[0].mxu0
        %v1124 = vadd.f32 %v825, %v1123
        %v1125 = vpop.f32.mrb[0].mxu0
        %1126 = vmatprep.mubr.bf16.mxu0 0
        %1127 = vmatmul.mubr.bf16.gmra.mrb[0].mxu0 %v472
        %v1128 = vpop.f32.mrb[0].mxu0
        %v1129 = vadd.f32 %v824, %v1128
        %v1130 = vpop.f32.mrb[0].mxu0
        %v1131 = vpop.f32.mrb[0].mxu0
        %v1132 = vadd.f32 %v823, %v1131
        %v1133 = vpop.f32.mrb[0].mxu0
        %1134 = vmatprep.mubr.bf16.mxu0 0
        %1135 = vmatmul.mubr.bf16.gmra.mrb[0].mxu0 %v473
        %v1136 = vpop.f32.mrb[0].mxu0
        %v1137 = vadd.f32 %v822, %v1136
        %v1138 = vpop.f32.mrb[0].mxu0
        %v1139 = vpop.f32.mrb[0].mxu0
        %v1140 = vadd.f32 %v869, %v1139
        %v1141 = vpop.f32.mrb[0].mxu0
        %1142 = vdwg.mxu0
        %s1143 = scalar_lea.vmem [#allocation8], 128
        %v1144 = vld [vmem:[%s1143] sm:$0xf]
        %v1145 = vld [vmem:[%s1143 + $0x4] sm:$0xf]
        %v1146 = vld [vmem:[%s1143 + $0x8] sm:$0xf]
        %v1147 = vld [vmem:[%s1143 + $0xc] sm:$0xf]
        %v1148 = vld [vmem:[%s1143 + $0x10] sm:$0xf]
        %v1149 = vld [vmem:[%s1143 + $0x14] sm:$0xf]
        %v1150 = vld [vmem:[%s1143 + $0x18] sm:$0xf]
        %v1151 = vld [vmem:[%s1143 + $0x1c] sm:$0xf]
        %v1152 = vld [vmem:[%s1143 + $0x20] sm:$0xf]
        %v1153 = vld [vmem:[%s1143 + $0x24] sm:$0xf]
        %v1154 = vld [vmem:[%s1143 + $0x28] sm:$0xf]
        %v1155 = vld [vmem:[%s1143 + $0x2c] sm:$0xf]
        %v1156 = vld [vmem:[%s1143 + $0x30] sm:$0xf]
        %v1157 = vld [vmem:[%s1143 + $0x34] sm:$0xf]
        %v1158 = vld [vmem:[%s1143 + $0x38] sm:$0xf]
        %v1159 = vld [vmem:[%s1143 + $0x3c] sm:$0xf]
        %v1176 = vunpack.c.l.b16 %v1144
        %v1177 = vunpack.c.l.b16 %v1145
        %v1178 = vunpack.c.l.b16 %v1146
        %v1179 = vunpack.c.l.b16 %v1147
        %v1180 = vunpack.c.l.b16 %v1148
        %v1181 = vunpack.c.l.b16 %v1149
        %v1182 = vunpack.c.l.b16 %v1150
        %v1183 = vunpack.c.l.b16 %v1151
        %v1184 = vunpack.c.l.b16 %v1152
        %v1185 = vunpack.c.l.b16 %v1153
        %v1186 = vunpack.c.l.b16 %v1154
        %v1187 = vunpack.c.l.b16 %v1155
        %v1188 = vunpack.c.l.b16 %v1156
        %v1189 = vunpack.c.l.b16 %v1157
        %v1190 = vunpack.c.l.b16 %v1158
        %v1191 = vunpack.c.l.b16 %v1159
        %v1192 = vpack.c.b16 %v1177, %v1176
        %v1193 = vpack.c.b16 %v1179, %v1178
        %v1194 = vpack.c.b16 %v1181, %v1180
        %v1195 = vpack.c.b16 %v1183, %v1182
        %v1196 = vpack.c.b16 %v1185, %v1184
        %v1197 = vpack.c.b16 %v1187, %v1186
        %v1198 = vpack.c.b16 %v1189, %v1188
        %v1199 = vpack.c.b16 %v1191, %v1190
        %1208 = vmatprep.subr.bf16.mxu0 0
        %1209 = vmatpush1.bf16.msra.mxu0 %v1192
        %1210 = vmatprep.subr.bf16.mxu0 0
        %1211 = vmatpush1.bf16.msra.mxu0 %v1193
        %1212 = vmatprep.subr.bf16.mxu0 0
        %1213 = vmatpush1.bf16.msra.mxu0 %v1194
        %1214 = vmatprep.subr.bf16.mxu0 0
        %1215 = vmatpush1.bf16.msra.mxu0 %v1195
        %1216 = vmatprep.subr.bf16.mxu0 0
        %1217 = vmatpush1.bf16.msra.mxu0 %v1196
        %1218 = vmatprep.subr.bf16.mxu0 0
        %1219 = vmatpush1.bf16.msra.mxu0 %v1197
        %1220 = vmatprep.subr.bf16.mxu0 0
        %1221 = vmatpush1.bf16.msra.mxu0 %v1198
        %1222 = vmatprep.subr.bf16.mxu0 0
        %1223 = vmatpush1.bf16.msra.mxu0 %v1199
        %1224 = vmatprep.subr.bf16.mxu0 0
        %1225 = vmatpush1.bf16.msra.mxu0 0
        %1226 = vmatprep.subr.bf16.mxu0 0
        %1227 = vmatpush1.bf16.msra.mxu0 0
        %1228 = vmatprep.subr.bf16.mxu0 0
        %1229 = vmatpush1.bf16.msra.mxu0 0
        %1230 = vmatprep.subr.bf16.mxu0 0
        %1231 = vmatpush1.bf16.msra.mxu0 0
        %1232 = vmatprep.subr.bf16.mxu0 0
        %1233 = vmatpush1.bf16.msra.mxu0 0
        %1234 = vmatprep.subr.bf16.mxu0 0
        %1235 = vmatpush1.bf16.msra.mxu0 0
        %1236 = vmatprep.subr.bf16.mxu0 0
        %1237 = vmatpush1.bf16.msra.mxu0 0
        %1238 = vmatprep.subr.bf16.mxu0 0
        %1239 = vmatpush1.bf16.msra.mxu0 0
        %1240 = vmatprep.mubr.bf16.mxu0 0
        %1241 = vmatmul.mubr.bf16.gmra.mrb[0].mxu0 %v450
        %v1242 = vpop.f32.mrb[0].mxu0
        %v1243 = vadd.f32 0.0, %v1242
        %v1244 = vpop.f32.mrb[0].mxu0
        %v1245 = vpop.f32.mrb[0].mxu0
        %v1246 = vadd.f32 0.0, %v1245
        %v1247 = vpop.f32.mrb[0].mxu0
        %1248 = vmatprep.mubr.bf16.mxu0 0
        %1249 = vmatmul.mubr.bf16.gmra.mrb[0].mxu0 %v451
        %v1250 = vpop.f32.mrb[0].mxu0
        %v1251 = vadd.f32 0.0, %v1250
        %v1252 = vpop.f32.mrb[0].mxu0
        %v1253 = vpop.f32.mrb[0].mxu0
        %v1254 = vadd.f32 0.0, %v1253
        %v1255 = vpop.f32.mrb[0].mxu0
        %1256 = vmatprep.mubr.bf16.mxu0 0
        %1257 = vmatmul.mubr.bf16.gmra.mrb[0].mxu0 %v452
        %v1258 = vpop.f32.mrb[0].mxu0
        %v1259 = vadd.f32 0.0, %v1258
        %v1260 = vpop.f32.mrb[0].mxu0
        %v1261 = vpop.f32.mrb[0].mxu0
        %v1262 = vadd.f32 0.0, %v1261
        %v1263 = vpop.f32.mrb[0].mxu0
        %1264 = vmatprep.mubr.bf16.mxu0 0
        %1265 = vmatmul.mubr.bf16.gmra.mrb[0].mxu0 %v453
        %v1266 = vpop.f32.mrb[0].mxu0
        %v1267 = vadd.f32 0.0, %v1266
        %v1268 = vpop.f32.mrb[0].mxu0
        %v1269 = vpop.f32.mrb[0].mxu0
        %v1270 = vadd.f32 0.0, %v1269
        %v1271 = vpop.f32.mrb[0].mxu0
        %1272 = vmatprep.mubr.bf16.mxu0 0
        %1273 = vmatmul.mubr.bf16.gmra.mrb[0].mxu0 %v454
        %v1274 = vpop.f32.mrb[0].mxu0
        %v1275 = vadd.f32 0.0, %v1274
        %v1276 = vpop.f32.mrb[0].mxu0
        %v1277 = vpop.f32.mrb[0].mxu0
        %v1278 = vadd.f32 0.0, %v1277
        %v1279 = vpop.f32.mrb[0].mxu0
        %1280 = vmatprep.mubr.bf16.mxu0 0
        %1281 = vmatmul.mubr.bf16.gmra.mrb[0].mxu0 %v455
        %v1282 = vpop.f32.mrb[0].mxu0
        %v1283 = vadd.f32 0.0, %v1282
        %v1284 = vpop.f32.mrb[0].mxu0
        %v1285 = vpop.f32.mrb[0].mxu0
        %v1286 = vadd.f32 0.0, %v1285
        %v1287 = vpop.f32.mrb[0].mxu0
        %1288 = vmatprep.mubr.bf16.mxu0 0
        %1289 = vmatmul.mubr.bf16.gmra.mrb[0].mxu0 %v456
        %v1290 = vpop.f32.mrb[0].mxu0
        %v1291 = vadd.f32 0.0, %v1290
        %v1292 = vpop.f32.mrb[0].mxu0
        %v1293 = vpop.f32.mrb[0].mxu0
        %v1294 = vadd.f32 0.0, %v1293
        %v1295 = vpop.f32.mrb[0].mxu0
        %1296 = vmatprep.mubr.bf16.mxu0 0
        %1297 = vmatmul.mubr.bf16.gmra.mrb[0].mxu0 %v457
        %v1298 = vpop.f32.mrb[0].mxu0
        %v1299 = vadd.f32 0.0, %v1298
        %v1300 = vpop.f32.mrb[0].mxu0
        %v1301 = vpop.f32.mrb[0].mxu0
        %v1302 = vadd.f32 0.0, %v1301
        %v1303 = vpop.f32.mrb[0].mxu0
        %1304 = vmatprep.mubr.bf16.mxu0 0
        %1305 = vmatmul.mubr.bf16.gmra.mrb[0].mxu0 %v458
        %v1306 = vpop.f32.mrb[0].mxu0
        %v1307 = vadd.f32 0.0, %v1306
        %v1308 = vpop.f32.mrb[0].mxu0
        %v1309 = vpop.f32.mrb[0].mxu0
        %v1310 = vadd.f32 0.0, %v1309
        %v1311 = vpop.f32.mrb[0].mxu0
        %1312 = vmatprep.mubr.bf16.mxu0 0
        %1313 = vmatmul.mubr.bf16.gmra.mrb[0].mxu0 %v459
        %v1314 = vpop.f32.mrb[0].mxu0
        %v1315 = vadd.f32 0.0, %v1314
        %v1316 = vpop.f32.mrb[0].mxu0
        %v1317 = vpop.f32.mrb[0].mxu0
        %v1318 = vadd.f32 0.0, %v1317
        %v1319 = vpop.f32.mrb[0].mxu0
        %1320 = vmatprep.mubr.bf16.mxu0 0
        %1321 = vmatmul.mubr.bf16.gmra.mrb[0].mxu0 %v460
        %v1322 = vpop.f32.mrb[0].mxu0
        %v1323 = vadd.f32 0.0, %v1322
        %v1324 = vpop.f32.mrb[0].mxu0
        %v1325 = vpop.f32.mrb[0].mxu0
        %v1326 = vadd.f32 0.0, %v1325
        %v1327 = vpop.f32.mrb[0].mxu0
        %1328 = vmatprep.mubr.bf16.mxu0 0
        %1329 = vmatmul.mubr.bf16.gmra.mrb[0].mxu0 %v461
        %v1330 = vpop.f32.mrb[0].mxu0
        %v1331 = vadd.f32 0.0, %v1330
        %v1332 = vpop.f32.mrb[0].mxu0
        %v1333 = vpop.f32.mrb[0].mxu0
        %v1334 = vadd.f32 0.0, %v1333
        %v1335 = vpop.f32.mrb[0].mxu0
        %1336 = vmatprep.mubr.bf16.mxu0 0
        %1337 = vmatmul.mubr.bf16.gmra.mrb[0].mxu0 %v462
        %v1338 = vpop.f32.mrb[0].mxu0
        %v1339 = vadd.f32 0.0, %v1338
        %v1340 = vpop.f32.mrb[0].mxu0
        %v1341 = vpop.f32.mrb[0].mxu0
        %v1342 = vadd.f32 0.0, %v1341
        %v1343 = vpop.f32.mrb[0].mxu0
        %1344 = vmatprep.mubr.bf16.mxu0 0
        %1345 = vmatmul.mubr.bf16.gmra.mrb[0].mxu0 %v463
        %v1346 = vpop.f32.mrb[0].mxu0
        %v1347 = vadd.f32 0.0, %v1346
        %v1348 = vpop.f32.mrb[0].mxu0
        %v1349 = vpop.f32.mrb[0].mxu0
        %v1350 = vadd.f32 0.0, %v1349
        %v1351 = vpop.f32.mrb[0].mxu0
        %1352 = vmatprep.mubr.bf16.mxu0 0
        %1353 = vmatmul.mubr.bf16.gmra.mrb[0].mxu0 %v464
        %v1354 = vpop.f32.mrb[0].mxu0
        %v1355 = vadd.f32 0.0, %v1354
        %v1356 = vpop.f32.mrb[0].mxu0
        %v1357 = vpop.f32.mrb[0].mxu0
        %v1358 = vadd.f32 0.0, %v1357
        %v1359 = vpop.f32.mrb[0].mxu0
        %1360 = vmatprep.mubr.bf16.mxu0 0
        %1361 = vmatmul.mubr.bf16.gmra.mrb[0].mxu0 %v465
        %v1362 = vpop.f32.mrb[0].mxu0
        %v1363 = vadd.f32 0.0, %v1362
        %v1364 = vpop.f32.mrb[0].mxu0
        %v1365 = vpop.f32.mrb[0].mxu0
        %v1366 = vadd.f32 0.0, %v1365
        %v1367 = vpop.f32.mrb[0].mxu0
        %1368 = vmatprep.mubr.bf16.mxu0 0
        %1369 = vmatmul.mubr.bf16.gmra.mrb[0].mxu0 %v466
        %v1370 = vpop.f32.mrb[0].mxu0
        %v1371 = vadd.f32 0.0, %v1370
        %v1372 = vpop.f32.mrb[0].mxu0
        %v1373 = vpop.f32.mrb[0].mxu0
        %v1374 = vadd.f32 0.0, %v1373
        %v1375 = vpop.f32.mrb[0].mxu0
        %1376 = vmatprep.mubr.bf16.mxu0 0
        %1377 = vmatmul.mubr.bf16.gmra.mrb[0].mxu0 %v467
        %v1378 = vpop.f32.mrb[0].mxu0
        %v1379 = vadd.f32 0.0, %v1378
        %v1380 = vpop.f32.mrb[0].mxu0
        %v1381 = vpop.f32.mrb[0].mxu0
        %v1382 = vadd.f32 0.0, %v1381
        %v1383 = vpop.f32.mrb[0].mxu0
        %1384 = vmatprep.mubr.bf16.mxu0 0
        %1385 = vmatmul.mubr.bf16.gmra.mrb[0].mxu0 %v468
        %v1386 = vpop.f32.mrb[0].mxu0
        %v1387 = vadd.f32 0.0, %v1386
        %v1388 = vpop.f32.mrb[0].mxu0
        %v1389 = vpop.f32.mrb[0].mxu0
        %v1390 = vadd.f32 0.0, %v1389
        %v1391 = vpop.f32.mrb[0].mxu0
        %1392 = vmatprep.mubr.bf16.mxu0 0
        %1393 = vmatmul.mubr.bf16.gmra.mrb[0].mxu0 %v469
        %v1394 = vpop.f32.mrb[0].mxu0
        %v1395 = vadd.f32 0.0, %v1394
        %v1396 = vpop.f32.mrb[0].mxu0
        %v1397 = vpop.f32.mrb[0].mxu0
        %v1398 = vadd.f32 0.0, %v1397
        %v1399 = vpop.f32.mrb[0].mxu0
        %1400 = vmatprep.mubr.bf16.mxu0 0
        %1401 = vmatmul.mubr.bf16.gmra.mrb[0].mxu0 %v470
        %v1402 = vpop.f32.mrb[0].mxu0
        %v1403 = vadd.f32 0.0, %v1402
        %v1404 = vpop.f32.mrb[0].mxu0
        %v1405 = vpop.f32.mrb[0].mxu0
        %v1406 = vadd.f32 0.0, %v1405
        %v1407 = vpop.f32.mrb[0].mxu0
        %1408 = vmatprep.mubr.bf16.mxu0 0
        %1409 = vmatmul.mubr.bf16.gmra.mrb[0].mxu0 %v471
        %v1410 = vpop.f32.mrb[0].mxu0
        %v1411 = vadd.f32 0.0, %v1410
        %v1412 = vpop.f32.mrb[0].mxu0
        %v1413 = vpop.f32.mrb[0].mxu0
        %v1414 = vadd.f32 0.0, %v1413
        %v1415 = vpop.f32.mrb[0].mxu0
        %1416 = vmatprep.mubr.bf16.mxu0 0
        %1417 = vmatmul.mubr.bf16.gmra.mrb[0].mxu0 %v472
        %v1418 = vpop.f32.mrb[0].mxu0
        %v1419 = vadd.f32 0.0, %v1418
        %v1420 = vpop.f32.mrb[0].mxu0
        %v1421 = vpop.f32.mrb[0].mxu0
        %v1422 = vadd.f32 0.0, %v1421
        %v1423 = vpop.f32.mrb[0].mxu0
        %1424 = vmatprep.mubr.bf16.mxu0 0
        %1425 = vmatmul.mubr.bf16.gmra.mrb[0].mxu0 %v473
        %v1426 = vpop.f32.mrb[0].mxu0
        %v1427 = vadd.f32 0.0, %v1426
        %v1428 = vpop.f32.mrb[0].mxu0
        %v1429 = vpop.f32.mrb[0].mxu0
        %v1430 = vadd.f32 0.0, %v1429
        %v1431 = vpop.f32.mrb[0].mxu0
        %1432 = vdwg.mxu0
        %v1433 = vrot.slane %v1243, 2
        %v1434 = vrot.slane %v1246, 2
        %v1435 = vrot.slane %v1251, 2
        %v1436 = vrot.slane %v1254, 2
        %v1437 = vrot.slane %v1259, 2
        %v1438 = vrot.slane %v1262, 2
        %v1439 = vrot.slane %v1267, 2
        %v1440 = vrot.slane %v1270, 2
        %v1441 = vrot.slane %v1275, 2
        %v1442 = vrot.slane %v1278, 2
        %v1443 = vrot.slane %v1283, 2
        %v1444 = vrot.slane %v1286, 2
        %v1445 = vrot.slane %v1291, 2
        %v1446 = vrot.slane %v1294, 2
        %v1447 = vrot.slane %v1299, 2
        %v1448 = vrot.slane %v1302, 2
        %v1449 = vrot.slane %v1307, 2
        %v1450 = vrot.slane %v1310, 2
        %v1451 = vrot.slane %v1315, 2
        %v1452 = vrot.slane %v1318, 2
        %v1453 = vrot.slane %v1323, 2
        %v1454 = vrot.slane %v1326, 2
        %v1455 = vrot.slane %v1331, 2
        %v1456 = vrot.slane %v1334, 2
        %v1457 = vrot.slane %v1339, 2
        %v1458 = vrot.slane %v1342, 2
        %v1459 = vrot.slane %v1347, 2
        %v1460 = vrot.slane %v1350, 2
        %v1461 = vrot.slane %v1355, 2
        %v1462 = vrot.slane %v1358, 2
        %v1463 = vrot.slane %v1363, 2
        %v1464 = vrot.slane %v1366, 2
        %v1465 = vrot.slane %v1371, 2
        %v1466 = vrot.slane %v1374, 2
        %v1467 = vrot.slane %v1379, 2
        %v1468 = vrot.slane %v1382, 2
        %v1469 = vrot.slane %v1387, 2
        %v1470 = vrot.slane %v1390, 2
        %v1471 = vrot.slane %v1395, 2
        %v1472 = vrot.slane %v1398, 2
        %v1473 = vrot.slane %v1403, 2
        %v1474 = vrot.slane %v1406, 2
        %v1475 = vrot.slane %v1411, 2
        %v1476 = vrot.slane %v1414, 2
        %v1477 = vrot.slane %v1419, 2
        %v1478 = vrot.slane %v1422, 2
        %v1479 = vrot.slane %v1427, 2
        %v1480 = vrot.slane %v1430, 2
        %vm1481 = vcmp.lt.s32.totalorder %v820, 6
        %v1482 = vsel %vm1481, %v1479, %v1480
        %v1483 = vsel %vm1481, %v1478, %v1479
        %v1484 = vsel %vm1481, %v1477, %v1478
        %v1485 = vsel %vm1481, %v1476, %v1477
        %v1486 = vsel %vm1481, %v1475, %v1476
        %v1487 = vsel %vm1481, %v1474, %v1475
        %v1488 = vsel %vm1481, %v1473, %v1474
        %v1489 = vsel %vm1481, %v1472, %v1473
        %v1490 = vsel %vm1481, %v1471, %v1472
        %v1491 = vsel %vm1481, %v1470, %v1471
        %v1492 = vsel %vm1481, %v1469, %v1470
        %v1493 = vsel %vm1481, %v1468, %v1469
        %v1494 = vsel %vm1481, %v1467, %v1468
        %v1495 = vsel %vm1481, %v1466, %v1467
        %v1496 = vsel %vm1481, %v1465, %v1466
        %v1497 = vsel %vm1481, %v1464, %v1465
        %v1498 = vsel %vm1481, %v1463, %v1464
        %v1499 = vsel %vm1481, %v1462, %v1463
        %v1500 = vsel %vm1481, %v1461, %v1462
        %v1501 = vsel %vm1481, %v1460, %v1461
        %v1502 = vsel %vm1481, %v1459, %v1460
        %v1503 = vsel %vm1481, %v1458, %v1459
        %v1504 = vsel %vm1481, %v1457, %v1458
        %v1505 = vsel %vm1481, %v1456, %v1457
        %v1506 = vsel %vm1481, %v1455, %v1456
        %v1507 = vsel %vm1481, %v1454, %v1455
        %v1508 = vsel %vm1481, %v1453, %v1454
        %v1509 = vsel %vm1481, %v1452, %v1453
        %v1510 = vsel %vm1481, %v1451, %v1452
        %v1511 = vsel %vm1481, %v1450, %v1451
        %v1512 = vsel %vm1481, %v1449, %v1450
        %v1513 = vsel %vm1481, %v1448, %v1449
        %v1514 = vsel %vm1481, %v1447, %v1448
        %v1515 = vsel %vm1481, %v1446, %v1447
        %v1516 = vsel %vm1481, %v1445, %v1446
        %v1517 = vsel %vm1481, %v1444, %v1445
        %v1518 = vsel %vm1481, %v1443, %v1444
        %v1519 = vsel %vm1481, %v1442, %v1443
        %v1520 = vsel %vm1481, %v1441, %v1442
        %v1521 = vsel %vm1481, %v1440, %v1441
        %v1522 = vsel %vm1481, %v1439, %v1440
        %v1523 = vsel %vm1481, %v1438, %v1439
        %v1524 = vsel %vm1481, %v1437, %v1438
        %v1525 = vsel %vm1481, %v1436, %v1437
        %v1526 = vsel %vm1481, %v1435, %v1436
        %v1527 = vsel %vm1481, %v1434, %v1435
        %v1528 = vsel %vm1481, %v1433, %v1434
        %v1529 = vsel %vm1481, %v1480, %v1433
        %v1530 = vadd.f32 %v953, %v1528
        %v1531 = vadd.f32 %v956, %v1527
        %v1532 = vadd.f32 %v961, %v1526
        %v1533 = vadd.f32 %v964, %v1525
        %v1534 = vadd.f32 %v969, %v1524
        %v1535 = vadd.f32 %v972, %v1523
        %v1536 = vadd.f32 %v977, %v1522
        %v1537 = vadd.f32 %v980, %v1521
        %v1538 = vadd.f32 %v985, %v1520
        %v1539 = vadd.f32 %v988, %v1519
        %v1540 = vadd.f32 %v993, %v1518
        %v1541 = vadd.f32 %v996, %v1517
        %v1542 = vadd.f32 %v1001, %v1516
        %v1543 = vadd.f32 %v1004, %v1515
        %v1544 = vadd.f32 %v1009, %v1514
        %v1545 = vadd.f32 %v1012, %v1513
        %v1546 = vadd.f32 %v1017, %v1512
        %v1547 = vadd.f32 %v1020, %v1511
        %v1548 = vadd.f32 %v1025, %v1510
        %v1549 = vadd.f32 %v1028, %v1509
        %v1550 = vadd.f32 %v1033, %v1508
        %v1551 = vadd.f32 %v1036, %v1507
        %v1552 = vadd.f32 %v1041, %v1506
        %v1553 = vadd.f32 %v1044, %v1505
        %v1554 = vadd.f32 %v1049, %v1504
        %v1555 = vadd.f32 %v1052, %v1503
        %v1556 = vadd.f32 %v1057, %v1502
        %v1557 = vadd.f32 %v1060, %v1501
        %v1558 = vadd.f32 %v1065, %v1500
        %v1559 = vadd.f32 %v1068, %v1499
        %v1560 = vadd.f32 %v1073, %v1498
        %v1561 = vadd.f32 %v1076, %v1497
        %v1562 = vadd.f32 %v1081, %v1496
        %v1563 = vadd.f32 %v1084, %v1495
        %v1564 = vadd.f32 %v1089, %v1494
        %v1565 = vadd.f32 %v1092, %v1493
        %v1566 = vadd.f32 %v1097, %v1492
        %v1567 = vadd.f32 %v1100, %v1491
        %v1568 = vadd.f32 %v1105, %v1490
        %v1569 = vadd.f32 %v1108, %v1489
        %v1570 = vadd.f32 %v1113, %v1488
        %v1571 = vadd.f32 %v1116, %v1487
        %v1572 = vadd.f32 %v1121, %v1486
        %v1573 = vadd.f32 %v1124, %v1485
        %v1574 = vadd.f32 %v1129, %v1484
        %v1575 = vadd.f32 %v1132, %v1483
        %v1576 = vadd.f32 %v1137, %v1482
        %v1577 = vadd.f32 %v1140, %v1529
        %1578 = vst [vmem:[#allocation3] sm:$0xff] %v1530
        %1579 = vst [vmem:[#allocation3 + $0x8] sm:$0xff] %v1531
        %1580 = vst [vmem:[#allocation3 + $0x10] sm:$0xff] %v1532
        %1581 = vst [vmem:[#allocation3 + $0x18] sm:$0xff] %v1533
        %1582 = vst [vmem:[#allocation3 + $0x20] sm:$0xff] %v1534
        %1583 = vst [vmem:[#allocation3 + $0x28] sm:$0xff] %v1535
        %1584 = vst [vmem:[#allocation3 + $0x30] sm:$0xff] %v1536
        %1585 = vst [vmem:[#allocation3 + $0x38] sm:$0xff] %v1537
        %1586 = vst [vmem:[#allocation3 + $0x40] sm:$0xff] %v1538
        %1587 = vst [vmem:[#allocation3 + $0x48] sm:$0xff] %v1539
        %1588 = vst [vmem:[#allocation3 + $0x50] sm:$0xff] %v1540
        %1589 = vst [vmem:[#allocation3 + $0x58] sm:$0xff] %v1541
        %1590 = vst [vmem:[#allocation3 + $0x60] sm:$0xff] %v1542
        %1591 = vst [vmem:[#allocation3 + $0x68] sm:$0xff] %v1543
        %1592 = vst [vmem:[#allocation3 + $0x70] sm:$0xff] %v1544
        %1593 = vst [vmem:[#allocation3 + $0x78] sm:$0xff] %v1545
        %1594 = vst [vmem:[#allocation3 + $0x80] sm:$0xff] %v1546
        %1595 = vst [vmem:[#allocation3 + $0x88] sm:$0xff] %v1547
        %1596 = vst [vmem:[#allocation3 + $0x90] sm:$0xff] %v1548
        %1597 = vst [vmem:[#allocation3 + $0x98] sm:$0xff] %v1549
        %1598 = vst [vmem:[#allocation3 + $0xa0] sm:$0xff] %v1550
        %1599 = vst [vmem:[#allocation3 + $0xa8] sm:$0xff] %v1551
        %1600 = vst [vmem:[#allocation3 + $0xb0] sm:$0xff] %v1552
        %1601 = vst [vmem:[#allocation3 + $0xb8] sm:$0xff] %v1553
        %1602 = vst [vmem:[#allocation3 + $0xc0] sm:$0xff] %v1554
        %1603 = vst [vmem:[#allocation3 + $0xc8] sm:$0xff] %v1555
        %1604 = vst [vmem:[#allocation3 + $0xd0] sm:$0xff] %v1556
        %1605 = vst [vmem:[#allocation3 + $0xd8] sm:$0xff] %v1557
        %1606 = vst [vmem:[#allocation3 + $0xe0] sm:$0xff] %v1558
        %1607 = vst [vmem:[#allocation3 + $0xe8] sm:$0xff] %v1559
        %1608 = vst [vmem:[#allocation3 + $0xf0] sm:$0xff] %v1560
        %1609 = vst [vmem:[#allocation3 + $0xf8] sm:$0xff] %v1561
        %1610 = vst [vmem:[#allocation3 + $0x100] sm:$0xff] %v1562
        %1611 = vst [vmem:[#allocation3 + $0x108] sm:$0xff] %v1563
        %1612 = vst [vmem:[#allocation3 + $0x110] sm:$0xff] %v1564
        %1613 = vst [vmem:[#allocation3 + $0x118] sm:$0xff] %v1565
        %1614 = vst [vmem:[#allocation3 + $0x120] sm:$0xff] %v1566
        %1615 = vst [vmem:[#allocation3 + $0x128] sm:$0xff] %v1567
        %1616 = vst [vmem:[#allocation3 + $0x130] sm:$0xff] %v1568
        %1617 = vst [vmem:[#allocation3 + $0x138] sm:$0xff] %v1569
        %1618 = vst [vmem:[#allocation3 + $0x140] sm:$0xff] %v1570
        %1619 = vst [vmem:[#allocation3 + $0x148] sm:$0xff] %v1571
        %1620 = vst [vmem:[#allocation3 + $0x150] sm:$0xff] %v1572
        %1621 = vst [vmem:[#allocation3 + $0x158] sm:$0xff] %v1573
        %1622 = vst [vmem:[#allocation3 + $0x160] sm:$0xff] %v1574
        %1623 = vst [vmem:[#allocation3 + $0x168] sm:$0xff] %v1575
        %1624 = vst [vmem:[#allocation3 + $0x170] sm:$0xff] %v1576
        %1625 = vst [vmem:[#allocation3 + $0x178] sm:$0xff] %v1577
        %s1626 = scalar_lea.vmem %s237, 12 [#allocation5]
        %v1627 = vld [vmem:[%s1626] sm:$0xf]
        %v1628 = vld [vmem:[%s1626 + $0x4] sm:$0xf]
        %v1629 = vld [vmem:[%s1626 + $0x8] sm:$0xf]
        %v1630 = vld [vmem:[%s1626 + $0xc] sm:$0xf]
        %v1631 = vld [vmem:[%s1626 + $0x10] sm:$0xf]
        %v1632 = vld [vmem:[%s1626 + $0x14] sm:$0xf]
        %v1633 = vld [vmem:[%s1626 + $0x18] sm:$0xf]
        %v1634 = vld [vmem:[%s1626 + $0x1c] sm:$0xf]
        %v1635 = vld [vmem:[%s1626 + $0x20] sm:$0xf]
        %v1636 = vld [vmem:[%s1626 + $0x24] sm:$0xf]
        %v1637 = vld [vmem:[%s1626 + $0x28] sm:$0xf]
        %v1638 = vld [vmem:[%s1626 + $0x2c] sm:$0xf]
        %v1639 = vld [vmem:[%s1626 + $0x30] sm:$0xf]
        %v1640 = vld [vmem:[%s1626 + $0x34] sm:$0xf]
        %v1641 = vld [vmem:[%s1626 + $0x38] sm:$0xf]
        %v1642 = vld [vmem:[%s1626 + $0x3c] sm:$0xf]
        %v1643 = vld [vmem:[%s1626 + $0x40] sm:$0xf]
        %v1644 = vld [vmem:[%s1626 + $0x44] sm:$0xf]
        %v1645 = vld [vmem:[%s1626 + $0x48] sm:$0xf]
        %v1646 = vld [vmem:[%s1626 + $0x4c] sm:$0xf]
        %v1647 = vld [vmem:[%s1626 + $0x50] sm:$0xf]
        %v1648 = vld [vmem:[%s1626 + $0x54] sm:$0xf]
        %v1649 = vld [vmem:[%s1626 + $0x58] sm:$0xf]
        %v1650 = vld [vmem:[%s1626 + $0x5c] sm:$0xf]
        %v1651 = vld [vmem:[%s1626 + $0x60] sm:$0xf]
        %v1652 = vld [vmem:[%s1626 + $0x64] sm:$0xf]
        %v1653 = vld [vmem:[%s1626 + $0x68] sm:$0xf]
        %v1654 = vld [vmem:[%s1626 + $0x6c] sm:$0xf]
        %v1655 = vld [vmem:[%s1626 + $0x70] sm:$0xf]
        %v1656 = vld [vmem:[%s1626 + $0x74] sm:$0xf]
        %v1657 = vld [vmem:[%s1626 + $0x78] sm:$0xf]
        %v1658 = vld [vmem:[%s1626 + $0x7c] sm:$0xf]
        %v1659 = vld [vmem:[%s1626 + $0x80] sm:$0xf]
        %v1660 = vld [vmem:[%s1626 + $0x84] sm:$0xf]
        %v1661 = vld [vmem:[%s1626 + $0x88] sm:$0xf]
        %v1662 = vld [vmem:[%s1626 + $0x8c] sm:$0xf]
        %v1663 = vld [vmem:[%s1626 + $0x90] sm:$0xf]
        %v1664 = vld [vmem:[%s1626 + $0x94] sm:$0xf]
        %v1665 = vld [vmem:[%s1626 + $0x98] sm:$0xf]
        %v1666 = vld [vmem:[%s1626 + $0x9c] sm:$0xf]
        %v1667 = vld [vmem:[%s1626 + $0xa0] sm:$0xf]
        %v1668 = vld [vmem:[%s1626 + $0xa4] sm:$0xf]
        %v1669 = vld [vmem:[%s1626 + $0xa8] sm:$0xf]
        %v1670 = vld [vmem:[%s1626 + $0xac] sm:$0xf]
        %v1671 = vld [vmem:[%s1626 + $0xb0] sm:$0xf]
        %v1672 = vld [vmem:[%s1626 + $0xb4] sm:$0xf]
        %v1673 = vld [vmem:[%s1626 + $0xb8] sm:$0xf]
        %v1674 = vld [vmem:[%s1626 + $0xbc] sm:$0xf]
        %s1675 = scalar_lea.vmem [#allocation8], 192
        %v1676 = vld [vmem:[%s1675] sm:$0xf]
        %v1677 = vld [vmem:[%s1675 + $0x4] sm:$0xf]
        %v1678 = vld [vmem:[%s1675 + $0x8] sm:$0xf]
        %v1679 = vld [vmem:[%s1675 + $0xc] sm:$0xf]
        %v1680 = vld [vmem:[%s1675 + $0x10] sm:$0xf]
        %v1681 = vld [vmem:[%s1675 + $0x14] sm:$0xf]
        %v1682 = vld [vmem:[%s1675 + $0x18] sm:$0xf]
        %v1683 = vld [vmem:[%s1675 + $0x1c] sm:$0xf]
        %v1684 = vld [vmem:[%s1675 + $0x20] sm:$0xf]
        %v1685 = vld [vmem:[%s1675 + $0x24] sm:$0xf]
        %v1686 = vld [vmem:[%s1675 + $0x28] sm:$0xf]
        %v1687 = vld [vmem:[%s1675 + $0x2c] sm:$0xf]
        %v1688 = vld [vmem:[%s1675 + $0x30] sm:$0xf]
        %v1689 = vld [vmem:[%s1675 + $0x34] sm:$0xf]
        %v1690 = vld [vmem:[%s1675 + $0x38] sm:$0xf]
        %v1691 = vld [vmem:[%s1675 + $0x3c] sm:$0xf]
        %s1692 = scalar_lea.vmem [#allocation8], 256
        %v1693 = vld [vmem:[%s1692] sm:$0xf]
        %v1694 = vld [vmem:[%s1692 + $0x4] sm:$0xf]
        %v1695 = vld [vmem:[%s1692 + $0x8] sm:$0xf]
        %v1696 = vld [vmem:[%s1692 + $0xc] sm:$0xf]
        %v1697 = vld [vmem:[%s1692 + $0x10] sm:$0xf]
        %v1698 = vld [vmem:[%s1692 + $0x14] sm:$0xf]
        %v1699 = vld [vmem:[%s1692 + $0x18] sm:$0xf]
        %v1700 = vld [vmem:[%s1692 + $0x1c] sm:$0xf]
        %v1701 = vld [vmem:[%s1692 + $0x20] sm:$0xf]
        %v1702 = vld [vmem:[%s1692 + $0x24] sm:$0xf]
        %v1703 = vld [vmem:[%s1692 + $0x28] sm:$0xf]
        %v1704 = vld [vmem:[%s1692 + $0x2c] sm:$0xf]
        %v1705 = vld [vmem:[%s1692 + $0x30] sm:$0xf]
        %v1706 = vld [vmem:[%s1692 + $0x34] sm:$0xf]
        %v1707 = vld [vmem:[%s1692 + $0x38] sm:$0xf]
        %v1708 = vld [vmem:[%s1692 + $0x3c] sm:$0xf]
        %v1757 = vunpack.c.l.b16 %v1627
        %v1758 = vunpack.c.l.b16 %v1628
        %v1759 = vunpack.c.l.b16 %v1629
        %v1760 = vunpack.c.l.b16 %v1630
        %v1761 = vunpack.c.l.b16 %v1631
        %v1762 = vunpack.c.l.b16 %v1632
        %v1763 = vunpack.c.l.b16 %v1633
        %v1764 = vunpack.c.l.b16 %v1634
        %v1765 = vunpack.c.l.b16 %v1635
        %v1766 = vunpack.c.l.b16 %v1636
        %v1767 = vunpack.c.l.b16 %v1637
        %v1768 = vunpack.c.l.b16 %v1638
        %v1769 = vunpack.c.l.b16 %v1639
        %v1770 = vunpack.c.l.b16 %v1640
        %v1771 = vunpack.c.l.b16 %v1641
        %v1772 = vunpack.c.l.b16 %v1642
        %v1773 = vunpack.c.l.b16 %v1643
        %v1774 = vunpack.c.l.b16 %v1644
        %v1775 = vunpack.c.l.b16 %v1645
        %v1776 = vunpack.c.l.b16 %v1646
        %v1777 = vunpack.c.l.b16 %v1647
        %v1778 = vunpack.c.l.b16 %v1648
        %v1779 = vunpack.c.l.b16 %v1649
        %v1780 = vunpack.c.l.b16 %v1650
        %v1781 = vunpack.c.l.b16 %v1651
        %v1782 = vunpack.c.l.b16 %v1652
        %v1783 = vunpack.c.l.b16 %v1653
        %v1784 = vunpack.c.l.b16 %v1654
        %v1785 = vunpack.c.l.b16 %v1655
        %v1786 = vunpack.c.l.b16 %v1656
        %v1787 = vunpack.c.l.b16 %v1657
        %v1788 = vunpack.c.l.b16 %v1658
        %v1789 = vunpack.c.l.b16 %v1659
        %v1790 = vunpack.c.l.b16 %v1660
        %v1791 = vunpack.c.l.b16 %v1661
        %v1792 = vunpack.c.l.b16 %v1662
        %v1793 = vunpack.c.l.b16 %v1663
        %v1794 = vunpack.c.l.b16 %v1664
        %v1795 = vunpack.c.l.b16 %v1665
        %v1796 = vunpack.c.l.b16 %v1666
        %v1797 = vunpack.c.l.b16 %v1667
        %v1798 = vunpack.c.l.b16 %v1668
        %v1799 = vunpack.c.l.b16 %v1669
        %v1800 = vunpack.c.l.b16 %v1670
        %v1801 = vunpack.c.l.b16 %v1671
        %v1802 = vunpack.c.l.b16 %v1672
        %v1803 = vunpack.c.l.b16 %v1673
        %v1804 = vunpack.c.l.b16 %v1674
        %v1805 = vpack.c.b16 %v1758, %v1757
        %v1806 = vpack.c.b16 %v1760, %v1759
        %v1807 = vpack.c.b16 %v1762, %v1761
        %v1808 = vpack.c.b16 %v1764, %v1763
        %v1809 = vpack.c.b16 %v1766, %v1765
        %v1810 = vpack.c.b16 %v1768, %v1767
        %v1811 = vpack.c.b16 %v1770, %v1769
        %v1812 = vpack.c.b16 %v1772, %v1771
        %v1813 = vpack.c.b16 %v1774, %v1773
        %v1814 = vpack.c.b16 %v1776, %v1775
        %v1815 = vpack.c.b16 %v1778, %v1777
        %v1816 = vpack.c.b16 %v1780, %v1779
        %v1817 = vpack.c.b16 %v1782, %v1781
        %v1818 = vpack.c.b16 %v1784, %v1783
        %v1819 = vpack.c.b16 %v1786, %v1785
        %v1820 = vpack.c.b16 %v1788, %v1787
        %v1821 = vpack.c.b16 %v1790, %v1789
        %v1822 = vpack.c.b16 %v1792, %v1791
        %v1823 = vpack.c.b16 %v1794, %v1793
        %v1824 = vpack.c.b16 %v1796, %v1795
        %v1825 = vpack.c.b16 %v1798, %v1797
        %v1826 = vpack.c.b16 %v1800, %v1799
        %v1827 = vpack.c.b16 %v1802, %v1801
        %v1828 = vpack.c.b16 %v1804, %v1803
        %v1869 = vunpack.c.l.b16 %v1693
        %v1870 = vunpack.c.l.b16 %v1694
        %v1871 = vunpack.c.l.b16 %v1695
        %v1872 = vunpack.c.l.b16 %v1696
        %v1873 = vunpack.c.l.b16 %v1697
        %v1874 = vunpack.c.l.b16 %v1698
        %v1875 = vunpack.c.l.b16 %v1699
        %v1876 = vunpack.c.l.b16 %v1700
        %v1877 = vunpack.c.l.b16 %v1701
        %v1878 = vunpack.c.l.b16 %v1702
        %v1879 = vunpack.c.l.b16 %v1703
        %v1880 = vunpack.c.l.b16 %v1704
        %v1881 = vunpack.c.l.b16 %v1705
        %v1882 = vunpack.c.l.b16 %v1706
        %v1883 = vunpack.c.l.b16 %v1707
        %v1884 = vunpack.c.l.b16 %v1708
        %v1885 = vpack.c.b16 %v1870, %v1869
        %v1886 = vpack.c.b16 %v1872, %v1871
        %v1887 = vpack.c.b16 %v1874, %v1873
        %v1888 = vpack.c.b16 %v1876, %v1875
        %v1889 = vpack.c.b16 %v1878, %v1877
        %v1890 = vpack.c.b16 %v1880, %v1879
        %v1891 = vpack.c.b16 %v1882, %v1881
        %v1892 = vpack.c.b16 %v1884, %v1883
        %1901 = vmatprep.subr.bf16.mxu0 0
        %1902 = vmatpush1.bf16.msra.mxu0 %v1885
        %1903 = vmatprep.subr.bf16.mxu0 0
        %1904 = vmatpush1.bf16.msra.mxu0 %v1886
        %1905 = vmatprep.subr.bf16.mxu0 0
        %1906 = vmatpush1.bf16.msra.mxu0 %v1887
        %1907 = vmatprep.subr.bf16.mxu0 0
        %1908 = vmatpush1.bf16.msra.mxu0 %v1888
        %1909 = vmatprep.subr.bf16.mxu0 0
        %1910 = vmatpush1.bf16.msra.mxu0 %v1889
        %1911 = vmatprep.subr.bf16.mxu0 0
        %1912 = vmatpush1.bf16.msra.mxu0 %v1890
        %1913 = vmatprep.subr.bf16.mxu0 0
        %1914 = vmatpush1.bf16.msra.mxu0 %v1891
        %1915 = vmatprep.subr.bf16.mxu0 0
        %1916 = vmatpush1.bf16.msra.mxu0 %v1892
        %1917 = vmatprep.subr.bf16.mxu0 0
        %1918 = vmatpush1.bf16.msra.mxu0 0
        %1919 = vmatprep.subr.bf16.mxu0 0
        %1920 = vmatpush1.bf16.msra.mxu0 0
        %1921 = vmatprep.subr.bf16.mxu0 0
        %1922 = vmatpush1.bf16.msra.mxu0 0
        %1923 = vmatprep.subr.bf16.mxu0 0
        %1924 = vmatpush1.bf16.msra.mxu0 0
        %1925 = vmatprep.subr.bf16.mxu0 0
        %1926 = vmatpush1.bf16.msra.mxu0 0
        %1927 = vmatprep.subr.bf16.mxu0 0
        %1928 = vmatpush1.bf16.msra.mxu0 0
        %1929 = vmatprep.subr.bf16.mxu0 0
        %1930 = vmatpush1.bf16.msra.mxu0 0
        %1931 = vmatprep.subr.bf16.mxu0 0
        %1932 = vmatpush1.bf16.msra.mxu0 0
        %1933 = vmatprep.mubr.bf16.mxu0 0
        %1934 = vmatmul.mubr.bf16.gmra.mrb[0].mxu0 %v1805
        %v1935 = vpop.f32.mrb[0].mxu0
        %v1936 = vadd.f32 0.0, %v1935
        %v1937 = vpop.f32.mrb[0].mxu0
        %v1938 = vpop.f32.mrb[0].mxu0
        %v1939 = vadd.f32 0.0, %v1938
        %v1940 = vpop.f32.mrb[0].mxu0
        %1941 = vmatprep.mubr.bf16.mxu0 0
        %1942 = vmatmul.mubr.bf16.gmra.mrb[0].mxu0 %v1806
        %v1943 = vpop.f32.mrb[0].mxu0
        %v1944 = vadd.f32 0.0, %v1943
        %v1945 = vpop.f32.mrb[0].mxu0
        %v1946 = vpop.f32.mrb[0].mxu0
        %v1947 = vadd.f32 0.0, %v1946
        %v1948 = vpop.f32.mrb[0].mxu0
        %1949 = vmatprep.mubr.bf16.mxu0 0
        %1950 = vmatmul.mubr.bf16.gmra.mrb[0].mxu0 %v1807
        %v1951 = vpop.f32.mrb[0].mxu0
        %v1952 = vadd.f32 0.0, %v1951
        %v1953 = vpop.f32.mrb[0].mxu0
        %v1954 = vpop.f32.mrb[0].mxu0
        %v1955 = vadd.f32 0.0, %v1954
        %v1956 = vpop.f32.mrb[0].mxu0
        %1957 = vmatprep.mubr.bf16.mxu0 0
        %1958 = vmatmul.mubr.bf16.gmra.mrb[0].mxu0 %v1808
        %v1959 = vpop.f32.mrb[0].mxu0
        %v1960 = vadd.f32 0.0, %v1959
        %v1961 = vpop.f32.mrb[0].mxu0
        %v1962 = vpop.f32.mrb[0].mxu0
        %v1963 = vadd.f32 0.0, %v1962
        %v1964 = vpop.f32.mrb[0].mxu0
        %1965 = vmatprep.mubr.bf16.mxu0 0
        %1966 = vmatmul.mubr.bf16.gmra.mrb[0].mxu0 %v1809
        %v1967 = vpop.f32.mrb[0].mxu0
        %v1968 = vadd.f32 0.0, %v1967
        %v1969 = vpop.f32.mrb[0].mxu0
        %v1970 = vpop.f32.mrb[0].mxu0
        %v1971 = vadd.f32 0.0, %v1970
        %v1972 = vpop.f32.mrb[0].mxu0
        %1973 = vmatprep.mubr.bf16.mxu0 0
        %1974 = vmatmul.mubr.bf16.gmra.mrb[0].mxu0 %v1810
        %v1975 = vpop.f32.mrb[0].mxu0
        %v1976 = vadd.f32 0.0, %v1975
        %v1977 = vpop.f32.mrb[0].mxu0
        %v1978 = vpop.f32.mrb[0].mxu0
        %v1979 = vadd.f32 0.0, %v1978
        %v1980 = vpop.f32.mrb[0].mxu0
        %1981 = vmatprep.mubr.bf16.mxu0 0
        %1982 = vmatmul.mubr.bf16.gmra.mrb[0].mxu0 %v1811
        %v1983 = vpop.f32.mrb[0].mxu0
        %v1984 = vadd.f32 0.0, %v1983
        %v1985 = vpop.f32.mrb[0].mxu0
        %v1986 = vpop.f32.mrb[0].mxu0
        %v1987 = vadd.f32 0.0, %v1986
        %v1988 = vpop.f32.mrb[0].mxu0
        %1989 = vmatprep.mubr.bf16.mxu0 0
        %1990 = vmatmul.mubr.bf16.gmra.mrb[0].mxu0 %v1812
        %v1991 = vpop.f32.mrb[0].mxu0
        %v1992 = vadd.f32 0.0, %v1991
        %v1993 = vpop.f32.mrb[0].mxu0
        %v1994 = vpop.f32.mrb[0].mxu0
        %v1995 = vadd.f32 0.0, %v1994
        %v1996 = vpop.f32.mrb[0].mxu0
        %1997 = vmatprep.mubr.bf16.mxu0 0
        %1998 = vmatmul.mubr.bf16.gmra.mrb[0].mxu0 %v1813
        %v1999 = vpop.f32.mrb[0].mxu0
        %v2000 = vadd.f32 0.0, %v1999
        %v2001 = vpop.f32.mrb[0].mxu0
        %v2002 = vpop.f32.mrb[0].mxu0
        %v2003 = vadd.f32 0.0, %v2002
        %v2004 = vpop.f32.mrb[0].mxu0
        %2005 = vmatprep.mubr.bf16.mxu0 0
        %2006 = vmatmul.mubr.bf16.gmra.mrb[0].mxu0 %v1814
        %v2007 = vpop.f32.mrb[0].mxu0
        %v2008 = vadd.f32 0.0, %v2007
        %v2009 = vpop.f32.mrb[0].mxu0
        %v2010 = vpop.f32.mrb[0].mxu0
        %v2011 = vadd.f32 0.0, %v2010
        %v2012 = vpop.f32.mrb[0].mxu0
        %2013 = vmatprep.mubr.bf16.mxu0 0
        %2014 = vmatmul.mubr.bf16.gmra.mrb[0].mxu0 %v1815
        %v2015 = vpop.f32.mrb[0].mxu0
        %v2016 = vadd.f32 0.0, %v2015
        %v2017 = vpop.f32.mrb[0].mxu0
        %v2018 = vpop.f32.mrb[0].mxu0
        %v2019 = vadd.f32 0.0, %v2018
        %v2020 = vpop.f32.mrb[0].mxu0
        %2021 = vmatprep.mubr.bf16.mxu0 0
        %2022 = vmatmul.mubr.bf16.gmra.mrb[0].mxu0 %v1816
        %v2023 = vpop.f32.mrb[0].mxu0
        %v2024 = vadd.f32 0.0, %v2023
        %v2025 = vpop.f32.mrb[0].mxu0
        %v2026 = vpop.f32.mrb[0].mxu0
        %v2027 = vadd.f32 0.0, %v2026
        %v2028 = vpop.f32.mrb[0].mxu0
        %2029 = vmatprep.mubr.bf16.mxu0 0
        %2030 = vmatmul.mubr.bf16.gmra.mrb[0].mxu0 %v1817
        %v2031 = vpop.f32.mrb[0].mxu0
        %v2032 = vadd.f32 0.0, %v2031
        %v2033 = vpop.f32.mrb[0].mxu0
        %v2034 = vpop.f32.mrb[0].mxu0
        %v2035 = vadd.f32 0.0, %v2034
        %v2036 = vpop.f32.mrb[0].mxu0
        %2037 = vmatprep.mubr.bf16.mxu0 0
        %2038 = vmatmul.mubr.bf16.gmra.mrb[0].mxu0 %v1818
        %v2039 = vpop.f32.mrb[0].mxu0
        %v2040 = vadd.f32 0.0, %v2039
        %v2041 = vpop.f32.mrb[0].mxu0
        %v2042 = vpop.f32.mrb[0].mxu0
        %v2043 = vadd.f32 0.0, %v2042
        %v2044 = vpop.f32.mrb[0].mxu0
        %2045 = vmatprep.mubr.bf16.mxu0 0
        %2046 = vmatmul.mubr.bf16.gmra.mrb[0].mxu0 %v1819
        %v2047 = vpop.f32.mrb[0].mxu0
        %v2048 = vadd.f32 0.0, %v2047
        %v2049 = vpop.f32.mrb[0].mxu0
        %v2050 = vpop.f32.mrb[0].mxu0
        %v2051 = vadd.f32 0.0, %v2050
        %v2052 = vpop.f32.mrb[0].mxu0
        %2053 = vmatprep.mubr.bf16.mxu0 0
        %2054 = vmatmul.mubr.bf16.gmra.mrb[0].mxu0 %v1820
        %v2055 = vpop.f32.mrb[0].mxu0
        %v2056 = vadd.f32 0.0, %v2055
        %v2057 = vpop.f32.mrb[0].mxu0
        %v2058 = vpop.f32.mrb[0].mxu0
        %v2059 = vadd.f32 0.0, %v2058
        %v2060 = vpop.f32.mrb[0].mxu0
        %2061 = vmatprep.mubr.bf16.mxu0 0
        %2062 = vmatmul.mubr.bf16.gmra.mrb[0].mxu0 %v1821
        %v2063 = vpop.f32.mrb[0].mxu0
        %v2064 = vadd.f32 0.0, %v2063
        %v2065 = vpop.f32.mrb[0].mxu0
        %v2066 = vpop.f32.mrb[0].mxu0
        %v2067 = vadd.f32 0.0, %v2066
        %v2068 = vpop.f32.mrb[0].mxu0
        %2069 = vmatprep.mubr.bf16.mxu0 0
        %2070 = vmatmul.mubr.bf16.gmra.mrb[0].mxu0 %v1822
        %v2071 = vpop.f32.mrb[0].mxu0
        %v2072 = vadd.f32 0.0, %v2071
        %v2073 = vpop.f32.mrb[0].mxu0
        %v2074 = vpop.f32.mrb[0].mxu0
        %v2075 = vadd.f32 0.0, %v2074
        %v2076 = vpop.f32.mrb[0].mxu0
        %2077 = vmatprep.mubr.bf16.mxu0 0
        %2078 = vmatmul.mubr.bf16.gmra.mrb[0].mxu0 %v1823
        %v2079 = vpop.f32.mrb[0].mxu0
        %v2080 = vadd.f32 0.0, %v2079
        %v2081 = vpop.f32.mrb[0].mxu0
        %v2082 = vpop.f32.mrb[0].mxu0
        %v2083 = vadd.f32 0.0, %v2082
        %v2084 = vpop.f32.mrb[0].mxu0
        %2085 = vmatprep.mubr.bf16.mxu0 0
        %2086 = vmatmul.mubr.bf16.gmra.mrb[0].mxu0 %v1824
        %v2087 = vpop.f32.mrb[0].mxu0
        %v2088 = vadd.f32 0.0, %v2087
        %v2089 = vpop.f32.mrb[0].mxu0
        %v2090 = vpop.f32.mrb[0].mxu0
        %v2091 = vadd.f32 0.0, %v2090
        %v2092 = vpop.f32.mrb[0].mxu0
        %2093 = vmatprep.mubr.bf16.mxu0 0
        %2094 = vmatmul.mubr.bf16.gmra.mrb[0].mxu0 %v1825
        %v2095 = vpop.f32.mrb[0].mxu0
        %v2096 = vadd.f32 0.0, %v2095
        %v2097 = vpop.f32.mrb[0].mxu0
        %v2098 = vpop.f32.mrb[0].mxu0
        %v2099 = vadd.f32 0.0, %v2098
        %v2100 = vpop.f32.mrb[0].mxu0
        %2101 = vmatprep.mubr.bf16.mxu0 0
        %2102 = vmatmul.mubr.bf16.gmra.mrb[0].mxu0 %v1826
        %v2103 = vpop.f32.mrb[0].mxu0
        %v2104 = vadd.f32 0.0, %v2103
        %v2105 = vpop.f32.mrb[0].mxu0
        %v2106 = vpop.f32.mrb[0].mxu0
        %v2107 = vadd.f32 0.0, %v2106
        %v2108 = vpop.f32.mrb[0].mxu0
        %2109 = vmatprep.mubr.bf16.mxu0 0
        %2110 = vmatmul.mubr.bf16.gmra.mrb[0].mxu0 %v1827
        %v2111 = vpop.f32.mrb[0].mxu0
        %v2112 = vadd.f32 0.0, %v2111
        %v2113 = vpop.f32.mrb[0].mxu0
        %v2114 = vpop.f32.mrb[0].mxu0
        %v2115 = vadd.f32 0.0, %v2114
        %v2116 = vpop.f32.mrb[0].mxu0
        %2117 = vmatprep.mubr.bf16.mxu0 0
        %2118 = vmatmul.mubr.bf16.gmra.mrb[0].mxu0 %v1828
        %v2119 = vpop.f32.mrb[0].mxu0
        %v2120 = vadd.f32 0.0, %v2119
        %v2121 = vpop.f32.mrb[0].mxu0
        %v2122 = vpop.f32.mrb[0].mxu0
        %v2123 = vadd.f32 0.0, %v2122
        %v2124 = vpop.f32.mrb[0].mxu0
        %2125 = vdwg.mxu0
        %v2126 = vrot.slane %v1936, 1
        %v2127 = vrot.slane %v1939, 1
        %v2128 = vrot.slane %v1944, 1
        %v2129 = vrot.slane %v1947, 1
        %v2130 = vrot.slane %v1952, 1
        %v2131 = vrot.slane %v1955, 1
        %v2132 = vrot.slane %v1960, 1
        %v2133 = vrot.slane %v1963, 1
        %v2134 = vrot.slane %v1968, 1
        %v2135 = vrot.slane %v1971, 1
        %v2136 = vrot.slane %v1976, 1
        %v2137 = vrot.slane %v1979, 1
        %v2138 = vrot.slane %v1984, 1
        %v2139 = vrot.slane %v1987, 1
        %v2140 = vrot.slane %v1992, 1
        %v2141 = vrot.slane %v1995, 1
        %v2142 = vrot.slane %v2000, 1
        %v2143 = vrot.slane %v2003, 1
        %v2144 = vrot.slane %v2008, 1
        %v2145 = vrot.slane %v2011, 1
        %v2146 = vrot.slane %v2016, 1
        %v2147 = vrot.slane %v2019, 1
        %v2148 = vrot.slane %v2024, 1
        %v2149 = vrot.slane %v2027, 1
        %v2150 = vrot.slane %v2032, 1
        %v2151 = vrot.slane %v2035, 1
        %v2152 = vrot.slane %v2040, 1
        %v2153 = vrot.slane %v2043, 1
        %v2154 = vrot.slane %v2048, 1
        %v2155 = vrot.slane %v2051, 1
        %v2156 = vrot.slane %v2056, 1
        %v2157 = vrot.slane %v2059, 1
        %v2158 = vrot.slane %v2064, 1
        %v2159 = vrot.slane %v2067, 1
        %v2160 = vrot.slane %v2072, 1
        %v2161 = vrot.slane %v2075, 1
        %v2162 = vrot.slane %v2080, 1
        %v2163 = vrot.slane %v2083, 1
        %v2164 = vrot.slane %v2088, 1
        %v2165 = vrot.slane %v2091, 1
        %v2166 = vrot.slane %v2096, 1
        %v2167 = vrot.slane %v2099, 1
        %v2168 = vrot.slane %v2104, 1
        %v2169 = vrot.slane %v2107, 1
        %v2170 = vrot.slane %v2112, 1
        %v2171 = vrot.slane %v2115, 1
        %v2172 = vrot.slane %v2120, 1
        %v2173 = vrot.slane %v2123, 1
        %v2174 = vsel %vm821, %v2172, %v2173
        %v2175 = vsel %vm821, %v2171, %v2172
        %v2176 = vsel %vm821, %v2170, %v2171
        %v2177 = vsel %vm821, %v2169, %v2170
        %v2178 = vsel %vm821, %v2168, %v2169
        %v2179 = vsel %vm821, %v2167, %v2168
        %v2180 = vsel %vm821, %v2166, %v2167
        %v2181 = vsel %vm821, %v2165, %v2166
        %v2182 = vsel %vm821, %v2164, %v2165
        %v2183 = vsel %vm821, %v2163, %v2164
        %v2184 = vsel %vm821, %v2162, %v2163
        %v2185 = vsel %vm821, %v2161, %v2162
        %v2186 = vsel %vm821, %v2160, %v2161
        %v2187 = vsel %vm821, %v2159, %v2160
        %v2188 = vsel %vm821, %v2158, %v2159
        %v2189 = vsel %vm821, %v2157, %v2158
        %v2190 = vsel %vm821, %v2156, %v2157
        %v2191 = vsel %vm821, %v2155, %v2156
        %v2192 = vsel %vm821, %v2154, %v2155
        %v2193 = vsel %vm821, %v2153, %v2154
        %v2194 = vsel %vm821, %v2152, %v2153
        %v2195 = vsel %vm821, %v2151, %v2152
        %v2196 = vsel %vm821, %v2150, %v2151
        %v2197 = vsel %vm821, %v2149, %v2150
        %v2198 = vsel %vm821, %v2148, %v2149
        %v2199 = vsel %vm821, %v2147, %v2148
        %v2200 = vsel %vm821, %v2146, %v2147
        %v2201 = vsel %vm821, %v2145, %v2146
        %v2202 = vsel %vm821, %v2144, %v2145
        %v2203 = vsel %vm821, %v2143, %v2144
        %v2204 = vsel %vm821, %v2142, %v2143
        %v2205 = vsel %vm821, %v2141, %v2142
        %v2206 = vsel %vm821, %v2140, %v2141
        %v2207 = vsel %vm821, %v2139, %v2140
        %v2208 = vsel %vm821, %v2138, %v2139
        %v2209 = vsel %vm821, %v2137, %v2138
        %v2210 = vsel %vm821, %v2136, %v2137
        %v2211 = vsel %vm821, %v2135, %v2136
        %v2212 = vsel %vm821, %v2134, %v2135
        %v2213 = vsel %vm821, %v2133, %v2134
        %v2214 = vsel %vm821, %v2132, %v2133
        %v2215 = vsel %vm821, %v2131, %v2132
        %v2216 = vsel %vm821, %v2130, %v2131
        %v2217 = vsel %vm821, %v2129, %v2130
        %v2218 = vsel %vm821, %v2128, %v2129
        %v2219 = vsel %vm821, %v2127, %v2128
        %v2220 = vsel %vm821, %v2126, %v2127
        %v2221 = vsel %vm821, %v2173, %v2126
        %v2238 = vunpack.c.l.b16 %v1676
        %v2239 = vunpack.c.l.b16 %v1677
        %v2240 = vunpack.c.l.b16 %v1678
        %v2241 = vunpack.c.l.b16 %v1679
        %v2242 = vunpack.c.l.b16 %v1680
        %v2243 = vunpack.c.l.b16 %v1681
        %v2244 = vunpack.c.l.b16 %v1682
        %v2245 = vunpack.c.l.b16 %v1683
        %v2246 = vunpack.c.l.b16 %v1684
        %v2247 = vunpack.c.l.b16 %v1685
        %v2248 = vunpack.c.l.b16 %v1686
        %v2249 = vunpack.c.l.b16 %v1687
        %v2250 = vunpack.c.l.b16 %v1688
        %v2251 = vunpack.c.l.b16 %v1689
        %v2252 = vunpack.c.l.b16 %v1690
        %v2253 = vunpack.c.l.b16 %v1691
        %v2254 = vpack.c.b16 %v2239, %v2238
        %v2255 = vpack.c.b16 %v2241, %v2240
        %v2256 = vpack.c.b16 %v2243, %v2242
        %v2257 = vpack.c.b16 %v2245, %v2244
        %v2258 = vpack.c.b16 %v2247, %v2246
        %v2259 = vpack.c.b16 %v2249, %v2248
        %v2260 = vpack.c.b16 %v2251, %v2250
        %v2261 = vpack.c.b16 %v2253, %v2252
        %2270 = vmatprep.subr.bf16.mxu0 0
        %2271 = vmatpush1.bf16.msra.mxu0 %v2254
        %2272 = vmatprep.subr.bf16.mxu0 0
        %2273 = vmatpush1.bf16.msra.mxu0 %v2255
        %2274 = vmatprep.subr.bf16.mxu0 0
        %2275 = vmatpush1.bf16.msra.mxu0 %v2256
        %2276 = vmatprep.subr.bf16.mxu0 0
        %2277 = vmatpush1.bf16.msra.mxu0 %v2257
        %2278 = vmatprep.subr.bf16.mxu0 0
        %2279 = vmatpush1.bf16.msra.mxu0 %v2258
        %2280 = vmatprep.subr.bf16.mxu0 0
        %2281 = vmatpush1.bf16.msra.mxu0 %v2259
        %2282 = vmatprep.subr.bf16.mxu0 0
        %2283 = vmatpush1.bf16.msra.mxu0 %v2260
        %2284 = vmatprep.subr.bf16.mxu0 0
        %2285 = vmatpush1.bf16.msra.mxu0 %v2261
        %2286 = vmatprep.subr.bf16.mxu0 0
        %2287 = vmatpush1.bf16.msra.mxu0 0
        %2288 = vmatprep.subr.bf16.mxu0 0
        %2289 = vmatpush1.bf16.msra.mxu0 0
        %2290 = vmatprep.subr.bf16.mxu0 0
        %2291 = vmatpush1.bf16.msra.mxu0 0
        %2292 = vmatprep.subr.bf16.mxu0 0
        %2293 = vmatpush1.bf16.msra.mxu0 0
        %2294 = vmatprep.subr.bf16.mxu0 0
        %2295 = vmatpush1.bf16.msra.mxu0 0
        %2296 = vmatprep.subr.bf16.mxu0 0
        %2297 = vmatpush1.bf16.msra.mxu0 0
        %2298 = vmatprep.subr.bf16.mxu0 0
        %2299 = vmatpush1.bf16.msra.mxu0 0
        %2300 = vmatprep.subr.bf16.mxu0 0
        %2301 = vmatpush1.bf16.msra.mxu0 0
        %2302 = vmatprep.mubr.bf16.mxu0 0
        %2303 = vmatmul.mubr.bf16.gmra.mrb[0].mxu0 %v1805
        %v2304 = vpop.f32.mrb[0].mxu0
        %v2305 = vadd.f32 %v2220, %v2304
        %v2306 = vpop.f32.mrb[0].mxu0
        %v2307 = vpop.f32.mrb[0].mxu0
        %v2308 = vadd.f32 %v2219, %v2307
        %v2309 = vpop.f32.mrb[0].mxu0
        %2310 = vmatprep.mubr.bf16.mxu0 0
        %2311 = vmatmul.mubr.bf16.gmra.mrb[0].mxu0 %v1806
        %v2312 = vpop.f32.mrb[0].mxu0
        %v2313 = vadd.f32 %v2218, %v2312
        %v2314 = vpop.f32.mrb[0].mxu0
        %v2315 = vpop.f32.mrb[0].mxu0
        %v2316 = vadd.f32 %v2217, %v2315
        %v2317 = vpop.f32.mrb[0].mxu0
        %2318 = vmatprep.mubr.bf16.mxu0 0
        %2319 = vmatmul.mubr.bf16.gmra.mrb[0].mxu0 %v1807
        %v2320 = vpop.f32.mrb[0].mxu0
        %v2321 = vadd.f32 %v2216, %v2320
        %v2322 = vpop.f32.mrb[0].mxu0
        %v2323 = vpop.f32.mrb[0].mxu0
        %v2324 = vadd.f32 %v2215, %v2323
        %v2325 = vpop.f32.mrb[0].mxu0
        %2326 = vmatprep.mubr.bf16.mxu0 0
        %2327 = vmatmul.mubr.bf16.gmra.mrb[0].mxu0 %v1808
        %v2328 = vpop.f32.mrb[0].mxu0
        %v2329 = vadd.f32 %v2214, %v2328
        %v2330 = vpop.f32.mrb[0].mxu0
        %v2331 = vpop.f32.mrb[0].mxu0
        %v2332 = vadd.f32 %v2213, %v2331
        %v2333 = vpop.f32.mrb[0].mxu0
        %2334 = vmatprep.mubr.bf16.mxu0 0
        %2335 = vmatmul.mubr.bf16.gmra.mrb[0].mxu0 %v1809
        %v2336 = vpop.f32.mrb[0].mxu0
        %v2337 = vadd.f32 %v2212, %v2336
        %v2338 = vpop.f32.mrb[0].mxu0
        %v2339 = vpop.f32.mrb[0].mxu0
        %v2340 = vadd.f32 %v2211, %v2339
        %v2341 = vpop.f32.mrb[0].mxu0
        %2342 = vmatprep.mubr.bf16.mxu0 0
        %2343 = vmatmul.mubr.bf16.gmra.mrb[0].mxu0 %v1810
        %v2344 = vpop.f32.mrb[0].mxu0
        %v2345 = vadd.f32 %v2210, %v2344
        %v2346 = vpop.f32.mrb[0].mxu0
        %v2347 = vpop.f32.mrb[0].mxu0
        %v2348 = vadd.f32 %v2209, %v2347
        %v2349 = vpop.f32.mrb[0].mxu0
        %2350 = vmatprep.mubr.bf16.mxu0 0
        %2351 = vmatmul.mubr.bf16.gmra.mrb[0].mxu0 %v1811
        %v2352 = vpop.f32.mrb[0].mxu0
        %v2353 = vadd.f32 %v2208, %v2352
        %v2354 = vpop.f32.mrb[0].mxu0
        %v2355 = vpop.f32.mrb[0].mxu0
        %v2356 = vadd.f32 %v2207, %v2355
        %v2357 = vpop.f32.mrb[0].mxu0
        %2358 = vmatprep.mubr.bf16.mxu0 0
        %2359 = vmatmul.mubr.bf16.gmra.mrb[0].mxu0 %v1812
        %v2360 = vpop.f32.mrb[0].mxu0
        %v2361 = vadd.f32 %v2206, %v2360
        %v2362 = vpop.f32.mrb[0].mxu0
        %v2363 = vpop.f32.mrb[0].mxu0
        %v2364 = vadd.f32 %v2205, %v2363
        %v2365 = vpop.f32.mrb[0].mxu0
        %2366 = vmatprep.mubr.bf16.mxu0 0
        %2367 = vmatmul.mubr.bf16.gmra.mrb[0].mxu0 %v1813
        %v2368 = vpop.f32.mrb[0].mxu0
        %v2369 = vadd.f32 %v2204, %v2368
        %v2370 = vpop.f32.mrb[0].mxu0
        %v2371 = vpop.f32.mrb[0].mxu0
        %v2372 = vadd.f32 %v2203, %v2371
        %v2373 = vpop.f32.mrb[0].mxu0
        %2374 = vmatprep.mubr.bf16.mxu0 0
        %2375 = vmatmul.mubr.bf16.gmra.mrb[0].mxu0 %v1814
        %v2376 = vpop.f32.mrb[0].mxu0
        %v2377 = vadd.f32 %v2202, %v2376
        %v2378 = vpop.f32.mrb[0].mxu0
        %v2379 = vpop.f32.mrb[0].mxu0
        %v2380 = vadd.f32 %v2201, %v2379
        %v2381 = vpop.f32.mrb[0].mxu0
        %2382 = vmatprep.mubr.bf16.mxu0 0
        %2383 = vmatmul.mubr.bf16.gmra.mrb[0].mxu0 %v1815
        %v2384 = vpop.f32.mrb[0].mxu0
        %v2385 = vadd.f32 %v2200, %v2384
        %v2386 = vpop.f32.mrb[0].mxu0
        %v2387 = vpop.f32.mrb[0].mxu0
        %v2388 = vadd.f32 %v2199, %v2387
        %v2389 = vpop.f32.mrb[0].mxu0
        %2390 = vmatprep.mubr.bf16.mxu0 0
        %2391 = vmatmul.mubr.bf16.gmra.mrb[0].mxu0 %v1816
        %v2392 = vpop.f32.mrb[0].mxu0
        %v2393 = vadd.f32 %v2198, %v2392
        %v2394 = vpop.f32.mrb[0].mxu0
        %v2395 = vpop.f32.mrb[0].mxu0
        %v2396 = vadd.f32 %v2197, %v2395
        %v2397 = vpop.f32.mrb[0].mxu0
        %2398 = vmatprep.mubr.bf16.mxu0 0
        %2399 = vmatmul.mubr.bf16.gmra.mrb[0].mxu0 %v1817
        %v2400 = vpop.f32.mrb[0].mxu0
        %v2401 = vadd.f32 %v2196, %v2400
        %v2402 = vpop.f32.mrb[0].mxu0
        %v2403 = vpop.f32.mrb[0].mxu0
        %v2404 = vadd.f32 %v2195, %v2403
        %v2405 = vpop.f32.mrb[0].mxu0
        %2406 = vmatprep.mubr.bf16.mxu0 0
        %2407 = vmatmul.mubr.bf16.gmra.mrb[0].mxu0 %v1818
        %v2408 = vpop.f32.mrb[0].mxu0
        %v2409 = vadd.f32 %v2194, %v2408
        %v2410 = vpop.f32.mrb[0].mxu0
        %v2411 = vpop.f32.mrb[0].mxu0
        %v2412 = vadd.f32 %v2193, %v2411
        %v2413 = vpop.f32.mrb[0].mxu0
        %2414 = vmatprep.mubr.bf16.mxu0 0
        %2415 = vmatmul.mubr.bf16.gmra.mrb[0].mxu0 %v1819
        %v2416 = vpop.f32.mrb[0].mxu0
        %v2417 = vadd.f32 %v2192, %v2416
        %v2418 = vpop.f32.mrb[0].mxu0
        %v2419 = vpop.f32.mrb[0].mxu0
        %v2420 = vadd.f32 %v2191, %v2419
        %v2421 = vpop.f32.mrb[0].mxu0
        %2422 = vmatprep.mubr.bf16.mxu0 0
        %2423 = vmatmul.mubr.bf16.gmra.mrb[0].mxu0 %v1820
        %v2424 = vpop.f32.mrb[0].mxu0
        %v2425 = vadd.f32 %v2190, %v2424
        %v2426 = vpop.f32.mrb[0].mxu0
        %v2427 = vpop.f32.mrb[0].mxu0
        %v2428 = vadd.f32 %v2189, %v2427
        %v2429 = vpop.f32.mrb[0].mxu0
        %2430 = vmatprep.mubr.bf16.mxu0 0
        %2431 = vmatmul.mubr.bf16.gmra.mrb[0].mxu0 %v1821
        %v2432 = vpop.f32.mrb[0].mxu0
        %v2433 = vadd.f32 %v2188, %v2432
        %v2434 = vpop.f32.mrb[0].mxu0
        %v2435 = vpop.f32.mrb[0].mxu0
        %v2436 = vadd.f32 %v2187, %v2435
        %v2437 = vpop.f32.mrb[0].mxu0
        %2438 = vmatprep.mubr.bf16.mxu0 0
        %2439 = vmatmul.mubr.bf16.gmra.mrb[0].mxu0 %v1822
        %v2440 = vpop.f32.mrb[0].mxu0
        %v2441 = vadd.f32 %v2186, %v2440
        %v2442 = vpop.f32.mrb[0].mxu0
        %v2443 = vpop.f32.mrb[0].mxu0
        %v2444 = vadd.f32 %v2185, %v2443
        %v2445 = vpop.f32.mrb[0].mxu0
        %2446 = vmatprep.mubr.bf16.mxu0 0
        %2447 = vmatmul.mubr.bf16.gmra.mrb[0].mxu0 %v1823
        %v2448 = vpop.f32.mrb[0].mxu0
        %v2449 = vadd.f32 %v2184, %v2448
        %v2450 = vpop.f32.mrb[0].mxu0
        %v2451 = vpop.f32.mrb[0].mxu0
        %v2452 = vadd.f32 %v2183, %v2451
        %v2453 = vpop.f32.mrb[0].mxu0
        %2454 = vmatprep.mubr.bf16.mxu0 0
        %2455 = vmatmul.mubr.bf16.gmra.mrb[0].mxu0 %v1824
        %v2456 = vpop.f32.mrb[0].mxu0
        %v2457 = vadd.f32 %v2182, %v2456
        %v2458 = vpop.f32.mrb[0].mxu0
        %v2459 = vpop.f32.mrb[0].mxu0
        %v2460 = vadd.f32 %v2181, %v2459
        %v2461 = vpop.f32.mrb[0].mxu0
        %2462 = vmatprep.mubr.bf16.mxu0 0
        %2463 = vmatmul.mubr.bf16.gmra.mrb[0].mxu0 %v1825
        %v2464 = vpop.f32.mrb[0].mxu0
        %v2465 = vadd.f32 %v2180, %v2464
        %v2466 = vpop.f32.mrb[0].mxu0
        %v2467 = vpop.f32.mrb[0].mxu0
        %v2468 = vadd.f32 %v2179, %v2467
        %v2469 = vpop.f32.mrb[0].mxu0
        %2470 = vmatprep.mubr.bf16.mxu0 0
        %2471 = vmatmul.mubr.bf16.gmra.mrb[0].mxu0 %v1826
        %v2472 = vpop.f32.mrb[0].mxu0
        %v2473 = vadd.f32 %v2178, %v2472
        %v2474 = vpop.f32.mrb[0].mxu0
        %v2475 = vpop.f32.mrb[0].mxu0
        %v2476 = vadd.f32 %v2177, %v2475
        %v2477 = vpop.f32.mrb[0].mxu0
        %2478 = vmatprep.mubr.bf16.mxu0 0
        %2479 = vmatmul.mubr.bf16.gmra.mrb[0].mxu0 %v1827
        %v2480 = vpop.f32.mrb[0].mxu0
        %v2481 = vadd.f32 %v2176, %v2480
        %v2482 = vpop.f32.mrb[0].mxu0
        %v2483 = vpop.f32.mrb[0].mxu0
        %v2484 = vadd.f32 %v2175, %v2483
        %v2485 = vpop.f32.mrb[0].mxu0
        %2486 = vmatprep.mubr.bf16.mxu0 0
        %2487 = vmatmul.mubr.bf16.gmra.mrb[0].mxu0 %v1828
        %v2488 = vpop.f32.mrb[0].mxu0
        %v2489 = vadd.f32 %v2174, %v2488
        %v2490 = vpop.f32.mrb[0].mxu0
        %v2491 = vpop.f32.mrb[0].mxu0
        %v2492 = vadd.f32 %v2221, %v2491
        %v2493 = vpop.f32.mrb[0].mxu0
        %2494 = vdwg.mxu0
        %s2495 = scalar_lea.vmem [#allocation8], 320
        %v2496 = vld [vmem:[%s2495] sm:$0xf]
        %v2497 = vld [vmem:[%s2495 + $0x4] sm:$0xf]
        %v2498 = vld [vmem:[%s2495 + $0x8] sm:$0xf]
        %v2499 = vld [vmem:[%s2495 + $0xc] sm:$0xf]
        %v2500 = vld [vmem:[%s2495 + $0x10] sm:$0xf]
        %v2501 = vld [vmem:[%s2495 + $0x14] sm:$0xf]
        %v2502 = vld [vmem:[%s2495 + $0x18] sm:$0xf]
        %v2503 = vld [vmem:[%s2495 + $0x1c] sm:$0xf]
        %v2504 = vld [vmem:[%s2495 + $0x20] sm:$0xf]
        %v2505 = vld [vmem:[%s2495 + $0x24] sm:$0xf]
        %v2506 = vld [vmem:[%s2495 + $0x28] sm:$0xf]
        %v2507 = vld [vmem:[%s2495 + $0x2c] sm:$0xf]
        %v2508 = vld [vmem:[%s2495 + $0x30] sm:$0xf]
        %v2509 = vld [vmem:[%s2495 + $0x34] sm:$0xf]
        %v2510 = vld [vmem:[%s2495 + $0x38] sm:$0xf]
        %v2511 = vld [vmem:[%s2495 + $0x3c] sm:$0xf]
        %v2528 = vunpack.c.l.b16 %v2496
        %v2529 = vunpack.c.l.b16 %v2497
        %v2530 = vunpack.c.l.b16 %v2498
        %v2531 = vunpack.c.l.b16 %v2499
        %v2532 = vunpack.c.l.b16 %v2500
        %v2533 = vunpack.c.l.b16 %v2501
        %v2534 = vunpack.c.l.b16 %v2502
        %v2535 = vunpack.c.l.b16 %v2503
        %v2536 = vunpack.c.l.b16 %v2504
        %v2537 = vunpack.c.l.b16 %v2505
        %v2538 = vunpack.c.l.b16 %v2506
        %v2539 = vunpack.c.l.b16 %v2507
        %v2540 = vunpack.c.l.b16 %v2508
        %v2541 = vunpack.c.l.b16 %v2509
        %v2542 = vunpack.c.l.b16 %v2510
        %v2543 = vunpack.c.l.b16 %v2511
        %v2544 = vpack.c.b16 %v2529, %v2528
        %v2545 = vpack.c.b16 %v2531, %v2530
        %v2546 = vpack.c.b16 %v2533, %v2532
        %v2547 = vpack.c.b16 %v2535, %v2534
        %v2548 = vpack.c.b16 %v2537, %v2536
        %v2549 = vpack.c.b16 %v2539, %v2538
        %v2550 = vpack.c.b16 %v2541, %v2540
        %v2551 = vpack.c.b16 %v2543, %v2542
        %2560 = vmatprep.subr.bf16.mxu0 0
        %2561 = vmatpush1.bf16.msra.mxu0 %v2544
        %2562 = vmatprep.subr.bf16.mxu0 0
        %2563 = vmatpush1.bf16.msra.mxu0 %v2545
        %2564 = vmatprep.subr.bf16.mxu0 0
        %2565 = vmatpush1.bf16.msra.mxu0 %v2546
        %2566 = vmatprep.subr.bf16.mxu0 0
        %2567 = vmatpush1.bf16.msra.mxu0 %v2547
        %2568 = vmatprep.subr.bf16.mxu0 0
        %2569 = vmatpush1.bf16.msra.mxu0 %v2548
        %2570 = vmatprep.subr.bf16.mxu0 0
        %2571 = vmatpush1.bf16.msra.mxu0 %v2549
        %2572 = vmatprep.subr.bf16.mxu0 0
        %2573 = vmatpush1.bf16.msra.mxu0 %v2550
        %2574 = vmatprep.subr.bf16.mxu0 0
        %2575 = vmatpush1.bf16.msra.mxu0 %v2551
        %2576 = vmatprep.subr.bf16.mxu0 0
        %2577 = vmatpush1.bf16.msra.mxu0 0
        %2578 = vmatprep.subr.bf16.mxu0 0
        %2579 = vmatpush1.bf16.msra.mxu0 0
        %2580 = vmatprep.subr.bf16.mxu0 0
        %2581 = vmatpush1.bf16.msra.mxu0 0
        %2582 = vmatprep.subr.bf16.mxu0 0
        %2583 = vmatpush1.bf16.msra.mxu0 0
        %2584 = vmatprep.subr.bf16.mxu0 0
        %2585 = vmatpush1.bf16.msra.mxu0 0
        %2586 = vmatprep.subr.bf16.mxu0 0
        %2587 = vmatpush1.bf16.msra.mxu0 0
        %2588 = vmatprep.subr.bf16.mxu0 0
        %2589 = vmatpush1.bf16.msra.mxu0 0
        %2590 = vmatprep.subr.bf16.mxu0 0
        %2591 = vmatpush1.bf16.msra.mxu0 0
        %2592 = vmatprep.mubr.bf16.mxu0 0
        %2593 = vmatmul.mubr.bf16.gmra.mrb[0].mxu0 %v1805
        %v2594 = vpop.f32.mrb[0].mxu0
        %v2595 = vadd.f32 0.0, %v2594
        %v2596 = vpop.f32.mrb[0].mxu0
        %v2597 = vpop.f32.mrb[0].mxu0
        %v2598 = vadd.f32 0.0, %v2597
        %v2599 = vpop.f32.mrb[0].mxu0
        %2600 = vmatprep.mubr.bf16.mxu0 0
        %2601 = vmatmul.mubr.bf16.gmra.mrb[0].mxu0 %v1806
        %v2602 = vpop.f32.mrb[0].mxu0
        %v2603 = vadd.f32 0.0, %v2602
        %v2604 = vpop.f32.mrb[0].mxu0
        %v2605 = vpop.f32.mrb[0].mxu0
        %v2606 = vadd.f32 0.0, %v2605
        %v2607 = vpop.f32.mrb[0].mxu0
        %2608 = vmatprep.mubr.bf16.mxu0 0
        %2609 = vmatmul.mubr.bf16.gmra.mrb[0].mxu0 %v1807
        %v2610 = vpop.f32.mrb[0].mxu0
        %v2611 = vadd.f32 0.0, %v2610
        %v2612 = vpop.f32.mrb[0].mxu0
        %v2613 = vpop.f32.mrb[0].mxu0
        %v2614 = vadd.f32 0.0, %v2613
        %v2615 = vpop.f32.mrb[0].mxu0
        %2616 = vmatprep.mubr.bf16.mxu0 0
        %2617 = vmatmul.mubr.bf16.gmra.mrb[0].mxu0 %v1808
        %v2618 = vpop.f32.mrb[0].mxu0
        %v2619 = vadd.f32 0.0, %v2618
        %v2620 = vpop.f32.mrb[0].mxu0
        %v2621 = vpop.f32.mrb[0].mxu0
        %v2622 = vadd.f32 0.0, %v2621
        %v2623 = vpop.f32.mrb[0].mxu0
        %2624 = vmatprep.mubr.bf16.mxu0 0
        %2625 = vmatmul.mubr.bf16.gmra.mrb[0].mxu0 %v1809
        %v2626 = vpop.f32.mrb[0].mxu0
        %v2627 = vadd.f32 0.0, %v2626
        %v2628 = vpop.f32.mrb[0].mxu0
        %v2629 = vpop.f32.mrb[0].mxu0
        %v2630 = vadd.f32 0.0, %v2629
        %v2631 = vpop.f32.mrb[0].mxu0
        %2632 = vmatprep.mubr.bf16.mxu0 0
        %2633 = vmatmul.mubr.bf16.gmra.mrb[0].mxu0 %v1810
        %v2634 = vpop.f32.mrb[0].mxu0
        %v2635 = vadd.f32 0.0, %v2634
        %v2636 = vpop.f32.mrb[0].mxu0
        %v2637 = vpop.f32.mrb[0].mxu0
        %v2638 = vadd.f32 0.0, %v2637
        %v2639 = vpop.f32.mrb[0].mxu0
        %2640 = vmatprep.mubr.bf16.mxu0 0
        %2641 = vmatmul.mubr.bf16.gmra.mrb[0].mxu0 %v1811
        %v2642 = vpop.f32.mrb[0].mxu0
        %v2643 = vadd.f32 0.0, %v2642
        %v2644 = vpop.f32.mrb[0].mxu0
        %v2645 = vpop.f32.mrb[0].mxu0
        %v2646 = vadd.f32 0.0, %v2645
        %v2647 = vpop.f32.mrb[0].mxu0
        %2648 = vmatprep.mubr.bf16.mxu0 0
        %2649 = vmatmul.mubr.bf16.gmra.mrb[0].mxu0 %v1812
        %v2650 = vpop.f32.mrb[0].mxu0
        %v2651 = vadd.f32 0.0, %v2650
        %v2652 = vpop.f32.mrb[0].mxu0
        %v2653 = vpop.f32.mrb[0].mxu0
        %v2654 = vadd.f32 0.0, %v2653
        %v2655 = vpop.f32.mrb[0].mxu0
        %2656 = vmatprep.mubr.bf16.mxu0 0
        %2657 = vmatmul.mubr.bf16.gmra.mrb[0].mxu0 %v1813
        %v2658 = vpop.f32.mrb[0].mxu0
        %v2659 = vadd.f32 0.0, %v2658
        %v2660 = vpop.f32.mrb[0].mxu0
        %v2661 = vpop.f32.mrb[0].mxu0
        %v2662 = vadd.f32 0.0, %v2661
        %v2663 = vpop.f32.mrb[0].mxu0
        %2664 = vmatprep.mubr.bf16.mxu0 0
        %2665 = vmatmul.mubr.bf16.gmra.mrb[0].mxu0 %v1814
        %v2666 = vpop.f32.mrb[0].mxu0
        %v2667 = vadd.f32 0.0, %v2666
        %v2668 = vpop.f32.mrb[0].mxu0
        %v2669 = vpop.f32.mrb[0].mxu0
        %v2670 = vadd.f32 0.0, %v2669
        %v2671 = vpop.f32.mrb[0].mxu0
        %2672 = vmatprep.mubr.bf16.mxu0 0
        %2673 = vmatmul.mubr.bf16.gmra.mrb[0].mxu0 %v1815
        %v2674 = vpop.f32.mrb[0].mxu0
        %v2675 = vadd.f32 0.0, %v2674
        %v2676 = vpop.f32.mrb[0].mxu0
        %v2677 = vpop.f32.mrb[0].mxu0
        %v2678 = vadd.f32 0.0, %v2677
        %v2679 = vpop.f32.mrb[0].mxu0
        %2680 = vmatprep.mubr.bf16.mxu0 0
        %2681 = vmatmul.mubr.bf16.gmra.mrb[0].mxu0 %v1816
        %v2682 = vpop.f32.mrb[0].mxu0
        %v2683 = vadd.f32 0.0, %v2682
        %v2684 = vpop.f32.mrb[0].mxu0
        %v2685 = vpop.f32.mrb[0].mxu0
        %v2686 = vadd.f32 0.0, %v2685
        %v2687 = vpop.f32.mrb[0].mxu0
        %2688 = vmatprep.mubr.bf16.mxu0 0
        %2689 = vmatmul.mubr.bf16.gmra.mrb[0].mxu0 %v1817
        %v2690 = vpop.f32.mrb[0].mxu0
        %v2691 = vadd.f32 0.0, %v2690
        %v2692 = vpop.f32.mrb[0].mxu0
        %v2693 = vpop.f32.mrb[0].mxu0
        %v2694 = vadd.f32 0.0, %v2693
        %v2695 = vpop.f32.mrb[0].mxu0
        %2696 = vmatprep.mubr.bf16.mxu0 0
        %2697 = vmatmul.mubr.bf16.gmra.mrb[0].mxu0 %v1818
        %v2698 = vpop.f32.mrb[0].mxu0
        %v2699 = vadd.f32 0.0, %v2698
        %v2700 = vpop.f32.mrb[0].mxu0
        %v2701 = vpop.f32.mrb[0].mxu0
        %v2702 = vadd.f32 0.0, %v2701
        %v2703 = vpop.f32.mrb[0].mxu0
        %2704 = vmatprep.mubr.bf16.mxu0 0
        %2705 = vmatmul.mubr.bf16.gmra.mrb[0].mxu0 %v1819
        %v2706 = vpop.f32.mrb[0].mxu0
        %v2707 = vadd.f32 0.0, %v2706
        %v2708 = vpop.f32.mrb[0].mxu0
        %v2709 = vpop.f32.mrb[0].mxu0
        %v2710 = vadd.f32 0.0, %v2709
        %v2711 = vpop.f32.mrb[0].mxu0
        %2712 = vmatprep.mubr.bf16.mxu0 0
        %2713 = vmatmul.mubr.bf16.gmra.mrb[0].mxu0 %v1820
        %v2714 = vpop.f32.mrb[0].mxu0
        %v2715 = vadd.f32 0.0, %v2714
        %v2716 = vpop.f32.mrb[0].mxu0
        %v2717 = vpop.f32.mrb[0].mxu0
        %v2718 = vadd.f32 0.0, %v2717
        %v2719 = vpop.f32.mrb[0].mxu0
        %2720 = vmatprep.mubr.bf16.mxu0 0
        %2721 = vmatmul.mubr.bf16.gmra.mrb[0].mxu0 %v1821
        %v2722 = vpop.f32.mrb[0].mxu0
        %v2723 = vadd.f32 0.0, %v2722
        %v2724 = vpop.f32.mrb[0].mxu0
        %v2725 = vpop.f32.mrb[0].mxu0
        %v2726 = vadd.f32 0.0, %v2725
        %v2727 = vpop.f32.mrb[0].mxu0
        %2728 = vmatprep.mubr.bf16.mxu0 0
        %2729 = vmatmul.mubr.bf16.gmra.mrb[0].mxu0 %v1822
        %v2730 = vpop.f32.mrb[0].mxu0
        %v2731 = vadd.f32 0.0, %v2730
        %v2732 = vpop.f32.mrb[0].mxu0
        %v2733 = vpop.f32.mrb[0].mxu0
        %v2734 = vadd.f32 0.0, %v2733
        %v2735 = vpop.f32.mrb[0].mxu0
        %2736 = vmatprep.mubr.bf16.mxu0 0
        %2737 = vmatmul.mubr.bf16.gmra.mrb[0].mxu0 %v1823
        %v2738 = vpop.f32.mrb[0].mxu0
        %v2739 = vadd.f32 0.0, %v2738
        %v2740 = vpop.f32.mrb[0].mxu0
        %v2741 = vpop.f32.mrb[0].mxu0
        %v2742 = vadd.f32 0.0, %v2741
        %v2743 = vpop.f32.mrb[0].mxu0
        %2744 = vmatprep.mubr.bf16.mxu0 0
        %2745 = vmatmul.mubr.bf16.gmra.mrb[0].mxu0 %v1824
        %v2746 = vpop.f32.mrb[0].mxu0
        %v2747 = vadd.f32 0.0, %v2746
        %v2748 = vpop.f32.mrb[0].mxu0
        %v2749 = vpop.f32.mrb[0].mxu0
        %v2750 = vadd.f32 0.0, %v2749
        %v2751 = vpop.f32.mrb[0].mxu0
        %2752 = vmatprep.mubr.bf16.mxu0 0
        %2753 = vmatmul.mubr.bf16.gmra.mrb[0].mxu0 %v1825
        %v2754 = vpop.f32.mrb[0].mxu0
        %v2755 = vadd.f32 0.0, %v2754
        %v2756 = vpop.f32.mrb[0].mxu0
        %v2757 = vpop.f32.mrb[0].mxu0
        %v2758 = vadd.f32 0.0, %v2757
        %v2759 = vpop.f32.mrb[0].mxu0
        %2760 = vmatprep.mubr.bf16.mxu0 0
        %2761 = vmatmul.mubr.bf16.gmra.mrb[0].mxu0 %v1826
        %v2762 = vpop.f32.mrb[0].mxu0
        %v2763 = vadd.f32 0.0, %v2762
        %v2764 = vpop.f32.mrb[0].mxu0
        %v2765 = vpop.f32.mrb[0].mxu0
        %v2766 = vadd.f32 0.0, %v2765
        %v2767 = vpop.f32.mrb[0].mxu0
        %2768 = vmatprep.mubr.bf16.mxu0 0
        %2769 = vmatmul.mubr.bf16.gmra.mrb[0].mxu0 %v1827
        %v2770 = vpop.f32.mrb[0].mxu0
        %v2771 = vadd.f32 0.0, %v2770
        %v2772 = vpop.f32.mrb[0].mxu0
        %v2773 = vpop.f32.mrb[0].mxu0
        %v2774 = vadd.f32 0.0, %v2773
        %v2775 = vpop.f32.mrb[0].mxu0
        %2776 = vmatprep.mubr.bf16.mxu0 0
        %2777 = vmatmul.mubr.bf16.gmra.mrb[0].mxu0 %v1828
        %v2778 = vpop.f32.mrb[0].mxu0
        %v2779 = vadd.f32 0.0, %v2778
        %v2780 = vpop.f32.mrb[0].mxu0
        %v2781 = vpop.f32.mrb[0].mxu0
        %v2782 = vadd.f32 0.0, %v2781
        %v2783 = vpop.f32.mrb[0].mxu0
        %2784 = vdwg.mxu0
        %v2785 = vrot.slane %v2595, 2
        %v2786 = vrot.slane %v2598, 2
        %v2787 = vrot.slane %v2603, 2
        %v2788 = vrot.slane %v2606, 2
        %v2789 = vrot.slane %v2611, 2
        %v2790 = vrot.slane %v2614, 2
        %v2791 = vrot.slane %v2619, 2
        %v2792 = vrot.slane %v2622, 2
        %v2793 = vrot.slane %v2627, 2
        %v2794 = vrot.slane %v2630, 2
        %v2795 = vrot.slane %v2635, 2
        %v2796 = vrot.slane %v2638, 2
        %v2797 = vrot.slane %v2643, 2
        %v2798 = vrot.slane %v2646, 2
        %v2799 = vrot.slane %v2651, 2
        %v2800 = vrot.slane %v2654, 2
        %v2801 = vrot.slane %v2659, 2
        %v2802 = vrot.slane %v2662, 2
        %v2803 = vrot.slane %v2667, 2
        %v2804 = vrot.slane %v2670, 2
        %v2805 = vrot.slane %v2675, 2
        %v2806 = vrot.slane %v2678, 2
        %v2807 = vrot.slane %v2683, 2
        %v2808 = vrot.slane %v2686, 2
        %v2809 = vrot.slane %v2691, 2
        %v2810 = vrot.slane %v2694, 2
        %v2811 = vrot.slane %v2699, 2
        %v2812 = vrot.slane %v2702, 2
        %v2813 = vrot.slane %v2707, 2
        %v2814 = vrot.slane %v2710, 2
        %v2815 = vrot.slane %v2715, 2
        %v2816 = vrot.slane %v2718, 2
        %v2817 = vrot.slane %v2723, 2
        %v2818 = vrot.slane %v2726, 2
        %v2819 = vrot.slane %v2731, 2
        %v2820 = vrot.slane %v2734, 2
        %v2821 = vrot.slane %v2739, 2
        %v2822 = vrot.slane %v2742, 2
        %v2823 = vrot.slane %v2747, 2
        %v2824 = vrot.slane %v2750, 2
        %v2825 = vrot.slane %v2755, 2
        %v2826 = vrot.slane %v2758, 2
        %v2827 = vrot.slane %v2763, 2
        %v2828 = vrot.slane %v2766, 2
        %v2829 = vrot.slane %v2771, 2
        %v2830 = vrot.slane %v2774, 2
        %v2831 = vrot.slane %v2779, 2
        %v2832 = vrot.slane %v2782, 2
        %v2833 = vsel %vm1481, %v2831, %v2832
        %v2834 = vsel %vm1481, %v2830, %v2831
        %v2835 = vsel %vm1481, %v2829, %v2830
        %v2836 = vsel %vm1481, %v2828, %v2829
        %v2837 = vsel %vm1481, %v2827, %v2828
        %v2838 = vsel %vm1481, %v2826, %v2827
        %v2839 = vsel %vm1481, %v2825, %v2826
        %v2840 = vsel %vm1481, %v2824, %v2825
        %v2841 = vsel %vm1481, %v2823, %v2824
        %v2842 = vsel %vm1481, %v2822, %v2823
        %v2843 = vsel %vm1481, %v2821, %v2822
        %v2844 = vsel %vm1481, %v2820, %v2821
        %v2845 = vsel %vm1481, %v2819, %v2820
        %v2846 = vsel %vm1481, %v2818, %v2819
        %v2847 = vsel %vm1481, %v2817, %v2818
        %v2848 = vsel %vm1481, %v2816, %v2817
        %v2849 = vsel %vm1481, %v2815, %v2816
        %v2850 = vsel %vm1481, %v2814, %v2815
        %v2851 = vsel %vm1481, %v2813, %v2814
        %v2852 = vsel %vm1481, %v2812, %v2813
        %v2853 = vsel %vm1481, %v2811, %v2812
        %v2854 = vsel %vm1481, %v2810, %v2811
        %v2855 = vsel %vm1481, %v2809, %v2810
        %v2856 = vsel %vm1481, %v2808, %v2809
        %v2857 = vsel %vm1481, %v2807, %v2808
        %v2858 = vsel %vm1481, %v2806, %v2807
        %v2859 = vsel %vm1481, %v2805, %v2806
        %v2860 = vsel %vm1481, %v2804, %v2805
        %v2861 = vsel %vm1481, %v2803, %v2804
        %v2862 = vsel %vm1481, %v2802, %v2803
        %v2863 = vsel %vm1481, %v2801, %v2802
        %v2864 = vsel %vm1481, %v2800, %v2801
        %v2865 = vsel %vm1481, %v2799, %v2800
        %v2866 = vsel %vm1481, %v2798, %v2799
        %v2867 = vsel %vm1481, %v2797, %v2798
        %v2868 = vsel %vm1481, %v2796, %v2797
        %v2869 = vsel %vm1481, %v2795, %v2796
        %v2870 = vsel %vm1481, %v2794, %v2795
        %v2871 = vsel %vm1481, %v2793, %v2794
        %v2872 = vsel %vm1481, %v2792, %v2793
        %v2873 = vsel %vm1481, %v2791, %v2792
        %v2874 = vsel %vm1481, %v2790, %v2791
        %v2875 = vsel %vm1481, %v2789, %v2790
        %v2876 = vsel %vm1481, %v2788, %v2789
        %v2877 = vsel %vm1481, %v2787, %v2788
        %v2878 = vsel %vm1481, %v2786, %v2787
        %v2879 = vsel %vm1481, %v2785, %v2786
        %v2880 = vsel %vm1481, %v2832, %v2785
        %v2881 = vadd.f32 %v2305, %v2879
        %v2882 = vadd.f32 %v2308, %v2878
        %v2883 = vadd.f32 %v2313, %v2877
        %v2884 = vadd.f32 %v2316, %v2876
        %v2885 = vadd.f32 %v2321, %v2875
        %v2886 = vadd.f32 %v2324, %v2874
        %v2887 = vadd.f32 %v2329, %v2873
        %v2888 = vadd.f32 %v2332, %v2872
        %v2889 = vadd.f32 %v2337, %v2871
        %v2890 = vadd.f32 %v2340, %v2870
        %v2891 = vadd.f32 %v2345, %v2869
        %v2892 = vadd.f32 %v2348, %v2868
        %v2893 = vadd.f32 %v2353, %v2867
        %v2894 = vadd.f32 %v2356, %v2866
        %v2895 = vadd.f32 %v2361, %v2865
        %v2896 = vadd.f32 %v2364, %v2864
        %v2897 = vadd.f32 %v2369, %v2863
        %v2898 = vadd.f32 %v2372, %v2862
        %v2899 = vadd.f32 %v2377, %v2861
        %v2900 = vadd.f32 %v2380, %v2860
        %v2901 = vadd.f32 %v2385, %v2859
        %v2902 = vadd.f32 %v2388, %v2858
        %v2903 = vadd.f32 %v2393, %v2857
        %v2904 = vadd.f32 %v2396, %v2856
        %v2905 = vadd.f32 %v2401, %v2855
        %v2906 = vadd.f32 %v2404, %v2854
        %v2907 = vadd.f32 %v2409, %v2853
        %v2908 = vadd.f32 %v2412, %v2852
        %v2909 = vadd.f32 %v2417, %v2851
        %v2910 = vadd.f32 %v2420, %v2850
        %v2911 = vadd.f32 %v2425, %v2849
        %v2912 = vadd.f32 %v2428, %v2848
        %v2913 = vadd.f32 %v2433, %v2847
        %v2914 = vadd.f32 %v2436, %v2846
        %v2915 = vadd.f32 %v2441, %v2845
        %v2916 = vadd.f32 %v2444, %v2844
        %v2917 = vadd.f32 %v2449, %v2843
        %v2918 = vadd.f32 %v2452, %v2842
        %v2919 = vadd.f32 %v2457, %v2841
        %v2920 = vadd.f32 %v2460, %v2840
        %v2921 = vadd.f32 %v2465, %v2839
        %v2922 = vadd.f32 %v2468, %v2838
        %v2923 = vadd.f32 %v2473, %v2837
        %v2924 = vadd.f32 %v2476, %v2836
        %v2925 = vadd.f32 %v2481, %v2835
        %v2926 = vadd.f32 %v2484, %v2834
        %v2927 = vadd.f32 %v2489, %v2833
        %v2928 = vadd.f32 %v2492, %v2880
        %v2929 = vld [vmem:[#allocation3] sm:$0xff]
        %v2930 = vld [vmem:[#allocation3 + $0x8] sm:$0xff]
        %v2931 = vld [vmem:[#allocation3 + $0x10] sm:$0xff]
        %v2932 = vld [vmem:[#allocation3 + $0x18] sm:$0xff]
        %v2933 = vld [vmem:[#allocation3 + $0x20] sm:$0xff]
        %v2934 = vld [vmem:[#allocation3 + $0x28] sm:$0xff]
        %v2935 = vld [vmem:[#allocation3 + $0x30] sm:$0xff]
        %v2936 = vld [vmem:[#allocation3 + $0x38] sm:$0xff]
        %v2937 = vld [vmem:[#allocation3 + $0x40] sm:$0xff]
        %v2938 = vld [vmem:[#allocation3 + $0x48] sm:$0xff]
        %v2939 = vld [vmem:[#allocation3 + $0x50] sm:$0xff]
        %v2940 = vld [vmem:[#allocation3 + $0x58] sm:$0xff]
        %v2941 = vld [vmem:[#allocation3 + $0x60] sm:$0xff]
        %v2942 = vld [vmem:[#allocation3 + $0x68] sm:$0xff]
        %v2943 = vld [vmem:[#allocation3 + $0x70] sm:$0xff]
        %v2944 = vld [vmem:[#allocation3 + $0x78] sm:$0xff]
        %v2945 = vld [vmem:[#allocation3 + $0x80] sm:$0xff]
        %v2946 = vld [vmem:[#allocation3 + $0x88] sm:$0xff]
        %v2947 = vld [vmem:[#allocation3 + $0x90] sm:$0xff]
        %v2948 = vld [vmem:[#allocation3 + $0x98] sm:$0xff]
        %v2949 = vld [vmem:[#allocation3 + $0xa0] sm:$0xff]
        %v2950 = vld [vmem:[#allocation3 + $0xa8] sm:$0xff]
        %v2951 = vld [vmem:[#allocation3 + $0xb0] sm:$0xff]
        %v2952 = vld [vmem:[#allocation3 + $0xb8] sm:$0xff]
        %v2953 = vld [vmem:[#allocation3 + $0xc0] sm:$0xff]
        %v2954 = vld [vmem:[#allocation3 + $0xc8] sm:$0xff]
        %v2955 = vld [vmem:[#allocation3 + $0xd0] sm:$0xff]
        %v2956 = vld [vmem:[#allocation3 + $0xd8] sm:$0xff]
        %v2957 = vld [vmem:[#allocation3 + $0xe0] sm:$0xff]
        %v2958 = vld [vmem:[#allocation3 + $0xe8] sm:$0xff]
        %v2959 = vld [vmem:[#allocation3 + $0xf0] sm:$0xff]
        %v2960 = vld [vmem:[#allocation3 + $0xf8] sm:$0xff]
        %v2961 = vld [vmem:[#allocation3 + $0x100] sm:$0xff]
        %v2962 = vld [vmem:[#allocation3 + $0x108] sm:$0xff]
        %v2963 = vld [vmem:[#allocation3 + $0x110] sm:$0xff]
        %v2964 = vld [vmem:[#allocation3 + $0x118] sm:$0xff]
        %v2965 = vld [vmem:[#allocation3 + $0x120] sm:$0xff]
        %v2966 = vld [vmem:[#allocation3 + $0x128] sm:$0xff]
        %v2967 = vld [vmem:[#allocation3 + $0x130] sm:$0xff]
        %v2968 = vld [vmem:[#allocation3 + $0x138] sm:$0xff]
        %v2969 = vld [vmem:[#allocation3 + $0x140] sm:$0xff]
        %v2970 = vld [vmem:[#allocation3 + $0x148] sm:$0xff]
        %v2971 = vld [vmem:[#allocation3 + $0x150] sm:$0xff]
        %v2972 = vld [vmem:[#allocation3 + $0x158] sm:$0xff]
        %v2973 = vld [vmem:[#allocation3 + $0x160] sm:$0xff]
        %v2974 = vld [vmem:[#allocation3 + $0x168] sm:$0xff]
        %v2975 = vld [vmem:[#allocation3 + $0x170] sm:$0xff]
        %v2976 = vld [vmem:[#allocation3 + $0x178] sm:$0xff]
        %v2977 = vadd.f32 %v2929, %v2881
        %v2978 = vadd.f32 %v2930, %v2882
        %v2979 = vadd.f32 %v2931, %v2883
        %v2980 = vadd.f32 %v2932, %v2884
        %v2981 = vadd.f32 %v2933, %v2885
        %v2982 = vadd.f32 %v2934, %v2886
        %v2983 = vadd.f32 %v2935, %v2887
        %v2984 = vadd.f32 %v2936, %v2888
        %v2985 = vadd.f32 %v2937, %v2889
        %v2986 = vadd.f32 %v2938, %v2890
        %v2987 = vadd.f32 %v2939, %v2891
        %v2988 = vadd.f32 %v2940, %v2892
        %v2989 = vadd.f32 %v2941, %v2893
        %v2990 = vadd.f32 %v2942, %v2894
        %v2991 = vadd.f32 %v2943, %v2895
        %v2992 = vadd.f32 %v2944, %v2896
        %v2993 = vadd.f32 %v2945, %v2897
        %v2994 = vadd.f32 %v2946, %v2898
        %v2995 = vadd.f32 %v2947, %v2899
        %v2996 = vadd.f32 %v2948, %v2900
        %v2997 = vadd.f32 %v2949, %v2901
        %v2998 = vadd.f32 %v2950, %v2902
        %v2999 = vadd.f32 %v2951, %v2903
        %v3000 = vadd.f32 %v2952, %v2904
        %v3001 = vadd.f32 %v2953, %v2905
        %v3002 = vadd.f32 %v2954, %v2906
        %v3003 = vadd.f32 %v2955, %v2907
        %v3004 = vadd.f32 %v2956, %v2908
        %v3005 = vadd.f32 %v2957, %v2909
        %v3006 = vadd.f32 %v2958, %v2910
        %v3007 = vadd.f32 %v2959, %v2911
        %v3008 = vadd.f32 %v2960, %v2912
        %v3009 = vadd.f32 %v2961, %v2913
        %v3010 = vadd.f32 %v2962, %v2914
        %v3011 = vadd.f32 %v2963, %v2915
        %v3012 = vadd.f32 %v2964, %v2916
        %v3013 = vadd.f32 %v2965, %v2917
        %v3014 = vadd.f32 %v2966, %v2918
        %v3015 = vadd.f32 %v2967, %v2919
        %v3016 = vadd.f32 %v2968, %v2920
        %v3017 = vadd.f32 %v2969, %v2921
        %v3018 = vadd.f32 %v2970, %v2922
        %v3019 = vadd.f32 %v2971, %v2923
        %v3020 = vadd.f32 %v2972, %v2924
        %v3021 = vadd.f32 %v2973, %v2925
        %v3022 = vadd.f32 %v2974, %v2926
        %v3023 = vadd.f32 %v2975, %v2927
        %v3024 = vadd.f32 %v2976, %v2928
        %3025 = vst [vmem:[#allocation3] sm:$0xff] %v2977
        %3026 = vst [vmem:[#allocation3 + $0x8] sm:$0xff] %v2978
        %3027 = vst [vmem:[#allocation3 + $0x10] sm:$0xff] %v2979
        %3028 = vst [vmem:[#allocation3 + $0x18] sm:$0xff] %v2980
        %3029 = vst [vmem:[#allocation3 + $0x20] sm:$0xff] %v2981
        %3030 = vst [vmem:[#allocation3 + $0x28] sm:$0xff] %v2982
        %3031 = vst [vmem:[#allocation3 + $0x30] sm:$0xff] %v2983
        %3032 = vst [vmem:[#allocation3 + $0x38] sm:$0xff] %v2984
        %3033 = vst [vmem:[#allocation3 + $0x40] sm:$0xff] %v2985
        %3034 = vst [vmem:[#allocation3 + $0x48] sm:$0xff] %v2986
        %3035 = vst [vmem:[#allocation3 + $0x50] sm:$0xff] %v2987
        %3036 = vst [vmem:[#allocation3 + $0x58] sm:$0xff] %v2988
        %3037 = vst [vmem:[#allocation3 + $0x60] sm:$0xff] %v2989
        %3038 = vst [vmem:[#allocation3 + $0x68] sm:$0xff] %v2990
        %3039 = vst [vmem:[#allocation3 + $0x70] sm:$0xff] %v2991
        %3040 = vst [vmem:[#allocation3 + $0x78] sm:$0xff] %v2992
        %3041 = vst [vmem:[#allocation3 + $0x80] sm:$0xff] %v2993
        %3042 = vst [vmem:[#allocation3 + $0x88] sm:$0xff] %v2994
        %3043 = vst [vmem:[#allocation3 + $0x90] sm:$0xff] %v2995
        %3044 = vst [vmem:[#allocation3 + $0x98] sm:$0xff] %v2996
        %3045 = vst [vmem:[#allocation3 + $0xa0] sm:$0xff] %v2997
        %3046 = vst [vmem:[#allocation3 + $0xa8] sm:$0xff] %v2998
        %3047 = vst [vmem:[#allocation3 + $0xb0] sm:$0xff] %v2999
        %3048 = vst [vmem:[#allocation3 + $0xb8] sm:$0xff] %v3000
        %3049 = vst [vmem:[#allocation3 + $0xc0] sm:$0xff] %v3001
        %3050 = vst [vmem:[#allocation3 + $0xc8] sm:$0xff] %v3002
        %3051 = vst [vmem:[#allocation3 + $0xd0] sm:$0xff] %v3003
        %3052 = vst [vmem:[#allocation3 + $0xd8] sm:$0xff] %v3004
        %3053 = vst [vmem:[#allocation3 + $0xe0] sm:$0xff] %v3005
        %3054 = vst [vmem:[#allocation3 + $0xe8] sm:$0xff] %v3006
        %3055 = vst [vmem:[#allocation3 + $0xf0] sm:$0xff] %v3007
        %3056 = vst [vmem:[#allocation3 + $0xf8] sm:$0xff] %v3008
        %3057 = vst [vmem:[#allocation3 + $0x100] sm:$0xff] %v3009
        %3058 = vst [vmem:[#allocation3 + $0x108] sm:$0xff] %v3010
        %3059 = vst [vmem:[#allocation3 + $0x110] sm:$0xff] %v3011
        %3060 = vst [vmem:[#allocation3 + $0x118] sm:$0xff] %v3012
        %3061 = vst [vmem:[#allocation3 + $0x120] sm:$0xff] %v3013
        %3062 = vst [vmem:[#allocation3 + $0x128] sm:$0xff] %v3014
        %3063 = vst [vmem:[#allocation3 + $0x130] sm:$0xff] %v3015
        %3064 = vst [vmem:[#allocation3 + $0x138] sm:$0xff] %v3016
        %3065 = vst [vmem:[#allocation3 + $0x140] sm:$0xff] %v3017
        %3066 = vst [vmem:[#allocation3 + $0x148] sm:$0xff] %v3018
        %3067 = vst [vmem:[#allocation3 + $0x150] sm:$0xff] %v3019
        %3068 = vst [vmem:[#allocation3 + $0x158] sm:$0xff] %v3020
        %3069 = vst [vmem:[#allocation3 + $0x160] sm:$0xff] %v3021
        %3070 = vst [vmem:[#allocation3 + $0x168] sm:$0xff] %v3022
        %3071 = vst [vmem:[#allocation3 + $0x170] sm:$0xff] %v3023
        %3072 = vst [vmem:[#allocation3 + $0x178] sm:$0xff] %v3024
        %s3073 = scalar_lea.vmem %s237, 24 [#allocation5]
        %v3074 = vld [vmem:[%s3073] sm:$0xf]
        %v3075 = vld [vmem:[%s3073 + $0x4] sm:$0xf]
        %v3076 = vld [vmem:[%s3073 + $0x8] sm:$0xf]
        %v3077 = vld [vmem:[%s3073 + $0xc] sm:$0xf]
        %v3078 = vld [vmem:[%s3073 + $0x10] sm:$0xf]
        %v3079 = vld [vmem:[%s3073 + $0x14] sm:$0xf]
        %v3080 = vld [vmem:[%s3073 + $0x18] sm:$0xf]
        %v3081 = vld [vmem:[%s3073 + $0x1c] sm:$0xf]
        %v3082 = vld [vmem:[%s3073 + $0x20] sm:$0xf]
        %v3083 = vld [vmem:[%s3073 + $0x24] sm:$0xf]
        %v3084 = vld [vmem:[%s3073 + $0x28] sm:$0xf]
        %v3085 = vld [vmem:[%s3073 + $0x2c] sm:$0xf]
        %v3086 = vld [vmem:[%s3073 + $0x30] sm:$0xf]
        %v3087 = vld [vmem:[%s3073 + $0x34] sm:$0xf]
        %v3088 = vld [vmem:[%s3073 + $0x38] sm:$0xf]
        %v3089 = vld [vmem:[%s3073 + $0x3c] sm:$0xf]
        %v3090 = vld [vmem:[%s3073 + $0x40] sm:$0xf]
        %v3091 = vld [vmem:[%s3073 + $0x44] sm:$0xf]
        %v3092 = vld [vmem:[%s3073 + $0x48] sm:$0xf]
        %v3093 = vld [vmem:[%s3073 + $0x4c] sm:$0xf]
        %v3094 = vld [vmem:[%s3073 + $0x50] sm:$0xf]
        %v3095 = vld [vmem:[%s3073 + $0x54] sm:$0xf]
        %v3096 = vld [vmem:[%s3073 + $0x58] sm:$0xf]
        %v3097 = vld [vmem:[%s3073 + $0x5c] sm:$0xf]
        %v3098 = vld [vmem:[%s3073 + $0x60] sm:$0xf]
        %v3099 = vld [vmem:[%s3073 + $0x64] sm:$0xf]
        %v3100 = vld [vmem:[%s3073 + $0x68] sm:$0xf]
        %v3101 = vld [vmem:[%s3073 + $0x6c] sm:$0xf]
        %v3102 = vld [vmem:[%s3073 + $0x70] sm:$0xf]
        %v3103 = vld [vmem:[%s3073 + $0x74] sm:$0xf]
        %v3104 = vld [vmem:[%s3073 + $0x78] sm:$0xf]
        %v3105 = vld [vmem:[%s3073 + $0x7c] sm:$0xf]
        %v3106 = vld [vmem:[%s3073 + $0x80] sm:$0xf]
        %v3107 = vld [vmem:[%s3073 + $0x84] sm:$0xf]
        %v3108 = vld [vmem:[%s3073 + $0x88] sm:$0xf]
        %v3109 = vld [vmem:[%s3073 + $0x8c] sm:$0xf]
        %v3110 = vld [vmem:[%s3073 + $0x90] sm:$0xf]
        %v3111 = vld [vmem:[%s3073 + $0x94] sm:$0xf]
        %v3112 = vld [vmem:[%s3073 + $0x98] sm:$0xf]
        %v3113 = vld [vmem:[%s3073 + $0x9c] sm:$0xf]
        %v3114 = vld [vmem:[%s3073 + $0xa0] sm:$0xf]
        %v3115 = vld [vmem:[%s3073 + $0xa4] sm:$0xf]
        %v3116 = vld [vmem:[%s3073 + $0xa8] sm:$0xf]
        %v3117 = vld [vmem:[%s3073 + $0xac] sm:$0xf]
        %v3118 = vld [vmem:[%s3073 + $0xb0] sm:$0xf]
        %v3119 = vld [vmem:[%s3073 + $0xb4] sm:$0xf]
        %v3120 = vld [vmem:[%s3073 + $0xb8] sm:$0xf]
        %v3121 = vld [vmem:[%s3073 + $0xbc] sm:$0xf]
        %s3122 = scalar_lea.vmem [#allocation8], 384
        %v3123 = vld [vmem:[%s3122] sm:$0xf]
        %v3124 = vld [vmem:[%s3122 + $0x4] sm:$0xf]
        %v3125 = vld [vmem:[%s3122 + $0x8] sm:$0xf]
        %v3126 = vld [vmem:[%s3122 + $0xc] sm:$0xf]
        %v3127 = vld [vmem:[%s3122 + $0x10] sm:$0xf]
        %v3128 = vld [vmem:[%s3122 + $0x14] sm:$0xf]
        %v3129 = vld [vmem:[%s3122 + $0x18] sm:$0xf]
        %v3130 = vld [vmem:[%s3122 + $0x1c] sm:$0xf]
        %v3131 = vld [vmem:[%s3122 + $0x20] sm:$0xf]
        %v3132 = vld [vmem:[%s3122 + $0x24] sm:$0xf]
        %v3133 = vld [vmem:[%s3122 + $0x28] sm:$0xf]
        %v3134 = vld [vmem:[%s3122 + $0x2c] sm:$0xf]
        %v3135 = vld [vmem:[%s3122 + $0x30] sm:$0xf]
        %v3136 = vld [vmem:[%s3122 + $0x34] sm:$0xf]
        %v3137 = vld [vmem:[%s3122 + $0x38] sm:$0xf]
        %v3138 = vld [vmem:[%s3122 + $0x3c] sm:$0xf]
        %s3139 = scalar_lea.vmem [#allocation8], 448
        %v3140 = vld [vmem:[%s3139] sm:$0xf]
        %v3141 = vld [vmem:[%s3139 + $0x4] sm:$0xf]
        %v3142 = vld [vmem:[%s3139 + $0x8] sm:$0xf]
        %v3143 = vld [vmem:[%s3139 + $0xc] sm:$0xf]
        %v3144 = vld [vmem:[%s3139 + $0x10] sm:$0xf]
        %v3145 = vld [vmem:[%s3139 + $0x14] sm:$0xf]
        %v3146 = vld [vmem:[%s3139 + $0x18] sm:$0xf]
        %v3147 = vld [vmem:[%s3139 + $0x1c] sm:$0xf]
        %v3148 = vld [vmem:[%s3139 + $0x20] sm:$0xf]
        %v3149 = vld [vmem:[%s3139 + $0x24] sm:$0xf]
        %v3150 = vld [vmem:[%s3139 + $0x28] sm:$0xf]
        %v3151 = vld [vmem:[%s3139 + $0x2c] sm:$0xf]
        %v3152 = vld [vmem:[%s3139 + $0x30] sm:$0xf]
        %v3153 = vld [vmem:[%s3139 + $0x34] sm:$0xf]
        %v3154 = vld [vmem:[%s3139 + $0x38] sm:$0xf]
        %v3155 = vld [vmem:[%s3139 + $0x3c] sm:$0xf]
        %v3204 = vunpack.c.l.b16 %v3074
        %v3205 = vunpack.c.l.b16 %v3075
        %v3206 = vunpack.c.l.b16 %v3076
        %v3207 = vunpack.c.l.b16 %v3077
        %v3208 = vunpack.c.l.b16 %v3078
        %v3209 = vunpack.c.l.b16 %v3079
        %v3210 = vunpack.c.l.b16 %v3080
        %v3211 = vunpack.c.l.b16 %v3081
        %v3212 = vunpack.c.l.b16 %v3082
        %v3213 = vunpack.c.l.b16 %v3083
        %v3214 = vunpack.c.l.b16 %v3084
        %v3215 = vunpack.c.l.b16 %v3085
        %v3216 = vunpack.c.l.b16 %v3086
        %v3217 = vunpack.c.l.b16 %v3087
        %v3218 = vunpack.c.l.b16 %v3088
        %v3219 = vunpack.c.l.b16 %v3089
        %v3220 = vunpack.c.l.b16 %v3090
        %v3221 = vunpack.c.l.b16 %v3091
        %v3222 = vunpack.c.l.b16 %v3092
        %v3223 = vunpack.c.l.b16 %v3093
        %v3224 = vunpack.c.l.b16 %v3094
        %v3225 = vunpack.c.l.b16 %v3095
        %v3226 = vunpack.c.l.b16 %v3096
        %v3227 = vunpack.c.l.b16 %v3097
        %v3228 = vunpack.c.l.b16 %v3098
        %v3229 = vunpack.c.l.b16 %v3099
        %v3230 = vunpack.c.l.b16 %v3100
        %v3231 = vunpack.c.l.b16 %v3101
        %v3232 = vunpack.c.l.b16 %v3102
        %v3233 = vunpack.c.l.b16 %v3103
        %v3234 = vunpack.c.l.b16 %v3104
        %v3235 = vunpack.c.l.b16 %v3105
        %v3236 = vunpack.c.l.b16 %v3106
        %v3237 = vunpack.c.l.b16 %v3107
        %v3238 = vunpack.c.l.b16 %v3108
        %v3239 = vunpack.c.l.b16 %v3109
        %v3240 = vunpack.c.l.b16 %v3110
        %v3241 = vunpack.c.l.b16 %v3111
        %v3242 = vunpack.c.l.b16 %v3112
        %v3243 = vunpack.c.l.b16 %v3113
        %v3244 = vunpack.c.l.b16 %v3114
        %v3245 = vunpack.c.l.b16 %v3115
        %v3246 = vunpack.c.l.b16 %v3116
        %v3247 = vunpack.c.l.b16 %v3117
        %v3248 = vunpack.c.l.b16 %v3118
        %v3249 = vunpack.c.l.b16 %v3119
        %v3250 = vunpack.c.l.b16 %v3120
        %v3251 = vunpack.c.l.b16 %v3121
        %v3252 = vpack.c.b16 %v3205, %v3204
        %v3253 = vpack.c.b16 %v3207, %v3206
        %v3254 = vpack.c.b16 %v3209, %v3208
        %v3255 = vpack.c.b16 %v3211, %v3210
        %v3256 = vpack.c.b16 %v3213, %v3212
        %v3257 = vpack.c.b16 %v3215, %v3214
        %v3258 = vpack.c.b16 %v3217, %v3216
        %v3259 = vpack.c.b16 %v3219, %v3218
        %v3260 = vpack.c.b16 %v3221, %v3220
        %v3261 = vpack.c.b16 %v3223, %v3222
        %v3262 = vpack.c.b16 %v3225, %v3224
        %v3263 = vpack.c.b16 %v3227, %v3226
        %v3264 = vpack.c.b16 %v3229, %v3228
        %v3265 = vpack.c.b16 %v3231, %v3230
        %v3266 = vpack.c.b16 %v3233, %v3232
        %v3267 = vpack.c.b16 %v3235, %v3234
        %v3268 = vpack.c.b16 %v3237, %v3236
        %v3269 = vpack.c.b16 %v3239, %v3238
        %v3270 = vpack.c.b16 %v3241, %v3240
        %v3271 = vpack.c.b16 %v3243, %v3242
        %v3272 = vpack.c.b16 %v3245, %v3244
        %v3273 = vpack.c.b16 %v3247, %v3246
        %v3274 = vpack.c.b16 %v3249, %v3248
        %v3275 = vpack.c.b16 %v3251, %v3250
        %v3316 = vunpack.c.l.b16 %v3140
        %v3317 = vunpack.c.l.b16 %v3141
        %v3318 = vunpack.c.l.b16 %v3142
        %v3319 = vunpack.c.l.b16 %v3143
        %v3320 = vunpack.c.l.b16 %v3144
        %v3321 = vunpack.c.l.b16 %v3145
        %v3322 = vunpack.c.l.b16 %v3146
        %v3323 = vunpack.c.l.b16 %v3147
        %v3324 = vunpack.c.l.b16 %v3148
        %v3325 = vunpack.c.l.b16 %v3149
        %v3326 = vunpack.c.l.b16 %v3150
        %v3327 = vunpack.c.l.b16 %v3151
        %v3328 = vunpack.c.l.b16 %v3152
        %v3329 = vunpack.c.l.b16 %v3153
        %v3330 = vunpack.c.l.b16 %v3154
        %v3331 = vunpack.c.l.b16 %v3155
        %v3332 = vpack.c.b16 %v3317, %v3316
        %v3333 = vpack.c.b16 %v3319, %v3318
        %v3334 = vpack.c.b16 %v3321, %v3320
        %v3335 = vpack.c.b16 %v3323, %v3322
        %v3336 = vpack.c.b16 %v3325, %v3324
        %v3337 = vpack.c.b16 %v3327, %v3326
        %v3338 = vpack.c.b16 %v3329, %v3328
        %v3339 = vpack.c.b16 %v3331, %v3330
        %3348 = vmatprep.subr.bf16.mxu0 0
        %3349 = vmatpush1.bf16.msra.mxu0 %v3332
        %3350 = vmatprep.subr.bf16.mxu0 0
        %3351 = vmatpush1.bf16.msra.mxu0 %v3333
        %3352 = vmatprep.subr.bf16.mxu0 0
        %3353 = vmatpush1.bf16.msra.mxu0 %v3334
        %3354 = vmatprep.subr.bf16.mxu0 0
        %3355 = vmatpush1.bf16.msra.mxu0 %v3335
        %3356 = vmatprep.subr.bf16.mxu0 0
        %3357 = vmatpush1.bf16.msra.mxu0 %v3336
        %3358 = vmatprep.subr.bf16.mxu0 0
        %3359 = vmatpush1.bf16.msra.mxu0 %v3337
        %3360 = vmatprep.subr.bf16.mxu0 0
        %3361 = vmatpush1.bf16.msra.mxu0 %v3338
        %3362 = vmatprep.subr.bf16.mxu0 0
        %3363 = vmatpush1.bf16.msra.mxu0 %v3339
        %3364 = vmatprep.subr.bf16.mxu0 0
        %3365 = vmatpush1.bf16.msra.mxu0 0
        %3366 = vmatprep.subr.bf16.mxu0 0
        %3367 = vmatpush1.bf16.msra.mxu0 0
        %3368 = vmatprep.subr.bf16.mxu0 0
        %3369 = vmatpush1.bf16.msra.mxu0 0
        %3370 = vmatprep.subr.bf16.mxu0 0
        %3371 = vmatpush1.bf16.msra.mxu0 0
        %3372 = vmatprep.subr.bf16.mxu0 0
        %3373 = vmatpush1.bf16.msra.mxu0 0
        %3374 = vmatprep.subr.bf16.mxu0 0
        %3375 = vmatpush1.bf16.msra.mxu0 0
        %3376 = vmatprep.subr.bf16.mxu0 0
        %3377 = vmatpush1.bf16.msra.mxu0 0
        %3378 = vmatprep.subr.bf16.mxu0 0
        %3379 = vmatpush1.bf16.msra.mxu0 0
        %3380 = vmatprep.mubr.bf16.mxu0 0
        %3381 = vmatmul.mubr.bf16.gmra.mrb[0].mxu0 %v3252
        %v3382 = vpop.f32.mrb[0].mxu0
        %v3383 = vadd.f32 0.0, %v3382
        %v3384 = vpop.f32.mrb[0].mxu0
        %v3385 = vpop.f32.mrb[0].mxu0
        %v3386 = vadd.f32 0.0, %v3385
        %v3387 = vpop.f32.mrb[0].mxu0
        %3388 = vmatprep.mubr.bf16.mxu0 0
        %3389 = vmatmul.mubr.bf16.gmra.mrb[0].mxu0 %v3253
        %v3390 = vpop.f32.mrb[0].mxu0
        %v3391 = vadd.f32 0.0, %v3390
        %v3392 = vpop.f32.mrb[0].mxu0
        %v3393 = vpop.f32.mrb[0].mxu0
        %v3394 = vadd.f32 0.0, %v3393
        %v3395 = vpop.f32.mrb[0].mxu0
        %3396 = vmatprep.mubr.bf16.mxu0 0
        %3397 = vmatmul.mubr.bf16.gmra.mrb[0].mxu0 %v3254
        %v3398 = vpop.f32.mrb[0].mxu0
        %v3399 = vadd.f32 0.0, %v3398
        %v3400 = vpop.f32.mrb[0].mxu0
        %v3401 = vpop.f32.mrb[0].mxu0
        %v3402 = vadd.f32 0.0, %v3401
        %v3403 = vpop.f32.mrb[0].mxu0
        %3404 = vmatprep.mubr.bf16.mxu0 0
        %3405 = vmatmul.mubr.bf16.gmra.mrb[0].mxu0 %v3255
        %v3406 = vpop.f32.mrb[0].mxu0
        %v3407 = vadd.f32 0.0, %v3406
        %v3408 = vpop.f32.mrb[0].mxu0
        %v3409 = vpop.f32.mrb[0].mxu0
        %v3410 = vadd.f32 0.0, %v3409
        %v3411 = vpop.f32.mrb[0].mxu0
        %3412 = vmatprep.mubr.bf16.mxu0 0
        %3413 = vmatmul.mubr.bf16.gmra.mrb[0].mxu0 %v3256
        %v3414 = vpop.f32.mrb[0].mxu0
        %v3415 = vadd.f32 0.0, %v3414
        %v3416 = vpop.f32.mrb[0].mxu0
        %v3417 = vpop.f32.mrb[0].mxu0
        %v3418 = vadd.f32 0.0, %v3417
        %v3419 = vpop.f32.mrb[0].mxu0
        %3420 = vmatprep.mubr.bf16.mxu0 0
        %3421 = vmatmul.mubr.bf16.gmra.mrb[0].mxu0 %v3257
        %v3422 = vpop.f32.mrb[0].mxu0
        %v3423 = vadd.f32 0.0, %v3422
        %v3424 = vpop.f32.mrb[0].mxu0
        %v3425 = vpop.f32.mrb[0].mxu0
        %v3426 = vadd.f32 0.0, %v3425
        %v3427 = vpop.f32.mrb[0].mxu0
        %3428 = vmatprep.mubr.bf16.mxu0 0
        %3429 = vmatmul.mubr.bf16.gmra.mrb[0].mxu0 %v3258
        %v3430 = vpop.f32.mrb[0].mxu0
        %v3431 = vadd.f32 0.0, %v3430
        %v3432 = vpop.f32.mrb[0].mxu0
        %v3433 = vpop.f32.mrb[0].mxu0
        %v3434 = vadd.f32 0.0, %v3433
        %v3435 = vpop.f32.mrb[0].mxu0
        %3436 = vmatprep.mubr.bf16.mxu0 0
        %3437 = vmatmul.mubr.bf16.gmra.mrb[0].mxu0 %v3259
        %v3438 = vpop.f32.mrb[0].mxu0
        %v3439 = vadd.f32 0.0, %v3438
        %v3440 = vpop.f32.mrb[0].mxu0
        %v3441 = vpop.f32.mrb[0].mxu0
        %v3442 = vadd.f32 0.0, %v3441
        %v3443 = vpop.f32.mrb[0].mxu0
        %3444 = vmatprep.mubr.bf16.mxu0 0
        %3445 = vmatmul.mubr.bf16.gmra.mrb[0].mxu0 %v3260
        %v3446 = vpop.f32.mrb[0].mxu0
        %v3447 = vadd.f32 0.0, %v3446
        %v3448 = vpop.f32.mrb[0].mxu0
        %v3449 = vpop.f32.mrb[0].mxu0
        %v3450 = vadd.f32 0.0, %v3449
        %v3451 = vpop.f32.mrb[0].mxu0
        %3452 = vmatprep.mubr.bf16.mxu0 0
        %3453 = vmatmul.mubr.bf16.gmra.mrb[0].mxu0 %v3261
        %v3454 = vpop.f32.mrb[0].mxu0
        %v3455 = vadd.f32 0.0, %v3454
        %v3456 = vpop.f32.mrb[0].mxu0
        %v3457 = vpop.f32.mrb[0].mxu0
        %v3458 = vadd.f32 0.0, %v3457
        %v3459 = vpop.f32.mrb[0].mxu0
        %3460 = vmatprep.mubr.bf16.mxu0 0
        %3461 = vmatmul.mubr.bf16.gmra.mrb[0].mxu0 %v3262
        %v3462 = vpop.f32.mrb[0].mxu0
        %v3463 = vadd.f32 0.0, %v3462
        %v3464 = vpop.f32.mrb[0].mxu0
        %v3465 = vpop.f32.mrb[0].mxu0
        %v3466 = vadd.f32 0.0, %v3465
        %v3467 = vpop.f32.mrb[0].mxu0
        %3468 = vmatprep.mubr.bf16.mxu0 0
        %3469 = vmatmul.mubr.bf16.gmra.mrb[0].mxu0 %v3263
        %v3470 = vpop.f32.mrb[0].mxu0
        %v3471 = vadd.f32 0.0, %v3470
        %v3472 = vpop.f32.mrb[0].mxu0
        %v3473 = vpop.f32.mrb[0].mxu0
        %v3474 = vadd.f32 0.0, %v3473
        %v3475 = vpop.f32.mrb[0].mxu0
        %3476 = vmatprep.mubr.bf16.mxu0 0
        %3477 = vmatmul.mubr.bf16.gmra.mrb[0].mxu0 %v3264
        %v3478 = vpop.f32.mrb[0].mxu0
        %v3479 = vadd.f32 0.0, %v3478
        %v3480 = vpop.f32.mrb[0].mxu0
        %v3481 = vpop.f32.mrb[0].mxu0
        %v3482 = vadd.f32 0.0, %v3481
        %v3483 = vpop.f32.mrb[0].mxu0
        %3484 = vmatprep.mubr.bf16.mxu0 0
        %3485 = vmatmul.mubr.bf16.gmra.mrb[0].mxu0 %v3265
        %v3486 = vpop.f32.mrb[0].mxu0
        %v3487 = vadd.f32 0.0, %v3486
        %v3488 = vpop.f32.mrb[0].mxu0
        %v3489 = vpop.f32.mrb[0].mxu0
        %v3490 = vadd.f32 0.0, %v3489
        %v3491 = vpop.f32.mrb[0].mxu0
        %3492 = vmatprep.mubr.bf16.mxu0 0
        %3493 = vmatmul.mubr.bf16.gmra.mrb[0].mxu0 %v3266
        %v3494 = vpop.f32.mrb[0].mxu0
        %v3495 = vadd.f32 0.0, %v3494
        %v3496 = vpop.f32.mrb[0].mxu0
        %v3497 = vpop.f32.mrb[0].mxu0
        %v3498 = vadd.f32 0.0, %v3497
        %v3499 = vpop.f32.mrb[0].mxu0
        %3500 = vmatprep.mubr.bf16.mxu0 0
        %3501 = vmatmul.mubr.bf16.gmra.mrb[0].mxu0 %v3267
        %v3502 = vpop.f32.mrb[0].mxu0
        %v3503 = vadd.f32 0.0, %v3502
        %v3504 = vpop.f32.mrb[0].mxu0
        %v3505 = vpop.f32.mrb[0].mxu0
        %v3506 = vadd.f32 0.0, %v3505
        %v3507 = vpop.f32.mrb[0].mxu0
        %3508 = vmatprep.mubr.bf16.mxu0 0
        %3509 = vmatmul.mubr.bf16.gmra.mrb[0].mxu0 %v3268
        %v3510 = vpop.f32.mrb[0].mxu0
        %v3511 = vadd.f32 0.0, %v3510
        %v3512 = vpop.f32.mrb[0].mxu0
        %v3513 = vpop.f32.mrb[0].mxu0
        %v3514 = vadd.f32 0.0, %v3513
        %v3515 = vpop.f32.mrb[0].mxu0
        %3516 = vmatprep.mubr.bf16.mxu0 0
        %3517 = vmatmul.mubr.bf16.gmra.mrb[0].mxu0 %v3269
        %v3518 = vpop.f32.mrb[0].mxu0
        %v3519 = vadd.f32 0.0, %v3518
        %v3520 = vpop.f32.mrb[0].mxu0
        %v3521 = vpop.f32.mrb[0].mxu0
        %v3522 = vadd.f32 0.0, %v3521
        %v3523 = vpop.f32.mrb[0].mxu0
        %3524 = vmatprep.mubr.bf16.mxu0 0
        %3525 = vmatmul.mubr.bf16.gmra.mrb[0].mxu0 %v3270
        %v3526 = vpop.f32.mrb[0].mxu0
        %v3527 = vadd.f32 0.0, %v3526
        %v3528 = vpop.f32.mrb[0].mxu0
        %v3529 = vpop.f32.mrb[0].mxu0
        %v3530 = vadd.f32 0.0, %v3529
        %v3531 = vpop.f32.mrb[0].mxu0
        %3532 = vmatprep.mubr.bf16.mxu0 0
        %3533 = vmatmul.mubr.bf16.gmra.mrb[0].mxu0 %v3271
        %v3534 = vpop.f32.mrb[0].mxu0
        %v3535 = vadd.f32 0.0, %v3534
        %v3536 = vpop.f32.mrb[0].mxu0
        %v3537 = vpop.f32.mrb[0].mxu0
        %v3538 = vadd.f32 0.0, %v3537
        %v3539 = vpop.f32.mrb[0].mxu0
        %3540 = vmatprep.mubr.bf16.mxu0 0
        %3541 = vmatmul.mubr.bf16.gmra.mrb[0].mxu0 %v3272
        %v3542 = vpop.f32.mrb[0].mxu0
        %v3543 = vadd.f32 0.0, %v3542
        %v3544 = vpop.f32.mrb[0].mxu0
        %v3545 = vpop.f32.mrb[0].mxu0
        %v3546 = vadd.f32 0.0, %v3545
        %v3547 = vpop.f32.mrb[0].mxu0
        %3548 = vmatprep.mubr.bf16.mxu0 0
        %3549 = vmatmul.mubr.bf16.gmra.mrb[0].mxu0 %v3273
        %v3550 = vpop.f32.mrb[0].mxu0
        %v3551 = vadd.f32 0.0, %v3550
        %v3552 = vpop.f32.mrb[0].mxu0
        %v3553 = vpop.f32.mrb[0].mxu0
        %v3554 = vadd.f32 0.0, %v3553
        %v3555 = vpop.f32.mrb[0].mxu0
        %3556 = vmatprep.mubr.bf16.mxu0 0
        %3557 = vmatmul.mubr.bf16.gmra.mrb[0].mxu0 %v3274
        %v3558 = vpop.f32.mrb[0].mxu0
        %v3559 = vadd.f32 0.0, %v3558
        %v3560 = vpop.f32.mrb[0].mxu0
        %v3561 = vpop.f32.mrb[0].mxu0
        %v3562 = vadd.f32 0.0, %v3561
        %v3563 = vpop.f32.mrb[0].mxu0
        %3564 = vmatprep.mubr.bf16.mxu0 0
        %3565 = vmatmul.mubr.bf16.gmra.mrb[0].mxu0 %v3275
        %v3566 = vpop.f32.mrb[0].mxu0
        %v3567 = vadd.f32 0.0, %v3566
        %v3568 = vpop.f32.mrb[0].mxu0
        %v3569 = vpop.f32.mrb[0].mxu0
        %v3570 = vadd.f32 0.0, %v3569
        %v3571 = vpop.f32.mrb[0].mxu0
        %3572 = vdwg.mxu0
        %v3573 = vrot.slane %v3383, 1
        %v3574 = vrot.slane %v3386, 1
        %v3575 = vrot.slane %v3391, 1
        %v3576 = vrot.slane %v3394, 1
        %v3577 = vrot.slane %v3399, 1
        %v3578 = vrot.slane %v3402, 1
        %v3579 = vrot.slane %v3407, 1
        %v3580 = vrot.slane %v3410, 1
        %v3581 = vrot.slane %v3415, 1
        %v3582 = vrot.slane %v3418, 1
        %v3583 = vrot.slane %v3423, 1
        %v3584 = vrot.slane %v3426, 1
        %v3585 = vrot.slane %v3431, 1
        %v3586 = vrot.slane %v3434, 1
        %v3587 = vrot.slane %v3439, 1
        %v3588 = vrot.slane %v3442, 1
        %v3589 = vrot.slane %v3447, 1
        %v3590 = vrot.slane %v3450, 1
        %v3591 = vrot.slane %v3455, 1
        %v3592 = vrot.slane %v3458, 1
        %v3593 = vrot.slane %v3463, 1
        %v3594 = vrot.slane %v3466, 1
        %v3595 = vrot.slane %v3471, 1
        %v3596 = vrot.slane %v3474, 1
        %v3597 = vrot.slane %v3479, 1
        %v3598 = vrot.slane %v3482, 1
        %v3599 = vrot.slane %v3487, 1
        %v3600 = vrot.slane %v3490, 1
        %v3601 = vrot.slane %v3495, 1
        %v3602 = vrot.slane %v3498, 1
        %v3603 = vrot.slane %v3503, 1
        %v3604 = vrot.slane %v3506, 1
        %v3605 = vrot.slane %v3511, 1
        %v3606 = vrot.slane %v3514, 1
        %v3607 = vrot.slane %v3519, 1
        %v3608 = vrot.slane %v3522, 1
        %v3609 = vrot.slane %v3527, 1
        %v3610 = vrot.slane %v3530, 1
        %v3611 = vrot.slane %v3535, 1
        %v3612 = vrot.slane %v3538, 1
        %v3613 = vrot.slane %v3543, 1
        %v3614 = vrot.slane %v3546, 1
        %v3615 = vrot.slane %v3551, 1
        %v3616 = vrot.slane %v3554, 1
        %v3617 = vrot.slane %v3559, 1
        %v3618 = vrot.slane %v3562, 1
        %v3619 = vrot.slane %v3567, 1
        %v3620 = vrot.slane %v3570, 1
        %v3621 = vsel %vm821, %v3619, %v3620
        %v3622 = vsel %vm821, %v3618, %v3619
        %v3623 = vsel %vm821, %v3617, %v3618
        %v3624 = vsel %vm821, %v3616, %v3617
        %v3625 = vsel %vm821, %v3615, %v3616
        %v3626 = vsel %vm821, %v3614, %v3615
        %v3627 = vsel %vm821, %v3613, %v3614
        %v3628 = vsel %vm821, %v3612, %v3613
        %v3629 = vsel %vm821, %v3611, %v3612
        %v3630 = vsel %vm821, %v3610, %v3611
        %v3631 = vsel %vm821, %v3609, %v3610
        %v3632 = vsel %vm821, %v3608, %v3609
        %v3633 = vsel %vm821, %v3607, %v3608
        %v3634 = vsel %vm821, %v3606, %v3607
        %v3635 = vsel %vm821, %v3605, %v3606
        %v3636 = vsel %vm821, %v3604, %v3605
        %v3637 = vsel %vm821, %v3603, %v3604
        %v3638 = vsel %vm821, %v3602, %v3603
        %v3639 = vsel %vm821, %v3601, %v3602
        %v3640 = vsel %vm821, %v3600, %v3601
        %v3641 = vsel %vm821, %v3599, %v3600
        %v3642 = vsel %vm821, %v3598, %v3599
        %v3643 = vsel %vm821, %v3597, %v3598
        %v3644 = vsel %vm821, %v3596, %v3597
        %v3645 = vsel %vm821, %v3595, %v3596
        %v3646 = vsel %vm821, %v3594, %v3595
        %v3647 = vsel %vm821, %v3593, %v3594
        %v3648 = vsel %vm821, %v3592, %v3593
        %v3649 = vsel %vm821, %v3591, %v3592
        %v3650 = vsel %vm821, %v3590, %v3591
        %v3651 = vsel %vm821, %v3589, %v3590
        %v3652 = vsel %vm821, %v3588, %v3589
        %v3653 = vsel %vm821, %v3587, %v3588
        %v3654 = vsel %vm821, %v3586, %v3587
        %v3655 = vsel %vm821, %v3585, %v3586
        %v3656 = vsel %vm821, %v3584, %v3585
        %v3657 = vsel %vm821, %v3583, %v3584
        %v3658 = vsel %vm821, %v3582, %v3583
        %v3659 = vsel %vm821, %v3581, %v3582
        %v3660 = vsel %vm821, %v3580, %v3581
        %v3661 = vsel %vm821, %v3579, %v3580
        %v3662 = vsel %vm821, %v3578, %v3579
        %v3663 = vsel %vm821, %v3577, %v3578
        %v3664 = vsel %vm821, %v3576, %v3577
        %v3665 = vsel %vm821, %v3575, %v3576
        %v3666 = vsel %vm821, %v3574, %v3575
        %v3667 = vsel %vm821, %v3573, %v3574
        %v3668 = vsel %vm821, %v3620, %v3573
        %v3685 = vunpack.c.l.b16 %v3123
        %v3686 = vunpack.c.l.b16 %v3124
        %v3687 = vunpack.c.l.b16 %v3125
        %v3688 = vunpack.c.l.b16 %v3126
        %v3689 = vunpack.c.l.b16 %v3127
        %v3690 = vunpack.c.l.b16 %v3128
        %v3691 = vunpack.c.l.b16 %v3129
        %v3692 = vunpack.c.l.b16 %v3130
        %v3693 = vunpack.c.l.b16 %v3131
        %v3694 = vunpack.c.l.b16 %v3132
        %v3695 = vunpack.c.l.b16 %v3133
        %v3696 = vunpack.c.l.b16 %v3134
        %v3697 = vunpack.c.l.b16 %v3135
        %v3698 = vunpack.c.l.b16 %v3136
        %v3699 = vunpack.c.l.b16 %v3137
        %v3700 = vunpack.c.l.b16 %v3138
        %v3701 = vpack.c.b16 %v3686, %v3685
        %v3702 = vpack.c.b16 %v3688, %v3687
        %v3703 = vpack.c.b16 %v3690, %v3689
        %v3704 = vpack.c.b16 %v3692, %v3691
        %v3705 = vpack.c.b16 %v3694, %v3693
        %v3706 = vpack.c.b16 %v3696, %v3695
        %v3707 = vpack.c.b16 %v3698, %v3697
        %v3708 = vpack.c.b16 %v3700, %v3699
        %3717 = vmatprep.subr.bf16.mxu0 0
        %3718 = vmatpush1.bf16.msra.mxu0 %v3701
        %3719 = vmatprep.subr.bf16.mxu0 0
        %3720 = vmatpush1.bf16.msra.mxu0 %v3702
        %3721 = vmatprep.subr.bf16.mxu0 0
        %3722 = vmatpush1.bf16.msra.mxu0 %v3703
        %3723 = vmatprep.subr.bf16.mxu0 0
        %3724 = vmatpush1.bf16.msra.mxu0 %v3704
        %3725 = vmatprep.subr.bf16.mxu0 0
        %3726 = vmatpush1.bf16.msra.mxu0 %v3705
        %3727 = vmatprep.subr.bf16.mxu0 0
        %3728 = vmatpush1.bf16.msra.mxu0 %v3706
        %3729 = vmatprep.subr.bf16.mxu0 0
        %3730 = vmatpush1.bf16.msra.mxu0 %v3707
        %3731 = vmatprep.subr.bf16.mxu0 0
        %3732 = vmatpush1.bf16.msra.mxu0 %v3708
        %3733 = vmatprep.subr.bf16.mxu0 0
        %3734 = vmatpush1.bf16.msra.mxu0 0
        %3735 = vmatprep.subr.bf16.mxu0 0
        %3736 = vmatpush1.bf16.msra.mxu0 0
        %3737 = vmatprep.subr.bf16.mxu0 0
        %3738 = vmatpush1.bf16.msra.mxu0 0
        %3739 = vmatprep.subr.bf16.mxu0 0
        %3740 = vmatpush1.bf16.msra.mxu0 0
        %3741 = vmatprep.subr.bf16.mxu0 0
        %3742 = vmatpush1.bf16.msra.mxu0 0
        %3743 = vmatprep.subr.bf16.mxu0 0
        %3744 = vmatpush1.bf16.msra.mxu0 0
        %3745 = vmatprep.subr.bf16.mxu0 0
        %3746 = vmatpush1.bf16.msra.mxu0 0
        %3747 = vmatprep.subr.bf16.mxu0 0
        %3748 = vmatpush1.bf16.msra.mxu0 0
        %3749 = vmatprep.mubr.bf16.mxu0 0
        %3750 = vmatmul.mubr.bf16.gmra.mrb[0].mxu0 %v3252
        %v3751 = vpop.f32.mrb[0].mxu0
        %v3752 = vadd.f32 %v3667, %v3751
        %v3753 = vpop.f32.mrb[0].mxu0
        %v3754 = vpop.f32.mrb[0].mxu0
        %v3755 = vadd.f32 %v3666, %v3754
        %v3756 = vpop.f32.mrb[0].mxu0
        %3757 = vmatprep.mubr.bf16.mxu0 0
        %3758 = vmatmul.mubr.bf16.gmra.mrb[0].mxu0 %v3253
        %v3759 = vpop.f32.mrb[0].mxu0
        %v3760 = vadd.f32 %v3665, %v3759
        %v3761 = vpop.f32.mrb[0].mxu0
        %v3762 = vpop.f32.mrb[0].mxu0
        %v3763 = vadd.f32 %v3664, %v3762
        %v3764 = vpop.f32.mrb[0].mxu0
        %3765 = vmatprep.mubr.bf16.mxu0 0
        %3766 = vmatmul.mubr.bf16.gmra.mrb[0].mxu0 %v3254
        %v3767 = vpop.f32.mrb[0].mxu0
        %v3768 = vadd.f32 %v3663, %v3767
        %v3769 = vpop.f32.mrb[0].mxu0
        %v3770 = vpop.f32.mrb[0].mxu0
        %v3771 = vadd.f32 %v3662, %v3770
        %v3772 = vpop.f32.mrb[0].mxu0
        %3773 = vmatprep.mubr.bf16.mxu0 0
        %3774 = vmatmul.mubr.bf16.gmra.mrb[0].mxu0 %v3255
        %v3775 = vpop.f32.mrb[0].mxu0
        %v3776 = vadd.f32 %v3661, %v3775
        %v3777 = vpop.f32.mrb[0].mxu0
        %v3778 = vpop.f32.mrb[0].mxu0
        %v3779 = vadd.f32 %v3660, %v3778
        %v3780 = vpop.f32.mrb[0].mxu0
        %3781 = vmatprep.mubr.bf16.mxu0 0
        %3782 = vmatmul.mubr.bf16.gmra.mrb[0].mxu0 %v3256
        %v3783 = vpop.f32.mrb[0].mxu0
        %v3784 = vadd.f32 %v3659, %v3783
        %v3785 = vpop.f32.mrb[0].mxu0
        %v3786 = vpop.f32.mrb[0].mxu0
        %v3787 = vadd.f32 %v3658, %v3786
        %v3788 = vpop.f32.mrb[0].mxu0
        %3789 = vmatprep.mubr.bf16.mxu0 0
        %3790 = vmatmul.mubr.bf16.gmra.mrb[0].mxu0 %v3257
        %v3791 = vpop.f32.mrb[0].mxu0
        %v3792 = vadd.f32 %v3657, %v3791
        %v3793 = vpop.f32.mrb[0].mxu0
        %v3794 = vpop.f32.mrb[0].mxu0
        %v3795 = vadd.f32 %v3656, %v3794
        %v3796 = vpop.f32.mrb[0].mxu0
        %3797 = vmatprep.mubr.bf16.mxu0 0
        %3798 = vmatmul.mubr.bf16.gmra.mrb[0].mxu0 %v3258
        %v3799 = vpop.f32.mrb[0].mxu0
        %v3800 = vadd.f32 %v3655, %v3799
        %v3801 = vpop.f32.mrb[0].mxu0
        %v3802 = vpop.f32.mrb[0].mxu0
        %v3803 = vadd.f32 %v3654, %v3802
        %v3804 = vpop.f32.mrb[0].mxu0
        %3805 = vmatprep.mubr.bf16.mxu0 0
        %3806 = vmatmul.mubr.bf16.gmra.mrb[0].mxu0 %v3259
        %v3807 = vpop.f32.mrb[0].mxu0
        %v3808 = vadd.f32 %v3653, %v3807
        %v3809 = vpop.f32.mrb[0].mxu0
        %v3810 = vpop.f32.mrb[0].mxu0
        %v3811 = vadd.f32 %v3652, %v3810
        %v3812 = vpop.f32.mrb[0].mxu0
        %3813 = vmatprep.mubr.bf16.mxu0 0
        %3814 = vmatmul.mubr.bf16.gmra.mrb[0].mxu0 %v3260
        %v3815 = vpop.f32.mrb[0].mxu0
        %v3816 = vadd.f32 %v3651, %v3815
        %v3817 = vpop.f32.mrb[0].mxu0
        %v3818 = vpop.f32.mrb[0].mxu0
        %v3819 = vadd.f32 %v3650, %v3818
        %v3820 = vpop.f32.mrb[0].mxu0
        %3821 = vmatprep.mubr.bf16.mxu0 0
        %3822 = vmatmul.mubr.bf16.gmra.mrb[0].mxu0 %v3261
        %v3823 = vpop.f32.mrb[0].mxu0
        %v3824 = vadd.f32 %v3649, %v3823
        %v3825 = vpop.f32.mrb[0].mxu0
        %v3826 = vpop.f32.mrb[0].mxu0
        %v3827 = vadd.f32 %v3648, %v3826
        %v3828 = vpop.f32.mrb[0].mxu0
        %3829 = vmatprep.mubr.bf16.mxu0 0
        %3830 = vmatmul.mubr.bf16.gmra.mrb[0].mxu0 %v3262
        %v3831 = vpop.f32.mrb[0].mxu0
        %v3832 = vadd.f32 %v3647, %v3831
        %v3833 = vpop.f32.mrb[0].mxu0
        %v3834 = vpop.f32.mrb[0].mxu0
        %v3835 = vadd.f32 %v3646, %v3834
        %v3836 = vpop.f32.mrb[0].mxu0
        %3837 = vmatprep.mubr.bf16.mxu0 0
        %3838 = vmatmul.mubr.bf16.gmra.mrb[0].mxu0 %v3263
        %v3839 = vpop.f32.mrb[0].mxu0
        %v3840 = vadd.f32 %v3645, %v3839
        %v3841 = vpop.f32.mrb[0].mxu0
        %v3842 = vpop.f32.mrb[0].mxu0
        %v3843 = vadd.f32 %v3644, %v3842
        %v3844 = vpop.f32.mrb[0].mxu0
        %3845 = vmatprep.mubr.bf16.mxu0 0
        %3846 = vmatmul.mubr.bf16.gmra.mrb[0].mxu0 %v3264
        %v3847 = vpop.f32.mrb[0].mxu0
        %v3848 = vadd.f32 %v3643, %v3847
        %v3849 = vpop.f32.mrb[0].mxu0
        %v3850 = vpop.f32.mrb[0].mxu0
        %v3851 = vadd.f32 %v3642, %v3850
        %v3852 = vpop.f32.mrb[0].mxu0
        %3853 = vmatprep.mubr.bf16.mxu0 0
        %3854 = vmatmul.mubr.bf16.gmra.mrb[0].mxu0 %v3265
        %v3855 = vpop.f32.mrb[0].mxu0
        %v3856 = vadd.f32 %v3641, %v3855
        %v3857 = vpop.f32.mrb[0].mxu0
        %v3858 = vpop.f32.mrb[0].mxu0
        %v3859 = vadd.f32 %v3640, %v3858
        %v3860 = vpop.f32.mrb[0].mxu0
        %3861 = vmatprep.mubr.bf16.mxu0 0
        %3862 = vmatmul.mubr.bf16.gmra.mrb[0].mxu0 %v3266
        %v3863 = vpop.f32.mrb[0].mxu0
        %v3864 = vadd.f32 %v3639, %v3863
        %v3865 = vpop.f32.mrb[0].mxu0
        %v3866 = vpop.f32.mrb[0].mxu0
        %v3867 = vadd.f32 %v3638, %v3866
        %v3868 = vpop.f32.mrb[0].mxu0
        %3869 = vmatprep.mubr.bf16.mxu0 0
        %3870 = vmatmul.mubr.bf16.gmra.mrb[0].mxu0 %v3267
        %v3871 = vpop.f32.mrb[0].mxu0
        %v3872 = vadd.f32 %v3637, %v3871
        %v3873 = vpop.f32.mrb[0].mxu0
        %v3874 = vpop.f32.mrb[0].mxu0
        %v3875 = vadd.f32 %v3636, %v3874
        %v3876 = vpop.f32.mrb[0].mxu0
        %3877 = vmatprep.mubr.bf16.mxu0 0
        %3878 = vmatmul.mubr.bf16.gmra.mrb[0].mxu0 %v3268
        %v3879 = vpop.f32.mrb[0].mxu0
        %v3880 = vadd.f32 %v3635, %v3879
        %v3881 = vpop.f32.mrb[0].mxu0
        %v3882 = vpop.f32.mrb[0].mxu0
        %v3883 = vadd.f32 %v3634, %v3882
        %v3884 = vpop.f32.mrb[0].mxu0
        %3885 = vmatprep.mubr.bf16.mxu0 0
        %3886 = vmatmul.mubr.bf16.gmra.mrb[0].mxu0 %v3269
        %v3887 = vpop.f32.mrb[0].mxu0
        %v3888 = vadd.f32 %v3633, %v3887
        %v3889 = vpop.f32.mrb[0].mxu0
        %v3890 = vpop.f32.mrb[0].mxu0
        %v3891 = vadd.f32 %v3632, %v3890
        %v3892 = vpop.f32.mrb[0].mxu0
        %3893 = vmatprep.mubr.bf16.mxu0 0
        %3894 = vmatmul.mubr.bf16.gmra.mrb[0].mxu0 %v3270
        %v3895 = vpop.f32.mrb[0].mxu0
        %v3896 = vadd.f32 %v3631, %v3895
        %v3897 = vpop.f32.mrb[0].mxu0
        %v3898 = vpop.f32.mrb[0].mxu0
        %v3899 = vadd.f32 %v3630, %v3898
        %v3900 = vpop.f32.mrb[0].mxu0
        %3901 = vmatprep.mubr.bf16.mxu0 0
        %3902 = vmatmul.mubr.bf16.gmra.mrb[0].mxu0 %v3271
        %v3903 = vpop.f32.mrb[0].mxu0
        %v3904 = vadd.f32 %v3629, %v3903
        %v3905 = vpop.f32.mrb[0].mxu0
        %v3906 = vpop.f32.mrb[0].mxu0
        %v3907 = vadd.f32 %v3628, %v3906
        %v3908 = vpop.f32.mrb[0].mxu0
        %3909 = vmatprep.mubr.bf16.mxu0 0
        %3910 = vmatmul.mubr.bf16.gmra.mrb[0].mxu0 %v3272
        %v3911 = vpop.f32.mrb[0].mxu0
        %v3912 = vadd.f32 %v3627, %v3911
        %v3913 = vpop.f32.mrb[0].mxu0
        %v3914 = vpop.f32.mrb[0].mxu0
        %v3915 = vadd.f32 %v3626, %v3914
        %v3916 = vpop.f32.mrb[0].mxu0
        %3917 = vmatprep.mubr.bf16.mxu0 0
        %3918 = vmatmul.mubr.bf16.gmra.mrb[0].mxu0 %v3273
        %v3919 = vpop.f32.mrb[0].mxu0
        %v3920 = vadd.f32 %v3625, %v3919
        %v3921 = vpop.f32.mrb[0].mxu0
        %v3922 = vpop.f32.mrb[0].mxu0
        %v3923 = vadd.f32 %v3624, %v3922
        %v3924 = vpop.f32.mrb[0].mxu0
        %3925 = vmatprep.mubr.bf16.mxu0 0
        %3926 = vmatmul.mubr.bf16.gmra.mrb[0].mxu0 %v3274
        %v3927 = vpop.f32.mrb[0].mxu0
        %v3928 = vadd.f32 %v3623, %v3927
        %v3929 = vpop.f32.mrb[0].mxu0
        %v3930 = vpop.f32.mrb[0].mxu0
        %v3931 = vadd.f32 %v3622, %v3930
        %v3932 = vpop.f32.mrb[0].mxu0
        %3933 = vmatprep.mubr.bf16.mxu0 0
        %3934 = vmatmul.mubr.bf16.gmra.mrb[0].mxu0 %v3275
        %v3935 = vpop.f32.mrb[0].mxu0
        %v3936 = vadd.f32 %v3621, %v3935
        %v3937 = vpop.f32.mrb[0].mxu0
        %v3938 = vpop.f32.mrb[0].mxu0
        %v3939 = vadd.f32 %v3668, %v3938
        %v3940 = vpop.f32.mrb[0].mxu0
        %3941 = vdwg.mxu0
        %s3942 = scalar_lea.vmem [#allocation8], 512
        %v3943 = vld [vmem:[%s3942] sm:$0xf]
        %v3944 = vld [vmem:[%s3942 + $0x4] sm:$0xf]
        %v3945 = vld [vmem:[%s3942 + $0x8] sm:$0xf]
        %v3946 = vld [vmem:[%s3942 + $0xc] sm:$0xf]
        %v3947 = vld [vmem:[%s3942 + $0x10] sm:$0xf]
        %v3948 = vld [vmem:[%s3942 + $0x14] sm:$0xf]
        %v3949 = vld [vmem:[%s3942 + $0x18] sm:$0xf]
        %v3950 = vld [vmem:[%s3942 + $0x1c] sm:$0xf]
        %v3951 = vld [vmem:[%s3942 + $0x20] sm:$0xf]
        %v3952 = vld [vmem:[%s3942 + $0x24] sm:$0xf]
        %v3953 = vld [vmem:[%s3942 + $0x28] sm:$0xf]
        %v3954 = vld [vmem:[%s3942 + $0x2c] sm:$0xf]
        %v3955 = vld [vmem:[%s3942 + $0x30] sm:$0xf]
        %v3956 = vld [vmem:[%s3942 + $0x34] sm:$0xf]
        %v3957 = vld [vmem:[%s3942 + $0x38] sm:$0xf]
        %v3958 = vld [vmem:[%s3942 + $0x3c] sm:$0xf]
        %v3975 = vunpack.c.l.b16 %v3943
        %v3976 = vunpack.c.l.b16 %v3944
        %v3977 = vunpack.c.l.b16 %v3945
        %v3978 = vunpack.c.l.b16 %v3946
        %v3979 = vunpack.c.l.b16 %v3947
        %v3980 = vunpack.c.l.b16 %v3948
        %v3981 = vunpack.c.l.b16 %v3949
        %v3982 = vunpack.c.l.b16 %v3950
        %v3983 = vunpack.c.l.b16 %v3951
        %v3984 = vunpack.c.l.b16 %v3952
        %v3985 = vunpack.c.l.b16 %v3953
        %v3986 = vunpack.c.l.b16 %v3954
        %v3987 = vunpack.c.l.b16 %v3955
        %v3988 = vunpack.c.l.b16 %v3956
        %v3989 = vunpack.c.l.b16 %v3957
        %v3990 = vunpack.c.l.b16 %v3958
        %v3991 = vpack.c.b16 %v3976, %v3975
        %v3992 = vpack.c.b16 %v3978, %v3977
        %v3993 = vpack.c.b16 %v3980, %v3979
        %v3994 = vpack.c.b16 %v3982, %v3981
        %v3995 = vpack.c.b16 %v3984, %v3983
        %v3996 = vpack.c.b16 %v3986, %v3985
        %v3997 = vpack.c.b16 %v3988, %v3987
        %v3998 = vpack.c.b16 %v3990, %v3989
        %4007 = vmatprep.subr.bf16.mxu0 0
        %4008 = vmatpush1.bf16.msra.mxu0 %v3991
        %4009 = vmatprep.subr.bf16.mxu0 0
        %4010 = vmatpush1.bf16.msra.mxu0 %v3992
        %4011 = vmatprep.subr.bf16.mxu0 0
        %4012 = vmatpush1.bf16.msra.mxu0 %v3993
        %4013 = vmatprep.subr.bf16.mxu0 0
        %4014 = vmatpush1.bf16.msra.mxu0 %v3994
        %4015 = vmatprep.subr.bf16.mxu0 0
        %4016 = vmatpush1.bf16.msra.mxu0 %v3995
        %4017 = vmatprep.subr.bf16.mxu0 0
        %4018 = vmatpush1.bf16.msra.mxu0 %v3996
        %4019 = vmatprep.subr.bf16.mxu0 0
        %4020 = vmatpush1.bf16.msra.mxu0 %v3997
        %4021 = vmatprep.subr.bf16.mxu0 0
        %4022 = vmatpush1.bf16.msra.mxu0 %v3998
        %4023 = vmatprep.subr.bf16.mxu0 0
        %4024 = vmatpush1.bf16.msra.mxu0 0
        %4025 = vmatprep.subr.bf16.mxu0 0
        %4026 = vmatpush1.bf16.msra.mxu0 0
        %4027 = vmatprep.subr.bf16.mxu0 0
        %4028 = vmatpush1.bf16.msra.mxu0 0
        %4029 = vmatprep.subr.bf16.mxu0 0
        %4030 = vmatpush1.bf16.msra.mxu0 0
        %4031 = vmatprep.subr.bf16.mxu0 0
        %4032 = vmatpush1.bf16.msra.mxu0 0
        %4033 = vmatprep.subr.bf16.mxu0 0
        %4034 = vmatpush1.bf16.msra.mxu0 0
        %4035 = vmatprep.subr.bf16.mxu0 0
        %4036 = vmatpush1.bf16.msra.mxu0 0
        %4037 = vmatprep.subr.bf16.mxu0 0
        %4038 = vmatpush1.bf16.msra.mxu0 0
        %4039 = vmatprep.mubr.bf16.mxu0 0
        %4040 = vmatmul.mubr.bf16.gmra.mrb[0].mxu0 %v3252
        %v4041 = vpop.f32.mrb[0].mxu0
        %v4042 = vadd.f32 0.0, %v4041
        %v4043 = vpop.f32.mrb[0].mxu0
        %v4044 = vpop.f32.mrb[0].mxu0
        %v4045 = vadd.f32 0.0, %v4044
        %v4046 = vpop.f32.mrb[0].mxu0
        %4047 = vmatprep.mubr.bf16.mxu0 0
        %4048 = vmatmul.mubr.bf16.gmra.mrb[0].mxu0 %v3253
        %v4049 = vpop.f32.mrb[0].mxu0
        %v4050 = vadd.f32 0.0, %v4049
        %v4051 = vpop.f32.mrb[0].mxu0
        %v4052 = vpop.f32.mrb[0].mxu0
        %v4053 = vadd.f32 0.0, %v4052
        %v4054 = vpop.f32.mrb[0].mxu0
        %4055 = vmatprep.mubr.bf16.mxu0 0
        %4056 = vmatmul.mubr.bf16.gmra.mrb[0].mxu0 %v3254
        %v4057 = vpop.f32.mrb[0].mxu0
        %v4058 = vadd.f32 0.0, %v4057
        %v4059 = vpop.f32.mrb[0].mxu0
        %v4060 = vpop.f32.mrb[0].mxu0
        %v4061 = vadd.f32 0.0, %v4060
        %v4062 = vpop.f32.mrb[0].mxu0
        %4063 = vmatprep.mubr.bf16.mxu0 0
        %4064 = vmatmul.mubr.bf16.gmra.mrb[0].mxu0 %v3255
        %v4065 = vpop.f32.mrb[0].mxu0
        %v4066 = vadd.f32 0.0, %v4065
        %v4067 = vpop.f32.mrb[0].mxu0
        %v4068 = vpop.f32.mrb[0].mxu0
        %v4069 = vadd.f32 0.0, %v4068
        %v4070 = vpop.f32.mrb[0].mxu0
        %4071 = vmatprep.mubr.bf16.mxu0 0
        %4072 = vmatmul.mubr.bf16.gmra.mrb[0].mxu0 %v3256
        %v4073 = vpop.f32.mrb[0].mxu0
        %v4074 = vadd.f32 0.0, %v4073
        %v4075 = vpop.f32.mrb[0].mxu0
        %v4076 = vpop.f32.mrb[0].mxu0
        %v4077 = vadd.f32 0.0, %v4076
        %v4078 = vpop.f32.mrb[0].mxu0
        %4079 = vmatprep.mubr.bf16.mxu0 0
        %4080 = vmatmul.mubr.bf16.gmra.mrb[0].mxu0 %v3257
        %v4081 = vpop.f32.mrb[0].mxu0
        %v4082 = vadd.f32 0.0, %v4081
        %v4083 = vpop.f32.mrb[0].mxu0
        %v4084 = vpop.f32.mrb[0].mxu0
        %v4085 = vadd.f32 0.0, %v4084
        %v4086 = vpop.f32.mrb[0].mxu0
        %4087 = vmatprep.mubr.bf16.mxu0 0
        %4088 = vmatmul.mubr.bf16.gmra.mrb[0].mxu0 %v3258
        %v4089 = vpop.f32.mrb[0].mxu0
        %v4090 = vadd.f32 0.0, %v4089
        %v4091 = vpop.f32.mrb[0].mxu0
        %v4092 = vpop.f32.mrb[0].mxu0
        %v4093 = vadd.f32 0.0, %v4092
        %v4094 = vpop.f32.mrb[0].mxu0
        %4095 = vmatprep.mubr.bf16.mxu0 0
        %4096 = vmatmul.mubr.bf16.gmra.mrb[0].mxu0 %v3259
        %v4097 = vpop.f32.mrb[0].mxu0
        %v4098 = vadd.f32 0.0, %v4097
        %v4099 = vpop.f32.mrb[0].mxu0
        %v4100 = vpop.f32.mrb[0].mxu0
        %v4101 = vadd.f32 0.0, %v4100
        %v4102 = vpop.f32.mrb[0].mxu0
        %4103 = vmatprep.mubr.bf16.mxu0 0
        %4104 = vmatmul.mubr.bf16.gmra.mrb[0].mxu0 %v3260
        %v4105 = vpop.f32.mrb[0].mxu0
        %v4106 = vadd.f32 0.0, %v4105
        %v4107 = vpop.f32.mrb[0].mxu0
        %v4108 = vpop.f32.mrb[0].mxu0
        %v4109 = vadd.f32 0.0, %v4108
        %v4110 = vpop.f32.mrb[0].mxu0
        %4111 = vmatprep.mubr.bf16.mxu0 0
        %4112 = vmatmul.mubr.bf16.gmra.mrb[0].mxu0 %v3261
        %v4113 = vpop.f32.mrb[0].mxu0
        %v4114 = vadd.f32 0.0, %v4113
        %v4115 = vpop.f32.mrb[0].mxu0
        %v4116 = vpop.f32.mrb[0].mxu0
        %v4117 = vadd.f32 0.0, %v4116
        %v4118 = vpop.f32.mrb[0].mxu0
        %4119 = vmatprep.mubr.bf16.mxu0 0
        %4120 = vmatmul.mubr.bf16.gmra.mrb[0].mxu0 %v3262
        %v4121 = vpop.f32.mrb[0].mxu0
        %v4122 = vadd.f32 0.0, %v4121
        %v4123 = vpop.f32.mrb[0].mxu0
        %v4124 = vpop.f32.mrb[0].mxu0
        %v4125 = vadd.f32 0.0, %v4124
        %v4126 = vpop.f32.mrb[0].mxu0
        %4127 = vmatprep.mubr.bf16.mxu0 0
        %4128 = vmatmul.mubr.bf16.gmra.mrb[0].mxu0 %v3263
        %v4129 = vpop.f32.mrb[0].mxu0
        %v4130 = vadd.f32 0.0, %v4129
        %v4131 = vpop.f32.mrb[0].mxu0
        %v4132 = vpop.f32.mrb[0].mxu0
        %v4133 = vadd.f32 0.0, %v4132
        %v4134 = vpop.f32.mrb[0].mxu0
        %4135 = vmatprep.mubr.bf16.mxu0 0
        %4136 = vmatmul.mubr.bf16.gmra.mrb[0].mxu0 %v3264
        %v4137 = vpop.f32.mrb[0].mxu0
        %v4138 = vadd.f32 0.0, %v4137
        %v4139 = vpop.f32.mrb[0].mxu0
        %v4140 = vpop.f32.mrb[0].mxu0
        %v4141 = vadd.f32 0.0, %v4140
        %v4142 = vpop.f32.mrb[0].mxu0
        %4143 = vmatprep.mubr.bf16.mxu0 0
        %4144 = vmatmul.mubr.bf16.gmra.mrb[0].mxu0 %v3265
        %v4145 = vpop.f32.mrb[0].mxu0
        %v4146 = vadd.f32 0.0, %v4145
        %v4147 = vpop.f32.mrb[0].mxu0
        %v4148 = vpop.f32.mrb[0].mxu0
        %v4149 = vadd.f32 0.0, %v4148
        %v4150 = vpop.f32.mrb[0].mxu0
        %4151 = vmatprep.mubr.bf16.mxu0 0
        %4152 = vmatmul.mubr.bf16.gmra.mrb[0].mxu0 %v3266
        %v4153 = vpop.f32.mrb[0].mxu0
        %v4154 = vadd.f32 0.0, %v4153
        %v4155 = vpop.f32.mrb[0].mxu0
        %v4156 = vpop.f32.mrb[0].mxu0
        %v4157 = vadd.f32 0.0, %v4156
        %v4158 = vpop.f32.mrb[0].mxu0
        %4159 = vmatprep.mubr.bf16.mxu0 0
        %4160 = vmatmul.mubr.bf16.gmra.mrb[0].mxu0 %v3267
        %v4161 = vpop.f32.mrb[0].mxu0
        %v4162 = vadd.f32 0.0, %v4161
        %v4163 = vpop.f32.mrb[0].mxu0
        %v4164 = vpop.f32.mrb[0].mxu0
        %v4165 = vadd.f32 0.0, %v4164
        %v4166 = vpop.f32.mrb[0].mxu0
        %4167 = vmatprep.mubr.bf16.mxu0 0
        %4168 = vmatmul.mubr.bf16.gmra.mrb[0].mxu0 %v3268
        %v4169 = vpop.f32.mrb[0].mxu0
        %v4170 = vadd.f32 0.0, %v4169
        %v4171 = vpop.f32.mrb[0].mxu0
        %v4172 = vpop.f32.mrb[0].mxu0
        %v4173 = vadd.f32 0.0, %v4172
        %v4174 = vpop.f32.mrb[0].mxu0
        %4175 = vmatprep.mubr.bf16.mxu0 0
        %4176 = vmatmul.mubr.bf16.gmra.mrb[0].mxu0 %v3269
        %v4177 = vpop.f32.mrb[0].mxu0
        %v4178 = vadd.f32 0.0, %v4177
        %v4179 = vpop.f32.mrb[0].mxu0
        %v4180 = vpop.f32.mrb[0].mxu0
        %v4181 = vadd.f32 0.0, %v4180
        %v4182 = vpop.f32.mrb[0].mxu0
        %4183 = vmatprep.mubr.bf16.mxu0 0
        %4184 = vmatmul.mubr.bf16.gmra.mrb[0].mxu0 %v3270
        %v4185 = vpop.f32.mrb[0].mxu0
        %v4186 = vadd.f32 0.0, %v4185
        %v4187 = vpop.f32.mrb[0].mxu0
        %v4188 = vpop.f32.mrb[0].mxu0
        %v4189 = vadd.f32 0.0, %v4188
        %v4190 = vpop.f32.mrb[0].mxu0
        %4191 = vmatprep.mubr.bf16.mxu0 0
        %4192 = vmatmul.mubr.bf16.gmra.mrb[0].mxu0 %v3271
        %v4193 = vpop.f32.mrb[0].mxu0
        %v4194 = vadd.f32 0.0, %v4193
        %v4195 = vpop.f32.mrb[0].mxu0
        %v4196 = vpop.f32.mrb[0].mxu0
        %v4197 = vadd.f32 0.0, %v4196
        %v4198 = vpop.f32.mrb[0].mxu0
        %4199 = vmatprep.mubr.bf16.mxu0 0
        %4200 = vmatmul.mubr.bf16.gmra.mrb[0].mxu0 %v3272
        %v4201 = vpop.f32.mrb[0].mxu0
        %v4202 = vadd.f32 0.0, %v4201
        %v4203 = vpop.f32.mrb[0].mxu0
        %v4204 = vpop.f32.mrb[0].mxu0
        %v4205 = vadd.f32 0.0, %v4204
        %v4206 = vpop.f32.mrb[0].mxu0
        %4207 = vmatprep.mubr.bf16.mxu0 0
        %4208 = vmatmul.mubr.bf16.gmra.mrb[0].mxu0 %v3273
        %v4209 = vpop.f32.mrb[0].mxu0
        %v4210 = vadd.f32 0.0, %v4209
        %v4211 = vpop.f32.mrb[0].mxu0
        %v4212 = vpop.f32.mrb[0].mxu0
        %v4213 = vadd.f32 0.0, %v4212
        %v4214 = vpop.f32.mrb[0].mxu0
        %4215 = vmatprep.mubr.bf16.mxu0 0
        %4216 = vmatmul.mubr.bf16.gmra.mrb[0].mxu0 %v3274
        %v4217 = vpop.f32.mrb[0].mxu0
        %v4218 = vadd.f32 0.0, %v4217
        %v4219 = vpop.f32.mrb[0].mxu0
        %v4220 = vpop.f32.mrb[0].mxu0
        %v4221 = vadd.f32 0.0, %v4220
        %v4222 = vpop.f32.mrb[0].mxu0
        %4223 = vmatprep.mubr.bf16.mxu0 0
        %4224 = vmatmul.mubr.bf16.gmra.mrb[0].mxu0 %v3275
        %v4225 = vpop.f32.mrb[0].mxu0
        %v4226 = vadd.f32 0.0, %v4225
        %v4227 = vpop.f32.mrb[0].mxu0
        %v4228 = vpop.f32.mrb[0].mxu0
        %v4229 = vadd.f32 0.0, %v4228
        %v4230 = vpop.f32.mrb[0].mxu0
        %4231 = vdwg.mxu0
        %v4232 = vrot.slane %v4042, 2
        %v4233 = vrot.slane %v4045, 2
        %v4234 = vrot.slane %v4050, 2
        %v4235 = vrot.slane %v4053, 2
        %v4236 = vrot.slane %v4058, 2
        %v4237 = vrot.slane %v4061, 2
        %v4238 = vrot.slane %v4066, 2
        %v4239 = vrot.slane %v4069, 2
        %v4240 = vrot.slane %v4074, 2
        %v4241 = vrot.slane %v4077, 2
        %v4242 = vrot.slane %v4082, 2
        %v4243 = vrot.slane %v4085, 2
        %v4244 = vrot.slane %v4090, 2
        %v4245 = vrot.slane %v4093, 2
        %v4246 = vrot.slane %v4098, 2
        %v4247 = vrot.slane %v4101, 2
        %v4248 = vrot.slane %v4106, 2
        %v4249 = vrot.slane %v4109, 2
        %v4250 = vrot.slane %v4114, 2
        %v4251 = vrot.slane %v4117, 2
        %v4252 = vrot.slane %v4122, 2
        %v4253 = vrot.slane %v4125, 2
        %v4254 = vrot.slane %v4130, 2
        %v4255 = vrot.slane %v4133, 2
        %v4256 = vrot.slane %v4138, 2
        %v4257 = vrot.slane %v4141, 2
        %v4258 = vrot.slane %v4146, 2
        %v4259 = vrot.slane %v4149, 2
        %v4260 = vrot.slane %v4154, 2
        %v4261 = vrot.slane %v4157, 2
        %v4262 = vrot.slane %v4162, 2
        %v4263 = vrot.slane %v4165, 2
        %v4264 = vrot.slane %v4170, 2
        %v4265 = vrot.slane %v4173, 2
        %v4266 = vrot.slane %v4178, 2
        %v4267 = vrot.slane %v4181, 2
        %v4268 = vrot.slane %v4186, 2
        %v4269 = vrot.slane %v4189, 2
        %v4270 = vrot.slane %v4194, 2
        %v4271 = vrot.slane %v4197, 2
        %v4272 = vrot.slane %v4202, 2
        %v4273 = vrot.slane %v4205, 2
        %v4274 = vrot.slane %v4210, 2
        %v4275 = vrot.slane %v4213, 2
        %v4276 = vrot.slane %v4218, 2
        %v4277 = vrot.slane %v4221, 2
        %v4278 = vrot.slane %v4226, 2
        %v4279 = vrot.slane %v4229, 2
        %v4280 = vsel %vm1481, %v4278, %v4279
        %v4281 = vsel %vm1481, %v4277, %v4278
        %v4282 = vsel %vm1481, %v4276, %v4277
        %v4283 = vsel %vm1481, %v4275, %v4276
        %v4284 = vsel %vm1481, %v4274, %v4275
        %v4285 = vsel %vm1481, %v4273, %v4274
        %v4286 = vsel %vm1481, %v4272, %v4273
        %v4287 = vsel %vm1481, %v4271, %v4272
        %v4288 = vsel %vm1481, %v4270, %v4271
        %v4289 = vsel %vm1481, %v4269, %v4270
        %v4290 = vsel %vm1481, %v4268, %v4269
        %v4291 = vsel %vm1481, %v4267, %v4268
        %v4292 = vsel %vm1481, %v4266, %v4267
        %v4293 = vsel %vm1481, %v4265, %v4266
        %v4294 = vsel %vm1481, %v4264, %v4265
        %v4295 = vsel %vm1481, %v4263, %v4264
        %v4296 = vsel %vm1481, %v4262, %v4263
        %v4297 = vsel %vm1481, %v4261, %v4262
        %v4298 = vsel %vm1481, %v4260, %v4261
        %v4299 = vsel %vm1481, %v4259, %v4260
        %v4300 = vsel %vm1481, %v4258, %v4259
        %v4301 = vsel %vm1481, %v4257, %v4258
        %v4302 = vsel %vm1481, %v4256, %v4257
        %v4303 = vsel %vm1481, %v4255, %v4256
        %v4304 = vsel %vm1481, %v4254, %v4255
        %v4305 = vsel %vm1481, %v4253, %v4254
        %v4306 = vsel %vm1481, %v4252, %v4253
        %v4307 = vsel %vm1481, %v4251, %v4252
        %v4308 = vsel %vm1481, %v4250, %v4251
        %v4309 = vsel %vm1481, %v4249, %v4250
        %v4310 = vsel %vm1481, %v4248, %v4249
        %v4311 = vsel %vm1481, %v4247, %v4248
        %v4312 = vsel %vm1481, %v4246, %v4247
        %v4313 = vsel %vm1481, %v4245, %v4246
        %v4314 = vsel %vm1481, %v4244, %v4245
        %v4315 = vsel %vm1481, %v4243, %v4244
        %v4316 = vsel %vm1481, %v4242, %v4243
        %v4317 = vsel %vm1481, %v4241, %v4242
        %v4318 = vsel %vm1481, %v4240, %v4241
        %v4319 = vsel %vm1481, %v4239, %v4240
        %v4320 = vsel %vm1481, %v4238, %v4239
        %v4321 = vsel %vm1481, %v4237, %v4238
        %v4322 = vsel %vm1481, %v4236, %v4237
        %v4323 = vsel %vm1481, %v4235, %v4236
        %v4324 = vsel %vm1481, %v4234, %v4235
        %v4325 = vsel %vm1481, %v4233, %v4234
        %v4326 = vsel %vm1481, %v4232, %v4233
        %v4327 = vsel %vm1481, %v4279, %v4232
        %v4328 = vadd.f32 %v3752, %v4326
        %v4329 = vadd.f32 %v3755, %v4325
        %v4330 = vadd.f32 %v3760, %v4324
        %v4331 = vadd.f32 %v3763, %v4323
        %v4332 = vadd.f32 %v3768, %v4322
        %v4333 = vadd.f32 %v3771, %v4321
        %v4334 = vadd.f32 %v3776, %v4320
        %v4335 = vadd.f32 %v3779, %v4319
        %v4336 = vadd.f32 %v3784, %v4318
        %v4337 = vadd.f32 %v3787, %v4317
        %v4338 = vadd.f32 %v3792, %v4316
        %v4339 = vadd.f32 %v3795, %v4315
        %v4340 = vadd.f32 %v3800, %v4314
        %v4341 = vadd.f32 %v3803, %v4313
        %v4342 = vadd.f32 %v3808, %v4312
        %v4343 = vadd.f32 %v3811, %v4311
        %v4344 = vadd.f32 %v3816, %v4310
        %v4345 = vadd.f32 %v3819, %v4309
        %v4346 = vadd.f32 %v3824, %v4308
        %v4347 = vadd.f32 %v3827, %v4307
        %v4348 = vadd.f32 %v3832, %v4306
        %v4349 = vadd.f32 %v3835, %v4305
        %v4350 = vadd.f32 %v3840, %v4304
        %v4351 = vadd.f32 %v3843, %v4303
        %v4352 = vadd.f32 %v3848, %v4302
        %v4353 = vadd.f32 %v3851, %v4301
        %v4354 = vadd.f32 %v3856, %v4300
        %v4355 = vadd.f32 %v3859, %v4299
        %v4356 = vadd.f32 %v3864, %v4298
        %v4357 = vadd.f32 %v3867, %v4297
        %v4358 = vadd.f32 %v3872, %v4296
        %v4359 = vadd.f32 %v3875, %v4295
        %v4360 = vadd.f32 %v3880, %v4294
        %v4361 = vadd.f32 %v3883, %v4293
        %v4362 = vadd.f32 %v3888, %v4292
        %v4363 = vadd.f32 %v3891, %v4291
        %v4364 = vadd.f32 %v3896, %v4290
        %v4365 = vadd.f32 %v3899, %v4289
        %v4366 = vadd.f32 %v3904, %v4288
        %v4367 = vadd.f32 %v3907, %v4287
        %v4368 = vadd.f32 %v3912, %v4286
        %v4369 = vadd.f32 %v3915, %v4285
        %v4370 = vadd.f32 %v3920, %v4284
        %v4371 = vadd.f32 %v3923, %v4283
        %v4372 = vadd.f32 %v3928, %v4282
        %v4373 = vadd.f32 %v3931, %v4281
        %v4374 = vadd.f32 %v3936, %v4280
        %v4375 = vadd.f32 %v3939, %v4327
        %v4376 = vld [vmem:[#allocation3] sm:$0xff]
        %v4377 = vld [vmem:[#allocation3 + $0x8] sm:$0xff]
        %v4378 = vld [vmem:[#allocation3 + $0x10] sm:$0xff]
        %v4379 = vld [vmem:[#allocation3 + $0x18] sm:$0xff]
        %v4380 = vld [vmem:[#allocation3 + $0x20] sm:$0xff]
        %v4381 = vld [vmem:[#allocation3 + $0x28] sm:$0xff]
        %v4382 = vld [vmem:[#allocation3 + $0x30] sm:$0xff]
        %v4383 = vld [vmem:[#allocation3 + $0x38] sm:$0xff]
        %v4384 = vld [vmem:[#allocation3 + $0x40] sm:$0xff]
        %v4385 = vld [vmem:[#allocation3 + $0x48] sm:$0xff]
        %v4386 = vld [vmem:[#allocation3 + $0x50] sm:$0xff]
        %v4387 = vld [vmem:[#allocation3 + $0x58] sm:$0xff]
        %v4388 = vld [vmem:[#allocation3 + $0x60] sm:$0xff]
        %v4389 = vld [vmem:[#allocation3 + $0x68] sm:$0xff]
        %v4390 = vld [vmem:[#allocation3 + $0x70] sm:$0xff]
        %v4391 = vld [vmem:[#allocation3 + $0x78] sm:$0xff]
        %v4392 = vld [vmem:[#allocation3 + $0x80] sm:$0xff]
        %v4393 = vld [vmem:[#allocation3 + $0x88] sm:$0xff]
        %v4394 = vld [vmem:[#allocation3 + $0x90] sm:$0xff]
        %v4395 = vld [vmem:[#allocation3 + $0x98] sm:$0xff]
        %v4396 = vld [vmem:[#allocation3 + $0xa0] sm:$0xff]
        %v4397 = vld [vmem:[#allocation3 + $0xa8] sm:$0xff]
        %v4398 = vld [vmem:[#allocation3 + $0xb0] sm:$0xff]
        %v4399 = vld [vmem:[#allocation3 + $0xb8] sm:$0xff]
        %v4400 = vld [vmem:[#allocation3 + $0xc0] sm:$0xff]
        %v4401 = vld [vmem:[#allocation3 + $0xc8] sm:$0xff]
        %v4402 = vld [vmem:[#allocation3 + $0xd0] sm:$0xff]
        %v4403 = vld [vmem:[#allocation3 + $0xd8] sm:$0xff]
        %v4404 = vld [vmem:[#allocation3 + $0xe0] sm:$0xff]
        %v4405 = vld [vmem:[#allocation3 + $0xe8] sm:$0xff]
        %v4406 = vld [vmem:[#allocation3 + $0xf0] sm:$0xff]
        %v4407 = vld [vmem:[#allocation3 + $0xf8] sm:$0xff]
        %v4408 = vld [vmem:[#allocation3 + $0x100] sm:$0xff]
        %v4409 = vld [vmem:[#allocation3 + $0x108] sm:$0xff]
        %v4410 = vld [vmem:[#allocation3 + $0x110] sm:$0xff]
        %v4411 = vld [vmem:[#allocation3 + $0x118] sm:$0xff]
        %v4412 = vld [vmem:[#allocation3 + $0x120] sm:$0xff]
        %v4413 = vld [vmem:[#allocation3 + $0x128] sm:$0xff]
        %v4414 = vld [vmem:[#allocation3 + $0x130] sm:$0xff]
        %v4415 = vld [vmem:[#allocation3 + $0x138] sm:$0xff]
        %v4416 = vld [vmem:[#allocation3 + $0x140] sm:$0xff]
        %v4417 = vld [vmem:[#allocation3 + $0x148] sm:$0xff]
        %v4418 = vld [vmem:[#allocation3 + $0x150] sm:$0xff]
        %v4419 = vld [vmem:[#allocation3 + $0x158] sm:$0xff]
        %v4420 = vld [vmem:[#allocation3 + $0x160] sm:$0xff]
        %v4421 = vld [vmem:[#allocation3 + $0x168] sm:$0xff]
        %v4422 = vld [vmem:[#allocation3 + $0x170] sm:$0xff]
        %v4423 = vld [vmem:[#allocation3 + $0x178] sm:$0xff]
        %v4424 = vadd.f32 %v4376, %v4328
        %v4425 = vadd.f32 %v4377, %v4329
        %v4426 = vadd.f32 %v4378, %v4330
        %v4427 = vadd.f32 %v4379, %v4331
        %v4428 = vadd.f32 %v4380, %v4332
        %v4429 = vadd.f32 %v4381, %v4333
        %v4430 = vadd.f32 %v4382, %v4334
        %v4431 = vadd.f32 %v4383, %v4335
        %v4432 = vadd.f32 %v4384, %v4336
        %v4433 = vadd.f32 %v4385, %v4337
        %v4434 = vadd.f32 %v4386, %v4338
        %v4435 = vadd.f32 %v4387, %v4339
        %v4436 = vadd.f32 %v4388, %v4340
        %v4437 = vadd.f32 %v4389, %v4341
        %v4438 = vadd.f32 %v4390, %v4342
        %v4439 = vadd.f32 %v4391, %v4343
        %v4440 = vadd.f32 %v4392, %v4344
        %v4441 = vadd.f32 %v4393, %v4345
        %v4442 = vadd.f32 %v4394, %v4346
        %v4443 = vadd.f32 %v4395, %v4347
        %v4444 = vadd.f32 %v4396, %v4348
        %v4445 = vadd.f32 %v4397, %v4349
        %v4446 = vadd.f32 %v4398, %v4350
        %v4447 = vadd.f32 %v4399, %v4351
        %v4448 = vadd.f32 %v4400, %v4352
        %v4449 = vadd.f32 %v4401, %v4353
        %v4450 = vadd.f32 %v4402, %v4354
        %v4451 = vadd.f32 %v4403, %v4355
        %v4452 = vadd.f32 %v4404, %v4356
        %v4453 = vadd.f32 %v4405, %v4357
        %v4454 = vadd.f32 %v4406, %v4358
        %v4455 = vadd.f32 %v4407, %v4359
        %v4456 = vadd.f32 %v4408, %v4360
        %v4457 = vadd.f32 %v4409, %v4361
        %v4458 = vadd.f32 %v4410, %v4362
        %v4459 = vadd.f32 %v4411, %v4363
        %v4460 = vadd.f32 %v4412, %v4364
        %v4461 = vadd.f32 %v4413, %v4365
        %v4462 = vadd.f32 %v4414, %v4366
        %v4463 = vadd.f32 %v4415, %v4367
        %v4464 = vadd.f32 %v4416, %v4368
        %v4465 = vadd.f32 %v4417, %v4369
        %v4466 = vadd.f32 %v4418, %v4370
        %v4467 = vadd.f32 %v4419, %v4371
        %v4468 = vadd.f32 %v4420, %v4372
        %v4469 = vadd.f32 %v4421, %v4373
        %v4470 = vadd.f32 %v4422, %v4374
        %v4471 = vadd.f32 %v4423, %v4375
        %4472 = vst [vmem:[#allocation3] sm:$0xff] %v4424
        %4473 = vst [vmem:[#allocation3 + $0x8] sm:$0xff] %v4425
        %4474 = vst [vmem:[#allocation3 + $0x10] sm:$0xff] %v4426
        %4475 = vst [vmem:[#allocation3 + $0x18] sm:$0xff] %v4427
        %4476 = vst [vmem:[#allocation3 + $0x20] sm:$0xff] %v4428
        %4477 = vst [vmem:[#allocation3 + $0x28] sm:$0xff] %v4429
        %4478 = vst [vmem:[#allocation3 + $0x30] sm:$0xff] %v4430
        %4479 = vst [vmem:[#allocation3 + $0x38] sm:$0xff] %v4431
        %4480 = vst [vmem:[#allocation3 + $0x40] sm:$0xff] %v4432
        %4481 = vst [vmem:[#allocation3 + $0x48] sm:$0xff] %v4433
        %4482 = vst [vmem:[#allocation3 + $0x50] sm:$0xff] %v4434
        %4483 = vst [vmem:[#allocation3 + $0x58] sm:$0xff] %v4435
        %4484 = vst [vmem:[#allocation3 + $0x60] sm:$0xff] %v4436
        %4485 = vst [vmem:[#allocation3 + $0x68] sm:$0xff] %v4437
        %4486 = vst [vmem:[#allocation3 + $0x70] sm:$0xff] %v4438
        %4487 = vst [vmem:[#allocation3 + $0x78] sm:$0xff] %v4439
        %4488 = vst [vmem:[#allocation3 + $0x80] sm:$0xff] %v4440
        %4489 = vst [vmem:[#allocation3 + $0x88] sm:$0xff] %v4441
        %4490 = vst [vmem:[#allocation3 + $0x90] sm:$0xff] %v4442
        %4491 = vst [vmem:[#allocation3 + $0x98] sm:$0xff] %v4443
        %4492 = vst [vmem:[#allocation3 + $0xa0] sm:$0xff] %v4444
        %4493 = vst [vmem:[#allocation3 + $0xa8] sm:$0xff] %v4445
        %4494 = vst [vmem:[#allocation3 + $0xb0] sm:$0xff] %v4446
        %4495 = vst [vmem:[#allocation3 + $0xb8] sm:$0xff] %v4447
        %4496 = vst [vmem:[#allocation3 + $0xc0] sm:$0xff] %v4448
        %4497 = vst [vmem:[#allocation3 + $0xc8] sm:$0xff] %v4449
        %4498 = vst [vmem:[#allocation3 + $0xd0] sm:$0xff] %v4450
        %4499 = vst [vmem:[#allocation3 + $0xd8] sm:$0xff] %v4451
        %4500 = vst [vmem:[#allocation3 + $0xe0] sm:$0xff] %v4452
        %4501 = vst [vmem:[#allocation3 + $0xe8] sm:$0xff] %v4453
        %4502 = vst [vmem:[#allocation3 + $0xf0] sm:$0xff] %v4454
        %4503 = vst [vmem:[#allocation3 + $0xf8] sm:$0xff] %v4455
        %4504 = vst [vmem:[#allocation3 + $0x100] sm:$0xff] %v4456
        %4505 = vst [vmem:[#allocation3 + $0x108] sm:$0xff] %v4457
        %4506 = vst [vmem:[#allocation3 + $0x110] sm:$0xff] %v4458
        %4507 = vst [vmem:[#allocation3 + $0x118] sm:$0xff] %v4459
        %4508 = vst [vmem:[#allocation3 + $0x120] sm:$0xff] %v4460
        %4509 = vst [vmem:[#allocation3 + $0x128] sm:$0xff] %v4461
        %4510 = vst [vmem:[#allocation3 + $0x130] sm:$0xff] %v4462
        %4511 = vst [vmem:[#allocation3 + $0x138] sm:$0xff] %v4463
        %4512 = vst [vmem:[#allocation3 + $0x140] sm:$0xff] %v4464
        %4513 = vst [vmem:[#allocation3 + $0x148] sm:$0xff] %v4465
        %4514 = vst [vmem:[#allocation3 + $0x150] sm:$0xff] %v4466
        %4515 = vst [vmem:[#allocation3 + $0x158] sm:$0xff] %v4467
        %4516 = vst [vmem:[#allocation3 + $0x160] sm:$0xff] %v4468
        %4517 = vst [vmem:[#allocation3 + $0x168] sm:$0xff] %v4469
        %4518 = vst [vmem:[#allocation3 + $0x170] sm:$0xff] %v4470
        %4519 = vst [vmem:[#allocation3 + $0x178] sm:$0xff] %v4471
        %v4520 = vld [vmem:[#allocation3] sm:$0xff]
        %v4521 = vld [vmem:[#allocation3 + $0x8] sm:$0xff]
        %v4522 = vld [vmem:[#allocation3 + $0x18] sm:$0xff]
        %v4523 = vld [vmem:[#allocation3 + $0x20] sm:$0xff]
        %v4524 = vld [vmem:[#allocation3 + $0x30] sm:$0xff]
        %v4525 = vld [vmem:[#allocation3 + $0x38] sm:$0xff]
        %v4526 = vld [vmem:[#allocation3 + $0x48] sm:$0xff]
        %v4527 = vld [vmem:[#allocation3 + $0x50] sm:$0xff]
        %v4528 = vld [vmem:[#allocation3 + $0x60] sm:$0xff]
        %v4529 = vld [vmem:[#allocation3 + $0x68] sm:$0xff]
        %v4530 = vld [vmem:[#allocation3 + $0x78] sm:$0xff]
        %v4531 = vld [vmem:[#allocation3 + $0x80] sm:$0xff]
        %v4532 = vld [vmem:[#allocation3 + $0x90] sm:$0xff]
        %v4533 = vld [vmem:[#allocation3 + $0x98] sm:$0xff]
        %v4534 = vld [vmem:[#allocation3 + $0xa8] sm:$0xff]
        %v4535 = vld [vmem:[#allocation3 + $0xb0] sm:$0xff]
        %v4536 = vld [vmem:[#allocation3 + $0xc0] sm:$0xff]
        %v4537 = vld [vmem:[#allocation3 + $0xc8] sm:$0xff]
        %v4538 = vld [vmem:[#allocation3 + $0xd8] sm:$0xff]
        %v4539 = vld [vmem:[#allocation3 + $0xe0] sm:$0xff]
        %v4540 = vld [vmem:[#allocation3 + $0xf0] sm:$0xff]
        %v4541 = vld [vmem:[#allocation3 + $0xf8] sm:$0xff]
        %v4542 = vld [vmem:[#allocation3 + $0x108] sm:$0xff]
        %v4543 = vld [vmem:[#allocation3 + $0x110] sm:$0xff]
        %v4544 = vld [vmem:[#allocation3 + $0x120] sm:$0xff]
        %v4545 = vld [vmem:[#allocation3 + $0x128] sm:$0xff]
        %v4546 = vld [vmem:[#allocation3 + $0x138] sm:$0xff]
        %v4547 = vld [vmem:[#allocation3 + $0x140] sm:$0xff]
        %v4548 = vld [vmem:[#allocation3 + $0x150] sm:$0xff]
        %v4549 = vld [vmem:[#allocation3 + $0x158] sm:$0xff]
        %v4550 = vld [vmem:[#allocation3 + $0x168] sm:$0xff]
        %v4551 = vld [vmem:[#allocation3 + $0x170] sm:$0xff]
        %v4552 = vld [vmem:[%s2] sm:$0x1]
        %v4554 = vlaneseq
        %v4555 = vshrl.u32 %v4554, 7
        %v4556 = vsub.s32 0, %v4555
        %v4557 = vrot.slane %v4552, %v4556
        %v4559 = vadd.f32 %v4520, %v4557
        %v4560 = vadd.f32 %v4521, %v4557
        %v4561 = vadd.f32 %v4522, %v4557
        %v4562 = vadd.f32 %v4523, %v4557
        %v4563 = vadd.f32 %v4524, %v4557
        %v4564 = vadd.f32 %v4525, %v4557
        %v4565 = vadd.f32 %v4526, %v4557
        %v4566 = vadd.f32 %v4527, %v4557
        %v4567 = vadd.f32 %v4528, %v4557
        %v4568 = vadd.f32 %v4529, %v4557
        %v4569 = vadd.f32 %v4530, %v4557
        %v4570 = vadd.f32 %v4531, %v4557
        %v4571 = vadd.f32 %v4532, %v4557
        %v4572 = vadd.f32 %v4533, %v4557
        %v4573 = vadd.f32 %v4534, %v4557
        %v4574 = vadd.f32 %v4535, %v4557
        %v4575 = vadd.f32 %v4536, %v4557
        %v4576 = vadd.f32 %v4537, %v4557
        %v4577 = vadd.f32 %v4538, %v4557
        %v4578 = vadd.f32 %v4539, %v4557
        %v4579 = vadd.f32 %v4540, %v4557
        %v4580 = vadd.f32 %v4541, %v4557
        %v4581 = vadd.f32 %v4542, %v4557
        %v4582 = vadd.f32 %v4543, %v4557
        %v4583 = vadd.f32 %v4544, %v4557
        %v4584 = vadd.f32 %v4545, %v4557
        %v4585 = vadd.f32 %v4546, %v4557
        %v4586 = vadd.f32 %v4547, %v4557
        %v4587 = vadd.f32 %v4548, %v4557
        %v4588 = vadd.f32 %v4549, %v4557
        %v4589 = vadd.f32 %v4550, %v4557
        %v4590 = vadd.f32 %v4551, %v4557
        %v4591 = vmax.f32 %v4559, 0.0
        %v4592 = vmax.f32 %v4560, 0.0
        %v4593 = vmax.f32 %v4561, 0.0
        %v4594 = vmax.f32 %v4562, 0.0
        %v4595 = vmax.f32 %v4563, 0.0
        %v4596 = vmax.f32 %v4564, 0.0
        %v4597 = vmax.f32 %v4565, 0.0
        %v4598 = vmax.f32 %v4566, 0.0
        %v4599 = vmax.f32 %v4567, 0.0
        %v4600 = vmax.f32 %v4568, 0.0
        %v4601 = vmax.f32 %v4569, 0.0
        %v4602 = vmax.f32 %v4570, 0.0
        %v4603 = vmax.f32 %v4571, 0.0
        %v4604 = vmax.f32 %v4572, 0.0
        %v4605 = vmax.f32 %v4573, 0.0
        %v4606 = vmax.f32 %v4574, 0.0
        %v4607 = vmax.f32 %v4575, 0.0
        %v4608 = vmax.f32 %v4576, 0.0
        %v4609 = vmax.f32 %v4577, 0.0
        %v4610 = vmax.f32 %v4578, 0.0
        %v4611 = vmax.f32 %v4579, 0.0
        %v4612 = vmax.f32 %v4580, 0.0
        %v4613 = vmax.f32 %v4581, 0.0
        %v4614 = vmax.f32 %v4582, 0.0
        %v4615 = vmax.f32 %v4583, 0.0
        %v4616 = vmax.f32 %v4584, 0.0
        %v4617 = vmax.f32 %v4585, 0.0
        %v4618 = vmax.f32 %v4586, 0.0
        %v4619 = vmax.f32 %v4587, 0.0
        %v4620 = vmax.f32 %v4588, 0.0
        %v4621 = vmax.f32 %v4589, 0.0
        %v4622 = vmax.f32 %v4590, 0.0
        %4623 = vst [vmem:[#allocation2] sm:$0xf] 0
        %4624 = vst [vmem:[#allocation2 + $0x4] sm:$0xf] 0
        %4625 = vst [vmem:[#allocation2 + $0x8] sm:$0xf] 0
        %s4626 = scalar_lea.vmem [#allocation2], 204
        %4627 = vst [vmem:[%s4626] sm:$0xf] 0
        %4628 = vst [vmem:[%s4626 + $0x4] sm:$0xf] 0
        %4629 = vst [vmem:[%s4626 + $0x8] sm:$0xf] 0
        %s4630 = scalar_lea.vmem [#allocation2], 12
        %4631 = vst [vmem:[%s4630 + $0x8] sm:$0xf] 0
        %4632 = vst [vmem:[%s4630 + $0x14] sm:$0xf] 0
        %4633 = vst [vmem:[%s4630 + $0x20] sm:$0xf] 0
        %4634 = vst [vmem:[%s4630 + $0x2c] sm:$0xf] 0
        %4635 = vst [vmem:[%s4630 + $0x38] sm:$0xf] 0
        %4636 = vst [vmem:[%s4630 + $0x44] sm:$0xf] 0
        %4637 = vst [vmem:[%s4630 + $0x50] sm:$0xf] 0
        %4638 = vst [vmem:[%s4630 + $0x5c] sm:$0xf] 0
        %4639 = vst [vmem:[%s4630 + $0x68] sm:$0xf] 0
        %4640 = vst [vmem:[%s4630 + $0x74] sm:$0xf] 0
        %4641 = vst [vmem:[%s4630 + $0x80] sm:$0xf] 0
        %4642 = vst [vmem:[%s4630 + $0x8c] sm:$0xf] 0
        %4643 = vst [vmem:[%s4630 + $0x98] sm:$0xf] 0
        %4644 = vst [vmem:[%s4630 + $0xa4] sm:$0xf] 0
        %4645 = vst [vmem:[%s4630 + $0xb0] sm:$0xf] 0
        %4646 = vst [vmem:[%s4630 + $0xbc] sm:$0xf] 0
        %v4647 = vpack.c.bf16 %v4592, %v4591
        %v4648 = vpack.c.bf16 %v4594, %v4593
        %v4649 = vpack.c.bf16 %v4596, %v4595
        %v4650 = vpack.c.bf16 %v4598, %v4597
        %v4651 = vpack.c.bf16 %v4600, %v4599
        %v4652 = vpack.c.bf16 %v4602, %v4601
        %v4653 = vpack.c.bf16 %v4604, %v4603
        %v4654 = vpack.c.bf16 %v4606, %v4605
        %v4655 = vpack.c.bf16 %v4608, %v4607
        %v4656 = vpack.c.bf16 %v4610, %v4609
        %v4657 = vpack.c.bf16 %v4612, %v4611
        %v4658 = vpack.c.bf16 %v4614, %v4613
        %v4659 = vpack.c.bf16 %v4616, %v4615
        %v4660 = vpack.c.bf16 %v4618, %v4617
        %v4661 = vpack.c.bf16 %v4620, %v4619
        %v4662 = vpack.c.bf16 %v4622, %v4621
        %v4679 = vunpack.c.l.b16 %v4647
        %v4680 = vunpack.c.h.b16 %v4647
        %v4681 = vunpack.c.l.b16 %v4648
        %v4682 = vunpack.c.h.b16 %v4648
        %v4683 = vunpack.c.l.b16 %v4649
        %v4684 = vunpack.c.h.b16 %v4649
        %v4685 = vunpack.c.l.b16 %v4650
        %v4686 = vunpack.c.h.b16 %v4650
        %v4687 = vunpack.c.l.b16 %v4651
        %v4688 = vunpack.c.h.b16 %v4651
        %v4689 = vunpack.c.l.b16 %v4652
        %v4690 = vunpack.c.h.b16 %v4652
        %v4691 = vunpack.c.l.b16 %v4653
        %v4692 = vunpack.c.h.b16 %v4653
        %v4693 = vunpack.c.l.b16 %v4654
        %v4694 = vunpack.c.h.b16 %v4654
        %v4695 = vunpack.c.l.b16 %v4655
        %v4696 = vunpack.c.h.b16 %v4655
        %v4697 = vunpack.c.l.b16 %v4656
        %v4698 = vunpack.c.h.b16 %v4656
        %v4699 = vunpack.c.l.b16 %v4657
        %v4700 = vunpack.c.h.b16 %v4657
        %v4701 = vunpack.c.l.b16 %v4658
        %v4702 = vunpack.c.h.b16 %v4658
        %v4703 = vunpack.c.l.b16 %v4659
        %v4704 = vunpack.c.h.b16 %v4659
        %v4705 = vunpack.c.l.b16 %v4660
        %v4706 = vunpack.c.h.b16 %v4660
        %v4707 = vunpack.c.l.b16 %v4661
        %v4708 = vunpack.c.h.b16 %v4661
        %v4709 = vunpack.c.l.b16 %v4662
        %v4710 = vunpack.c.h.b16 %v4662
        %v4711 = vpack.c.b16 %v4679, %v4679
        %v4712 = vpack.c.b16 %v4680, %v4680
        %v4713 = vpack.c.b16 %v4681, %v4681
        %v4714 = vpack.c.b16 %v4682, %v4682
        %v4715 = vpack.c.b16 %v4683, %v4683
        %v4716 = vpack.c.b16 %v4684, %v4684
        %v4717 = vpack.c.b16 %v4685, %v4685
        %v4718 = vpack.c.b16 %v4686, %v4686
        %v4719 = vpack.c.b16 %v4687, %v4687
        %v4720 = vpack.c.b16 %v4688, %v4688
        %v4721 = vpack.c.b16 %v4689, %v4689
        %v4722 = vpack.c.b16 %v4690, %v4690
        %v4723 = vpack.c.b16 %v4691, %v4691
        %v4724 = vpack.c.b16 %v4692, %v4692
        %v4725 = vpack.c.b16 %v4693, %v4693
        %v4726 = vpack.c.b16 %v4694, %v4694
        %v4727 = vpack.c.b16 %v4695, %v4695
        %v4728 = vpack.c.b16 %v4696, %v4696
        %v4729 = vpack.c.b16 %v4697, %v4697
        %v4730 = vpack.c.b16 %v4698, %v4698
        %v4731 = vpack.c.b16 %v4699, %v4699
        %v4732 = vpack.c.b16 %v4700, %v4700
        %v4733 = vpack.c.b16 %v4701, %v4701
        %v4734 = vpack.c.b16 %v4702, %v4702
        %v4735 = vpack.c.b16 %v4703, %v4703
        %v4736 = vpack.c.b16 %v4704, %v4704
        %v4737 = vpack.c.b16 %v4705, %v4705
        %v4738 = vpack.c.b16 %v4706, %v4706
        %v4739 = vpack.c.b16 %v4707, %v4707
        %v4740 = vpack.c.b16 %v4708, %v4708
        %v4741 = vpack.c.b16 %v4709, %v4709
        %v4742 = vpack.c.b16 %v4710, %v4710
        %4775 = vst [vmem:[%s4630] sm:$0xf] %v4711
        %4776 = vst [vmem:[%s4630 + $0x4] sm:$0xf] %v4712
        %4777 = vst [vmem:[%s4630 + $0xc] sm:$0xf] %v4713
        %4778 = vst [vmem:[%s4630 + $0x10] sm:$0xf] %v4714
        %4779 = vst [vmem:[%s4630 + $0x18] sm:$0xf] %v4715
        %4780 = vst [vmem:[%s4630 + $0x1c] sm:$0xf] %v4716
        %4781 = vst [vmem:[%s4630 + $0x24] sm:$0xf] %v4717
        %4782 = vst [vmem:[%s4630 + $0x28] sm:$0xf] %v4718
        %4783 = vst [vmem:[%s4630 + $0x30] sm:$0xf] %v4719
        %4784 = vst [vmem:[%s4630 + $0x34] sm:$0xf] %v4720
        %4785 = vst [vmem:[%s4630 + $0x3c] sm:$0xf] %v4721
        %4786 = vst [vmem:[%s4630 + $0x40] sm:$0xf] %v4722
        %4787 = vst [vmem:[%s4630 + $0x48] sm:$0xf] %v4723
        %4788 = vst [vmem:[%s4630 + $0x4c] sm:$0xf] %v4724
        %4789 = vst [vmem:[%s4630 + $0x54] sm:$0xf] %v4725
        %4790 = vst [vmem:[%s4630 + $0x58] sm:$0xf] %v4726
        %4791 = vst [vmem:[%s4630 + $0x60] sm:$0xf] %v4727
        %4792 = vst [vmem:[%s4630 + $0x64] sm:$0xf] %v4728
        %4793 = vst [vmem:[%s4630 + $0x6c] sm:$0xf] %v4729
        %4794 = vst [vmem:[%s4630 + $0x70] sm:$0xf] %v4730
        %4795 = vst [vmem:[%s4630 + $0x78] sm:$0xf] %v4731
        %4796 = vst [vmem:[%s4630 + $0x7c] sm:$0xf] %v4732
        %4797 = vst [vmem:[%s4630 + $0x84] sm:$0xf] %v4733
        %4798 = vst [vmem:[%s4630 + $0x88] sm:$0xf] %v4734
        %4799 = vst [vmem:[%s4630 + $0x90] sm:$0xf] %v4735
        %4800 = vst [vmem:[%s4630 + $0x94] sm:$0xf] %v4736
        %4801 = vst [vmem:[%s4630 + $0x9c] sm:$0xf] %v4737
        %4802 = vst [vmem:[%s4630 + $0xa0] sm:$0xf] %v4738
        %4803 = vst [vmem:[%s4630 + $0xa8] sm:$0xf] %v4739
        %4804 = vst [vmem:[%s4630 + $0xac] sm:$0xf] %v4740
        %4805 = vst [vmem:[%s4630 + $0xb4] sm:$0xf] %v4741
        %4806 = vst [vmem:[%s4630 + $0xb8] sm:$0xf] %v4742
        %v4807 = vld [vmem:[#allocation2] sm:$0xf]
        %v4808 = vld [vmem:[#allocation2 + $0x4] sm:$0xf]
        %v4809 = vld [vmem:[#allocation2 + $0x8] sm:$0xf]
        %v4810 = vld [vmem:[#allocation2 + $0xc] sm:$0xf]
        %v4811 = vld [vmem:[#allocation2 + $0x10] sm:$0xf]
        %v4812 = vld [vmem:[#allocation2 + $0x14] sm:$0xf]
        %v4813 = vld [vmem:[#allocation2 + $0x18] sm:$0xf]
        %v4814 = vld [vmem:[#allocation2 + $0x1c] sm:$0xf]
        %v4815 = vld [vmem:[#allocation2 + $0x20] sm:$0xf]
        %v4816 = vld [vmem:[#allocation2 + $0x24] sm:$0xf]
        %v4817 = vld [vmem:[#allocation2 + $0x28] sm:$0xf]
        %v4818 = vld [vmem:[#allocation2 + $0x2c] sm:$0xf]
        %v4819 = vld [vmem:[#allocation2 + $0x30] sm:$0xf]
        %v4820 = vld [vmem:[#allocation2 + $0x34] sm:$0xf]
        %v4821 = vld [vmem:[#allocation2 + $0x38] sm:$0xf]
        %v4822 = vld [vmem:[#allocation2 + $0x3c] sm:$0xf]
        %v4823 = vld [vmem:[#allocation2 + $0x40] sm:$0xf]
        %v4824 = vld [vmem:[#allocation2 + $0x44] sm:$0xf]
        %v4825 = vld [vmem:[#allocation2 + $0x48] sm:$0xf]
        %v4826 = vld [vmem:[#allocation2 + $0x4c] sm:$0xf]
        %v4827 = vld [vmem:[#allocation2 + $0x50] sm:$0xf]
        %v4828 = vld [vmem:[#allocation2 + $0x54] sm:$0xf]
        %v4829 = vld [vmem:[#allocation2 + $0x58] sm:$0xf]
        %v4830 = vld [vmem:[#allocation2 + $0x5c] sm:$0xf]
        %v4831 = vld [vmem:[#allocation2 + $0x60] sm:$0xf]
        %v4832 = vld [vmem:[#allocation2 + $0x64] sm:$0xf]
        %v4833 = vld [vmem:[#allocation2 + $0x68] sm:$0xf]
        %v4834 = vld [vmem:[#allocation2 + $0x6c] sm:$0xf]
        %v4835 = vld [vmem:[#allocation2 + $0x70] sm:$0xf]
        %v4836 = vld [vmem:[#allocation2 + $0x74] sm:$0xf]
        %v4837 = vld [vmem:[#allocation2 + $0x78] sm:$0xf]
        %v4838 = vld [vmem:[#allocation2 + $0x7c] sm:$0xf]
        %v4839 = vld [vmem:[#allocation2 + $0x80] sm:$0xf]
        %v4840 = vld [vmem:[#allocation2 + $0x84] sm:$0xf]
        %v4841 = vld [vmem:[#allocation2 + $0x88] sm:$0xf]
        %v4842 = vld [vmem:[#allocation2 + $0x8c] sm:$0xf]
        %v4843 = vld [vmem:[#allocation2 + $0x90] sm:$0xf]
        %v4844 = vld [vmem:[#allocation2 + $0x94] sm:$0xf]
        %v4845 = vld [vmem:[#allocation2 + $0x98] sm:$0xf]
        %v4846 = vld [vmem:[#allocation2 + $0x9c] sm:$0xf]
        %v4847 = vld [vmem:[#allocation2 + $0xa0] sm:$0xf]
        %v4848 = vld [vmem:[#allocation2 + $0xa4] sm:$0xf]
        %v4849 = vld [vmem:[#allocation2 + $0xa8] sm:$0xf]
        %v4850 = vld [vmem:[#allocation2 + $0xac] sm:$0xf]
        %v4851 = vld [vmem:[#allocation2 + $0xb0] sm:$0xf]
        %v4852 = vld [vmem:[#allocation2 + $0xb4] sm:$0xf]
        %v4853 = vld [vmem:[#allocation2 + $0xb8] sm:$0xf]
        %v4854 = vld [vmem:[#allocation2 + $0xbc] sm:$0xf]
        %v4855 = vld [vmem:[#allocation10] sm:$0xf]
        %v4856 = vld [vmem:[#allocation10 + $0x4] sm:$0xf]
        %v4857 = vld [vmem:[#allocation10 + $0x8] sm:$0xf]
        %v4858 = vld [vmem:[#allocation10 + $0xc] sm:$0xf]
        %v4859 = vld [vmem:[#allocation10 + $0x10] sm:$0xf]
        %v4860 = vld [vmem:[#allocation10 + $0x14] sm:$0xf]
        %v4861 = vld [vmem:[#allocation10 + $0x18] sm:$0xf]
        %v4862 = vld [vmem:[#allocation10 + $0x1c] sm:$0xf]
        %v4863 = vld [vmem:[#allocation10 + $0x20] sm:$0xf]
        %v4864 = vld [vmem:[#allocation10 + $0x24] sm:$0xf]
        %v4865 = vld [vmem:[#allocation10 + $0x28] sm:$0xf]
        %v4866 = vld [vmem:[#allocation10 + $0x2c] sm:$0xf]
        %v4867 = vld [vmem:[#allocation10 + $0x30] sm:$0xf]
        %v4868 = vld [vmem:[#allocation10 + $0x34] sm:$0xf]
        %v4869 = vld [vmem:[#allocation10 + $0x38] sm:$0xf]
        %v4870 = vld [vmem:[#allocation10 + $0x3c] sm:$0xf]
        %v4919 = vunpack.c.l.b16 %v4807
        %v4920 = vunpack.c.l.b16 %v4808
        %v4921 = vunpack.c.l.b16 %v4809
        %v4922 = vunpack.c.l.b16 %v4810
        %v4923 = vunpack.c.l.b16 %v4811
        %v4924 = vunpack.c.l.b16 %v4812
        %v4925 = vunpack.c.l.b16 %v4813
        %v4926 = vunpack.c.l.b16 %v4814
        %v4927 = vunpack.c.l.b16 %v4815
        %v4928 = vunpack.c.l.b16 %v4816
        %v4929 = vunpack.c.l.b16 %v4817
        %v4930 = vunpack.c.l.b16 %v4818
        %v4931 = vunpack.c.l.b16 %v4819
        %v4932 = vunpack.c.l.b16 %v4820
        %v4933 = vunpack.c.l.b16 %v4821
        %v4934 = vunpack.c.l.b16 %v4822
        %v4935 = vunpack.c.l.b16 %v4823
        %v4936 = vunpack.c.l.b16 %v4824
        %v4937 = vunpack.c.l.b16 %v4825
        %v4938 = vunpack.c.l.b16 %v4826
        %v4939 = vunpack.c.l.b16 %v4827
        %v4940 = vunpack.c.l.b16 %v4828
        %v4941 = vunpack.c.l.b16 %v4829
        %v4942 = vunpack.c.l.b16 %v4830
        %v4943 = vunpack.c.l.b16 %v4831
        %v4944 = vunpack.c.l.b16 %v4832
        %v4945 = vunpack.c.l.b16 %v4833
        %v4946 = vunpack.c.l.b16 %v4834
        %v4947 = vunpack.c.l.b16 %v4835
        %v4948 = vunpack.c.l.b16 %v4836
        %v4949 = vunpack.c.l.b16 %v4837
        %v4950 = vunpack.c.l.b16 %v4838
        %v4951 = vunpack.c.l.b16 %v4839
        %v4952 = vunpack.c.l.b16 %v4840
        %v4953 = vunpack.c.l.b16 %v4841
        %v4954 = vunpack.c.l.b16 %v4842
        %v4955 = vunpack.c.l.b16 %v4843
        %v4956 = vunpack.c.l.b16 %v4844
        %v4957 = vunpack.c.l.b16 %v4845
        %v4958 = vunpack.c.l.b16 %v4846
        %v4959 = vunpack.c.l.b16 %v4847
        %v4960 = vunpack.c.l.b16 %v4848
        %v4961 = vunpack.c.l.b16 %v4849
        %v4962 = vunpack.c.l.b16 %v4850
        %v4963 = vunpack.c.l.b16 %v4851
        %v4964 = vunpack.c.l.b16 %v4852
        %v4965 = vunpack.c.l.b16 %v4853
        %v4966 = vunpack.c.l.b16 %v4854
        %v4967 = vpack.c.b16 %v4920, %v4919
        %v4968 = vpack.c.b16 %v4922, %v4921
        %v4969 = vpack.c.b16 %v4924, %v4923
        %v4970 = vpack.c.b16 %v4926, %v4925
        %v4971 = vpack.c.b16 %v4928, %v4927
        %v4972 = vpack.c.b16 %v4930, %v4929
        %v4973 = vpack.c.b16 %v4932, %v4931
        %v4974 = vpack.c.b16 %v4934, %v4933
        %v4975 = vpack.c.b16 %v4936, %v4935
        %v4976 = vpack.c.b16 %v4938, %v4937
        %v4977 = vpack.c.b16 %v4940, %v4939
        %v4978 = vpack.c.b16 %v4942, %v4941
        %v4979 = vpack.c.b16 %v4944, %v4943
        %v4980 = vpack.c.b16 %v4946, %v4945
        %v4981 = vpack.c.b16 %v4948, %v4947
        %v4982 = vpack.c.b16 %v4950, %v4949
        %v4983 = vpack.c.b16 %v4952, %v4951
        %v4984 = vpack.c.b16 %v4954, %v4953
        %v4985 = vpack.c.b16 %v4956, %v4955
        %v4986 = vpack.c.b16 %v4958, %v4957
        %v4987 = vpack.c.b16 %v4960, %v4959
        %v4988 = vpack.c.b16 %v4962, %v4961
        %v4989 = vpack.c.b16 %v4964, %v4963
        %v4990 = vpack.c.b16 %v4966, %v4965
        %v5031 = vunpack.c.l.b16 %v4855
        %v5032 = vunpack.c.l.b16 %v4856
        %v5033 = vunpack.c.l.b16 %v4857
        %v5034 = vunpack.c.l.b16 %v4858
        %v5035 = vunpack.c.l.b16 %v4859
        %v5036 = vunpack.c.l.b16 %v4860
        %v5037 = vunpack.c.l.b16 %v4861
        %v5038 = vunpack.c.l.b16 %v4862
        %v5039 = vunpack.c.l.b16 %v4863
        %v5040 = vunpack.c.l.b16 %v4864
        %v5041 = vunpack.c.l.b16 %v4865
        %v5042 = vunpack.c.l.b16 %v4866
        %v5043 = vunpack.c.l.b16 %v4867
        %v5044 = vunpack.c.l.b16 %v4868
        %v5045 = vunpack.c.l.b16 %v4869
        %v5046 = vunpack.c.l.b16 %v4870
        %v5047 = vpack.c.b16 %v5032, %v5031
        %v5048 = vpack.c.b16 %v5034, %v5033
        %v5049 = vpack.c.b16 %v5036, %v5035
        %v5050 = vpack.c.b16 %v5038, %v5037
        %v5051 = vpack.c.b16 %v5040, %v5039
        %v5052 = vpack.c.b16 %v5042, %v5041
        %v5053 = vpack.c.b16 %v5044, %v5043
        %v5054 = vpack.c.b16 %v5046, %v5045
        %5063 = vmatprep.subr.bf16.mxu0 0
        %5064 = vmatpush1.bf16.msra.mxu0 %v5047
        %5065 = vmatprep.subr.bf16.mxu0 0
        %5066 = vmatpush1.bf16.msra.mxu0 %v5048
        %5067 = vmatprep.subr.bf16.mxu0 0
        %5068 = vmatpush1.bf16.msra.mxu0 %v5049
        %5069 = vmatprep.subr.bf16.mxu0 0
        %5070 = vmatpush1.bf16.msra.mxu0 %v5050
        %5071 = vmatprep.subr.bf16.mxu0 0
        %5072 = vmatpush1.bf16.msra.mxu0 %v5051
        %5073 = vmatprep.subr.bf16.mxu0 0
        %5074 = vmatpush1.bf16.msra.mxu0 %v5052
        %5075 = vmatprep.subr.bf16.mxu0 0
        %5076 = vmatpush1.bf16.msra.mxu0 %v5053
        %5077 = vmatprep.subr.bf16.mxu0 0
        %5078 = vmatpush1.bf16.msra.mxu0 %v5054
        %5079 = vmatprep.subr.bf16.mxu0 0
        %5080 = vmatpush1.bf16.msra.mxu0 0
        %5081 = vmatprep.subr.bf16.mxu0 0
        %5082 = vmatpush1.bf16.msra.mxu0 0
        %5083 = vmatprep.subr.bf16.mxu0 0
        %5084 = vmatpush1.bf16.msra.mxu0 0
        %5085 = vmatprep.subr.bf16.mxu0 0
        %5086 = vmatpush1.bf16.msra.mxu0 0
        %5087 = vmatprep.subr.bf16.mxu0 0
        %5088 = vmatpush1.bf16.msra.mxu0 0
        %5089 = vmatprep.subr.bf16.mxu0 0
        %5090 = vmatpush1.bf16.msra.mxu0 0
        %5091 = vmatprep.subr.bf16.mxu0 0
        %5092 = vmatpush1.bf16.msra.mxu0 0
        %5093 = vmatprep.subr.bf16.mxu0 0
        %5094 = vmatpush1.bf16.msra.mxu0 0
        %5095 = vmatprep.mubr.bf16.mxu0 0
        %5096 = vmatmul.mubr.bf16.gmra.mrb[0].mxu0 %v4967
        %v5097 = vpop.f32.mrb[0].mxu0
        %v5098 = vadd.f32 0.0, %v5097
        %v5099 = vpop.f32.mrb[0].mxu0
        %v5100 = vpop.f32.mrb[0].mxu0
        %v5101 = vadd.f32 0.0, %v5100
        %v5102 = vpop.f32.mrb[0].mxu0
        %5103 = vmatprep.mubr.bf16.mxu0 0
        %5104 = vmatmul.mubr.bf16.gmra.mrb[0].mxu0 %v4968
        %v5105 = vpop.f32.mrb[0].mxu0
        %v5106 = vadd.f32 0.0, %v5105
        %v5107 = vpop.f32.mrb[0].mxu0
        %v5108 = vpop.f32.mrb[0].mxu0
        %v5109 = vadd.f32 0.0, %v5108
        %v5110 = vpop.f32.mrb[0].mxu0
        %5111 = vmatprep.mubr.bf16.mxu0 0
        %5112 = vmatmul.mubr.bf16.gmra.mrb[0].mxu0 %v4969
        %v5113 = vpop.f32.mrb[0].mxu0
        %v5114 = vadd.f32 0.0, %v5113
        %v5115 = vpop.f32.mrb[0].mxu0
        %v5116 = vpop.f32.mrb[0].mxu0
        %v5117 = vadd.f32 0.0, %v5116
        %v5118 = vpop.f32.mrb[0].mxu0
        %5119 = vmatprep.mubr.bf16.mxu0 0
        %5120 = vmatmul.mubr.bf16.gmra.mrb[0].mxu0 %v4970
        %v5121 = vpop.f32.mrb[0].mxu0
        %v5122 = vadd.f32 0.0, %v5121
        %v5123 = vpop.f32.mrb[0].mxu0
        %v5124 = vpop.f32.mrb[0].mxu0
        %v5125 = vadd.f32 0.0, %v5124
        %v5126 = vpop.f32.mrb[0].mxu0
        %5127 = vmatprep.mubr.bf16.mxu0 0
        %5128 = vmatmul.mubr.bf16.gmra.mrb[0].mxu0 %v4971
        %v5129 = vpop.f32.mrb[0].mxu0
        %v5130 = vadd.f32 0.0, %v5129
        %v5131 = vpop.f32.mrb[0].mxu0
        %v5132 = vpop.f32.mrb[0].mxu0
        %v5133 = vadd.f32 0.0, %v5132
        %v5134 = vpop.f32.mrb[0].mxu0
        %5135 = vmatprep.mubr.bf16.mxu0 0
        %5136 = vmatmul.mubr.bf16.gmra.mrb[0].mxu0 %v4972
        %v5137 = vpop.f32.mrb[0].mxu0
        %v5138 = vadd.f32 0.0, %v5137
        %v5139 = vpop.f32.mrb[0].mxu0
        %v5140 = vpop.f32.mrb[0].mxu0
        %v5141 = vadd.f32 0.0, %v5140
        %v5142 = vpop.f32.mrb[0].mxu0
        %5143 = vmatprep.mubr.bf16.mxu0 0
        %5144 = vmatmul.mubr.bf16.gmra.mrb[0].mxu0 %v4973
        %v5145 = vpop.f32.mrb[0].mxu0
        %v5146 = vadd.f32 0.0, %v5145
        %v5147 = vpop.f32.mrb[0].mxu0
        %v5148 = vpop.f32.mrb[0].mxu0
        %v5149 = vadd.f32 0.0, %v5148
        %v5150 = vpop.f32.mrb[0].mxu0
        %5151 = vmatprep.mubr.bf16.mxu0 0
        %5152 = vmatmul.mubr.bf16.gmra.mrb[0].mxu0 %v4974
        %v5153 = vpop.f32.mrb[0].mxu0
        %v5154 = vadd.f32 0.0, %v5153
        %v5155 = vpop.f32.mrb[0].mxu0
        %v5156 = vpop.f32.mrb[0].mxu0
        %v5157 = vadd.f32 0.0, %v5156
        %v5158 = vpop.f32.mrb[0].mxu0
        %5159 = vmatprep.mubr.bf16.mxu0 0
        %5160 = vmatmul.mubr.bf16.gmra.mrb[0].mxu0 %v4975
        %v5161 = vpop.f32.mrb[0].mxu0
        %v5162 = vadd.f32 0.0, %v5161
        %v5163 = vpop.f32.mrb[0].mxu0
        %v5164 = vpop.f32.mrb[0].mxu0
        %v5165 = vadd.f32 0.0, %v5164
        %v5166 = vpop.f32.mrb[0].mxu0
        %5167 = vmatprep.mubr.bf16.mxu0 0
        %5168 = vmatmul.mubr.bf16.gmra.mrb[0].mxu0 %v4976
        %v5169 = vpop.f32.mrb[0].mxu0
        %v5170 = vadd.f32 0.0, %v5169
        %v5171 = vpop.f32.mrb[0].mxu0
        %v5172 = vpop.f32.mrb[0].mxu0
        %v5173 = vadd.f32 0.0, %v5172
        %v5174 = vpop.f32.mrb[0].mxu0
        %5175 = vmatprep.mubr.bf16.mxu0 0
        %5176 = vmatmul.mubr.bf16.gmra.mrb[0].mxu0 %v4977
        %v5177 = vpop.f32.mrb[0].mxu0
        %v5178 = vadd.f32 0.0, %v5177
        %v5179 = vpop.f32.mrb[0].mxu0
        %v5180 = vpop.f32.mrb[0].mxu0
        %v5181 = vadd.f32 0.0, %v5180
        %v5182 = vpop.f32.mrb[0].mxu0
        %5183 = vmatprep.mubr.bf16.mxu0 0
        %5184 = vmatmul.mubr.bf16.gmra.mrb[0].mxu0 %v4978
        %v5185 = vpop.f32.mrb[0].mxu0
        %v5186 = vadd.f32 0.0, %v5185
        %v5187 = vpop.f32.mrb[0].mxu0
        %v5188 = vpop.f32.mrb[0].mxu0
        %v5189 = vadd.f32 0.0, %v5188
        %v5190 = vpop.f32.mrb[0].mxu0
        %5191 = vmatprep.mubr.bf16.mxu0 0
        %5192 = vmatmul.mubr.bf16.gmra.mrb[0].mxu0 %v4979
        %v5193 = vpop.f32.mrb[0].mxu0
        %v5194 = vadd.f32 0.0, %v5193
        %v5195 = vpop.f32.mrb[0].mxu0
        %v5196 = vpop.f32.mrb[0].mxu0
        %v5197 = vadd.f32 0.0, %v5196
        %v5198 = vpop.f32.mrb[0].mxu0
        %5199 = vmatprep.mubr.bf16.mxu0 0
        %5200 = vmatmul.mubr.bf16.gmra.mrb[0].mxu0 %v4980
        %v5201 = vpop.f32.mrb[0].mxu0
        %v5202 = vadd.f32 0.0, %v5201
        %v5203 = vpop.f32.mrb[0].mxu0
        %v5204 = vpop.f32.mrb[0].mxu0
        %v5205 = vadd.f32 0.0, %v5204
        %v5206 = vpop.f32.mrb[0].mxu0
        %5207 = vmatprep.mubr.bf16.mxu0 0
        %5208 = vmatmul.mubr.bf16.gmra.mrb[0].mxu0 %v4981
        %v5209 = vpop.f32.mrb[0].mxu0
        %v5210 = vadd.f32 0.0, %v5209
        %v5211 = vpop.f32.mrb[0].mxu0
        %v5212 = vpop.f32.mrb[0].mxu0
        %v5213 = vadd.f32 0.0, %v5212
        %v5214 = vpop.f32.mrb[0].mxu0
        %5215 = vmatprep.mubr.bf16.mxu0 0
        %5216 = vmatmul.mubr.bf16.gmra.mrb[0].mxu0 %v4982
        %v5217 = vpop.f32.mrb[0].mxu0
        %v5218 = vadd.f32 0.0, %v5217
        %v5219 = vpop.f32.mrb[0].mxu0
        %v5220 = vpop.f32.mrb[0].mxu0
        %v5221 = vadd.f32 0.0, %v5220
        %v5222 = vpop.f32.mrb[0].mxu0
        %5223 = vmatprep.mubr.bf16.mxu0 0
        %5224 = vmatmul.mubr.bf16.gmra.mrb[0].mxu0 %v4983
        %v5225 = vpop.f32.mrb[0].mxu0
        %v5226 = vadd.f32 0.0, %v5225
        %v5227 = vpop.f32.mrb[0].mxu0
        %v5228 = vpop.f32.mrb[0].mxu0
        %v5229 = vadd.f32 0.0, %v5228
        %v5230 = vpop.f32.mrb[0].mxu0
        %5231 = vmatprep.mubr.bf16.mxu0 0
        %5232 = vmatmul.mubr.bf16.gmra.mrb[0].mxu0 %v4984
        %v5233 = vpop.f32.mrb[0].mxu0
        %v5234 = vadd.f32 0.0, %v5233
        %v5235 = vpop.f32.mrb[0].mxu0
        %v5236 = vpop.f32.mrb[0].mxu0
        %v5237 = vadd.f32 0.0, %v5236
        %v5238 = vpop.f32.mrb[0].mxu0
        %5239 = vmatprep.mubr.bf16.mxu0 0
        %5240 = vmatmul.mubr.bf16.gmra.mrb[0].mxu0 %v4985
        %v5241 = vpop.f32.mrb[0].mxu0
        %v5242 = vadd.f32 0.0, %v5241
        %v5243 = vpop.f32.mrb[0].mxu0
        %v5244 = vpop.f32.mrb[0].mxu0
        %v5245 = vadd.f32 0.0, %v5244
        %v5246 = vpop.f32.mrb[0].mxu0
        %5247 = vmatprep.mubr.bf16.mxu0 0
        %5248 = vmatmul.mubr.bf16.gmra.mrb[0].mxu0 %v4986
        %v5249 = vpop.f32.mrb[0].mxu0
        %v5250 = vadd.f32 0.0, %v5249
        %v5251 = vpop.f32.mrb[0].mxu0
        %v5252 = vpop.f32.mrb[0].mxu0
        %v5253 = vadd.f32 0.0, %v5252
        %v5254 = vpop.f32.mrb[0].mxu0
        %5255 = vmatprep.mubr.bf16.mxu0 0
        %5256 = vmatmul.mubr.bf16.gmra.mrb[0].mxu0 %v4987
        %v5257 = vpop.f32.mrb[0].mxu0
        %v5258 = vadd.f32 0.0, %v5257
        %v5259 = vpop.f32.mrb[0].mxu0
        %v5260 = vpop.f32.mrb[0].mxu0
        %v5261 = vadd.f32 0.0, %v5260
        %v5262 = vpop.f32.mrb[0].mxu0
        %5263 = vmatprep.mubr.bf16.mxu0 0
        %5264 = vmatmul.mubr.bf16.gmra.mrb[0].mxu0 %v4988
        %v5265 = vpop.f32.mrb[0].mxu0
        %v5266 = vadd.f32 0.0, %v5265
        %v5267 = vpop.f32.mrb[0].mxu0
        %v5268 = vpop.f32.mrb[0].mxu0
        %v5269 = vadd.f32 0.0, %v5268
        %v5270 = vpop.f32.mrb[0].mxu0
        %5271 = vmatprep.mubr.bf16.mxu0 0
        %5272 = vmatmul.mubr.bf16.gmra.mrb[0].mxu0 %v4989
        %v5273 = vpop.f32.mrb[0].mxu0
        %v5274 = vadd.f32 0.0, %v5273
        %v5275 = vpop.f32.mrb[0].mxu0
        %v5276 = vpop.f32.mrb[0].mxu0
        %v5277 = vadd.f32 0.0, %v5276
        %v5278 = vpop.f32.mrb[0].mxu0
        %5279 = vmatprep.mubr.bf16.mxu0 0
        %5280 = vmatmul.mubr.bf16.gmra.mrb[0].mxu0 %v4990
        %v5281 = vpop.f32.mrb[0].mxu0
        %v5282 = vadd.f32 0.0, %v5281
        %v5283 = vpop.f32.mrb[0].mxu0
        %v5284 = vpop.f32.mrb[0].mxu0
        %v5285 = vadd.f32 0.0, %v5284
        %v5286 = vpop.f32.mrb[0].mxu0
        %5287 = vdwg.mxu0
        %v5288 = vrot.slane %v5098, 7
        %v5289 = vrot.slane %v5101, 7
        %v5290 = vrot.slane %v5106, 7
        %v5291 = vrot.slane %v5109, 7
        %v5292 = vrot.slane %v5114, 7
        %v5293 = vrot.slane %v5117, 7
        %v5294 = vrot.slane %v5122, 7
        %v5295 = vrot.slane %v5125, 7
        %v5296 = vrot.slane %v5130, 7
        %v5297 = vrot.slane %v5133, 7
        %v5298 = vrot.slane %v5138, 7
        %v5299 = vrot.slane %v5141, 7
        %v5300 = vrot.slane %v5146, 7
        %v5301 = vrot.slane %v5149, 7
        %v5302 = vrot.slane %v5154, 7
        %v5303 = vrot.slane %v5157, 7
        %v5304 = vrot.slane %v5162, 7
        %v5305 = vrot.slane %v5165, 7
        %v5306 = vrot.slane %v5170, 7
        %v5307 = vrot.slane %v5173, 7
        %v5308 = vrot.slane %v5178, 7
        %v5309 = vrot.slane %v5181, 7
        %v5310 = vrot.slane %v5186, 7
        %v5311 = vrot.slane %v5189, 7
        %v5312 = vrot.slane %v5194, 7
        %v5313 = vrot.slane %v5197, 7
        %v5314 = vrot.slane %v5202, 7
        %v5315 = vrot.slane %v5205, 7
        %v5316 = vrot.slane %v5210, 7
        %v5317 = vrot.slane %v5213, 7
        %v5318 = vrot.slane %v5218, 7
        %v5319 = vrot.slane %v5221, 7
        %v5320 = vrot.slane %v5226, 7
        %v5321 = vrot.slane %v5229, 7
        %v5322 = vrot.slane %v5234, 7
        %v5323 = vrot.slane %v5237, 7
        %v5324 = vrot.slane %v5242, 7
        %v5325 = vrot.slane %v5245, 7
        %v5326 = vrot.slane %v5250, 7
        %v5327 = vrot.slane %v5253, 7
        %v5328 = vrot.slane %v5258, 7
        %v5329 = vrot.slane %v5261, 7
        %v5330 = vrot.slane %v5266, 7
        %v5331 = vrot.slane %v5269, 7
        %v5332 = vrot.slane %v5274, 7
        %v5333 = vrot.slane %v5277, 7
        %v5334 = vrot.slane %v5282, 7
        %v5335 = vrot.slane %v5285, 7
        %vm5336 = vcmp.lt.s32.totalorder %v820, 1
        %v5337 = vsel %vm5336, %v5334, %v5335
        %v5338 = vsel %vm5336, %v5333, %v5334
        %v5339 = vsel %vm5336, %v5332, %v5333
        %v5340 = vsel %vm5336, %v5331, %v5332
        %v5341 = vsel %vm5336, %v5330, %v5331
        %v5342 = vsel %vm5336, %v5329, %v5330
        %v5343 = vsel %vm5336, %v5328, %v5329
        %v5344 = vsel %vm5336, %v5327, %v5328
        %v5345 = vsel %vm5336, %v5326, %v5327
        %v5346 = vsel %vm5336, %v5325, %v5326
        %v5347 = vsel %vm5336, %v5324, %v5325
        %v5348 = vsel %vm5336, %v5323, %v5324
        %v5349 = vsel %vm5336, %v5322, %v5323
        %v5350 = vsel %vm5336, %v5321, %v5322
        %v5351 = vsel %vm5336, %v5320, %v5321
        %v5352 = vsel %vm5336, %v5319, %v5320
        %v5353 = vsel %vm5336, %v5318, %v5319
        %v5354 = vsel %vm5336, %v5317, %v5318
        %v5355 = vsel %vm5336, %v5316, %v5317
        %v5356 = vsel %vm5336, %v5315, %v5316
        %v5357 = vsel %vm5336, %v5314, %v5315
        %v5358 = vsel %vm5336, %v5313, %v5314
        %v5359 = vsel %vm5336, %v5312, %v5313
        %v5360 = vsel %vm5336, %v5311, %v5312
        %v5361 = vsel %vm5336, %v5310, %v5311
        %v5362 = vsel %vm5336, %v5309, %v5310
        %v5363 = vsel %vm5336, %v5308, %v5309
        %v5364 = vsel %vm5336, %v5307, %v5308
        %v5365 = vsel %vm5336, %v5306, %v5307
        %v5366 = vsel %vm5336, %v5305, %v5306
        %v5367 = vsel %vm5336, %v5304, %v5305
        %v5368 = vsel %vm5336, %v5303, %v5304
        %v5369 = vsel %vm5336, %v5302, %v5303
        %v5370 = vsel %vm5336, %v5301, %v5302
        %v5371 = vsel %vm5336, %v5300, %v5301
        %v5372 = vsel %vm5336, %v5299, %v5300
        %v5373 = vsel %vm5336, %v5298, %v5299
        %v5374 = vsel %vm5336, %v5297, %v5298
        %v5375 = vsel %vm5336, %v5296, %v5297
        %v5376 = vsel %vm5336, %v5295, %v5296
        %v5377 = vsel %vm5336, %v5294, %v5295
        %v5378 = vsel %vm5336, %v5293, %v5294
        %v5379 = vsel %vm5336, %v5292, %v5293
        %v5380 = vsel %vm5336, %v5291, %v5292
        %v5381 = vsel %vm5336, %v5290, %v5291
        %v5382 = vsel %vm5336, %v5289, %v5290
        %v5383 = vsel %vm5336, %v5288, %v5289
        %v5384 = vsel %vm5336, %v5335, %v5288
        %s5385 = scalar_lea.vmem [#allocation10], 64
        %v5386 = vld [vmem:[%s5385] sm:$0xf]
        %v5387 = vld [vmem:[%s5385 + $0x4] sm:$0xf]
        %v5388 = vld [vmem:[%s5385 + $0x8] sm:$0xf]
        %v5389 = vld [vmem:[%s5385 + $0xc] sm:$0xf]
        %v5390 = vld [vmem:[%s5385 + $0x10] sm:$0xf]
        %v5391 = vld [vmem:[%s5385 + $0x14] sm:$0xf]
        %v5392 = vld [vmem:[%s5385 + $0x18] sm:$0xf]
        %v5393 = vld [vmem:[%s5385 + $0x1c] sm:$0xf]
        %v5394 = vld [vmem:[%s5385 + $0x20] sm:$0xf]
        %v5395 = vld [vmem:[%s5385 + $0x24] sm:$0xf]
        %v5396 = vld [vmem:[%s5385 + $0x28] sm:$0xf]
        %v5397 = vld [vmem:[%s5385 + $0x2c] sm:$0xf]
        %v5398 = vld [vmem:[%s5385 + $0x30] sm:$0xf]
        %v5399 = vld [vmem:[%s5385 + $0x34] sm:$0xf]
        %v5400 = vld [vmem:[%s5385 + $0x38] sm:$0xf]
        %v5401 = vld [vmem:[%s5385 + $0x3c] sm:$0xf]
        %v5418 = vunpack.c.l.b16 %v5386
        %v5419 = vunpack.c.l.b16 %v5387
        %v5420 = vunpack.c.l.b16 %v5388
        %v5421 = vunpack.c.l.b16 %v5389
        %v5422 = vunpack.c.l.b16 %v5390
        %v5423 = vunpack.c.l.b16 %v5391
        %v5424 = vunpack.c.l.b16 %v5392
        %v5425 = vunpack.c.l.b16 %v5393
        %v5426 = vunpack.c.l.b16 %v5394
        %v5427 = vunpack.c.l.b16 %v5395
        %v5428 = vunpack.c.l.b16 %v5396
        %v5429 = vunpack.c.l.b16 %v5397
        %v5430 = vunpack.c.l.b16 %v5398
        %v5431 = vunpack.c.l.b16 %v5399
        %v5432 = vunpack.c.l.b16 %v5400
        %v5433 = vunpack.c.l.b16 %v5401
        %v5434 = vpack.c.b16 %v5419, %v5418
        %v5435 = vpack.c.b16 %v5421, %v5420
        %v5436 = vpack.c.b16 %v5423, %v5422
        %v5437 = vpack.c.b16 %v5425, %v5424
        %v5438 = vpack.c.b16 %v5427, %v5426
        %v5439 = vpack.c.b16 %v5429, %v5428
        %v5440 = vpack.c.b16 %v5431, %v5430
        %v5441 = vpack.c.b16 %v5433, %v5432
        %5450 = vmatprep.subr.bf16.mxu0 0
        %5451 = vmatpush1.bf16.msra.mxu0 %v5434
        %5452 = vmatprep.subr.bf16.mxu0 0
        %5453 = vmatpush1.bf16.msra.mxu0 %v5435
        %5454 = vmatprep.subr.bf16.mxu0 0
        %5455 = vmatpush1.bf16.msra.mxu0 %v5436
        %5456 = vmatprep.subr.bf16.mxu0 0
        %5457 = vmatpush1.bf16.msra.mxu0 %v5437
        %5458 = vmatprep.subr.bf16.mxu0 0
        %5459 = vmatpush1.bf16.msra.mxu0 %v5438
        %5460 = vmatprep.subr.bf16.mxu0 0
        %5461 = vmatpush1.bf16.msra.mxu0 %v5439
        %5462 = vmatprep.subr.bf16.mxu0 0
        %5463 = vmatpush1.bf16.msra.mxu0 %v5440
        %5464 = vmatprep.subr.bf16.mxu0 0
        %5465 = vmatpush1.bf16.msra.mxu0 %v5441
        %5466 = vmatprep.subr.bf16.mxu0 0
        %5467 = vmatpush1.bf16.msra.mxu0 0
        %5468 = vmatprep.subr.bf16.mxu0 0
        %5469 = vmatpush1.bf16.msra.mxu0 0
        %5470 = vmatprep.subr.bf16.mxu0 0
        %5471 = vmatpush1.bf16.msra.mxu0 0
        %5472 = vmatprep.subr.bf16.mxu0 0
        %5473 = vmatpush1.bf16.msra.mxu0 0
        %5474 = vmatprep.subr.bf16.mxu0 0
        %5475 = vmatpush1.bf16.msra.mxu0 0
        %5476 = vmatprep.subr.bf16.mxu0 0
        %5477 = vmatpush1.bf16.msra.mxu0 0
        %5478 = vmatprep.subr.bf16.mxu0 0
        %5479 = vmatpush1.bf16.msra.mxu0 0
        %5480 = vmatprep.subr.bf16.mxu0 0
        %5481 = vmatpush1.bf16.msra.mxu0 0
        %5482 = vmatprep.mubr.bf16.mxu0 0
        %5483 = vmatmul.mubr.bf16.gmra.mrb[0].mxu0 %v4967
        %v5484 = vpop.f32.mrb[0].mxu0
        %v5485 = vadd.f32 0.0, %v5484
        %v5486 = vpop.f32.mrb[0].mxu0
        %v5487 = vpop.f32.mrb[0].mxu0
        %v5488 = vadd.f32 0.0, %v5487
        %v5489 = vpop.f32.mrb[0].mxu0
        %5490 = vmatprep.mubr.bf16.mxu0 0
        %5491 = vmatmul.mubr.bf16.gmra.mrb[0].mxu0 %v4968
        %v5492 = vpop.f32.mrb[0].mxu0
        %v5493 = vadd.f32 0.0, %v5492
        %v5494 = vpop.f32.mrb[0].mxu0
        %v5495 = vpop.f32.mrb[0].mxu0
        %v5496 = vadd.f32 0.0, %v5495
        %v5497 = vpop.f32.mrb[0].mxu0
        %5498 = vmatprep.mubr.bf16.mxu0 0
        %5499 = vmatmul.mubr.bf16.gmra.mrb[0].mxu0 %v4969
        %v5500 = vpop.f32.mrb[0].mxu0
        %v5501 = vadd.f32 0.0, %v5500
        %v5502 = vpop.f32.mrb[0].mxu0
        %v5503 = vpop.f32.mrb[0].mxu0
        %v5504 = vadd.f32 0.0, %v5503
        %v5505 = vpop.f32.mrb[0].mxu0
        %5506 = vmatprep.mubr.bf16.mxu0 0
        %5507 = vmatmul.mubr.bf16.gmra.mrb[0].mxu0 %v4970
        %v5508 = vpop.f32.mrb[0].mxu0
        %v5509 = vadd.f32 0.0, %v5508
        %v5510 = vpop.f32.mrb[0].mxu0
        %v5511 = vpop.f32.mrb[0].mxu0
        %v5512 = vadd.f32 0.0, %v5511
        %v5513 = vpop.f32.mrb[0].mxu0
        %5514 = vmatprep.mubr.bf16.mxu0 0
        %5515 = vmatmul.mubr.bf16.gmra.mrb[0].mxu0 %v4971
        %v5516 = vpop.f32.mrb[0].mxu0
        %v5517 = vadd.f32 0.0, %v5516
        %v5518 = vpop.f32.mrb[0].mxu0
        %v5519 = vpop.f32.mrb[0].mxu0
        %v5520 = vadd.f32 0.0, %v5519
        %v5521 = vpop.f32.mrb[0].mxu0
        %5522 = vmatprep.mubr.bf16.mxu0 0
        %5523 = vmatmul.mubr.bf16.gmra.mrb[0].mxu0 %v4972
        %v5524 = vpop.f32.mrb[0].mxu0
        %v5525 = vadd.f32 0.0, %v5524
        %v5526 = vpop.f32.mrb[0].mxu0
        %v5527 = vpop.f32.mrb[0].mxu0
        %v5528 = vadd.f32 0.0, %v5527
        %v5529 = vpop.f32.mrb[0].mxu0
        %5530 = vmatprep.mubr.bf16.mxu0 0
        %5531 = vmatmul.mubr.bf16.gmra.mrb[0].mxu0 %v4973
        %v5532 = vpop.f32.mrb[0].mxu0
        %v5533 = vadd.f32 0.0, %v5532
        %v5534 = vpop.f32.mrb[0].mxu0
        %v5535 = vpop.f32.mrb[0].mxu0
        %v5536 = vadd.f32 0.0, %v5535
        %v5537 = vpop.f32.mrb[0].mxu0
        %5538 = vmatprep.mubr.bf16.mxu0 0
        %5539 = vmatmul.mubr.bf16.gmra.mrb[0].mxu0 %v4974
        %v5540 = vpop.f32.mrb[0].mxu0
        %v5541 = vadd.f32 0.0, %v5540
        %v5542 = vpop.f32.mrb[0].mxu0
        %v5543 = vpop.f32.mrb[0].mxu0
        %v5544 = vadd.f32 0.0, %v5543
        %v5545 = vpop.f32.mrb[0].mxu0
        %5546 = vmatprep.mubr.bf16.mxu0 0
        %5547 = vmatmul.mubr.bf16.gmra.mrb[0].mxu0 %v4975
        %v5548 = vpop.f32.mrb[0].mxu0
        %v5549 = vadd.f32 0.0, %v5548
        %v5550 = vpop.f32.mrb[0].mxu0
        %v5551 = vpop.f32.mrb[0].mxu0
        %v5552 = vadd.f32 0.0, %v5551
        %v5553 = vpop.f32.mrb[0].mxu0
        %5554 = vmatprep.mubr.bf16.mxu0 0
        %5555 = vmatmul.mubr.bf16.gmra.mrb[0].mxu0 %v4976
        %v5556 = vpop.f32.mrb[0].mxu0
        %v5557 = vadd.f32 0.0, %v5556
        %v5558 = vpop.f32.mrb[0].mxu0
        %v5559 = vpop.f32.mrb[0].mxu0
        %v5560 = vadd.f32 0.0, %v5559
        %v5561 = vpop.f32.mrb[0].mxu0
        %5562 = vmatprep.mubr.bf16.mxu0 0
        %5563 = vmatmul.mubr.bf16.gmra.mrb[0].mxu0 %v4977
        %v5564 = vpop.f32.mrb[0].mxu0
        %v5565 = vadd.f32 0.0, %v5564
        %v5566 = vpop.f32.mrb[0].mxu0
        %v5567 = vpop.f32.mrb[0].mxu0
        %v5568 = vadd.f32 0.0, %v5567
        %v5569 = vpop.f32.mrb[0].mxu0
        %5570 = vmatprep.mubr.bf16.mxu0 0
        %5571 = vmatmul.mubr.bf16.gmra.mrb[0].mxu0 %v4978
        %v5572 = vpop.f32.mrb[0].mxu0
        %v5573 = vadd.f32 0.0, %v5572
        %v5574 = vpop.f32.mrb[0].mxu0
        %v5575 = vpop.f32.mrb[0].mxu0
        %v5576 = vadd.f32 0.0, %v5575
        %v5577 = vpop.f32.mrb[0].mxu0
        %5578 = vmatprep.mubr.bf16.mxu0 0
        %5579 = vmatmul.mubr.bf16.gmra.mrb[0].mxu0 %v4979
        %v5580 = vpop.f32.mrb[0].mxu0
        %v5581 = vadd.f32 0.0, %v5580
        %v5582 = vpop.f32.mrb[0].mxu0
        %v5583 = vpop.f32.mrb[0].mxu0
        %v5584 = vadd.f32 0.0, %v5583
        %v5585 = vpop.f32.mrb[0].mxu0
        %5586 = vmatprep.mubr.bf16.mxu0 0
        %5587 = vmatmul.mubr.bf16.gmra.mrb[0].mxu0 %v4980
        %v5588 = vpop.f32.mrb[0].mxu0
        %v5589 = vadd.f32 0.0, %v5588
        %v5590 = vpop.f32.mrb[0].mxu0
        %v5591 = vpop.f32.mrb[0].mxu0
        %v5592 = vadd.f32 0.0, %v5591
        %v5593 = vpop.f32.mrb[0].mxu0
        %5594 = vmatprep.mubr.bf16.mxu0 0
        %5595 = vmatmul.mubr.bf16.gmra.mrb[0].mxu0 %v4981
        %v5596 = vpop.f32.mrb[0].mxu0
        %v5597 = vadd.f32 0.0, %v5596
        %v5598 = vpop.f32.mrb[0].mxu0
        %v5599 = vpop.f32.mrb[0].mxu0
        %v5600 = vadd.f32 0.0, %v5599
        %v5601 = vpop.f32.mrb[0].mxu0
        %5602 = vmatprep.mubr.bf16.mxu0 0
        %5603 = vmatmul.mubr.bf16.gmra.mrb[0].mxu0 %v4982
        %v5604 = vpop.f32.mrb[0].mxu0
        %v5605 = vadd.f32 0.0, %v5604
        %v5606 = vpop.f32.mrb[0].mxu0
        %v5607 = vpop.f32.mrb[0].mxu0
        %v5608 = vadd.f32 0.0, %v5607
        %v5609 = vpop.f32.mrb[0].mxu0
        %5610 = vmatprep.mubr.bf16.mxu0 0
        %5611 = vmatmul.mubr.bf16.gmra.mrb[0].mxu0 %v4983
        %v5612 = vpop.f32.mrb[0].mxu0
        %v5613 = vadd.f32 0.0, %v5612
        %v5614 = vpop.f32.mrb[0].mxu0
        %v5615 = vpop.f32.mrb[0].mxu0
        %v5616 = vadd.f32 0.0, %v5615
        %v5617 = vpop.f32.mrb[0].mxu0
        %5618 = vmatprep.mubr.bf16.mxu0 0
        %5619 = vmatmul.mubr.bf16.gmra.mrb[0].mxu0 %v4984
        %v5620 = vpop.f32.mrb[0].mxu0
        %v5621 = vadd.f32 0.0, %v5620
        %v5622 = vpop.f32.mrb[0].mxu0
        %v5623 = vpop.f32.mrb[0].mxu0
        %v5624 = vadd.f32 0.0, %v5623
        %v5625 = vpop.f32.mrb[0].mxu0
        %5626 = vmatprep.mubr.bf16.mxu0 0
        %5627 = vmatmul.mubr.bf16.gmra.mrb[0].mxu0 %v4985
        %v5628 = vpop.f32.mrb[0].mxu0
        %v5629 = vadd.f32 0.0, %v5628
        %v5630 = vpop.f32.mrb[0].mxu0
        %v5631 = vpop.f32.mrb[0].mxu0
        %v5632 = vadd.f32 0.0, %v5631
        %v5633 = vpop.f32.mrb[0].mxu0
        %5634 = vmatprep.mubr.bf16.mxu0 0
        %5635 = vmatmul.mubr.bf16.gmra.mrb[0].mxu0 %v4986
        %v5636 = vpop.f32.mrb[0].mxu0
        %v5637 = vadd.f32 0.0, %v5636
        %v5638 = vpop.f32.mrb[0].mxu0
        %v5639 = vpop.f32.mrb[0].mxu0
        %v5640 = vadd.f32 0.0, %v5639
        %v5641 = vpop.f32.mrb[0].mxu0
        %5642 = vmatprep.mubr.bf16.mxu0 0
        %5643 = vmatmul.mubr.bf16.gmra.mrb[0].mxu0 %v4987
        %v5644 = vpop.f32.mrb[0].mxu0
        %v5645 = vadd.f32 0.0, %v5644
        %v5646 = vpop.f32.mrb[0].mxu0
        %v5647 = vpop.f32.mrb[0].mxu0
        %v5648 = vadd.f32 0.0, %v5647
        %v5649 = vpop.f32.mrb[0].mxu0
        %5650 = vmatprep.mubr.bf16.mxu0 0
        %5651 = vmatmul.mubr.bf16.gmra.mrb[0].mxu0 %v4988
        %v5652 = vpop.f32.mrb[0].mxu0
        %v5653 = vadd.f32 0.0, %v5652
        %v5654 = vpop.f32.mrb[0].mxu0
        %v5655 = vpop.f32.mrb[0].mxu0
        %v5656 = vadd.f32 0.0, %v5655
        %v5657 = vpop.f32.mrb[0].mxu0
        %5658 = vmatprep.mubr.bf16.mxu0 0
        %5659 = vmatmul.mubr.bf16.gmra.mrb[0].mxu0 %v4989
        %v5660 = vpop.f32.mrb[0].mxu0
        %v5661 = vadd.f32 0.0, %v5660
        %v5662 = vpop.f32.mrb[0].mxu0
        %v5663 = vpop.f32.mrb[0].mxu0
        %v5664 = vadd.f32 0.0, %v5663
        %v5665 = vpop.f32.mrb[0].mxu0
        %5666 = vmatprep.mubr.bf16.mxu0 0
        %5667 = vmatmul.mubr.bf16.gmra.mrb[0].mxu0 %v4990
        %v5668 = vpop.f32.mrb[0].mxu0
        %v5669 = vadd.f32 0.0, %v5668
        %v5670 = vpop.f32.mrb[0].mxu0
        %v5671 = vpop.f32.mrb[0].mxu0
        %v5672 = vadd.f32 0.0, %v5671
        %v5673 = vpop.f32.mrb[0].mxu0
        %5674 = vdwg.mxu0
        %v5675 = vadd.f32 %v5384, %v5485
        %v5676 = vadd.f32 %v5383, %v5488
        %v5677 = vadd.f32 %v5382, %v5493
        %v5678 = vadd.f32 %v5381, %v5496
        %v5679 = vadd.f32 %v5380, %v5501
        %v5680 = vadd.f32 %v5379, %v5504
        %v5681 = vadd.f32 %v5378, %v5509
        %v5682 = vadd.f32 %v5377, %v5512
        %v5683 = vadd.f32 %v5376, %v5517
        %v5684 = vadd.f32 %v5375, %v5520
        %v5685 = vadd.f32 %v5374, %v5525
        %v5686 = vadd.f32 %v5373, %v5528
        %v5687 = vadd.f32 %v5372, %v5533
        %v5688 = vadd.f32 %v5371, %v5536
        %v5689 = vadd.f32 %v5370, %v5541
        %v5690 = vadd.f32 %v5369, %v5544
        %v5691 = vadd.f32 %v5368, %v5549
        %v5692 = vadd.f32 %v5367, %v5552
        %v5693 = vadd.f32 %v5366, %v5557
        %v5694 = vadd.f32 %v5365, %v5560
        %v5695 = vadd.f32 %v5364, %v5565
        %v5696 = vadd.f32 %v5363, %v5568
        %v5697 = vadd.f32 %v5362, %v5573
        %v5698 = vadd.f32 %v5361, %v5576
        %v5699 = vadd.f32 %v5360, %v5581
        %v5700 = vadd.f32 %v5359, %v5584
        %v5701 = vadd.f32 %v5358, %v5589
        %v5702 = vadd.f32 %v5357, %v5592
        %v5703 = vadd.f32 %v5356, %v5597
        %v5704 = vadd.f32 %v5355, %v5600
        %v5705 = vadd.f32 %v5354, %v5605
        %v5706 = vadd.f32 %v5353, %v5608
        %v5707 = vadd.f32 %v5352, %v5613
        %v5708 = vadd.f32 %v5351, %v5616
        %v5709 = vadd.f32 %v5350, %v5621
        %v5710 = vadd.f32 %v5349, %v5624
        %v5711 = vadd.f32 %v5348, %v5629
        %v5712 = vadd.f32 %v5347, %v5632
        %v5713 = vadd.f32 %v5346, %v5637
        %v5714 = vadd.f32 %v5345, %v5640
        %v5715 = vadd.f32 %v5344, %v5645
        %v5716 = vadd.f32 %v5343, %v5648
        %v5717 = vadd.f32 %v5342, %v5653
        %v5718 = vadd.f32 %v5341, %v5656
        %v5719 = vadd.f32 %v5340, %v5661
        %v5720 = vadd.f32 %v5339, %v5664
        %v5721 = vadd.f32 %v5338, %v5669
        %v5722 = vadd.f32 %v5337, %v5672
        %s5723 = scalar_lea.vmem [#allocation10], 128
        %v5724 = vld [vmem:[%s5723] sm:$0xf]
        %v5725 = vld [vmem:[%s5723 + $0x4] sm:$0xf]
        %v5726 = vld [vmem:[%s5723 + $0x8] sm:$0xf]
        %v5727 = vld [vmem:[%s5723 + $0xc] sm:$0xf]
        %v5728 = vld [vmem:[%s5723 + $0x10] sm:$0xf]
        %v5729 = vld [vmem:[%s5723 + $0x14] sm:$0xf]
        %v5730 = vld [vmem:[%s5723 + $0x18] sm:$0xf]
        %v5731 = vld [vmem:[%s5723 + $0x1c] sm:$0xf]
        %v5732 = vld [vmem:[%s5723 + $0x20] sm:$0xf]
        %v5733 = vld [vmem:[%s5723 + $0x24] sm:$0xf]
        %v5734 = vld [vmem:[%s5723 + $0x28] sm:$0xf]
        %v5735 = vld [vmem:[%s5723 + $0x2c] sm:$0xf]
        %v5736 = vld [vmem:[%s5723 + $0x30] sm:$0xf]
        %v5737 = vld [vmem:[%s5723 + $0x34] sm:$0xf]
        %v5738 = vld [vmem:[%s5723 + $0x38] sm:$0xf]
        %v5739 = vld [vmem:[%s5723 + $0x3c] sm:$0xf]
        %v5756 = vunpack.c.l.b16 %v5724
        %v5757 = vunpack.c.l.b16 %v5725
        %v5758 = vunpack.c.l.b16 %v5726
        %v5759 = vunpack.c.l.b16 %v5727
        %v5760 = vunpack.c.l.b16 %v5728
        %v5761 = vunpack.c.l.b16 %v5729
        %v5762 = vunpack.c.l.b16 %v5730
        %v5763 = vunpack.c.l.b16 %v5731
        %v5764 = vunpack.c.l.b16 %v5732
        %v5765 = vunpack.c.l.b16 %v5733
        %v5766 = vunpack.c.l.b16 %v5734
        %v5767 = vunpack.c.l.b16 %v5735
        %v5768 = vunpack.c.l.b16 %v5736
        %v5769 = vunpack.c.l.b16 %v5737
        %v5770 = vunpack.c.l.b16 %v5738
        %v5771 = vunpack.c.l.b16 %v5739
        %v5772 = vpack.c.b16 %v5757, %v5756
        %v5773 = vpack.c.b16 %v5759, %v5758
        %v5774 = vpack.c.b16 %v5761, %v5760
        %v5775 = vpack.c.b16 %v5763, %v5762
        %v5776 = vpack.c.b16 %v5765, %v5764
        %v5777 = vpack.c.b16 %v5767, %v5766
        %v5778 = vpack.c.b16 %v5769, %v5768
        %v5779 = vpack.c.b16 %v5771, %v5770
        %5788 = vmatprep.subr.bf16.mxu0 0
        %5789 = vmatpush1.bf16.msra.mxu0 %v5772
        %5790 = vmatprep.subr.bf16.mxu0 0
        %5791 = vmatpush1.bf16.msra.mxu0 %v5773
        %5792 = vmatprep.subr.bf16.mxu0 0
        %5793 = vmatpush1.bf16.msra.mxu0 %v5774
        %5794 = vmatprep.subr.bf16.mxu0 0
        %5795 = vmatpush1.bf16.msra.mxu0 %v5775
        %5796 = vmatprep.subr.bf16.mxu0 0
        %5797 = vmatpush1.bf16.msra.mxu0 %v5776
        %5798 = vmatprep.subr.bf16.mxu0 0
        %5799 = vmatpush1.bf16.msra.mxu0 %v5777
        %5800 = vmatprep.subr.bf16.mxu0 0
        %5801 = vmatpush1.bf16.msra.mxu0 %v5778
        %5802 = vmatprep.subr.bf16.mxu0 0
        %5803 = vmatpush1.bf16.msra.mxu0 %v5779
        %5804 = vmatprep.subr.bf16.mxu0 0
        %5805 = vmatpush1.bf16.msra.mxu0 0
        %5806 = vmatprep.subr.bf16.mxu0 0
        %5807 = vmatpush1.bf16.msra.mxu0 0
        %5808 = vmatprep.subr.bf16.mxu0 0
        %5809 = vmatpush1.bf16.msra.mxu0 0
        %5810 = vmatprep.subr.bf16.mxu0 0
        %5811 = vmatpush1.bf16.msra.mxu0 0
        %5812 = vmatprep.subr.bf16.mxu0 0
        %5813 = vmatpush1.bf16.msra.mxu0 0
        %5814 = vmatprep.subr.bf16.mxu0 0
        %5815 = vmatpush1.bf16.msra.mxu0 0
        %5816 = vmatprep.subr.bf16.mxu0 0
        %5817 = vmatpush1.bf16.msra.mxu0 0
        %5818 = vmatprep.subr.bf16.mxu0 0
        %5819 = vmatpush1.bf16.msra.mxu0 0
        %5820 = vmatprep.mubr.bf16.mxu0 0
        %5821 = vmatmul.mubr.bf16.gmra.mrb[0].mxu0 %v4967
        %v5822 = vpop.f32.mrb[0].mxu0
        %v5823 = vadd.f32 0.0, %v5822
        %v5824 = vpop.f32.mrb[0].mxu0
        %v5825 = vpop.f32.mrb[0].mxu0
        %v5826 = vadd.f32 0.0, %v5825
        %v5827 = vpop.f32.mrb[0].mxu0
        %5828 = vmatprep.mubr.bf16.mxu0 0
        %5829 = vmatmul.mubr.bf16.gmra.mrb[0].mxu0 %v4968
        %v5830 = vpop.f32.mrb[0].mxu0
        %v5831 = vadd.f32 0.0, %v5830
        %v5832 = vpop.f32.mrb[0].mxu0
        %v5833 = vpop.f32.mrb[0].mxu0
        %v5834 = vadd.f32 0.0, %v5833
        %v5835 = vpop.f32.mrb[0].mxu0
        %5836 = vmatprep.mubr.bf16.mxu0 0
        %5837 = vmatmul.mubr.bf16.gmra.mrb[0].mxu0 %v4969
        %v5838 = vpop.f32.mrb[0].mxu0
        %v5839 = vadd.f32 0.0, %v5838
        %v5840 = vpop.f32.mrb[0].mxu0
        %v5841 = vpop.f32.mrb[0].mxu0
        %v5842 = vadd.f32 0.0, %v5841
        %v5843 = vpop.f32.mrb[0].mxu0
        %5844 = vmatprep.mubr.bf16.mxu0 0
        %5845 = vmatmul.mubr.bf16.gmra.mrb[0].mxu0 %v4970
        %v5846 = vpop.f32.mrb[0].mxu0
        %v5847 = vadd.f32 0.0, %v5846
        %v5848 = vpop.f32.mrb[0].mxu0
        %v5849 = vpop.f32.mrb[0].mxu0
        %v5850 = vadd.f32 0.0, %v5849
        %v5851 = vpop.f32.mrb[0].mxu0
        %5852 = vmatprep.mubr.bf16.mxu0 0
        %5853 = vmatmul.mubr.bf16.gmra.mrb[0].mxu0 %v4971
        %v5854 = vpop.f32.mrb[0].mxu0
        %v5855 = vadd.f32 0.0, %v5854
        %v5856 = vpop.f32.mrb[0].mxu0
        %v5857 = vpop.f32.mrb[0].mxu0
        %v5858 = vadd.f32 0.0, %v5857
        %v5859 = vpop.f32.mrb[0].mxu0
        %5860 = vmatprep.mubr.bf16.mxu0 0
        %5861 = vmatmul.mubr.bf16.gmra.mrb[0].mxu0 %v4972
        %v5862 = vpop.f32.mrb[0].mxu0
        %v5863 = vadd.f32 0.0, %v5862
        %v5864 = vpop.f32.mrb[0].mxu0
        %v5865 = vpop.f32.mrb[0].mxu0
        %v5866 = vadd.f32 0.0, %v5865
        %v5867 = vpop.f32.mrb[0].mxu0
        %5868 = vmatprep.mubr.bf16.mxu0 0
        %5869 = vmatmul.mubr.bf16.gmra.mrb[0].mxu0 %v4973
        %v5870 = vpop.f32.mrb[0].mxu0
        %v5871 = vadd.f32 0.0, %v5870
        %v5872 = vpop.f32.mrb[0].mxu0
        %v5873 = vpop.f32.mrb[0].mxu0
        %v5874 = vadd.f32 0.0, %v5873
        %v5875 = vpop.f32.mrb[0].mxu0
        %5876 = vmatprep.mubr.bf16.mxu0 0
        %5877 = vmatmul.mubr.bf16.gmra.mrb[0].mxu0 %v4974
        %v5878 = vpop.f32.mrb[0].mxu0
        %v5879 = vadd.f32 0.0, %v5878
        %v5880 = vpop.f32.mrb[0].mxu0
        %v5881 = vpop.f32.mrb[0].mxu0
        %v5882 = vadd.f32 0.0, %v5881
        %v5883 = vpop.f32.mrb[0].mxu0
        %5884 = vmatprep.mubr.bf16.mxu0 0
        %5885 = vmatmul.mubr.bf16.gmra.mrb[0].mxu0 %v4975
        %v5886 = vpop.f32.mrb[0].mxu0
        %v5887 = vadd.f32 0.0, %v5886
        %v5888 = vpop.f32.mrb[0].mxu0
        %v5889 = vpop.f32.mrb[0].mxu0
        %v5890 = vadd.f32 0.0, %v5889
        %v5891 = vpop.f32.mrb[0].mxu0
        %5892 = vmatprep.mubr.bf16.mxu0 0
        %5893 = vmatmul.mubr.bf16.gmra.mrb[0].mxu0 %v4976
        %v5894 = vpop.f32.mrb[0].mxu0
        %v5895 = vadd.f32 0.0, %v5894
        %v5896 = vpop.f32.mrb[0].mxu0
        %v5897 = vpop.f32.mrb[0].mxu0
        %v5898 = vadd.f32 0.0, %v5897
        %v5899 = vpop.f32.mrb[0].mxu0
        %5900 = vmatprep.mubr.bf16.mxu0 0
        %5901 = vmatmul.mubr.bf16.gmra.mrb[0].mxu0 %v4977
        %v5902 = vpop.f32.mrb[0].mxu0
        %v5903 = vadd.f32 0.0, %v5902
        %v5904 = vpop.f32.mrb[0].mxu0
        %v5905 = vpop.f32.mrb[0].mxu0
        %v5906 = vadd.f32 0.0, %v5905
        %v5907 = vpop.f32.mrb[0].mxu0
        %5908 = vmatprep.mubr.bf16.mxu0 0
        %5909 = vmatmul.mubr.bf16.gmra.mrb[0].mxu0 %v4978
        %v5910 = vpop.f32.mrb[0].mxu0
        %v5911 = vadd.f32 0.0, %v5910
        %v5912 = vpop.f32.mrb[0].mxu0
        %v5913 = vpop.f32.mrb[0].mxu0
        %v5914 = vadd.f32 0.0, %v5913
        %v5915 = vpop.f32.mrb[0].mxu0
        %5916 = vmatprep.mubr.bf16.mxu0 0
        %5917 = vmatmul.mubr.bf16.gmra.mrb[0].mxu0 %v4979
        %v5918 = vpop.f32.mrb[0].mxu0
        %v5919 = vadd.f32 0.0, %v5918
        %v5920 = vpop.f32.mrb[0].mxu0
        %v5921 = vpop.f32.mrb[0].mxu0
        %v5922 = vadd.f32 0.0, %v5921
        %v5923 = vpop.f32.mrb[0].mxu0
        %5924 = vmatprep.mubr.bf16.mxu0 0
        %5925 = vmatmul.mubr.bf16.gmra.mrb[0].mxu0 %v4980
        %v5926 = vpop.f32.mrb[0].mxu0
        %v5927 = vadd.f32 0.0, %v5926
        %v5928 = vpop.f32.mrb[0].mxu0
        %v5929 = vpop.f32.mrb[0].mxu0
        %v5930 = vadd.f32 0.0, %v5929
        %v5931 = vpop.f32.mrb[0].mxu0
        %5932 = vmatprep.mubr.bf16.mxu0 0
        %5933 = vmatmul.mubr.bf16.gmra.mrb[0].mxu0 %v4981
        %v5934 = vpop.f32.mrb[0].mxu0
        %v5935 = vadd.f32 0.0, %v5934
        %v5936 = vpop.f32.mrb[0].mxu0
        %v5937 = vpop.f32.mrb[0].mxu0
        %v5938 = vadd.f32 0.0, %v5937
        %v5939 = vpop.f32.mrb[0].mxu0
        %5940 = vmatprep.mubr.bf16.mxu0 0
        %5941 = vmatmul.mubr.bf16.gmra.mrb[0].mxu0 %v4982
        %v5942 = vpop.f32.mrb[0].mxu0
        %v5943 = vadd.f32 0.0, %v5942
        %v5944 = vpop.f32.mrb[0].mxu0
        %v5945 = vpop.f32.mrb[0].mxu0
        %v5946 = vadd.f32 0.0, %v5945
        %v5947 = vpop.f32.mrb[0].mxu0
        %5948 = vmatprep.mubr.bf16.mxu0 0
        %5949 = vmatmul.mubr.bf16.gmra.mrb[0].mxu0 %v4983
        %v5950 = vpop.f32.mrb[0].mxu0
        %v5951 = vadd.f32 0.0, %v5950
        %v5952 = vpop.f32.mrb[0].mxu0
        %v5953 = vpop.f32.mrb[0].mxu0
        %v5954 = vadd.f32 0.0, %v5953
        %v5955 = vpop.f32.mrb[0].mxu0
        %5956 = vmatprep.mubr.bf16.mxu0 0
        %5957 = vmatmul.mubr.bf16.gmra.mrb[0].mxu0 %v4984
        %v5958 = vpop.f32.mrb[0].mxu0
        %v5959 = vadd.f32 0.0, %v5958
        %v5960 = vpop.f32.mrb[0].mxu0
        %v5961 = vpop.f32.mrb[0].mxu0
        %v5962 = vadd.f32 0.0, %v5961
        %v5963 = vpop.f32.mrb[0].mxu0
        %5964 = vmatprep.mubr.bf16.mxu0 0
        %5965 = vmatmul.mubr.bf16.gmra.mrb[0].mxu0 %v4985
        %v5966 = vpop.f32.mrb[0].mxu0
        %v5967 = vadd.f32 0.0, %v5966
        %v5968 = vpop.f32.mrb[0].mxu0
        %v5969 = vpop.f32.mrb[0].mxu0
        %v5970 = vadd.f32 0.0, %v5969
        %v5971 = vpop.f32.mrb[0].mxu0
        %5972 = vmatprep.mubr.bf16.mxu0 0
        %5973 = vmatmul.mubr.bf16.gmra.mrb[0].mxu0 %v4986
        %v5974 = vpop.f32.mrb[0].mxu0
        %v5975 = vadd.f32 0.0, %v5974
        %v5976 = vpop.f32.mrb[0].mxu0
        %v5977 = vpop.f32.mrb[0].mxu0
        %v5978 = vadd.f32 0.0, %v5977
        %v5979 = vpop.f32.mrb[0].mxu0
        %5980 = vmatprep.mubr.bf16.mxu0 0
        %5981 = vmatmul.mubr.bf16.gmra.mrb[0].mxu0 %v4987
        %v5982 = vpop.f32.mrb[0].mxu0
        %v5983 = vadd.f32 0.0, %v5982
        %v5984 = vpop.f32.mrb[0].mxu0
        %v5985 = vpop.f32.mrb[0].mxu0
        %v5986 = vadd.f32 0.0, %v5985
        %v5987 = vpop.f32.mrb[0].mxu0
        %5988 = vmatprep.mubr.bf16.mxu0 0
        %5989 = vmatmul.mubr.bf16.gmra.mrb[0].mxu0 %v4988
        %v5990 = vpop.f32.mrb[0].mxu0
        %v5991 = vadd.f32 0.0, %v5990
        %v5992 = vpop.f32.mrb[0].mxu0
        %v5993 = vpop.f32.mrb[0].mxu0
        %v5994 = vadd.f32 0.0, %v5993
        %v5995 = vpop.f32.mrb[0].mxu0
        %5996 = vmatprep.mubr.bf16.mxu0 0
        %5997 = vmatmul.mubr.bf16.gmra.mrb[0].mxu0 %v4989
        %v5998 = vpop.f32.mrb[0].mxu0
        %v5999 = vadd.f32 0.0, %v5998
        %v6000 = vpop.f32.mrb[0].mxu0
        %v6001 = vpop.f32.mrb[0].mxu0
        %v6002 = vadd.f32 0.0, %v6001
        %v6003 = vpop.f32.mrb[0].mxu0
        %6004 = vmatprep.mubr.bf16.mxu0 0
        %6005 = vmatmul.mubr.bf16.gmra.mrb[0].mxu0 %v4990
        %v6006 = vpop.f32.mrb[0].mxu0
        %v6007 = vadd.f32 0.0, %v6006
        %v6008 = vpop.f32.mrb[0].mxu0
        %v6009 = vpop.f32.mrb[0].mxu0
        %v6010 = vadd.f32 0.0, %v6009
        %v6011 = vpop.f32.mrb[0].mxu0
        %6012 = vdwg.mxu0
        %v6013 = vrot.slane %v5823, 1
        %v6014 = vrot.slane %v5826, 1
        %v6015 = vrot.slane %v5831, 1
        %v6016 = vrot.slane %v5834, 1
        %v6017 = vrot.slane %v5839, 1
        %v6018 = vrot.slane %v5842, 1
        %v6019 = vrot.slane %v5847, 1
        %v6020 = vrot.slane %v5850, 1
        %v6021 = vrot.slane %v5855, 1
        %v6022 = vrot.slane %v5858, 1
        %v6023 = vrot.slane %v5863, 1
        %v6024 = vrot.slane %v5866, 1
        %v6025 = vrot.slane %v5871, 1
        %v6026 = vrot.slane %v5874, 1
        %v6027 = vrot.slane %v5879, 1
        %v6028 = vrot.slane %v5882, 1
        %v6029 = vrot.slane %v5887, 1
        %v6030 = vrot.slane %v5890, 1
        %v6031 = vrot.slane %v5895, 1
        %v6032 = vrot.slane %v5898, 1
        %v6033 = vrot.slane %v5903, 1
        %v6034 = vrot.slane %v5906, 1
        %v6035 = vrot.slane %v5911, 1
        %v6036 = vrot.slane %v5914, 1
        %v6037 = vrot.slane %v5919, 1
        %v6038 = vrot.slane %v5922, 1
        %v6039 = vrot.slane %v5927, 1
        %v6040 = vrot.slane %v5930, 1
        %v6041 = vrot.slane %v5935, 1
        %v6042 = vrot.slane %v5938, 1
        %v6043 = vrot.slane %v5943, 1
        %v6044 = vrot.slane %v5946, 1
        %v6045 = vrot.slane %v5951, 1
        %v6046 = vrot.slane %v5954, 1
        %v6047 = vrot.slane %v5959, 1
        %v6048 = vrot.slane %v5962, 1
        %v6049 = vrot.slane %v5967, 1
        %v6050 = vrot.slane %v5970, 1
        %v6051 = vrot.slane %v5975, 1
        %v6052 = vrot.slane %v5978, 1
        %v6053 = vrot.slane %v5983, 1
        %v6054 = vrot.slane %v5986, 1
        %v6055 = vrot.slane %v5991, 1
        %v6056 = vrot.slane %v5994, 1
        %v6057 = vrot.slane %v5999, 1
        %v6058 = vrot.slane %v6002, 1
        %v6059 = vrot.slane %v6007, 1
        %v6060 = vrot.slane %v6010, 1
        %v6061 = vsel %vm821, %v6059, %v6060
        %v6062 = vsel %vm821, %v6058, %v6059
        %v6063 = vsel %vm821, %v6057, %v6058
        %v6064 = vsel %vm821, %v6056, %v6057
        %v6065 = vsel %vm821, %v6055, %v6056
        %v6066 = vsel %vm821, %v6054, %v6055
        %v6067 = vsel %vm821, %v6053, %v6054
        %v6068 = vsel %vm821, %v6052, %v6053
        %v6069 = vsel %vm821, %v6051, %v6052
        %v6070 = vsel %vm821, %v6050, %v6051
        %v6071 = vsel %vm821, %v6049, %v6050
        %v6072 = vsel %vm821, %v6048, %v6049
        %v6073 = vsel %vm821, %v6047, %v6048
        %v6074 = vsel %vm821, %v6046, %v6047
        %v6075 = vsel %vm821, %v6045, %v6046
        %v6076 = vsel %vm821, %v6044, %v6045
        %v6077 = vsel %vm821, %v6043, %v6044
        %v6078 = vsel %vm821, %v6042, %v6043
        %v6079 = vsel %vm821, %v6041, %v6042
        %v6080 = vsel %vm821, %v6040, %v6041
        %v6081 = vsel %vm821, %v6039, %v6040
        %v6082 = vsel %vm821, %v6038, %v6039
        %v6083 = vsel %vm821, %v6037, %v6038
        %v6084 = vsel %vm821, %v6036, %v6037
        %v6085 = vsel %vm821, %v6035, %v6036
        %v6086 = vsel %vm821, %v6034, %v6035
        %v6087 = vsel %vm821, %v6033, %v6034
        %v6088 = vsel %vm821, %v6032, %v6033
        %v6089 = vsel %vm821, %v6031, %v6032
        %v6090 = vsel %vm821, %v6030, %v6031
        %v6091 = vsel %vm821, %v6029, %v6030
        %v6092 = vsel %vm821, %v6028, %v6029
        %v6093 = vsel %vm821, %v6027, %v6028
        %v6094 = vsel %vm821, %v6026, %v6027
        %v6095 = vsel %vm821, %v6025, %v6026
        %v6096 = vsel %vm821, %v6024, %v6025
        %v6097 = vsel %vm821, %v6023, %v6024
        %v6098 = vsel %vm821, %v6022, %v6023
        %v6099 = vsel %vm821, %v6021, %v6022
        %v6100 = vsel %vm821, %v6020, %v6021
        %v6101 = vsel %vm821, %v6019, %v6020
        %v6102 = vsel %vm821, %v6018, %v6019
        %v6103 = vsel %vm821, %v6017, %v6018
        %v6104 = vsel %vm821, %v6016, %v6017
        %v6105 = vsel %vm821, %v6015, %v6016
        %v6106 = vsel %vm821, %v6014, %v6015
        %v6107 = vsel %vm821, %v6013, %v6014
        %v6108 = vsel %vm821, %v6060, %v6013
        %v6109 = vadd.f32 %v5675, %v6107
        %v6110 = vadd.f32 %v5676, %v6106
        %v6111 = vadd.f32 %v5677, %v6105
        %v6112 = vadd.f32 %v5678, %v6104
        %v6113 = vadd.f32 %v5679, %v6103
        %v6114 = vadd.f32 %v5680, %v6102
        %v6115 = vadd.f32 %v5681, %v6101
        %v6116 = vadd.f32 %v5682, %v6100
        %v6117 = vadd.f32 %v5683, %v6099
        %v6118 = vadd.f32 %v5684, %v6098
        %v6119 = vadd.f32 %v5685, %v6097
        %v6120 = vadd.f32 %v5686, %v6096
        %v6121 = vadd.f32 %v5687, %v6095
        %v6122 = vadd.f32 %v5688, %v6094
        %v6123 = vadd.f32 %v5689, %v6093
        %v6124 = vadd.f32 %v5690, %v6092
        %v6125 = vadd.f32 %v5691, %v6091
        %v6126 = vadd.f32 %v5692, %v6090
        %v6127 = vadd.f32 %v5693, %v6089
        %v6128 = vadd.f32 %v5694, %v6088
        %v6129 = vadd.f32 %v5695, %v6087
        %v6130 = vadd.f32 %v5696, %v6086
        %v6131 = vadd.f32 %v5697, %v6085
        %v6132 = vadd.f32 %v5698, %v6084
        %v6133 = vadd.f32 %v5699, %v6083
        %v6134 = vadd.f32 %v5700, %v6082
        %v6135 = vadd.f32 %v5701, %v6081
        %v6136 = vadd.f32 %v5702, %v6080
        %v6137 = vadd.f32 %v5703, %v6079
        %v6138 = vadd.f32 %v5704, %v6078
        %v6139 = vadd.f32 %v5705, %v6077
        %v6140 = vadd.f32 %v5706, %v6076
        %v6141 = vadd.f32 %v5707, %v6075
        %v6142 = vadd.f32 %v5708, %v6074
        %v6143 = vadd.f32 %v5709, %v6073
        %v6144 = vadd.f32 %v5710, %v6072
        %v6145 = vadd.f32 %v5711, %v6071
        %v6146 = vadd.f32 %v5712, %v6070
        %v6147 = vadd.f32 %v5713, %v6069
        %v6148 = vadd.f32 %v5714, %v6068
        %v6149 = vadd.f32 %v5715, %v6067
        %v6150 = vadd.f32 %v5716, %v6066
        %v6151 = vadd.f32 %v5717, %v6065
        %v6152 = vadd.f32 %v5718, %v6064
        %v6153 = vadd.f32 %v5719, %v6063
        %v6154 = vadd.f32 %v5720, %v6062
        %v6155 = vadd.f32 %v5721, %v6061
        %v6156 = vadd.f32 %v5722, %v6108
        %6157 = vst [vmem:[#allocation4] sm:$0xff] %v6109
        %6158 = vst [vmem:[#allocation4 + $0x8] sm:$0xff] %v6110
        %6159 = vst [vmem:[#allocation4 + $0x10] sm:$0xff] %v6111
        %6160 = vst [vmem:[#allocation4 + $0x18] sm:$0xff] %v6112
        %6161 = vst [vmem:[#allocation4 + $0x20] sm:$0xff] %v6113
        %6162 = vst [vmem:[#allocation4 + $0x28] sm:$0xff] %v6114
        %6163 = vst [vmem:[#allocation4 + $0x30] sm:$0xff] %v6115
        %6164 = vst [vmem:[#allocation4 + $0x38] sm:$0xff] %v6116
        %6165 = vst [vmem:[#allocation4 + $0x40] sm:$0xff] %v6117
        %6166 = vst [vmem:[#allocation4 + $0x48] sm:$0xff] %v6118
        %6167 = vst [vmem:[#allocation4 + $0x50] sm:$0xff] %v6119
        %6168 = vst [vmem:[#allocation4 + $0x58] sm:$0xff] %v6120
        %6169 = vst [vmem:[#allocation4 + $0x60] sm:$0xff] %v6121
        %6170 = vst [vmem:[#allocation4 + $0x68] sm:$0xff] %v6122
        %6171 = vst [vmem:[#allocation4 + $0x70] sm:$0xff] %v6123
        %6172 = vst [vmem:[#allocation4 + $0x78] sm:$0xff] %v6124
        %6173 = vst [vmem:[#allocation4 + $0x80] sm:$0xff] %v6125
        %6174 = vst [vmem:[#allocation4 + $0x88] sm:$0xff] %v6126
        %6175 = vst [vmem:[#allocation4 + $0x90] sm:$0xff] %v6127
        %6176 = vst [vmem:[#allocation4 + $0x98] sm:$0xff] %v6128
        %6177 = vst [vmem:[#allocation4 + $0xa0] sm:$0xff] %v6129
        %6178 = vst [vmem:[#allocation4 + $0xa8] sm:$0xff] %v6130
        %6179 = vst [vmem:[#allocation4 + $0xb0] sm:$0xff] %v6131
        %6180 = vst [vmem:[#allocation4 + $0xb8] sm:$0xff] %v6132
        %6181 = vst [vmem:[#allocation4 + $0xc0] sm:$0xff] %v6133
        %6182 = vst [vmem:[#allocation4 + $0xc8] sm:$0xff] %v6134
        %6183 = vst [vmem:[#allocation4 + $0xd0] sm:$0xff] %v6135
        %6184 = vst [vmem:[#allocation4 + $0xd8] sm:$0xff] %v6136
        %6185 = vst [vmem:[#allocation4 + $0xe0] sm:$0xff] %v6137
        %6186 = vst [vmem:[#allocation4 + $0xe8] sm:$0xff] %v6138
        %6187 = vst [vmem:[#allocation4 + $0xf0] sm:$0xff] %v6139
        %6188 = vst [vmem:[#allocation4 + $0xf8] sm:$0xff] %v6140
        %6189 = vst [vmem:[#allocation4 + $0x100] sm:$0xff] %v6141
        %6190 = vst [vmem:[#allocation4 + $0x108] sm:$0xff] %v6142
        %6191 = vst [vmem:[#allocation4 + $0x110] sm:$0xff] %v6143
        %6192 = vst [vmem:[#allocation4 + $0x118] sm:$0xff] %v6144
        %6193 = vst [vmem:[#allocation4 + $0x120] sm:$0xff] %v6145
        %6194 = vst [vmem:[#allocation4 + $0x128] sm:$0xff] %v6146
        %6195 = vst [vmem:[#allocation4 + $0x130] sm:$0xff] %v6147
        %6196 = vst [vmem:[#allocation4 + $0x138] sm:$0xff] %v6148
        %6197 = vst [vmem:[#allocation4 + $0x140] sm:$0xff] %v6149
        %6198 = vst [vmem:[#allocation4 + $0x148] sm:$0xff] %v6150
        %6199 = vst [vmem:[#allocation4 + $0x150] sm:$0xff] %v6151
        %6200 = vst [vmem:[#allocation4 + $0x158] sm:$0xff] %v6152
        %6201 = vst [vmem:[#allocation4 + $0x160] sm:$0xff] %v6153
        %6202 = vst [vmem:[#allocation4 + $0x168] sm:$0xff] %v6154
        %6203 = vst [vmem:[#allocation4 + $0x170] sm:$0xff] %v6155
        %6204 = vst [vmem:[#allocation4 + $0x178] sm:$0xff] %v6156
        %v6205 = vld [vmem:[%s4630] sm:$0xf]
        %v6206 = vld [vmem:[%s4630 + $0x4] sm:$0xf]
        %v6207 = vld [vmem:[%s4630 + $0x8] sm:$0xf]
        %v6208 = vld [vmem:[%s4630 + $0xc] sm:$0xf]
        %v6209 = vld [vmem:[%s4630 + $0x10] sm:$0xf]
        %v6210 = vld [vmem:[%s4630 + $0x14] sm:$0xf]
        %v6211 = vld [vmem:[%s4630 + $0x18] sm:$0xf]
        %v6212 = vld [vmem:[%s4630 + $0x1c] sm:$0xf]
        %v6213 = vld [vmem:[%s4630 + $0x20] sm:$0xf]
        %v6214 = vld [vmem:[%s4630 + $0x24] sm:$0xf]
        %v6215 = vld [vmem:[%s4630 + $0x28] sm:$0xf]
        %v6216 = vld [vmem:[%s4630 + $0x2c] sm:$0xf]
        %v6217 = vld [vmem:[%s4630 + $0x30] sm:$0xf]
        %v6218 = vld [vmem:[%s4630 + $0x34] sm:$0xf]
        %v6219 = vld [vmem:[%s4630 + $0x38] sm:$0xf]
        %v6220 = vld [vmem:[%s4630 + $0x3c] sm:$0xf]
        %v6221 = vld [vmem:[%s4630 + $0x40] sm:$0xf]
        %v6222 = vld [vmem:[%s4630 + $0x44] sm:$0xf]
        %v6223 = vld [vmem:[%s4630 + $0x48] sm:$0xf]
        %v6224 = vld [vmem:[%s4630 + $0x4c] sm:$0xf]
        %v6225 = vld [vmem:[%s4630 + $0x50] sm:$0xf]
        %v6226 = vld [vmem:[%s4630 + $0x54] sm:$0xf]
        %v6227 = vld [vmem:[%s4630 + $0x58] sm:$0xf]
        %v6228 = vld [vmem:[%s4630 + $0x5c] sm:$0xf]
        %v6229 = vld [vmem:[%s4630 + $0x60] sm:$0xf]
        %v6230 = vld [vmem:[%s4630 + $0x64] sm:$0xf]
        %v6231 = vld [vmem:[%s4630 + $0x68] sm:$0xf]
        %v6232 = vld [vmem:[%s4630 + $0x6c] sm:$0xf]
        %v6233 = vld [vmem:[%s4630 + $0x70] sm:$0xf]
        %v6234 = vld [vmem:[%s4630 + $0x74] sm:$0xf]
        %v6235 = vld [vmem:[%s4630 + $0x78] sm:$0xf]
        %v6236 = vld [vmem:[%s4630 + $0x7c] sm:$0xf]
        %v6237 = vld [vmem:[%s4630 + $0x80] sm:$0xf]
        %v6238 = vld [vmem:[%s4630 + $0x84] sm:$0xf]
        %v6239 = vld [vmem:[%s4630 + $0x88] sm:$0xf]
        %v6240 = vld [vmem:[%s4630 + $0x8c] sm:$0xf]
        %v6241 = vld [vmem:[%s4630 + $0x90] sm:$0xf]
        %v6242 = vld [vmem:[%s4630 + $0x94] sm:$0xf]
        %v6243 = vld [vmem:[%s4630 + $0x98] sm:$0xf]
        %v6244 = vld [vmem:[%s4630 + $0x9c] sm:$0xf]
        %v6245 = vld [vmem:[%s4630 + $0xa0] sm:$0xf]
        %v6246 = vld [vmem:[%s4630 + $0xa4] sm:$0xf]
        %v6247 = vld [vmem:[%s4630 + $0xa8] sm:$0xf]
        %v6248 = vld [vmem:[%s4630 + $0xac] sm:$0xf]
        %v6249 = vld [vmem:[%s4630 + $0xb0] sm:$0xf]
        %v6250 = vld [vmem:[%s4630 + $0xb4] sm:$0xf]
        %v6251 = vld [vmem:[%s4630 + $0xb8] sm:$0xf]
        %v6252 = vld [vmem:[%s4630 + $0xbc] sm:$0xf]
        %s6253 = scalar_lea.vmem [#allocation10], 192
        %v6254 = vld [vmem:[%s6253] sm:$0xf]
        %v6255 = vld [vmem:[%s6253 + $0x4] sm:$0xf]
        %v6256 = vld [vmem:[%s6253 + $0x8] sm:$0xf]
        %v6257 = vld [vmem:[%s6253 + $0xc] sm:$0xf]
        %v6258 = vld [vmem:[%s6253 + $0x10] sm:$0xf]
        %v6259 = vld [vmem:[%s6253 + $0x14] sm:$0xf]
        %v6260 = vld [vmem:[%s6253 + $0x18] sm:$0xf]
        %v6261 = vld [vmem:[%s6253 + $0x1c] sm:$0xf]
        %v6262 = vld [vmem:[%s6253 + $0x20] sm:$0xf]
        %v6263 = vld [vmem:[%s6253 + $0x24] sm:$0xf]
        %v6264 = vld [vmem:[%s6253 + $0x28] sm:$0xf]
        %v6265 = vld [vmem:[%s6253 + $0x2c] sm:$0xf]
        %v6266 = vld [vmem:[%s6253 + $0x30] sm:$0xf]
        %v6267 = vld [vmem:[%s6253 + $0x34] sm:$0xf]
        %v6268 = vld [vmem:[%s6253 + $0x38] sm:$0xf]
        %v6269 = vld [vmem:[%s6253 + $0x3c] sm:$0xf]
        %v6318 = vunpack.c.l.b16 %v6205
        %v6319 = vunpack.c.l.b16 %v6206
        %v6320 = vunpack.c.l.b16 %v6207
        %v6321 = vunpack.c.l.b16 %v6208
        %v6322 = vunpack.c.l.b16 %v6209
        %v6323 = vunpack.c.l.b16 %v6210
        %v6324 = vunpack.c.l.b16 %v6211
        %v6325 = vunpack.c.l.b16 %v6212
        %v6326 = vunpack.c.l.b16 %v6213
        %v6327 = vunpack.c.l.b16 %v6214
        %v6328 = vunpack.c.l.b16 %v6215
        %v6329 = vunpack.c.l.b16 %v6216
        %v6330 = vunpack.c.l.b16 %v6217
        %v6331 = vunpack.c.l.b16 %v6218
        %v6332 = vunpack.c.l.b16 %v6219
        %v6333 = vunpack.c.l.b16 %v6220
        %v6334 = vunpack.c.l.b16 %v6221
        %v6335 = vunpack.c.l.b16 %v6222
        %v6336 = vunpack.c.l.b16 %v6223
        %v6337 = vunpack.c.l.b16 %v6224
        %v6338 = vunpack.c.l.b16 %v6225
        %v6339 = vunpack.c.l.b16 %v6226
        %v6340 = vunpack.c.l.b16 %v6227
        %v6341 = vunpack.c.l.b16 %v6228
        %v6342 = vunpack.c.l.b16 %v6229
        %v6343 = vunpack.c.l.b16 %v6230
        %v6344 = vunpack.c.l.b16 %v6231
        %v6345 = vunpack.c.l.b16 %v6232
        %v6346 = vunpack.c.l.b16 %v6233
        %v6347 = vunpack.c.l.b16 %v6234
        %v6348 = vunpack.c.l.b16 %v6235
        %v6349 = vunpack.c.l.b16 %v6236
        %v6350 = vunpack.c.l.b16 %v6237
        %v6351 = vunpack.c.l.b16 %v6238
        %v6352 = vunpack.c.l.b16 %v6239
        %v6353 = vunpack.c.l.b16 %v6240
        %v6354 = vunpack.c.l.b16 %v6241
        %v6355 = vunpack.c.l.b16 %v6242
        %v6356 = vunpack.c.l.b16 %v6243
        %v6357 = vunpack.c.l.b16 %v6244
        %v6358 = vunpack.c.l.b16 %v6245
        %v6359 = vunpack.c.l.b16 %v6246
        %v6360 = vunpack.c.l.b16 %v6247
        %v6361 = vunpack.c.l.b16 %v6248
        %v6362 = vunpack.c.l.b16 %v6249
        %v6363 = vunpack.c.l.b16 %v6250
        %v6364 = vunpack.c.l.b16 %v6251
        %v6365 = vunpack.c.l.b16 %v6252
        %v6366 = vpack.c.b16 %v6319, %v6318
        %v6367 = vpack.c.b16 %v6321, %v6320
        %v6368 = vpack.c.b16 %v6323, %v6322
        %v6369 = vpack.c.b16 %v6325, %v6324
        %v6370 = vpack.c.b16 %v6327, %v6326
        %v6371 = vpack.c.b16 %v6329, %v6328
        %v6372 = vpack.c.b16 %v6331, %v6330
        %v6373 = vpack.c.b16 %v6333, %v6332
        %v6374 = vpack.c.b16 %v6335, %v6334
        %v6375 = vpack.c.b16 %v6337, %v6336
        %v6376 = vpack.c.b16 %v6339, %v6338
        %v6377 = vpack.c.b16 %v6341, %v6340
        %v6378 = vpack.c.b16 %v6343, %v6342
        %v6379 = vpack.c.b16 %v6345, %v6344
        %v6380 = vpack.c.b16 %v6347, %v6346
        %v6381 = vpack.c.b16 %v6349, %v6348
        %v6382 = vpack.c.b16 %v6351, %v6350
        %v6383 = vpack.c.b16 %v6353, %v6352
        %v6384 = vpack.c.b16 %v6355, %v6354
        %v6385 = vpack.c.b16 %v6357, %v6356
        %v6386 = vpack.c.b16 %v6359, %v6358
        %v6387 = vpack.c.b16 %v6361, %v6360
        %v6388 = vpack.c.b16 %v6363, %v6362
        %v6389 = vpack.c.b16 %v6365, %v6364
        %v6430 = vunpack.c.l.b16 %v6254
        %v6431 = vunpack.c.l.b16 %v6255
        %v6432 = vunpack.c.l.b16 %v6256
        %v6433 = vunpack.c.l.b16 %v6257
        %v6434 = vunpack.c.l.b16 %v6258
        %v6435 = vunpack.c.l.b16 %v6259
        %v6436 = vunpack.c.l.b16 %v6260
        %v6437 = vunpack.c.l.b16 %v6261
        %v6438 = vunpack.c.l.b16 %v6262
        %v6439 = vunpack.c.l.b16 %v6263
        %v6440 = vunpack.c.l.b16 %v6264
        %v6441 = vunpack.c.l.b16 %v6265
        %v6442 = vunpack.c.l.b16 %v6266
        %v6443 = vunpack.c.l.b16 %v6267
        %v6444 = vunpack.c.l.b16 %v6268
        %v6445 = vunpack.c.l.b16 %v6269
        %v6446 = vpack.c.b16 %v6431, %v6430
        %v6447 = vpack.c.b16 %v6433, %v6432
        %v6448 = vpack.c.b16 %v6435, %v6434
        %v6449 = vpack.c.b16 %v6437, %v6436
        %v6450 = vpack.c.b16 %v6439, %v6438
        %v6451 = vpack.c.b16 %v6441, %v6440
        %v6452 = vpack.c.b16 %v6443, %v6442
        %v6453 = vpack.c.b16 %v6445, %v6444
        %6462 = vmatprep.subr.bf16.mxu0 0
        %6463 = vmatpush1.bf16.msra.mxu0 %v6446
        %6464 = vmatprep.subr.bf16.mxu0 0
        %6465 = vmatpush1.bf16.msra.mxu0 %v6447
        %6466 = vmatprep.subr.bf16.mxu0 0
        %6467 = vmatpush1.bf16.msra.mxu0 %v6448
        %6468 = vmatprep.subr.bf16.mxu0 0
        %6469 = vmatpush1.bf16.msra.mxu0 %v6449
        %6470 = vmatprep.subr.bf16.mxu0 0
        %6471 = vmatpush1.bf16.msra.mxu0 %v6450
        %6472 = vmatprep.subr.bf16.mxu0 0
        %6473 = vmatpush1.bf16.msra.mxu0 %v6451
        %6474 = vmatprep.subr.bf16.mxu0 0
        %6475 = vmatpush1.bf16.msra.mxu0 %v6452
        %6476 = vmatprep.subr.bf16.mxu0 0
        %6477 = vmatpush1.bf16.msra.mxu0 %v6453
        %6478 = vmatprep.subr.bf16.mxu0 0
        %6479 = vmatpush1.bf16.msra.mxu0 0
        %6480 = vmatprep.subr.bf16.mxu0 0
        %6481 = vmatpush1.bf16.msra.mxu0 0
        %6482 = vmatprep.subr.bf16.mxu0 0
        %6483 = vmatpush1.bf16.msra.mxu0 0
        %6484 = vmatprep.subr.bf16.mxu0 0
        %6485 = vmatpush1.bf16.msra.mxu0 0
        %6486 = vmatprep.subr.bf16.mxu0 0
        %6487 = vmatpush1.bf16.msra.mxu0 0
        %6488 = vmatprep.subr.bf16.mxu0 0
        %6489 = vmatpush1.bf16.msra.mxu0 0
        %6490 = vmatprep.subr.bf16.mxu0 0
        %6491 = vmatpush1.bf16.msra.mxu0 0
        %6492 = vmatprep.subr.bf16.mxu0 0
        %6493 = vmatpush1.bf16.msra.mxu0 0
        %6494 = vmatprep.mubr.bf16.mxu0 0
        %6495 = vmatmul.mubr.bf16.gmra.mrb[0].mxu0 %v6366
        %v6496 = vpop.f32.mrb[0].mxu0
        %v6497 = vadd.f32 0.0, %v6496
        %v6498 = vpop.f32.mrb[0].mxu0
        %v6499 = vpop.f32.mrb[0].mxu0
        %v6500 = vadd.f32 0.0, %v6499
        %v6501 = vpop.f32.mrb[0].mxu0
        %6502 = vmatprep.mubr.bf16.mxu0 0
        %6503 = vmatmul.mubr.bf16.gmra.mrb[0].mxu0 %v6367
        %v6504 = vpop.f32.mrb[0].mxu0
        %v6505 = vadd.f32 0.0, %v6504
        %v6506 = vpop.f32.mrb[0].mxu0
        %v6507 = vpop.f32.mrb[0].mxu0
        %v6508 = vadd.f32 0.0, %v6507
        %v6509 = vpop.f32.mrb[0].mxu0
        %6510 = vmatprep.mubr.bf16.mxu0 0
        %6511 = vmatmul.mubr.bf16.gmra.mrb[0].mxu0 %v6368
        %v6512 = vpop.f32.mrb[0].mxu0
        %v6513 = vadd.f32 0.0, %v6512
        %v6514 = vpop.f32.mrb[0].mxu0
        %v6515 = vpop.f32.mrb[0].mxu0
        %v6516 = vadd.f32 0.0, %v6515
        %v6517 = vpop.f32.mrb[0].mxu0
        %6518 = vmatprep.mubr.bf16.mxu0 0
        %6519 = vmatmul.mubr.bf16.gmra.mrb[0].mxu0 %v6369
        %v6520 = vpop.f32.mrb[0].mxu0
        %v6521 = vadd.f32 0.0, %v6520
        %v6522 = vpop.f32.mrb[0].mxu0
        %v6523 = vpop.f32.mrb[0].mxu0
        %v6524 = vadd.f32 0.0, %v6523
        %v6525 = vpop.f32.mrb[0].mxu0
        %6526 = vmatprep.mubr.bf16.mxu0 0
        %6527 = vmatmul.mubr.bf16.gmra.mrb[0].mxu0 %v6370
        %v6528 = vpop.f32.mrb[0].mxu0
        %v6529 = vadd.f32 0.0, %v6528
        %v6530 = vpop.f32.mrb[0].mxu0
        %v6531 = vpop.f32.mrb[0].mxu0
        %v6532 = vadd.f32 0.0, %v6531
        %v6533 = vpop.f32.mrb[0].mxu0
        %6534 = vmatprep.mubr.bf16.mxu0 0
        %6535 = vmatmul.mubr.bf16.gmra.mrb[0].mxu0 %v6371
        %v6536 = vpop.f32.mrb[0].mxu0
        %v6537 = vadd.f32 0.0, %v6536
        %v6538 = vpop.f32.mrb[0].mxu0
        %v6539 = vpop.f32.mrb[0].mxu0
        %v6540 = vadd.f32 0.0, %v6539
        %v6541 = vpop.f32.mrb[0].mxu0
        %6542 = vmatprep.mubr.bf16.mxu0 0
        %6543 = vmatmul.mubr.bf16.gmra.mrb[0].mxu0 %v6372
        %v6544 = vpop.f32.mrb[0].mxu0
        %v6545 = vadd.f32 0.0, %v6544
        %v6546 = vpop.f32.mrb[0].mxu0
        %v6547 = vpop.f32.mrb[0].mxu0
        %v6548 = vadd.f32 0.0, %v6547
        %v6549 = vpop.f32.mrb[0].mxu0
        %6550 = vmatprep.mubr.bf16.mxu0 0
        %6551 = vmatmul.mubr.bf16.gmra.mrb[0].mxu0 %v6373
        %v6552 = vpop.f32.mrb[0].mxu0
        %v6553 = vadd.f32 0.0, %v6552
        %v6554 = vpop.f32.mrb[0].mxu0
        %v6555 = vpop.f32.mrb[0].mxu0
        %v6556 = vadd.f32 0.0, %v6555
        %v6557 = vpop.f32.mrb[0].mxu0
        %6558 = vmatprep.mubr.bf16.mxu0 0
        %6559 = vmatmul.mubr.bf16.gmra.mrb[0].mxu0 %v6374
        %v6560 = vpop.f32.mrb[0].mxu0
        %v6561 = vadd.f32 0.0, %v6560
        %v6562 = vpop.f32.mrb[0].mxu0
        %v6563 = vpop.f32.mrb[0].mxu0
        %v6564 = vadd.f32 0.0, %v6563
        %v6565 = vpop.f32.mrb[0].mxu0
        %6566 = vmatprep.mubr.bf16.mxu0 0
        %6567 = vmatmul.mubr.bf16.gmra.mrb[0].mxu0 %v6375
        %v6568 = vpop.f32.mrb[0].mxu0
        %v6569 = vadd.f32 0.0, %v6568
        %v6570 = vpop.f32.mrb[0].mxu0
        %v6571 = vpop.f32.mrb[0].mxu0
        %v6572 = vadd.f32 0.0, %v6571
        %v6573 = vpop.f32.mrb[0].mxu0
        %6574 = vmatprep.mubr.bf16.mxu0 0
        %6575 = vmatmul.mubr.bf16.gmra.mrb[0].mxu0 %v6376
        %v6576 = vpop.f32.mrb[0].mxu0
        %v6577 = vadd.f32 0.0, %v6576
        %v6578 = vpop.f32.mrb[0].mxu0
        %v6579 = vpop.f32.mrb[0].mxu0
        %v6580 = vadd.f32 0.0, %v6579
        %v6581 = vpop.f32.mrb[0].mxu0
        %6582 = vmatprep.mubr.bf16.mxu0 0
        %6583 = vmatmul.mubr.bf16.gmra.mrb[0].mxu0 %v6377
        %v6584 = vpop.f32.mrb[0].mxu0
        %v6585 = vadd.f32 0.0, %v6584
        %v6586 = vpop.f32.mrb[0].mxu0
        %v6587 = vpop.f32.mrb[0].mxu0
        %v6588 = vadd.f32 0.0, %v6587
        %v6589 = vpop.f32.mrb[0].mxu0
        %6590 = vmatprep.mubr.bf16.mxu0 0
        %6591 = vmatmul.mubr.bf16.gmra.mrb[0].mxu0 %v6378
        %v6592 = vpop.f32.mrb[0].mxu0
        %v6593 = vadd.f32 0.0, %v6592
        %v6594 = vpop.f32.mrb[0].mxu0
        %v6595 = vpop.f32.mrb[0].mxu0
        %v6596 = vadd.f32 0.0, %v6595
        %v6597 = vpop.f32.mrb[0].mxu0
        %6598 = vmatprep.mubr.bf16.mxu0 0
        %6599 = vmatmul.mubr.bf16.gmra.mrb[0].mxu0 %v6379
        %v6600 = vpop.f32.mrb[0].mxu0
        %v6601 = vadd.f32 0.0, %v6600
        %v6602 = vpop.f32.mrb[0].mxu0
        %v6603 = vpop.f32.mrb[0].mxu0
        %v6604 = vadd.f32 0.0, %v6603
        %v6605 = vpop.f32.mrb[0].mxu0
        %6606 = vmatprep.mubr.bf16.mxu0 0
        %6607 = vmatmul.mubr.bf16.gmra.mrb[0].mxu0 %v6380
        %v6608 = vpop.f32.mrb[0].mxu0
        %v6609 = vadd.f32 0.0, %v6608
        %v6610 = vpop.f32.mrb[0].mxu0
        %v6611 = vpop.f32.mrb[0].mxu0
        %v6612 = vadd.f32 0.0, %v6611
        %v6613 = vpop.f32.mrb[0].mxu0
        %6614 = vmatprep.mubr.bf16.mxu0 0
        %6615 = vmatmul.mubr.bf16.gmra.mrb[0].mxu0 %v6381
        %v6616 = vpop.f32.mrb[0].mxu0
        %v6617 = vadd.f32 0.0, %v6616
        %v6618 = vpop.f32.mrb[0].mxu0
        %v6619 = vpop.f32.mrb[0].mxu0
        %v6620 = vadd.f32 0.0, %v6619
        %v6621 = vpop.f32.mrb[0].mxu0
        %6622 = vmatprep.mubr.bf16.mxu0 0
        %6623 = vmatmul.mubr.bf16.gmra.mrb[0].mxu0 %v6382
        %v6624 = vpop.f32.mrb[0].mxu0
        %v6625 = vadd.f32 0.0, %v6624
        %v6626 = vpop.f32.mrb[0].mxu0
        %v6627 = vpop.f32.mrb[0].mxu0
        %v6628 = vadd.f32 0.0, %v6627
        %v6629 = vpop.f32.mrb[0].mxu0
        %6630 = vmatprep.mubr.bf16.mxu0 0
        %6631 = vmatmul.mubr.bf16.gmra.mrb[0].mxu0 %v6383
        %v6632 = vpop.f32.mrb[0].mxu0
        %v6633 = vadd.f32 0.0, %v6632
        %v6634 = vpop.f32.mrb[0].mxu0
        %v6635 = vpop.f32.mrb[0].mxu0
        %v6636 = vadd.f32 0.0, %v6635
        %v6637 = vpop.f32.mrb[0].mxu0
        %6638 = vmatprep.mubr.bf16.mxu0 0
        %6639 = vmatmul.mubr.bf16.gmra.mrb[0].mxu0 %v6384
        %v6640 = vpop.f32.mrb[0].mxu0
        %v6641 = vadd.f32 0.0, %v6640
        %v6642 = vpop.f32.mrb[0].mxu0
        %v6643 = vpop.f32.mrb[0].mxu0
        %v6644 = vadd.f32 0.0, %v6643
        %v6645 = vpop.f32.mrb[0].mxu0
        %6646 = vmatprep.mubr.bf16.mxu0 0
        %6647 = vmatmul.mubr.bf16.gmra.mrb[0].mxu0 %v6385
        %v6648 = vpop.f32.mrb[0].mxu0
        %v6649 = vadd.f32 0.0, %v6648
        %v6650 = vpop.f32.mrb[0].mxu0
        %v6651 = vpop.f32.mrb[0].mxu0
        %v6652 = vadd.f32 0.0, %v6651
        %v6653 = vpop.f32.mrb[0].mxu0
        %6654 = vmatprep.mubr.bf16.mxu0 0
        %6655 = vmatmul.mubr.bf16.gmra.mrb[0].mxu0 %v6386
        %v6656 = vpop.f32.mrb[0].mxu0
        %v6657 = vadd.f32 0.0, %v6656
        %v6658 = vpop.f32.mrb[0].mxu0
        %v6659 = vpop.f32.mrb[0].mxu0
        %v6660 = vadd.f32 0.0, %v6659
        %v6661 = vpop.f32.mrb[0].mxu0
        %6662 = vmatprep.mubr.bf16.mxu0 0
        %6663 = vmatmul.mubr.bf16.gmra.mrb[0].mxu0 %v6387
        %v6664 = vpop.f32.mrb[0].mxu0
        %v6665 = vadd.f32 0.0, %v6664
        %v6666 = vpop.f32.mrb[0].mxu0
        %v6667 = vpop.f32.mrb[0].mxu0
        %v6668 = vadd.f32 0.0, %v6667
        %v6669 = vpop.f32.mrb[0].mxu0
        %6670 = vmatprep.mubr.bf16.mxu0 0
        %6671 = vmatmul.mubr.bf16.gmra.mrb[0].mxu0 %v6388
        %v6672 = vpop.f32.mrb[0].mxu0
        %v6673 = vadd.f32 0.0, %v6672
        %v6674 = vpop.f32.mrb[0].mxu0
        %v6675 = vpop.f32.mrb[0].mxu0
        %v6676 = vadd.f32 0.0, %v6675
        %v6677 = vpop.f32.mrb[0].mxu0
        %6678 = vmatprep.mubr.bf16.mxu0 0
        %6679 = vmatmul.mubr.bf16.gmra.mrb[0].mxu0 %v6389
        %v6680 = vpop.f32.mrb[0].mxu0
        %v6681 = vadd.f32 0.0, %v6680
        %v6682 = vpop.f32.mrb[0].mxu0
        %v6683 = vpop.f32.mrb[0].mxu0
        %v6684 = vadd.f32 0.0, %v6683
        %v6685 = vpop.f32.mrb[0].mxu0
        %6686 = vdwg.mxu0
        %v6687 = vrot.slane %v6497, 7
        %v6688 = vrot.slane %v6500, 7
        %v6689 = vrot.slane %v6505, 7
        %v6690 = vrot.slane %v6508, 7
        %v6691 = vrot.slane %v6513, 7
        %v6692 = vrot.slane %v6516, 7
        %v6693 = vrot.slane %v6521, 7
        %v6694 = vrot.slane %v6524, 7
        %v6695 = vrot.slane %v6529, 7
        %v6696 = vrot.slane %v6532, 7
        %v6697 = vrot.slane %v6537, 7
        %v6698 = vrot.slane %v6540, 7
        %v6699 = vrot.slane %v6545, 7
        %v6700 = vrot.slane %v6548, 7
        %v6701 = vrot.slane %v6553, 7
        %v6702 = vrot.slane %v6556, 7
        %v6703 = vrot.slane %v6561, 7
        %v6704 = vrot.slane %v6564, 7
        %v6705 = vrot.slane %v6569, 7
        %v6706 = vrot.slane %v6572, 7
        %v6707 = vrot.slane %v6577, 7
        %v6708 = vrot.slane %v6580, 7
        %v6709 = vrot.slane %v6585, 7
        %v6710 = vrot.slane %v6588, 7
        %v6711 = vrot.slane %v6593, 7
        %v6712 = vrot.slane %v6596, 7
        %v6713 = vrot.slane %v6601, 7
        %v6714 = vrot.slane %v6604, 7
        %v6715 = vrot.slane %v6609, 7
        %v6716 = vrot.slane %v6612, 7
        %v6717 = vrot.slane %v6617, 7
        %v6718 = vrot.slane %v6620, 7
        %v6719 = vrot.slane %v6625, 7
        %v6720 = vrot.slane %v6628, 7
        %v6721 = vrot.slane %v6633, 7
        %v6722 = vrot.slane %v6636, 7
        %v6723 = vrot.slane %v6641, 7
        %v6724 = vrot.slane %v6644, 7
        %v6725 = vrot.slane %v6649, 7
        %v6726 = vrot.slane %v6652, 7
        %v6727 = vrot.slane %v6657, 7
        %v6728 = vrot.slane %v6660, 7
        %v6729 = vrot.slane %v6665, 7
        %v6730 = vrot.slane %v6668, 7
        %v6731 = vrot.slane %v6673, 7
        %v6732 = vrot.slane %v6676, 7
        %v6733 = vrot.slane %v6681, 7
        %v6734 = vrot.slane %v6684, 7
        %v6735 = vsel %vm5336, %v6733, %v6734
        %v6736 = vsel %vm5336, %v6732, %v6733
        %v6737 = vsel %vm5336, %v6731, %v6732
        %v6738 = vsel %vm5336, %v6730, %v6731
        %v6739 = vsel %vm5336, %v6729, %v6730
        %v6740 = vsel %vm5336, %v6728, %v6729
        %v6741 = vsel %vm5336, %v6727, %v6728
        %v6742 = vsel %vm5336, %v6726, %v6727
        %v6743 = vsel %vm5336, %v6725, %v6726
        %v6744 = vsel %vm5336, %v6724, %v6725
        %v6745 = vsel %vm5336, %v6723, %v6724
        %v6746 = vsel %vm5336, %v6722, %v6723
        %v6747 = vsel %vm5336, %v6721, %v6722
        %v6748 = vsel %vm5336, %v6720, %v6721
        %v6749 = vsel %vm5336, %v6719, %v6720
        %v6750 = vsel %vm5336, %v6718, %v6719
        %v6751 = vsel %vm5336, %v6717, %v6718
        %v6752 = vsel %vm5336, %v6716, %v6717
        %v6753 = vsel %vm5336, %v6715, %v6716
        %v6754 = vsel %vm5336, %v6714, %v6715
        %v6755 = vsel %vm5336, %v6713, %v6714
        %v6756 = vsel %vm5336, %v6712, %v6713
        %v6757 = vsel %vm5336, %v6711, %v6712
        %v6758 = vsel %vm5336, %v6710, %v6711
        %v6759 = vsel %vm5336, %v6709, %v6710
        %v6760 = vsel %vm5336, %v6708, %v6709
        %v6761 = vsel %vm5336, %v6707, %v6708
        %v6762 = vsel %vm5336, %v6706, %v6707
        %v6763 = vsel %vm5336, %v6705, %v6706
        %v6764 = vsel %vm5336, %v6704, %v6705
        %v6765 = vsel %vm5336, %v6703, %v6704
        %v6766 = vsel %vm5336, %v6702, %v6703
        %v6767 = vsel %vm5336, %v6701, %v6702
        %v6768 = vsel %vm5336, %v6700, %v6701
        %v6769 = vsel %vm5336, %v6699, %v6700
        %v6770 = vsel %vm5336, %v6698, %v6699
        %v6771 = vsel %vm5336, %v6697, %v6698
        %v6772 = vsel %vm5336, %v6696, %v6697
        %v6773 = vsel %vm5336, %v6695, %v6696
        %v6774 = vsel %vm5336, %v6694, %v6695
        %v6775 = vsel %vm5336, %v6693, %v6694
        %v6776 = vsel %vm5336, %v6692, %v6693
        %v6777 = vsel %vm5336, %v6691, %v6692
        %v6778 = vsel %vm5336, %v6690, %v6691
        %v6779 = vsel %vm5336, %v6689, %v6690
        %v6780 = vsel %vm5336, %v6688, %v6689
        %v6781 = vsel %vm5336, %v6687, %v6688
        %v6782 = vsel %vm5336, %v6734, %v6687
        %s6783 = scalar_lea.vmem [#allocation10], 256
        %v6784 = vld [vmem:[%s6783] sm:$0xf]
        %v6785 = vld [vmem:[%s6783 + $0x4] sm:$0xf]
        %v6786 = vld [vmem:[%s6783 + $0x8] sm:$0xf]
        %v6787 = vld [vmem:[%s6783 + $0xc] sm:$0xf]
        %v6788 = vld [vmem:[%s6783 + $0x10] sm:$0xf]
        %v6789 = vld [vmem:[%s6783 + $0x14] sm:$0xf]
        %v6790 = vld [vmem:[%s6783 + $0x18] sm:$0xf]
        %v6791 = vld [vmem:[%s6783 + $0x1c] sm:$0xf]
        %v6792 = vld [vmem:[%s6783 + $0x20] sm:$0xf]
        %v6793 = vld [vmem:[%s6783 + $0x24] sm:$0xf]
        %v6794 = vld [vmem:[%s6783 + $0x28] sm:$0xf]
        %v6795 = vld [vmem:[%s6783 + $0x2c] sm:$0xf]
        %v6796 = vld [vmem:[%s6783 + $0x30] sm:$0xf]
        %v6797 = vld [vmem:[%s6783 + $0x34] sm:$0xf]
        %v6798 = vld [vmem:[%s6783 + $0x38] sm:$0xf]
        %v6799 = vld [vmem:[%s6783 + $0x3c] sm:$0xf]
        %v6816 = vunpack.c.l.b16 %v6784
        %v6817 = vunpack.c.l.b16 %v6785
        %v6818 = vunpack.c.l.b16 %v6786
        %v6819 = vunpack.c.l.b16 %v6787
        %v6820 = vunpack.c.l.b16 %v6788
        %v6821 = vunpack.c.l.b16 %v6789
        %v6822 = vunpack.c.l.b16 %v6790
        %v6823 = vunpack.c.l.b16 %v6791
        %v6824 = vunpack.c.l.b16 %v6792
        %v6825 = vunpack.c.l.b16 %v6793
        %v6826 = vunpack.c.l.b16 %v6794
        %v6827 = vunpack.c.l.b16 %v6795
        %v6828 = vunpack.c.l.b16 %v6796
        %v6829 = vunpack.c.l.b16 %v6797
        %v6830 = vunpack.c.l.b16 %v6798
        %v6831 = vunpack.c.l.b16 %v6799
        %v6832 = vpack.c.b16 %v6817, %v6816
        %v6833 = vpack.c.b16 %v6819, %v6818
        %v6834 = vpack.c.b16 %v6821, %v6820
        %v6835 = vpack.c.b16 %v6823, %v6822
        %v6836 = vpack.c.b16 %v6825, %v6824
        %v6837 = vpack.c.b16 %v6827, %v6826
        %v6838 = vpack.c.b16 %v6829, %v6828
        %v6839 = vpack.c.b16 %v6831, %v6830
        %6848 = vmatprep.subr.bf16.mxu0 0
        %6849 = vmatpush1.bf16.msra.mxu0 %v6832
        %6850 = vmatprep.subr.bf16.mxu0 0
        %6851 = vmatpush1.bf16.msra.mxu0 %v6833
        %6852 = vmatprep.subr.bf16.mxu0 0
        %6853 = vmatpush1.bf16.msra.mxu0 %v6834
        %6854 = vmatprep.subr.bf16.mxu0 0
        %6855 = vmatpush1.bf16.msra.mxu0 %v6835
        %6856 = vmatprep.subr.bf16.mxu0 0
        %6857 = vmatpush1.bf16.msra.mxu0 %v6836
        %6858 = vmatprep.subr.bf16.mxu0 0
        %6859 = vmatpush1.bf16.msra.mxu0 %v6837
        %6860 = vmatprep.subr.bf16.mxu0 0
        %6861 = vmatpush1.bf16.msra.mxu0 %v6838
        %6862 = vmatprep.subr.bf16.mxu0 0
        %6863 = vmatpush1.bf16.msra.mxu0 %v6839
        %6864 = vmatprep.subr.bf16.mxu0 0
        %6865 = vmatpush1.bf16.msra.mxu0 0
        %6866 = vmatprep.subr.bf16.mxu0 0
        %6867 = vmatpush1.bf16.msra.mxu0 0
        %6868 = vmatprep.subr.bf16.mxu0 0
        %6869 = vmatpush1.bf16.msra.mxu0 0
        %6870 = vmatprep.subr.bf16.mxu0 0
        %6871 = vmatpush1.bf16.msra.mxu0 0
        %6872 = vmatprep.subr.bf16.mxu0 0
        %6873 = vmatpush1.bf16.msra.mxu0 0
        %6874 = vmatprep.subr.bf16.mxu0 0
        %6875 = vmatpush1.bf16.msra.mxu0 0
        %6876 = vmatprep.subr.bf16.mxu0 0
        %6877 = vmatpush1.bf16.msra.mxu0 0
        %6878 = vmatprep.subr.bf16.mxu0 0
        %6879 = vmatpush1.bf16.msra.mxu0 0
        %6880 = vmatprep.mubr.bf16.mxu0 0
        %6881 = vmatmul.mubr.bf16.gmra.mrb[0].mxu0 %v6366
        %v6882 = vpop.f32.mrb[0].mxu0
        %v6883 = vadd.f32 0.0, %v6882
        %v6884 = vpop.f32.mrb[0].mxu0
        %v6885 = vpop.f32.mrb[0].mxu0
        %v6886 = vadd.f32 0.0, %v6885
        %v6887 = vpop.f32.mrb[0].mxu0
        %6888 = vmatprep.mubr.bf16.mxu0 0
        %6889 = vmatmul.mubr.bf16.gmra.mrb[0].mxu0 %v6367
        %v6890 = vpop.f32.mrb[0].mxu0
        %v6891 = vadd.f32 0.0, %v6890
        %v6892 = vpop.f32.mrb[0].mxu0
        %v6893 = vpop.f32.mrb[0].mxu0
        %v6894 = vadd.f32 0.0, %v6893
        %v6895 = vpop.f32.mrb[0].mxu0
        %6896 = vmatprep.mubr.bf16.mxu0 0
        %6897 = vmatmul.mubr.bf16.gmra.mrb[0].mxu0 %v6368
        %v6898 = vpop.f32.mrb[0].mxu0
        %v6899 = vadd.f32 0.0, %v6898
        %v6900 = vpop.f32.mrb[0].mxu0
        %v6901 = vpop.f32.mrb[0].mxu0
        %v6902 = vadd.f32 0.0, %v6901
        %v6903 = vpop.f32.mrb[0].mxu0
        %6904 = vmatprep.mubr.bf16.mxu0 0
        %6905 = vmatmul.mubr.bf16.gmra.mrb[0].mxu0 %v6369
        %v6906 = vpop.f32.mrb[0].mxu0
        %v6907 = vadd.f32 0.0, %v6906
        %v6908 = vpop.f32.mrb[0].mxu0
        %v6909 = vpop.f32.mrb[0].mxu0
        %v6910 = vadd.f32 0.0, %v6909
        %v6911 = vpop.f32.mrb[0].mxu0
        %6912 = vmatprep.mubr.bf16.mxu0 0
        %6913 = vmatmul.mubr.bf16.gmra.mrb[0].mxu0 %v6370
        %v6914 = vpop.f32.mrb[0].mxu0
        %v6915 = vadd.f32 0.0, %v6914
        %v6916 = vpop.f32.mrb[0].mxu0
        %v6917 = vpop.f32.mrb[0].mxu0
        %v6918 = vadd.f32 0.0, %v6917
        %v6919 = vpop.f32.mrb[0].mxu0
        %6920 = vmatprep.mubr.bf16.mxu0 0
        %6921 = vmatmul.mubr.bf16.gmra.mrb[0].mxu0 %v6371
        %v6922 = vpop.f32.mrb[0].mxu0
        %v6923 = vadd.f32 0.0, %v6922
        %v6924 = vpop.f32.mrb[0].mxu0
        %v6925 = vpop.f32.mrb[0].mxu0
        %v6926 = vadd.f32 0.0, %v6925
        %v6927 = vpop.f32.mrb[0].mxu0
        %6928 = vmatprep.mubr.bf16.mxu0 0
        %6929 = vmatmul.mubr.bf16.gmra.mrb[0].mxu0 %v6372
        %v6930 = vpop.f32.mrb[0].mxu0
        %v6931 = vadd.f32 0.0, %v6930
        %v6932 = vpop.f32.mrb[0].mxu0
        %v6933 = vpop.f32.mrb[0].mxu0
        %v6934 = vadd.f32 0.0, %v6933
        %v6935 = vpop.f32.mrb[0].mxu0
        %6936 = vmatprep.mubr.bf16.mxu0 0
        %6937 = vmatmul.mubr.bf16.gmra.mrb[0].mxu0 %v6373
        %v6938 = vpop.f32.mrb[0].mxu0
        %v6939 = vadd.f32 0.0, %v6938
        %v6940 = vpop.f32.mrb[0].mxu0
        %v6941 = vpop.f32.mrb[0].mxu0
        %v6942 = vadd.f32 0.0, %v6941
        %v6943 = vpop.f32.mrb[0].mxu0
        %6944 = vmatprep.mubr.bf16.mxu0 0
        %6945 = vmatmul.mubr.bf16.gmra.mrb[0].mxu0 %v6374
        %v6946 = vpop.f32.mrb[0].mxu0
        %v6947 = vadd.f32 0.0, %v6946
        %v6948 = vpop.f32.mrb[0].mxu0
        %v6949 = vpop.f32.mrb[0].mxu0
        %v6950 = vadd.f32 0.0, %v6949
        %v6951 = vpop.f32.mrb[0].mxu0
        %6952 = vmatprep.mubr.bf16.mxu0 0
        %6953 = vmatmul.mubr.bf16.gmra.mrb[0].mxu0 %v6375
        %v6954 = vpop.f32.mrb[0].mxu0
        %v6955 = vadd.f32 0.0, %v6954
        %v6956 = vpop.f32.mrb[0].mxu0
        %v6957 = vpop.f32.mrb[0].mxu0
        %v6958 = vadd.f32 0.0, %v6957
        %v6959 = vpop.f32.mrb[0].mxu0
        %6960 = vmatprep.mubr.bf16.mxu0 0
        %6961 = vmatmul.mubr.bf16.gmra.mrb[0].mxu0 %v6376
        %v6962 = vpop.f32.mrb[0].mxu0
        %v6963 = vadd.f32 0.0, %v6962
        %v6964 = vpop.f32.mrb[0].mxu0
        %v6965 = vpop.f32.mrb[0].mxu0
        %v6966 = vadd.f32 0.0, %v6965
        %v6967 = vpop.f32.mrb[0].mxu0
        %6968 = vmatprep.mubr.bf16.mxu0 0
        %6969 = vmatmul.mubr.bf16.gmra.mrb[0].mxu0 %v6377
        %v6970 = vpop.f32.mrb[0].mxu0
        %v6971 = vadd.f32 0.0, %v6970
        %v6972 = vpop.f32.mrb[0].mxu0
        %v6973 = vpop.f32.mrb[0].mxu0
        %v6974 = vadd.f32 0.0, %v6973
        %v6975 = vpop.f32.mrb[0].mxu0
        %6976 = vmatprep.mubr.bf16.mxu0 0
        %6977 = vmatmul.mubr.bf16.gmra.mrb[0].mxu0 %v6378
        %v6978 = vpop.f32.mrb[0].mxu0
        %v6979 = vadd.f32 0.0, %v6978
        %v6980 = vpop.f32.mrb[0].mxu0
        %v6981 = vpop.f32.mrb[0].mxu0
        %v6982 = vadd.f32 0.0, %v6981
        %v6983 = vpop.f32.mrb[0].mxu0
        %6984 = vmatprep.mubr.bf16.mxu0 0
        %6985 = vmatmul.mubr.bf16.gmra.mrb[0].mxu0 %v6379
        %v6986 = vpop.f32.mrb[0].mxu0
        %v6987 = vadd.f32 0.0, %v6986
        %v6988 = vpop.f32.mrb[0].mxu0
        %v6989 = vpop.f32.mrb[0].mxu0
        %v6990 = vadd.f32 0.0, %v6989
        %v6991 = vpop.f32.mrb[0].mxu0
        %6992 = vmatprep.mubr.bf16.mxu0 0
        %6993 = vmatmul.mubr.bf16.gmra.mrb[0].mxu0 %v6380
        %v6994 = vpop.f32.mrb[0].mxu0
        %v6995 = vadd.f32 0.0, %v6994
        %v6996 = vpop.f32.mrb[0].mxu0
        %v6997 = vpop.f32.mrb[0].mxu0
        %v6998 = vadd.f32 0.0, %v6997
        %v6999 = vpop.f32.mrb[0].mxu0
        %7000 = vmatprep.mubr.bf16.mxu0 0
        %7001 = vmatmul.mubr.bf16.gmra.mrb[0].mxu0 %v6381
        %v7002 = vpop.f32.mrb[0].mxu0
        %v7003 = vadd.f32 0.0, %v7002
        %v7004 = vpop.f32.mrb[0].mxu0
        %v7005 = vpop.f32.mrb[0].mxu0
        %v7006 = vadd.f32 0.0, %v7005
        %v7007 = vpop.f32.mrb[0].mxu0
        %7008 = vmatprep.mubr.bf16.mxu0 0
        %7009 = vmatmul.mubr.bf16.gmra.mrb[0].mxu0 %v6382
        %v7010 = vpop.f32.mrb[0].mxu0
        %v7011 = vadd.f32 0.0, %v7010
        %v7012 = vpop.f32.mrb[0].mxu0
        %v7013 = vpop.f32.mrb[0].mxu0
        %v7014 = vadd.f32 0.0, %v7013
        %v7015 = vpop.f32.mrb[0].mxu0
        %7016 = vmatprep.mubr.bf16.mxu0 0
        %7017 = vmatmul.mubr.bf16.gmra.mrb[0].mxu0 %v6383
        %v7018 = vpop.f32.mrb[0].mxu0
        %v7019 = vadd.f32 0.0, %v7018
        %v7020 = vpop.f32.mrb[0].mxu0
        %v7021 = vpop.f32.mrb[0].mxu0
        %v7022 = vadd.f32 0.0, %v7021
        %v7023 = vpop.f32.mrb[0].mxu0
        %7024 = vmatprep.mubr.bf16.mxu0 0
        %7025 = vmatmul.mubr.bf16.gmra.mrb[0].mxu0 %v6384
        %v7026 = vpop.f32.mrb[0].mxu0
        %v7027 = vadd.f32 0.0, %v7026
        %v7028 = vpop.f32.mrb[0].mxu0
        %v7029 = vpop.f32.mrb[0].mxu0
        %v7030 = vadd.f32 0.0, %v7029
        %v7031 = vpop.f32.mrb[0].mxu0
        %7032 = vmatprep.mubr.bf16.mxu0 0
        %7033 = vmatmul.mubr.bf16.gmra.mrb[0].mxu0 %v6385
        %v7034 = vpop.f32.mrb[0].mxu0
        %v7035 = vadd.f32 0.0, %v7034
        %v7036 = vpop.f32.mrb[0].mxu0
        %v7037 = vpop.f32.mrb[0].mxu0
        %v7038 = vadd.f32 0.0, %v7037
        %v7039 = vpop.f32.mrb[0].mxu0
        %7040 = vmatprep.mubr.bf16.mxu0 0
        %7041 = vmatmul.mubr.bf16.gmra.mrb[0].mxu0 %v6386
        %v7042 = vpop.f32.mrb[0].mxu0
        %v7043 = vadd.f32 0.0, %v7042
        %v7044 = vpop.f32.mrb[0].mxu0
        %v7045 = vpop.f32.mrb[0].mxu0
        %v7046 = vadd.f32 0.0, %v7045
        %v7047 = vpop.f32.mrb[0].mxu0
        %7048 = vmatprep.mubr.bf16.mxu0 0
        %7049 = vmatmul.mubr.bf16.gmra.mrb[0].mxu0 %v6387
        %v7050 = vpop.f32.mrb[0].mxu0
        %v7051 = vadd.f32 0.0, %v7050
        %v7052 = vpop.f32.mrb[0].mxu0
        %v7053 = vpop.f32.mrb[0].mxu0
        %v7054 = vadd.f32 0.0, %v7053
        %v7055 = vpop.f32.mrb[0].mxu0
        %7056 = vmatprep.mubr.bf16.mxu0 0
        %7057 = vmatmul.mubr.bf16.gmra.mrb[0].mxu0 %v6388
        %v7058 = vpop.f32.mrb[0].mxu0
        %v7059 = vadd.f32 0.0, %v7058
        %v7060 = vpop.f32.mrb[0].mxu0
        %v7061 = vpop.f32.mrb[0].mxu0
        %v7062 = vadd.f32 0.0, %v7061
        %v7063 = vpop.f32.mrb[0].mxu0
        %7064 = vmatprep.mubr.bf16.mxu0 0
        %7065 = vmatmul.mubr.bf16.gmra.mrb[0].mxu0 %v6389
        %v7066 = vpop.f32.mrb[0].mxu0
        %v7067 = vadd.f32 0.0, %v7066
        %v7068 = vpop.f32.mrb[0].mxu0
        %v7069 = vpop.f32.mrb[0].mxu0
        %v7070 = vadd.f32 0.0, %v7069
        %v7071 = vpop.f32.mrb[0].mxu0
        %7072 = vdwg.mxu0
        %v7073 = vadd.f32 %v6782, %v6883
        %v7074 = vadd.f32 %v6781, %v6886
        %v7075 = vadd.f32 %v6780, %v6891
        %v7076 = vadd.f32 %v6779, %v6894
        %v7077 = vadd.f32 %v6778, %v6899
        %v7078 = vadd.f32 %v6777, %v6902
        %v7079 = vadd.f32 %v6776, %v6907
        %v7080 = vadd.f32 %v6775, %v6910
        %v7081 = vadd.f32 %v6774, %v6915
        %v7082 = vadd.f32 %v6773, %v6918
        %v7083 = vadd.f32 %v6772, %v6923
        %v7084 = vadd.f32 %v6771, %v6926
        %v7085 = vadd.f32 %v6770, %v6931
        %v7086 = vadd.f32 %v6769, %v6934
        %v7087 = vadd.f32 %v6768, %v6939
        %v7088 = vadd.f32 %v6767, %v6942
        %v7089 = vadd.f32 %v6766, %v6947
        %v7090 = vadd.f32 %v6765, %v6950
        %v7091 = vadd.f32 %v6764, %v6955
        %v7092 = vadd.f32 %v6763, %v6958
        %v7093 = vadd.f32 %v6762, %v6963
        %v7094 = vadd.f32 %v6761, %v6966
        %v7095 = vadd.f32 %v6760, %v6971
        %v7096 = vadd.f32 %v6759, %v6974
        %v7097 = vadd.f32 %v6758, %v6979
        %v7098 = vadd.f32 %v6757, %v6982
        %v7099 = vadd.f32 %v6756, %v6987
        %v7100 = vadd.f32 %v6755, %v6990
        %v7101 = vadd.f32 %v6754, %v6995
        %v7102 = vadd.f32 %v6753, %v6998
        %v7103 = vadd.f32 %v6752, %v7003
        %v7104 = vadd.f32 %v6751, %v7006
        %v7105 = vadd.f32 %v6750, %v7011
        %v7106 = vadd.f32 %v6749, %v7014
        %v7107 = vadd.f32 %v6748, %v7019
        %v7108 = vadd.f32 %v6747, %v7022
        %v7109 = vadd.f32 %v6746, %v7027
        %v7110 = vadd.f32 %v6745, %v7030
        %v7111 = vadd.f32 %v6744, %v7035
        %v7112 = vadd.f32 %v6743, %v7038
        %v7113 = vadd.f32 %v6742, %v7043
        %v7114 = vadd.f32 %v6741, %v7046
        %v7115 = vadd.f32 %v6740, %v7051
        %v7116 = vadd.f32 %v6739, %v7054
        %v7117 = vadd.f32 %v6738, %v7059
        %v7118 = vadd.f32 %v6737, %v7062
        %v7119 = vadd.f32 %v6736, %v7067
        %v7120 = vadd.f32 %v6735, %v7070
        %s7121 = scalar_lea.vmem [#allocation10], 320
        %v7122 = vld [vmem:[%s7121] sm:$0xf]
        %v7123 = vld [vmem:[%s7121 + $0x4] sm:$0xf]
        %v7124 = vld [vmem:[%s7121 + $0x8] sm:$0xf]
        %v7125 = vld [vmem:[%s7121 + $0xc] sm:$0xf]
        %v7126 = vld [vmem:[%s7121 + $0x10] sm:$0xf]
        %v7127 = vld [vmem:[%s7121 + $0x14] sm:$0xf]
        %v7128 = vld [vmem:[%s7121 + $0x18] sm:$0xf]
        %v7129 = vld [vmem:[%s7121 + $0x1c] sm:$0xf]
        %v7130 = vld [vmem:[%s7121 + $0x20] sm:$0xf]
        %v7131 = vld [vmem:[%s7121 + $0x24] sm:$0xf]
        %v7132 = vld [vmem:[%s7121 + $0x28] sm:$0xf]
        %v7133 = vld [vmem:[%s7121 + $0x2c] sm:$0xf]
        %v7134 = vld [vmem:[%s7121 + $0x30] sm:$0xf]
        %v7135 = vld [vmem:[%s7121 + $0x34] sm:$0xf]
        %v7136 = vld [vmem:[%s7121 + $0x38] sm:$0xf]
        %v7137 = vld [vmem:[%s7121 + $0x3c] sm:$0xf]
        %v7154 = vunpack.c.l.b16 %v7122
        %v7155 = vunpack.c.l.b16 %v7123
        %v7156 = vunpack.c.l.b16 %v7124
        %v7157 = vunpack.c.l.b16 %v7125
        %v7158 = vunpack.c.l.b16 %v7126
        %v7159 = vunpack.c.l.b16 %v7127
        %v7160 = vunpack.c.l.b16 %v7128
        %v7161 = vunpack.c.l.b16 %v7129
        %v7162 = vunpack.c.l.b16 %v7130
        %v7163 = vunpack.c.l.b16 %v7131
        %v7164 = vunpack.c.l.b16 %v7132
        %v7165 = vunpack.c.l.b16 %v7133
        %v7166 = vunpack.c.l.b16 %v7134
        %v7167 = vunpack.c.l.b16 %v7135
        %v7168 = vunpack.c.l.b16 %v7136
        %v7169 = vunpack.c.l.b16 %v7137
        %v7170 = vpack.c.b16 %v7155, %v7154
        %v7171 = vpack.c.b16 %v7157, %v7156
        %v7172 = vpack.c.b16 %v7159, %v7158
        %v7173 = vpack.c.b16 %v7161, %v7160
        %v7174 = vpack.c.b16 %v7163, %v7162
        %v7175 = vpack.c.b16 %v7165, %v7164
        %v7176 = vpack.c.b16 %v7167, %v7166
        %v7177 = vpack.c.b16 %v7169, %v7168
        %7186 = vmatprep.subr.bf16.mxu0 0
        %7187 = vmatpush1.bf16.msra.mxu0 %v7170
        %7188 = vmatprep.subr.bf16.mxu0 0
        %7189 = vmatpush1.bf16.msra.mxu0 %v7171
        %7190 = vmatprep.subr.bf16.mxu0 0
        %7191 = vmatpush1.bf16.msra.mxu0 %v7172
        %7192 = vmatprep.subr.bf16.mxu0 0
        %7193 = vmatpush1.bf16.msra.mxu0 %v7173
        %7194 = vmatprep.subr.bf16.mxu0 0
        %7195 = vmatpush1.bf16.msra.mxu0 %v7174
        %7196 = vmatprep.subr.bf16.mxu0 0
        %7197 = vmatpush1.bf16.msra.mxu0 %v7175
        %7198 = vmatprep.subr.bf16.mxu0 0
        %7199 = vmatpush1.bf16.msra.mxu0 %v7176
        %7200 = vmatprep.subr.bf16.mxu0 0
        %7201 = vmatpush1.bf16.msra.mxu0 %v7177
        %7202 = vmatprep.subr.bf16.mxu0 0
        %7203 = vmatpush1.bf16.msra.mxu0 0
        %7204 = vmatprep.subr.bf16.mxu0 0
        %7205 = vmatpush1.bf16.msra.mxu0 0
        %7206 = vmatprep.subr.bf16.mxu0 0
        %7207 = vmatpush1.bf16.msra.mxu0 0
        %7208 = vmatprep.subr.bf16.mxu0 0
        %7209 = vmatpush1.bf16.msra.mxu0 0
        %7210 = vmatprep.subr.bf16.mxu0 0
        %7211 = vmatpush1.bf16.msra.mxu0 0
        %7212 = vmatprep.subr.bf16.mxu0 0
        %7213 = vmatpush1.bf16.msra.mxu0 0
        %7214 = vmatprep.subr.bf16.mxu0 0
        %7215 = vmatpush1.bf16.msra.mxu0 0
        %7216 = vmatprep.subr.bf16.mxu0 0
        %7217 = vmatpush1.bf16.msra.mxu0 0
        %7218 = vmatprep.mubr.bf16.mxu0 0
        %7219 = vmatmul.mubr.bf16.gmra.mrb[0].mxu0 %v6366
        %v7220 = vpop.f32.mrb[0].mxu0
        %v7221 = vadd.f32 0.0, %v7220
        %v7222 = vpop.f32.mrb[0].mxu0
        %v7223 = vpop.f32.mrb[0].mxu0
        %v7224 = vadd.f32 0.0, %v7223
        %v7225 = vpop.f32.mrb[0].mxu0
        %7226 = vmatprep.mubr.bf16.mxu0 0
        %7227 = vmatmul.mubr.bf16.gmra.mrb[0].mxu0 %v6367
        %v7228 = vpop.f32.mrb[0].mxu0
        %v7229 = vadd.f32 0.0, %v7228
        %v7230 = vpop.f32.mrb[0].mxu0
        %v7231 = vpop.f32.mrb[0].mxu0
        %v7232 = vadd.f32 0.0, %v7231
        %v7233 = vpop.f32.mrb[0].mxu0
        %7234 = vmatprep.mubr.bf16.mxu0 0
        %7235 = vmatmul.mubr.bf16.gmra.mrb[0].mxu0 %v6368
        %v7236 = vpop.f32.mrb[0].mxu0
        %v7237 = vadd.f32 0.0, %v7236
        %v7238 = vpop.f32.mrb[0].mxu0
        %v7239 = vpop.f32.mrb[0].mxu0
        %v7240 = vadd.f32 0.0, %v7239
        %v7241 = vpop.f32.mrb[0].mxu0
        %7242 = vmatprep.mubr.bf16.mxu0 0
        %7243 = vmatmul.mubr.bf16.gmra.mrb[0].mxu0 %v6369
        %v7244 = vpop.f32.mrb[0].mxu0
        %v7245 = vadd.f32 0.0, %v7244
        %v7246 = vpop.f32.mrb[0].mxu0
        %v7247 = vpop.f32.mrb[0].mxu0
        %v7248 = vadd.f32 0.0, %v7247
        %v7249 = vpop.f32.mrb[0].mxu0
        %7250 = vmatprep.mubr.bf16.mxu0 0
        %7251 = vmatmul.mubr.bf16.gmra.mrb[0].mxu0 %v6370
        %v7252 = vpop.f32.mrb[0].mxu0
        %v7253 = vadd.f32 0.0, %v7252
        %v7254 = vpop.f32.mrb[0].mxu0
        %v7255 = vpop.f32.mrb[0].mxu0
        %v7256 = vadd.f32 0.0, %v7255
        %v7257 = vpop.f32.mrb[0].mxu0
        %7258 = vmatprep.mubr.bf16.mxu0 0
        %7259 = vmatmul.mubr.bf16.gmra.mrb[0].mxu0 %v6371
        %v7260 = vpop.f32.mrb[0].mxu0
        %v7261 = vadd.f32 0.0, %v7260
        %v7262 = vpop.f32.mrb[0].mxu0
        %v7263 = vpop.f32.mrb[0].mxu0
        %v7264 = vadd.f32 0.0, %v7263
        %v7265 = vpop.f32.mrb[0].mxu0
        %7266 = vmatprep.mubr.bf16.mxu0 0
        %7267 = vmatmul.mubr.bf16.gmra.mrb[0].mxu0 %v6372
        %v7268 = vpop.f32.mrb[0].mxu0
        %v7269 = vadd.f32 0.0, %v7268
        %v7270 = vpop.f32.mrb[0].mxu0
        %v7271 = vpop.f32.mrb[0].mxu0
        %v7272 = vadd.f32 0.0, %v7271
        %v7273 = vpop.f32.mrb[0].mxu0
        %7274 = vmatprep.mubr.bf16.mxu0 0
        %7275 = vmatmul.mubr.bf16.gmra.mrb[0].mxu0 %v6373
        %v7276 = vpop.f32.mrb[0].mxu0
        %v7277 = vadd.f32 0.0, %v7276
        %v7278 = vpop.f32.mrb[0].mxu0
        %v7279 = vpop.f32.mrb[0].mxu0
        %v7280 = vadd.f32 0.0, %v7279
        %v7281 = vpop.f32.mrb[0].mxu0
        %7282 = vmatprep.mubr.bf16.mxu0 0
        %7283 = vmatmul.mubr.bf16.gmra.mrb[0].mxu0 %v6374
        %v7284 = vpop.f32.mrb[0].mxu0
        %v7285 = vadd.f32 0.0, %v7284
        %v7286 = vpop.f32.mrb[0].mxu0
        %v7287 = vpop.f32.mrb[0].mxu0
        %v7288 = vadd.f32 0.0, %v7287
        %v7289 = vpop.f32.mrb[0].mxu0
        %7290 = vmatprep.mubr.bf16.mxu0 0
        %7291 = vmatmul.mubr.bf16.gmra.mrb[0].mxu0 %v6375
        %v7292 = vpop.f32.mrb[0].mxu0
        %v7293 = vadd.f32 0.0, %v7292
        %v7294 = vpop.f32.mrb[0].mxu0
        %v7295 = vpop.f32.mrb[0].mxu0
        %v7296 = vadd.f32 0.0, %v7295
        %v7297 = vpop.f32.mrb[0].mxu0
        %7298 = vmatprep.mubr.bf16.mxu0 0
        %7299 = vmatmul.mubr.bf16.gmra.mrb[0].mxu0 %v6376
        %v7300 = vpop.f32.mrb[0].mxu0
        %v7301 = vadd.f32 0.0, %v7300
        %v7302 = vpop.f32.mrb[0].mxu0
        %v7303 = vpop.f32.mrb[0].mxu0
        %v7304 = vadd.f32 0.0, %v7303
        %v7305 = vpop.f32.mrb[0].mxu0
        %7306 = vmatprep.mubr.bf16.mxu0 0
        %7307 = vmatmul.mubr.bf16.gmra.mrb[0].mxu0 %v6377
        %v7308 = vpop.f32.mrb[0].mxu0
        %v7309 = vadd.f32 0.0, %v7308
        %v7310 = vpop.f32.mrb[0].mxu0
        %v7311 = vpop.f32.mrb[0].mxu0
        %v7312 = vadd.f32 0.0, %v7311
        %v7313 = vpop.f32.mrb[0].mxu0
        %7314 = vmatprep.mubr.bf16.mxu0 0
        %7315 = vmatmul.mubr.bf16.gmra.mrb[0].mxu0 %v6378
        %v7316 = vpop.f32.mrb[0].mxu0
        %v7317 = vadd.f32 0.0, %v7316
        %v7318 = vpop.f32.mrb[0].mxu0
        %v7319 = vpop.f32.mrb[0].mxu0
        %v7320 = vadd.f32 0.0, %v7319
        %v7321 = vpop.f32.mrb[0].mxu0
        %7322 = vmatprep.mubr.bf16.mxu0 0
        %7323 = vmatmul.mubr.bf16.gmra.mrb[0].mxu0 %v6379
        %v7324 = vpop.f32.mrb[0].mxu0
        %v7325 = vadd.f32 0.0, %v7324
        %v7326 = vpop.f32.mrb[0].mxu0
        %v7327 = vpop.f32.mrb[0].mxu0
        %v7328 = vadd.f32 0.0, %v7327
        %v7329 = vpop.f32.mrb[0].mxu0
        %7330 = vmatprep.mubr.bf16.mxu0 0
        %7331 = vmatmul.mubr.bf16.gmra.mrb[0].mxu0 %v6380
        %v7332 = vpop.f32.mrb[0].mxu0
        %v7333 = vadd.f32 0.0, %v7332
        %v7334 = vpop.f32.mrb[0].mxu0
        %v7335 = vpop.f32.mrb[0].mxu0
        %v7336 = vadd.f32 0.0, %v7335
        %v7337 = vpop.f32.mrb[0].mxu0
        %7338 = vmatprep.mubr.bf16.mxu0 0
        %7339 = vmatmul.mubr.bf16.gmra.mrb[0].mxu0 %v6381
        %v7340 = vpop.f32.mrb[0].mxu0
        %v7341 = vadd.f32 0.0, %v7340
        %v7342 = vpop.f32.mrb[0].mxu0
        %v7343 = vpop.f32.mrb[0].mxu0
        %v7344 = vadd.f32 0.0, %v7343
        %v7345 = vpop.f32.mrb[0].mxu0
        %7346 = vmatprep.mubr.bf16.mxu0 0
        %7347 = vmatmul.mubr.bf16.gmra.mrb[0].mxu0 %v6382
        %v7348 = vpop.f32.mrb[0].mxu0
        %v7349 = vadd.f32 0.0, %v7348
        %v7350 = vpop.f32.mrb[0].mxu0
        %v7351 = vpop.f32.mrb[0].mxu0
        %v7352 = vadd.f32 0.0, %v7351
        %v7353 = vpop.f32.mrb[0].mxu0
        %7354 = vmatprep.mubr.bf16.mxu0 0
        %7355 = vmatmul.mubr.bf16.gmra.mrb[0].mxu0 %v6383
        %v7356 = vpop.f32.mrb[0].mxu0
        %v7357 = vadd.f32 0.0, %v7356
        %v7358 = vpop.f32.mrb[0].mxu0
        %v7359 = vpop.f32.mrb[0].mxu0
        %v7360 = vadd.f32 0.0, %v7359
        %v7361 = vpop.f32.mrb[0].mxu0
        %7362 = vmatprep.mubr.bf16.mxu0 0
        %7363 = vmatmul.mubr.bf16.gmra.mrb[0].mxu0 %v6384
        %v7364 = vpop.f32.mrb[0].mxu0
        %v7365 = vadd.f32 0.0, %v7364
        %v7366 = vpop.f32.mrb[0].mxu0
        %v7367 = vpop.f32.mrb[0].mxu0
        %v7368 = vadd.f32 0.0, %v7367
        %v7369 = vpop.f32.mrb[0].mxu0
        %7370 = vmatprep.mubr.bf16.mxu0 0
        %7371 = vmatmul.mubr.bf16.gmra.mrb[0].mxu0 %v6385
        %v7372 = vpop.f32.mrb[0].mxu0
        %v7373 = vadd.f32 0.0, %v7372
        %v7374 = vpop.f32.mrb[0].mxu0
        %v7375 = vpop.f32.mrb[0].mxu0
        %v7376 = vadd.f32 0.0, %v7375
        %v7377 = vpop.f32.mrb[0].mxu0
        %7378 = vmatprep.mubr.bf16.mxu0 0
        %7379 = vmatmul.mubr.bf16.gmra.mrb[0].mxu0 %v6386
        %v7380 = vpop.f32.mrb[0].mxu0
        %v7381 = vadd.f32 0.0, %v7380
        %v7382 = vpop.f32.mrb[0].mxu0
        %v7383 = vpop.f32.mrb[0].mxu0
        %v7384 = vadd.f32 0.0, %v7383
        %v7385 = vpop.f32.mrb[0].mxu0
        %7386 = vmatprep.mubr.bf16.mxu0 0
        %7387 = vmatmul.mubr.bf16.gmra.mrb[0].mxu0 %v6387
        %v7388 = vpop.f32.mrb[0].mxu0
        %v7389 = vadd.f32 0.0, %v7388
        %v7390 = vpop.f32.mrb[0].mxu0
        %v7391 = vpop.f32.mrb[0].mxu0
        %v7392 = vadd.f32 0.0, %v7391
        %v7393 = vpop.f32.mrb[0].mxu0
        %7394 = vmatprep.mubr.bf16.mxu0 0
        %7395 = vmatmul.mubr.bf16.gmra.mrb[0].mxu0 %v6388
        %v7396 = vpop.f32.mrb[0].mxu0
        %v7397 = vadd.f32 0.0, %v7396
        %v7398 = vpop.f32.mrb[0].mxu0
        %v7399 = vpop.f32.mrb[0].mxu0
        %v7400 = vadd.f32 0.0, %v7399
        %v7401 = vpop.f32.mrb[0].mxu0
        %7402 = vmatprep.mubr.bf16.mxu0 0
        %7403 = vmatmul.mubr.bf16.gmra.mrb[0].mxu0 %v6389
        %v7404 = vpop.f32.mrb[0].mxu0
        %v7405 = vadd.f32 0.0, %v7404
        %v7406 = vpop.f32.mrb[0].mxu0
        %v7407 = vpop.f32.mrb[0].mxu0
        %v7408 = vadd.f32 0.0, %v7407
        %v7409 = vpop.f32.mrb[0].mxu0
        %7410 = vdwg.mxu0
        %v7411 = vrot.slane %v7221, 1
        %v7412 = vrot.slane %v7224, 1
        %v7413 = vrot.slane %v7229, 1
        %v7414 = vrot.slane %v7232, 1
        %v7415 = vrot.slane %v7237, 1
        %v7416 = vrot.slane %v7240, 1
        %v7417 = vrot.slane %v7245, 1
        %v7418 = vrot.slane %v7248, 1
        %v7419 = vrot.slane %v7253, 1
        %v7420 = vrot.slane %v7256, 1
        %v7421 = vrot.slane %v7261, 1
        %v7422 = vrot.slane %v7264, 1
        %v7423 = vrot.slane %v7269, 1
        %v7424 = vrot.slane %v7272, 1
        %v7425 = vrot.slane %v7277, 1
        %v7426 = vrot.slane %v7280, 1
        %v7427 = vrot.slane %v7285, 1
        %v7428 = vrot.slane %v7288, 1
        %v7429 = vrot.slane %v7293, 1
        %v7430 = vrot.slane %v7296, 1
        %v7431 = vrot.slane %v7301, 1
        %v7432 = vrot.slane %v7304, 1
        %v7433 = vrot.slane %v7309, 1
        %v7434 = vrot.slane %v7312, 1
        %v7435 = vrot.slane %v7317, 1
        %v7436 = vrot.slane %v7320, 1
        %v7437 = vrot.slane %v7325, 1
        %v7438 = vrot.slane %v7328, 1
        %v7439 = vrot.slane %v7333, 1
        %v7440 = vrot.slane %v7336, 1
        %v7441 = vrot.slane %v7341, 1
        %v7442 = vrot.slane %v7344, 1
        %v7443 = vrot.slane %v7349, 1
        %v7444 = vrot.slane %v7352, 1
        %v7445 = vrot.slane %v7357, 1
        %v7446 = vrot.slane %v7360, 1
        %v7447 = vrot.slane %v7365, 1
        %v7448 = vrot.slane %v7368, 1
        %v7449 = vrot.slane %v7373, 1
        %v7450 = vrot.slane %v7376, 1
        %v7451 = vrot.slane %v7381, 1
        %v7452 = vrot.slane %v7384, 1
        %v7453 = vrot.slane %v7389, 1
        %v7454 = vrot.slane %v7392, 1
        %v7455 = vrot.slane %v7397, 1
        %v7456 = vrot.slane %v7400, 1
        %v7457 = vrot.slane %v7405, 1
        %v7458 = vrot.slane %v7408, 1
        %v7459 = vsel %vm821, %v7457, %v7458
        %v7460 = vsel %vm821, %v7456, %v7457
        %v7461 = vsel %vm821, %v7455, %v7456
        %v7462 = vsel %vm821, %v7454, %v7455
        %v7463 = vsel %vm821, %v7453, %v7454
        %v7464 = vsel %vm821, %v7452, %v7453
        %v7465 = vsel %vm821, %v7451, %v7452
        %v7466 = vsel %vm821, %v7450, %v7451
        %v7467 = vsel %vm821, %v7449, %v7450
        %v7468 = vsel %vm821, %v7448, %v7449
        %v7469 = vsel %vm821, %v7447, %v7448
        %v7470 = vsel %vm821, %v7446, %v7447
        %v7471 = vsel %vm821, %v7445, %v7446
        %v7472 = vsel %vm821, %v7444, %v7445
        %v7473 = vsel %vm821, %v7443, %v7444
        %v7474 = vsel %vm821, %v7442, %v7443
        %v7475 = vsel %vm821, %v7441, %v7442
        %v7476 = vsel %vm821, %v7440, %v7441
        %v7477 = vsel %vm821, %v7439, %v7440
        %v7478 = vsel %vm821, %v7438, %v7439
        %v7479 = vsel %vm821, %v7437, %v7438
        %v7480 = vsel %vm821, %v7436, %v7437
        %v7481 = vsel %vm821, %v7435, %v7436
        %v7482 = vsel %vm821, %v7434, %v7435
        %v7483 = vsel %vm821, %v7433, %v7434
        %v7484 = vsel %vm821, %v7432, %v7433
        %v7485 = vsel %vm821, %v7431, %v7432
        %v7486 = vsel %vm821, %v7430, %v7431
        %v7487 = vsel %vm821, %v7429, %v7430
        %v7488 = vsel %vm821, %v7428, %v7429
        %v7489 = vsel %vm821, %v7427, %v7428
        %v7490 = vsel %vm821, %v7426, %v7427
        %v7491 = vsel %vm821, %v7425, %v7426
        %v7492 = vsel %vm821, %v7424, %v7425
        %v7493 = vsel %vm821, %v7423, %v7424
        %v7494 = vsel %vm821, %v7422, %v7423
        %v7495 = vsel %vm821, %v7421, %v7422
        %v7496 = vsel %vm821, %v7420, %v7421
        %v7497 = vsel %vm821, %v7419, %v7420
        %v7498 = vsel %vm821, %v7418, %v7419
        %v7499 = vsel %vm821, %v7417, %v7418
        %v7500 = vsel %vm821, %v7416, %v7417
        %v7501 = vsel %vm821, %v7415, %v7416
        %v7502 = vsel %vm821, %v7414, %v7415
        %v7503 = vsel %vm821, %v7413, %v7414
        %v7504 = vsel %vm821, %v7412, %v7413
        %v7505 = vsel %vm821, %v7411, %v7412
        %v7506 = vsel %vm821, %v7458, %v7411
        %v7507 = vadd.f32 %v7073, %v7505
        %v7508 = vadd.f32 %v7074, %v7504
        %v7509 = vadd.f32 %v7075, %v7503
        %v7510 = vadd.f32 %v7076, %v7502
        %v7511 = vadd.f32 %v7077, %v7501
        %v7512 = vadd.f32 %v7078, %v7500
        %v7513 = vadd.f32 %v7079, %v7499
        %v7514 = vadd.f32 %v7080, %v7498
        %v7515 = vadd.f32 %v7081, %v7497
        %v7516 = vadd.f32 %v7082, %v7496
        %v7517 = vadd.f32 %v7083, %v7495
        %v7518 = vadd.f32 %v7084, %v7494
        %v7519 = vadd.f32 %v7085, %v7493
        %v7520 = vadd.f32 %v7086, %v7492
        %v7521 = vadd.f32 %v7087, %v7491
        %v7522 = vadd.f32 %v7088, %v7490
        %v7523 = vadd.f32 %v7089, %v7489
        %v7524 = vadd.f32 %v7090, %v7488
        %v7525 = vadd.f32 %v7091, %v7487
        %v7526 = vadd.f32 %v7092, %v7486
        %v7527 = vadd.f32 %v7093, %v7485
        %v7528 = vadd.f32 %v7094, %v7484
        %v7529 = vadd.f32 %v7095, %v7483
        %v7530 = vadd.f32 %v7096, %v7482
        %v7531 = vadd.f32 %v7097, %v7481
        %v7532 = vadd.f32 %v7098, %v7480
        %v7533 = vadd.f32 %v7099, %v7479
        %v7534 = vadd.f32 %v7100, %v7478
        %v7535 = vadd.f32 %v7101, %v7477
        %v7536 = vadd.f32 %v7102, %v7476
        %v7537 = vadd.f32 %v7103, %v7475
        %v7538 = vadd.f32 %v7104, %v7474
        %v7539 = vadd.f32 %v7105, %v7473
        %v7540 = vadd.f32 %v7106, %v7472
        %v7541 = vadd.f32 %v7107, %v7471
        %v7542 = vadd.f32 %v7108, %v7470
        %v7543 = vadd.f32 %v7109, %v7469
        %v7544 = vadd.f32 %v7110, %v7468
        %v7545 = vadd.f32 %v7111, %v7467
        %v7546 = vadd.f32 %v7112, %v7466
        %v7547 = vadd.f32 %v7113, %v7465
        %v7548 = vadd.f32 %v7114, %v7464
        %v7549 = vadd.f32 %v7115, %v7463
        %v7550 = vadd.f32 %v7116, %v7462
        %v7551 = vadd.f32 %v7117, %v7461
        %v7552 = vadd.f32 %v7118, %v7460
        %v7553 = vadd.f32 %v7119, %v7459
        %v7554 = vadd.f32 %v7120, %v7506
        %v7555 = vld [vmem:[#allocation4] sm:$0xff]
        %v7556 = vld [vmem:[#allocation4 + $0x8] sm:$0xff]
        %v7557 = vld [vmem:[#allocation4 + $0x10] sm:$0xff]
        %v7558 = vld [vmem:[#allocation4 + $0x18] sm:$0xff]
        %v7559 = vld [vmem:[#allocation4 + $0x20] sm:$0xff]
        %v7560 = vld [vmem:[#allocation4 + $0x28] sm:$0xff]
        %v7561 = vld [vmem:[#allocation4 + $0x30] sm:$0xff]
        %v7562 = vld [vmem:[#allocation4 + $0x38] sm:$0xff]
        %v7563 = vld [vmem:[#allocation4 + $0x40] sm:$0xff]
        %v7564 = vld [vmem:[#allocation4 + $0x48] sm:$0xff]
        %v7565 = vld [vmem:[#allocation4 + $0x50] sm:$0xff]
        %v7566 = vld [vmem:[#allocation4 + $0x58] sm:$0xff]
        %v7567 = vld [vmem:[#allocation4 + $0x60] sm:$0xff]
        %v7568 = vld [vmem:[#allocation4 + $0x68] sm:$0xff]
        %v7569 = vld [vmem:[#allocation4 + $0x70] sm:$0xff]
        %v7570 = vld [vmem:[#allocation4 + $0x78] sm:$0xff]
        %v7571 = vld [vmem:[#allocation4 + $0x80] sm:$0xff]
        %v7572 = vld [vmem:[#allocation4 + $0x88] sm:$0xff]
        %v7573 = vld [vmem:[#allocation4 + $0x90] sm:$0xff]
        %v7574 = vld [vmem:[#allocation4 + $0x98] sm:$0xff]
        %v7575 = vld [vmem:[#allocation4 + $0xa0] sm:$0xff]
        %v7576 = vld [vmem:[#allocation4 + $0xa8] sm:$0xff]
        %v7577 = vld [vmem:[#allocation4 + $0xb0] sm:$0xff]
        %v7578 = vld [vmem:[#allocation4 + $0xb8] sm:$0xff]
        %v7579 = vld [vmem:[#allocation4 + $0xc0] sm:$0xff]
        %v7580 = vld [vmem:[#allocation4 + $0xc8] sm:$0xff]
        %v7581 = vld [vmem:[#allocation4 + $0xd0] sm:$0xff]
        %v7582 = vld [vmem:[#allocation4 + $0xd8] sm:$0xff]
        %v7583 = vld [vmem:[#allocation4 + $0xe0] sm:$0xff]
        %v7584 = vld [vmem:[#allocation4 + $0xe8] sm:$0xff]
        %v7585 = vld [vmem:[#allocation4 + $0xf0] sm:$0xff]
        %v7586 = vld [vmem:[#allocation4 + $0xf8] sm:$0xff]
        %v7587 = vld [vmem:[#allocation4 + $0x100] sm:$0xff]
        %v7588 = vld [vmem:[#allocation4 + $0x108] sm:$0xff]
        %v7589 = vld [vmem:[#allocation4 + $0x110] sm:$0xff]
        %v7590 = vld [vmem:[#allocation4 + $0x118] sm:$0xff]
        %v7591 = vld [vmem:[#allocation4 + $0x120] sm:$0xff]
        %v7592 = vld [vmem:[#allocation4 + $0x128] sm:$0xff]
        %v7593 = vld [vmem:[#allocation4 + $0x130] sm:$0xff]
        %v7594 = vld [vmem:[#allocation4 + $0x138] sm:$0xff]
        %v7595 = vld [vmem:[#allocation4 + $0x140] sm:$0xff]
        %v7596 = vld [vmem:[#allocation4 + $0x148] sm:$0xff]
        %v7597 = vld [vmem:[#allocation4 + $0x150] sm:$0xff]
        %v7598 = vld [vmem:[#allocation4 + $0x158] sm:$0xff]
        %v7599 = vld [vmem:[#allocation4 + $0x160] sm:$0xff]
        %v7600 = vld [vmem:[#allocation4 + $0x168] sm:$0xff]
        %v7601 = vld [vmem:[#allocation4 + $0x170] sm:$0xff]
        %v7602 = vld [vmem:[#allocation4 + $0x178] sm:$0xff]
        %v7603 = vadd.f32 %v7555, %v7507
        %v7604 = vadd.f32 %v7556, %v7508
        %v7605 = vadd.f32 %v7557, %v7509
        %v7606 = vadd.f32 %v7558, %v7510
        %v7607 = vadd.f32 %v7559, %v7511
        %v7608 = vadd.f32 %v7560, %v7512
        %v7609 = vadd.f32 %v7561, %v7513
        %v7610 = vadd.f32 %v7562, %v7514
        %v7611 = vadd.f32 %v7563, %v7515
        %v7612 = vadd.f32 %v7564, %v7516
        %v7613 = vadd.f32 %v7565, %v7517
        %v7614 = vadd.f32 %v7566, %v7518
        %v7615 = vadd.f32 %v7567, %v7519
        %v7616 = vadd.f32 %v7568, %v7520
        %v7617 = vadd.f32 %v7569, %v7521
        %v7618 = vadd.f32 %v7570, %v7522
        %v7619 = vadd.f32 %v7571, %v7523
        %v7620 = vadd.f32 %v7572, %v7524
        %v7621 = vadd.f32 %v7573, %v7525
        %v7622 = vadd.f32 %v7574, %v7526
        %v7623 = vadd.f32 %v7575, %v7527
        %v7624 = vadd.f32 %v7576, %v7528
        %v7625 = vadd.f32 %v7577, %v7529
        %v7626 = vadd.f32 %v7578, %v7530
        %v7627 = vadd.f32 %v7579, %v7531
        %v7628 = vadd.f32 %v7580, %v7532
        %v7629 = vadd.f32 %v7581, %v7533
        %v7630 = vadd.f32 %v7582, %v7534
        %v7631 = vadd.f32 %v7583, %v7535
        %v7632 = vadd.f32 %v7584, %v7536
        %v7633 = vadd.f32 %v7585, %v7537
        %v7634 = vadd.f32 %v7586, %v7538
        %v7635 = vadd.f32 %v7587, %v7539
        %v7636 = vadd.f32 %v7588, %v7540
        %v7637 = vadd.f32 %v7589, %v7541
        %v7638 = vadd.f32 %v7590, %v7542
        %v7639 = vadd.f32 %v7591, %v7543
        %v7640 = vadd.f32 %v7592, %v7544
        %v7641 = vadd.f32 %v7593, %v7545
        %v7642 = vadd.f32 %v7594, %v7546
        %v7643 = vadd.f32 %v7595, %v7547
        %v7644 = vadd.f32 %v7596, %v7548
        %v7645 = vadd.f32 %v7597, %v7549
        %v7646 = vadd.f32 %v7598, %v7550
        %v7647 = vadd.f32 %v7599, %v7551
        %v7648 = vadd.f32 %v7600, %v7552
        %v7649 = vadd.f32 %v7601, %v7553
        %v7650 = vadd.f32 %v7602, %v7554
        %7651 = vst [vmem:[#allocation4] sm:$0xff] %v7603
        %7652 = vst [vmem:[#allocation4 + $0x8] sm:$0xff] %v7604
        %7653 = vst [vmem:[#allocation4 + $0x10] sm:$0xff] %v7605
        %7654 = vst [vmem:[#allocation4 + $0x18] sm:$0xff] %v7606
        %7655 = vst [vmem:[#allocation4 + $0x20] sm:$0xff] %v7607
        %7656 = vst [vmem:[#allocation4 + $0x28] sm:$0xff] %v7608
        %7657 = vst [vmem:[#allocation4 + $0x30] sm:$0xff] %v7609
        %7658 = vst [vmem:[#allocation4 + $0x38] sm:$0xff] %v7610
        %7659 = vst [vmem:[#allocation4 + $0x40] sm:$0xff] %v7611
        %7660 = vst [vmem:[#allocation4 + $0x48] sm:$0xff] %v7612
        %7661 = vst [vmem:[#allocation4 + $0x50] sm:$0xff] %v7613
        %7662 = vst [vmem:[#allocation4 + $0x58] sm:$0xff] %v7614
        %7663 = vst [vmem:[#allocation4 + $0x60] sm:$0xff] %v7615
        %7664 = vst [vmem:[#allocation4 + $0x68] sm:$0xff] %v7616
        %7665 = vst [vmem:[#allocation4 + $0x70] sm:$0xff] %v7617
        %7666 = vst [vmem:[#allocation4 + $0x78] sm:$0xff] %v7618
        %7667 = vst [vmem:[#allocation4 + $0x80] sm:$0xff] %v7619
        %7668 = vst [vmem:[#allocation4 + $0x88] sm:$0xff] %v7620
        %7669 = vst [vmem:[#allocation4 + $0x90] sm:$0xff] %v7621
        %7670 = vst [vmem:[#allocation4 + $0x98] sm:$0xff] %v7622
        %7671 = vst [vmem:[#allocation4 + $0xa0] sm:$0xff] %v7623
        %7672 = vst [vmem:[#allocation4 + $0xa8] sm:$0xff] %v7624
        %7673 = vst [vmem:[#allocation4 + $0xb0] sm:$0xff] %v7625
        %7674 = vst [vmem:[#allocation4 + $0xb8] sm:$0xff] %v7626
        %7675 = vst [vmem:[#allocation4 + $0xc0] sm:$0xff] %v7627
        %7676 = vst [vmem:[#allocation4 + $0xc8] sm:$0xff] %v7628
        %7677 = vst [vmem:[#allocation4 + $0xd0] sm:$0xff] %v7629
        %7678 = vst [vmem:[#allocation4 + $0xd8] sm:$0xff] %v7630
        %7679 = vst [vmem:[#allocation4 + $0xe0] sm:$0xff] %v7631
        %7680 = vst [vmem:[#allocation4 + $0xe8] sm:$0xff] %v7632
        %7681 = vst [vmem:[#allocation4 + $0xf0] sm:$0xff] %v7633
        %7682 = vst [vmem:[#allocation4 + $0xf8] sm:$0xff] %v7634
        %7683 = vst [vmem:[#allocation4 + $0x100] sm:$0xff] %v7635
        %7684 = vst [vmem:[#allocation4 + $0x108] sm:$0xff] %v7636
        %7685 = vst [vmem:[#allocation4 + $0x110] sm:$0xff] %v7637
        %7686 = vst [vmem:[#allocation4 + $0x118] sm:$0xff] %v7638
        %7687 = vst [vmem:[#allocation4 + $0x120] sm:$0xff] %v7639
        %7688 = vst [vmem:[#allocation4 + $0x128] sm:$0xff] %v7640
        %7689 = vst [vmem:[#allocation4 + $0x130] sm:$0xff] %v7641
        %7690 = vst [vmem:[#allocation4 + $0x138] sm:$0xff] %v7642
        %7691 = vst [vmem:[#allocation4 + $0x140] sm:$0xff] %v7643
        %7692 = vst [vmem:[#allocation4 + $0x148] sm:$0xff] %v7644
        %7693 = vst [vmem:[#allocation4 + $0x150] sm:$0xff] %v7645
        %7694 = vst [vmem:[#allocation4 + $0x158] sm:$0xff] %v7646
        %7695 = vst [vmem:[#allocation4 + $0x160] sm:$0xff] %v7647
        %7696 = vst [vmem:[#allocation4 + $0x168] sm:$0xff] %v7648
        %7697 = vst [vmem:[#allocation4 + $0x170] sm:$0xff] %v7649
        %7698 = vst [vmem:[#allocation4 + $0x178] sm:$0xff] %v7650
        %s7699 = scalar_lea.vmem [#allocation2], 24
        %v7700 = vld [vmem:[%s7699] sm:$0xf]
        %v7701 = vld [vmem:[%s7699 + $0x4] sm:$0xf]
        %v7702 = vld [vmem:[%s7699 + $0x8] sm:$0xf]
        %v7703 = vld [vmem:[%s7699 + $0xc] sm:$0xf]
        %v7704 = vld [vmem:[%s7699 + $0x10] sm:$0xf]
        %v7705 = vld [vmem:[%s7699 + $0x14] sm:$0xf]
        %v7706 = vld [vmem:[%s7699 + $0x18] sm:$0xf]
        %v7707 = vld [vmem:[%s7699 + $0x1c] sm:$0xf]
        %v7708 = vld [vmem:[%s7699 + $0x20] sm:$0xf]
        %v7709 = vld [vmem:[%s7699 + $0x24] sm:$0xf]
        %v7710 = vld [vmem:[%s7699 + $0x28] sm:$0xf]
        %v7711 = vld [vmem:[%s7699 + $0x2c] sm:$0xf]
        %v7712 = vld [vmem:[%s7699 + $0x30] sm:$0xf]
        %v7713 = vld [vmem:[%s7699 + $0x34] sm:$0xf]
        %v7714 = vld [vmem:[%s7699 + $0x38] sm:$0xf]
        %v7715 = vld [vmem:[%s7699 + $0x3c] sm:$0xf]
        %v7716 = vld [vmem:[%s7699 + $0x40] sm:$0xf]
        %v7717 = vld [vmem:[%s7699 + $0x44] sm:$0xf]
        %v7718 = vld [vmem:[%s7699 + $0x48] sm:$0xf]
        %v7719 = vld [vmem:[%s7699 + $0x4c] sm:$0xf]
        %v7720 = vld [vmem:[%s7699 + $0x50] sm:$0xf]
        %v7721 = vld [vmem:[%s7699 + $0x54] sm:$0xf]
        %v7722 = vld [vmem:[%s7699 + $0x58] sm:$0xf]
        %v7723 = vld [vmem:[%s7699 + $0x5c] sm:$0xf]
        %v7724 = vld [vmem:[%s7699 + $0x60] sm:$0xf]
        %v7725 = vld [vmem:[%s7699 + $0x64] sm:$0xf]
        %v7726 = vld [vmem:[%s7699 + $0x68] sm:$0xf]
        %v7727 = vld [vmem:[%s7699 + $0x6c] sm:$0xf]
        %v7728 = vld [vmem:[%s7699 + $0x70] sm:$0xf]
        %v7729 = vld [vmem:[%s7699 + $0x74] sm:$0xf]
        %v7730 = vld [vmem:[%s7699 + $0x78] sm:$0xf]
        %v7731 = vld [vmem:[%s7699 + $0x7c] sm:$0xf]
        %v7732 = vld [vmem:[%s7699 + $0x80] sm:$0xf]
        %v7733 = vld [vmem:[%s7699 + $0x84] sm:$0xf]
        %v7734 = vld [vmem:[%s7699 + $0x88] sm:$0xf]
        %v7735 = vld [vmem:[%s7699 + $0x8c] sm:$0xf]
        %v7736 = vld [vmem:[%s7699 + $0x90] sm:$0xf]
        %v7737 = vld [vmem:[%s7699 + $0x94] sm:$0xf]
        %v7738 = vld [vmem:[%s7699 + $0x98] sm:$0xf]
        %v7739 = vld [vmem:[%s7699 + $0x9c] sm:$0xf]
        %v7740 = vld [vmem:[%s7699 + $0xa0] sm:$0xf]
        %v7741 = vld [vmem:[%s7699 + $0xa4] sm:$0xf]
        %v7742 = vld [vmem:[%s7699 + $0xa8] sm:$0xf]
        %v7743 = vld [vmem:[%s7699 + $0xac] sm:$0xf]
        %v7744 = vld [vmem:[%s7699 + $0xb0] sm:$0xf]
        %v7745 = vld [vmem:[%s7699 + $0xb4] sm:$0xf]
        %v7746 = vld [vmem:[%s7699 + $0xb8] sm:$0xf]
        %v7747 = vld [vmem:[%s7699 + $0xbc] sm:$0xf]
        %s7748 = scalar_lea.vmem [#allocation10], 384
        %v7749 = vld [vmem:[%s7748] sm:$0xf]
        %v7750 = vld [vmem:[%s7748 + $0x4] sm:$0xf]
        %v7751 = vld [vmem:[%s7748 + $0x8] sm:$0xf]
        %v7752 = vld [vmem:[%s7748 + $0xc] sm:$0xf]
        %v7753 = vld [vmem:[%s7748 + $0x10] sm:$0xf]
        %v7754 = vld [vmem:[%s7748 + $0x14] sm:$0xf]
        %v7755 = vld [vmem:[%s7748 + $0x18] sm:$0xf]
        %v7756 = vld [vmem:[%s7748 + $0x1c] sm:$0xf]
        %v7757 = vld [vmem:[%s7748 + $0x20] sm:$0xf]
        %v7758 = vld [vmem:[%s7748 + $0x24] sm:$0xf]
        %v7759 = vld [vmem:[%s7748 + $0x28] sm:$0xf]
        %v7760 = vld [vmem:[%s7748 + $0x2c] sm:$0xf]
        %v7761 = vld [vmem:[%s7748 + $0x30] sm:$0xf]
        %v7762 = vld [vmem:[%s7748 + $0x34] sm:$0xf]
        %v7763 = vld [vmem:[%s7748 + $0x38] sm:$0xf]
        %v7764 = vld [vmem:[%s7748 + $0x3c] sm:$0xf]
        %v7813 = vunpack.c.l.b16 %v7700
        %v7814 = vunpack.c.l.b16 %v7701
        %v7815 = vunpack.c.l.b16 %v7702
        %v7816 = vunpack.c.l.b16 %v7703
        %v7817 = vunpack.c.l.b16 %v7704
        %v7818 = vunpack.c.l.b16 %v7705
        %v7819 = vunpack.c.l.b16 %v7706
        %v7820 = vunpack.c.l.b16 %v7707
        %v7821 = vunpack.c.l.b16 %v7708
        %v7822 = vunpack.c.l.b16 %v7709
        %v7823 = vunpack.c.l.b16 %v7710
        %v7824 = vunpack.c.l.b16 %v7711
        %v7825 = vunpack.c.l.b16 %v7712
        %v7826 = vunpack.c.l.b16 %v7713
        %v7827 = vunpack.c.l.b16 %v7714
        %v7828 = vunpack.c.l.b16 %v7715
        %v7829 = vunpack.c.l.b16 %v7716
        %v7830 = vunpack.c.l.b16 %v7717
        %v7831 = vunpack.c.l.b16 %v7718
        %v7832 = vunpack.c.l.b16 %v7719
        %v7833 = vunpack.c.l.b16 %v7720
        %v7834 = vunpack.c.l.b16 %v7721
        %v7835 = vunpack.c.l.b16 %v7722
        %v7836 = vunpack.c.l.b16 %v7723
        %v7837 = vunpack.c.l.b16 %v7724
        %v7838 = vunpack.c.l.b16 %v7725
        %v7839 = vunpack.c.l.b16 %v7726
        %v7840 = vunpack.c.l.b16 %v7727
        %v7841 = vunpack.c.l.b16 %v7728
        %v7842 = vunpack.c.l.b16 %v7729
        %v7843 = vunpack.c.l.b16 %v7730
        %v7844 = vunpack.c.l.b16 %v7731
        %v7845 = vunpack.c.l.b16 %v7732
        %v7846 = vunpack.c.l.b16 %v7733
        %v7847 = vunpack.c.l.b16 %v7734
        %v7848 = vunpack.c.l.b16 %v7735
        %v7849 = vunpack.c.l.b16 %v7736
        %v7850 = vunpack.c.l.b16 %v7737
        %v7851 = vunpack.c.l.b16 %v7738
        %v7852 = vunpack.c.l.b16 %v7739
        %v7853 = vunpack.c.l.b16 %v7740
        %v7854 = vunpack.c.l.b16 %v7741
        %v7855 = vunpack.c.l.b16 %v7742
        %v7856 = vunpack.c.l.b16 %v7743
        %v7857 = vunpack.c.l.b16 %v7744
        %v7858 = vunpack.c.l.b16 %v7745
        %v7859 = vunpack.c.l.b16 %v7746
        %v7860 = vunpack.c.l.b16 %v7747
        %v7861 = vpack.c.b16 %v7814, %v7813
        %v7862 = vpack.c.b16 %v7816, %v7815
        %v7863 = vpack.c.b16 %v7818, %v7817
        %v7864 = vpack.c.b16 %v7820, %v7819
        %v7865 = vpack.c.b16 %v7822, %v7821
        %v7866 = vpack.c.b16 %v7824, %v7823
        %v7867 = vpack.c.b16 %v7826, %v7825
        %v7868 = vpack.c.b16 %v7828, %v7827
        %v7869 = vpack.c.b16 %v7830, %v7829
        %v7870 = vpack.c.b16 %v7832, %v7831
        %v7871 = vpack.c.b16 %v7834, %v7833
        %v7872 = vpack.c.b16 %v7836, %v7835
        %v7873 = vpack.c.b16 %v7838, %v7837
        %v7874 = vpack.c.b16 %v7840, %v7839
        %v7875 = vpack.c.b16 %v7842, %v7841
        %v7876 = vpack.c.b16 %v7844, %v7843
        %v7877 = vpack.c.b16 %v7846, %v7845
        %v7878 = vpack.c.b16 %v7848, %v7847
        %v7879 = vpack.c.b16 %v7850, %v7849
        %v7880 = vpack.c.b16 %v7852, %v7851
        %v7881 = vpack.c.b16 %v7854, %v7853
        %v7882 = vpack.c.b16 %v7856, %v7855
        %v7883 = vpack.c.b16 %v7858, %v7857
        %v7884 = vpack.c.b16 %v7860, %v7859
        %v7925 = vunpack.c.l.b16 %v7749
        %v7926 = vunpack.c.l.b16 %v7750
        %v7927 = vunpack.c.l.b16 %v7751
        %v7928 = vunpack.c.l.b16 %v7752
        %v7929 = vunpack.c.l.b16 %v7753
        %v7930 = vunpack.c.l.b16 %v7754
        %v7931 = vunpack.c.l.b16 %v7755
        %v7932 = vunpack.c.l.b16 %v7756
        %v7933 = vunpack.c.l.b16 %v7757
        %v7934 = vunpack.c.l.b16 %v7758
        %v7935 = vunpack.c.l.b16 %v7759
        %v7936 = vunpack.c.l.b16 %v7760
        %v7937 = vunpack.c.l.b16 %v7761
        %v7938 = vunpack.c.l.b16 %v7762
        %v7939 = vunpack.c.l.b16 %v7763
        %v7940 = vunpack.c.l.b16 %v7764
        %v7941 = vpack.c.b16 %v7926, %v7925
        %v7942 = vpack.c.b16 %v7928, %v7927
        %v7943 = vpack.c.b16 %v7930, %v7929
        %v7944 = vpack.c.b16 %v7932, %v7931
        %v7945 = vpack.c.b16 %v7934, %v7933
        %v7946 = vpack.c.b16 %v7936, %v7935
        %v7947 = vpack.c.b16 %v7938, %v7937
        %v7948 = vpack.c.b16 %v7940, %v7939
        %7957 = vmatprep.subr.bf16.mxu0 0
        %7958 = vmatpush1.bf16.msra.mxu0 %v7941
        %7959 = vmatprep.subr.bf16.mxu0 0
        %7960 = vmatpush1.bf16.msra.mxu0 %v7942
        %7961 = vmatprep.subr.bf16.mxu0 0
        %7962 = vmatpush1.bf16.msra.mxu0 %v7943
        %7963 = vmatprep.subr.bf16.mxu0 0
        %7964 = vmatpush1.bf16.msra.mxu0 %v7944
        %7965 = vmatprep.subr.bf16.mxu0 0
        %7966 = vmatpush1.bf16.msra.mxu0 %v7945
        %7967 = vmatprep.subr.bf16.mxu0 0
        %7968 = vmatpush1.bf16.msra.mxu0 %v7946
        %7969 = vmatprep.subr.bf16.mxu0 0
        %7970 = vmatpush1.bf16.msra.mxu0 %v7947
        %7971 = vmatprep.subr.bf16.mxu0 0
        %7972 = vmatpush1.bf16.msra.mxu0 %v7948
        %7973 = vmatprep.subr.bf16.mxu0 0
        %7974 = vmatpush1.bf16.msra.mxu0 0
        %7975 = vmatprep.subr.bf16.mxu0 0
        %7976 = vmatpush1.bf16.msra.mxu0 0
        %7977 = vmatprep.subr.bf16.mxu0 0
        %7978 = vmatpush1.bf16.msra.mxu0 0
        %7979 = vmatprep.subr.bf16.mxu0 0
        %7980 = vmatpush1.bf16.msra.mxu0 0
        %7981 = vmatprep.subr.bf16.mxu0 0
        %7982 = vmatpush1.bf16.msra.mxu0 0
        %7983 = vmatprep.subr.bf16.mxu0 0
        %7984 = vmatpush1.bf16.msra.mxu0 0
        %7985 = vmatprep.subr.bf16.mxu0 0
        %7986 = vmatpush1.bf16.msra.mxu0 0
        %7987 = vmatprep.subr.bf16.mxu0 0
        %7988 = vmatpush1.bf16.msra.mxu0 0
        %7989 = vmatprep.mubr.bf16.mxu0 0
        %7990 = vmatmul.mubr.bf16.gmra.mrb[0].mxu0 %v7861
        %v7991 = vpop.f32.mrb[0].mxu0
        %v7992 = vadd.f32 0.0, %v7991
        %v7993 = vpop.f32.mrb[0].mxu0
        %v7994 = vpop.f32.mrb[0].mxu0
        %v7995 = vadd.f32 0.0, %v7994
        %v7996 = vpop.f32.mrb[0].mxu0
        %7997 = vmatprep.mubr.bf16.mxu0 0
        %7998 = vmatmul.mubr.bf16.gmra.mrb[0].mxu0 %v7862
        %v7999 = vpop.f32.mrb[0].mxu0
        %v8000 = vadd.f32 0.0, %v7999
        %v8001 = vpop.f32.mrb[0].mxu0
        %v8002 = vpop.f32.mrb[0].mxu0
        %v8003 = vadd.f32 0.0, %v8002
        %v8004 = vpop.f32.mrb[0].mxu0
        %8005 = vmatprep.mubr.bf16.mxu0 0
        %8006 = vmatmul.mubr.bf16.gmra.mrb[0].mxu0 %v7863
        %v8007 = vpop.f32.mrb[0].mxu0
        %v8008 = vadd.f32 0.0, %v8007
        %v8009 = vpop.f32.mrb[0].mxu0
        %v8010 = vpop.f32.mrb[0].mxu0
        %v8011 = vadd.f32 0.0, %v8010
        %v8012 = vpop.f32.mrb[0].mxu0
        %8013 = vmatprep.mubr.bf16.mxu0 0
        %8014 = vmatmul.mubr.bf16.gmra.mrb[0].mxu0 %v7864
        %v8015 = vpop.f32.mrb[0].mxu0
        %v8016 = vadd.f32 0.0, %v8015
        %v8017 = vpop.f32.mrb[0].mxu0
        %v8018 = vpop.f32.mrb[0].mxu0
        %v8019 = vadd.f32 0.0, %v8018
        %v8020 = vpop.f32.mrb[0].mxu0
        %8021 = vmatprep.mubr.bf16.mxu0 0
        %8022 = vmatmul.mubr.bf16.gmra.mrb[0].mxu0 %v7865
        %v8023 = vpop.f32.mrb[0].mxu0
        %v8024 = vadd.f32 0.0, %v8023
        %v8025 = vpop.f32.mrb[0].mxu0
        %v8026 = vpop.f32.mrb[0].mxu0
        %v8027 = vadd.f32 0.0, %v8026
        %v8028 = vpop.f32.mrb[0].mxu0
        %8029 = vmatprep.mubr.bf16.mxu0 0
        %8030 = vmatmul.mubr.bf16.gmra.mrb[0].mxu0 %v7866
        %v8031 = vpop.f32.mrb[0].mxu0
        %v8032 = vadd.f32 0.0, %v8031
        %v8033 = vpop.f32.mrb[0].mxu0
        %v8034 = vpop.f32.mrb[0].mxu0
        %v8035 = vadd.f32 0.0, %v8034
        %v8036 = vpop.f32.mrb[0].mxu0
        %8037 = vmatprep.mubr.bf16.mxu0 0
        %8038 = vmatmul.mubr.bf16.gmra.mrb[0].mxu0 %v7867
        %v8039 = vpop.f32.mrb[0].mxu0
        %v8040 = vadd.f32 0.0, %v8039
        %v8041 = vpop.f32.mrb[0].mxu0
        %v8042 = vpop.f32.mrb[0].mxu0
        %v8043 = vadd.f32 0.0, %v8042
        %v8044 = vpop.f32.mrb[0].mxu0
        %8045 = vmatprep.mubr.bf16.mxu0 0
        %8046 = vmatmul.mubr.bf16.gmra.mrb[0].mxu0 %v7868
        %v8047 = vpop.f32.mrb[0].mxu0
        %v8048 = vadd.f32 0.0, %v8047
        %v8049 = vpop.f32.mrb[0].mxu0
        %v8050 = vpop.f32.mrb[0].mxu0
        %v8051 = vadd.f32 0.0, %v8050
        %v8052 = vpop.f32.mrb[0].mxu0
        %8053 = vmatprep.mubr.bf16.mxu0 0
        %8054 = vmatmul.mubr.bf16.gmra.mrb[0].mxu0 %v7869
        %v8055 = vpop.f32.mrb[0].mxu0
        %v8056 = vadd.f32 0.0, %v8055
        %v8057 = vpop.f32.mrb[0].mxu0
        %v8058 = vpop.f32.mrb[0].mxu0
        %v8059 = vadd.f32 0.0, %v8058
        %v8060 = vpop.f32.mrb[0].mxu0
        %8061 = vmatprep.mubr.bf16.mxu0 0
        %8062 = vmatmul.mubr.bf16.gmra.mrb[0].mxu0 %v7870
        %v8063 = vpop.f32.mrb[0].mxu0
        %v8064 = vadd.f32 0.0, %v8063
        %v8065 = vpop.f32.mrb[0].mxu0
        %v8066 = vpop.f32.mrb[0].mxu0
        %v8067 = vadd.f32 0.0, %v8066
        %v8068 = vpop.f32.mrb[0].mxu0
        %8069 = vmatprep.mubr.bf16.mxu0 0
        %8070 = vmatmul.mubr.bf16.gmra.mrb[0].mxu0 %v7871
        %v8071 = vpop.f32.mrb[0].mxu0
        %v8072 = vadd.f32 0.0, %v8071
        %v8073 = vpop.f32.mrb[0].mxu0
        %v8074 = vpop.f32.mrb[0].mxu0
        %v8075 = vadd.f32 0.0, %v8074
        %v8076 = vpop.f32.mrb[0].mxu0
        %8077 = vmatprep.mubr.bf16.mxu0 0
        %8078 = vmatmul.mubr.bf16.gmra.mrb[0].mxu0 %v7872
        %v8079 = vpop.f32.mrb[0].mxu0
        %v8080 = vadd.f32 0.0, %v8079
        %v8081 = vpop.f32.mrb[0].mxu0
        %v8082 = vpop.f32.mrb[0].mxu0
        %v8083 = vadd.f32 0.0, %v8082
        %v8084 = vpop.f32.mrb[0].mxu0
        %8085 = vmatprep.mubr.bf16.mxu0 0
        %8086 = vmatmul.mubr.bf16.gmra.mrb[0].mxu0 %v7873
        %v8087 = vpop.f32.mrb[0].mxu0
        %v8088 = vadd.f32 0.0, %v8087
        %v8089 = vpop.f32.mrb[0].mxu0
        %v8090 = vpop.f32.mrb[0].mxu0
        %v8091 = vadd.f32 0.0, %v8090
        %v8092 = vpop.f32.mrb[0].mxu0
        %8093 = vmatprep.mubr.bf16.mxu0 0
        %8094 = vmatmul.mubr.bf16.gmra.mrb[0].mxu0 %v7874
        %v8095 = vpop.f32.mrb[0].mxu0
        %v8096 = vadd.f32 0.0, %v8095
        %v8097 = vpop.f32.mrb[0].mxu0
        %v8098 = vpop.f32.mrb[0].mxu0
        %v8099 = vadd.f32 0.0, %v8098
        %v8100 = vpop.f32.mrb[0].mxu0
        %8101 = vmatprep.mubr.bf16.mxu0 0
        %8102 = vmatmul.mubr.bf16.gmra.mrb[0].mxu0 %v7875
        %v8103 = vpop.f32.mrb[0].mxu0
        %v8104 = vadd.f32 0.0, %v8103
        %v8105 = vpop.f32.mrb[0].mxu0
        %v8106 = vpop.f32.mrb[0].mxu0
        %v8107 = vadd.f32 0.0, %v8106
        %v8108 = vpop.f32.mrb[0].mxu0
        %8109 = vmatprep.mubr.bf16.mxu0 0
        %8110 = vmatmul.mubr.bf16.gmra.mrb[0].mxu0 %v7876
        %v8111 = vpop.f32.mrb[0].mxu0
        %v8112 = vadd.f32 0.0, %v8111
        %v8113 = vpop.f32.mrb[0].mxu0
        %v8114 = vpop.f32.mrb[0].mxu0
        %v8115 = vadd.f32 0.0, %v8114
        %v8116 = vpop.f32.mrb[0].mxu0
        %8117 = vmatprep.mubr.bf16.mxu0 0
        %8118 = vmatmul.mubr.bf16.gmra.mrb[0].mxu0 %v7877
        %v8119 = vpop.f32.mrb[0].mxu0
        %v8120 = vadd.f32 0.0, %v8119
        %v8121 = vpop.f32.mrb[0].mxu0
        %v8122 = vpop.f32.mrb[0].mxu0
        %v8123 = vadd.f32 0.0, %v8122
        %v8124 = vpop.f32.mrb[0].mxu0
        %8125 = vmatprep.mubr.bf16.mxu0 0
        %8126 = vmatmul.mubr.bf16.gmra.mrb[0].mxu0 %v7878
        %v8127 = vpop.f32.mrb[0].mxu0
        %v8128 = vadd.f32 0.0, %v8127
        %v8129 = vpop.f32.mrb[0].mxu0
        %v8130 = vpop.f32.mrb[0].mxu0
        %v8131 = vadd.f32 0.0, %v8130
        %v8132 = vpop.f32.mrb[0].mxu0
        %8133 = vmatprep.mubr.bf16.mxu0 0
        %8134 = vmatmul.mubr.bf16.gmra.mrb[0].mxu0 %v7879
        %v8135 = vpop.f32.mrb[0].mxu0
        %v8136 = vadd.f32 0.0, %v8135
        %v8137 = vpop.f32.mrb[0].mxu0
        %v8138 = vpop.f32.mrb[0].mxu0
        %v8139 = vadd.f32 0.0, %v8138
        %v8140 = vpop.f32.mrb[0].mxu0
        %8141 = vmatprep.mubr.bf16.mxu0 0
        %8142 = vmatmul.mubr.bf16.gmra.mrb[0].mxu0 %v7880
        %v8143 = vpop.f32.mrb[0].mxu0
        %v8144 = vadd.f32 0.0, %v8143
        %v8145 = vpop.f32.mrb[0].mxu0
        %v8146 = vpop.f32.mrb[0].mxu0
        %v8147 = vadd.f32 0.0, %v8146
        %v8148 = vpop.f32.mrb[0].mxu0
        %8149 = vmatprep.mubr.bf16.mxu0 0
        %8150 = vmatmul.mubr.bf16.gmra.mrb[0].mxu0 %v7881
        %v8151 = vpop.f32.mrb[0].mxu0
        %v8152 = vadd.f32 0.0, %v8151
        %v8153 = vpop.f32.mrb[0].mxu0
        %v8154 = vpop.f32.mrb[0].mxu0
        %v8155 = vadd.f32 0.0, %v8154
        %v8156 = vpop.f32.mrb[0].mxu0
        %8157 = vmatprep.mubr.bf16.mxu0 0
        %8158 = vmatmul.mubr.bf16.gmra.mrb[0].mxu0 %v7882
        %v8159 = vpop.f32.mrb[0].mxu0
        %v8160 = vadd.f32 0.0, %v8159
        %v8161 = vpop.f32.mrb[0].mxu0
        %v8162 = vpop.f32.mrb[0].mxu0
        %v8163 = vadd.f32 0.0, %v8162
        %v8164 = vpop.f32.mrb[0].mxu0
        %8165 = vmatprep.mubr.bf16.mxu0 0
        %8166 = vmatmul.mubr.bf16.gmra.mrb[0].mxu0 %v7883
        %v8167 = vpop.f32.mrb[0].mxu0
        %v8168 = vadd.f32 0.0, %v8167
        %v8169 = vpop.f32.mrb[0].mxu0
        %v8170 = vpop.f32.mrb[0].mxu0
        %v8171 = vadd.f32 0.0, %v8170
        %v8172 = vpop.f32.mrb[0].mxu0
        %8173 = vmatprep.mubr.bf16.mxu0 0
        %8174 = vmatmul.mubr.bf16.gmra.mrb[0].mxu0 %v7884
        %v8175 = vpop.f32.mrb[0].mxu0
        %v8176 = vadd.f32 0.0, %v8175
        %v8177 = vpop.f32.mrb[0].mxu0
        %v8178 = vpop.f32.mrb[0].mxu0
        %v8179 = vadd.f32 0.0, %v8178
        %v8180 = vpop.f32.mrb[0].mxu0
        %8181 = vdwg.mxu0
        %v8182 = vrot.slane %v7992, 7
        %v8183 = vrot.slane %v7995, 7
        %v8184 = vrot.slane %v8000, 7
        %v8185 = vrot.slane %v8003, 7
        %v8186 = vrot.slane %v8008, 7
        %v8187 = vrot.slane %v8011, 7
        %v8188 = vrot.slane %v8016, 7
        %v8189 = vrot.slane %v8019, 7
        %v8190 = vrot.slane %v8024, 7
        %v8191 = vrot.slane %v8027, 7
        %v8192 = vrot.slane %v8032, 7
        %v8193 = vrot.slane %v8035, 7
        %v8194 = vrot.slane %v8040, 7
        %v8195 = vrot.slane %v8043, 7
        %v8196 = vrot.slane %v8048, 7
        %v8197 = vrot.slane %v8051, 7
        %v8198 = vrot.slane %v8056, 7
        %v8199 = vrot.slane %v8059, 7
        %v8200 = vrot.slane %v8064, 7
        %v8201 = vrot.slane %v8067, 7
        %v8202 = vrot.slane %v8072, 7
        %v8203 = vrot.slane %v8075, 7
        %v8204 = vrot.slane %v8080, 7
        %v8205 = vrot.slane %v8083, 7
        %v8206 = vrot.slane %v8088, 7
        %v8207 = vrot.slane %v8091, 7
        %v8208 = vrot.slane %v8096, 7
        %v8209 = vrot.slane %v8099, 7
        %v8210 = vrot.slane %v8104, 7
        %v8211 = vrot.slane %v8107, 7
        %v8212 = vrot.slane %v8112, 7
        %v8213 = vrot.slane %v8115, 7
        %v8214 = vrot.slane %v8120, 7
        %v8215 = vrot.slane %v8123, 7
        %v8216 = vrot.slane %v8128, 7
        %v8217 = vrot.slane %v8131, 7
        %v8218 = vrot.slane %v8136, 7
        %v8219 = vrot.slane %v8139, 7
        %v8220 = vrot.slane %v8144, 7
        %v8221 = vrot.slane %v8147, 7
        %v8222 = vrot.slane %v8152, 7
        %v8223 = vrot.slane %v8155, 7
        %v8224 = vrot.slane %v8160, 7
        %v8225 = vrot.slane %v8163, 7
        %v8226 = vrot.slane %v8168, 7
        %v8227 = vrot.slane %v8171, 7
        %v8228 = vrot.slane %v8176, 7
        %v8229 = vrot.slane %v8179, 7
        %v8230 = vsel %vm5336, %v8228, %v8229
        %v8231 = vsel %vm5336, %v8227, %v8228
        %v8232 = vsel %vm5336, %v8226, %v8227
        %v8233 = vsel %vm5336, %v8225, %v8226
        %v8234 = vsel %vm5336, %v8224, %v8225
        %v8235 = vsel %vm5336, %v8223, %v8224
        %v8236 = vsel %vm5336, %v8222, %v8223
        %v8237 = vsel %vm5336, %v8221, %v8222
        %v8238 = vsel %vm5336, %v8220, %v8221
        %v8239 = vsel %vm5336, %v8219, %v8220
        %v8240 = vsel %vm5336, %v8218, %v8219
        %v8241 = vsel %vm5336, %v8217, %v8218
        %v8242 = vsel %vm5336, %v8216, %v8217
        %v8243 = vsel %vm5336, %v8215, %v8216
        %v8244 = vsel %vm5336, %v8214, %v8215
        %v8245 = vsel %vm5336, %v8213, %v8214
        %v8246 = vsel %vm5336, %v8212, %v8213
        %v8247 = vsel %vm5336, %v8211, %v8212
        %v8248 = vsel %vm5336, %v8210, %v8211
        %v8249 = vsel %vm5336, %v8209, %v8210
        %v8250 = vsel %vm5336, %v8208, %v8209
        %v8251 = vsel %vm5336, %v8207, %v8208
        %v8252 = vsel %vm5336, %v8206, %v8207
        %v8253 = vsel %vm5336, %v8205, %v8206
        %v8254 = vsel %vm5336, %v8204, %v8205
        %v8255 = vsel %vm5336, %v8203, %v8204
        %v8256 = vsel %vm5336, %v8202, %v8203
        %v8257 = vsel %vm5336, %v8201, %v8202
        %v8258 = vsel %vm5336, %v8200, %v8201
        %v8259 = vsel %vm5336, %v8199, %v8200
        %v8260 = vsel %vm5336, %v8198, %v8199
        %v8261 = vsel %vm5336, %v8197, %v8198
        %v8262 = vsel %vm5336, %v8196, %v8197
        %v8263 = vsel %vm5336, %v8195, %v8196
        %v8264 = vsel %vm5336, %v8194, %v8195
        %v8265 = vsel %vm5336, %v8193, %v8194
        %v8266 = vsel %vm5336, %v8192, %v8193
        %v8267 = vsel %vm5336, %v8191, %v8192
        %v8268 = vsel %vm5336, %v8190, %v8191
        %v8269 = vsel %vm5336, %v8189, %v8190
        %v8270 = vsel %vm5336, %v8188, %v8189
        %v8271 = vsel %vm5336, %v8187, %v8188
        %v8272 = vsel %vm5336, %v8186, %v8187
        %v8273 = vsel %vm5336, %v8185, %v8186
        %v8274 = vsel %vm5336, %v8184, %v8185
        %v8275 = vsel %vm5336, %v8183, %v8184
        %v8276 = vsel %vm5336, %v8182, %v8183
        %v8277 = vsel %vm5336, %v8229, %v8182
        %s8278 = scalar_lea.vmem [#allocation10], 448
        %v8279 = vld [vmem:[%s8278] sm:$0xf]
        %v8280 = vld [vmem:[%s8278 + $0x4] sm:$0xf]
        %v8281 = vld [vmem:[%s8278 + $0x8] sm:$0xf]
        %v8282 = vld [vmem:[%s8278 + $0xc] sm:$0xf]
        %v8283 = vld [vmem:[%s8278 + $0x10] sm:$0xf]
        %v8284 = vld [vmem:[%s8278 + $0x14] sm:$0xf]
        %v8285 = vld [vmem:[%s8278 + $0x18] sm:$0xf]
        %v8286 = vld [vmem:[%s8278 + $0x1c] sm:$0xf]
        %v8287 = vld [vmem:[%s8278 + $0x20] sm:$0xf]
        %v8288 = vld [vmem:[%s8278 + $0x24] sm:$0xf]
        %v8289 = vld [vmem:[%s8278 + $0x28] sm:$0xf]
        %v8290 = vld [vmem:[%s8278 + $0x2c] sm:$0xf]
        %v8291 = vld [vmem:[%s8278 + $0x30] sm:$0xf]
        %v8292 = vld [vmem:[%s8278 + $0x34] sm:$0xf]
        %v8293 = vld [vmem:[%s8278 + $0x38] sm:$0xf]
        %v8294 = vld [vmem:[%s8278 + $0x3c] sm:$0xf]
        %v8311 = vunpack.c.l.b16 %v8279
        %v8312 = vunpack.c.l.b16 %v8280
        %v8313 = vunpack.c.l.b16 %v8281
        %v8314 = vunpack.c.l.b16 %v8282
        %v8315 = vunpack.c.l.b16 %v8283
        %v8316 = vunpack.c.l.b16 %v8284
        %v8317 = vunpack.c.l.b16 %v8285
        %v8318 = vunpack.c.l.b16 %v8286
        %v8319 = vunpack.c.l.b16 %v8287
        %v8320 = vunpack.c.l.b16 %v8288
        %v8321 = vunpack.c.l.b16 %v8289
        %v8322 = vunpack.c.l.b16 %v8290
        %v8323 = vunpack.c.l.b16 %v8291
        %v8324 = vunpack.c.l.b16 %v8292
        %v8325 = vunpack.c.l.b16 %v8293
        %v8326 = vunpack.c.l.b16 %v8294
        %v8327 = vpack.c.b16 %v8312, %v8311
        %v8328 = vpack.c.b16 %v8314, %v8313
        %v8329 = vpack.c.b16 %v8316, %v8315
        %v8330 = vpack.c.b16 %v8318, %v8317
        %v8331 = vpack.c.b16 %v8320, %v8319
        %v8332 = vpack.c.b16 %v8322, %v8321
        %v8333 = vpack.c.b16 %v8324, %v8323
        %v8334 = vpack.c.b16 %v8326, %v8325
        %8343 = vmatprep.subr.bf16.mxu0 0
        %8344 = vmatpush1.bf16.msra.mxu0 %v8327
        %8345 = vmatprep.subr.bf16.mxu0 0
        %8346 = vmatpush1.bf16.msra.mxu0 %v8328
        %8347 = vmatprep.subr.bf16.mxu0 0
        %8348 = vmatpush1.bf16.msra.mxu0 %v8329
        %8349 = vmatprep.subr.bf16.mxu0 0
        %8350 = vmatpush1.bf16.msra.mxu0 %v8330
        %8351 = vmatprep.subr.bf16.mxu0 0
        %8352 = vmatpush1.bf16.msra.mxu0 %v8331
        %8353 = vmatprep.subr.bf16.mxu0 0
        %8354 = vmatpush1.bf16.msra.mxu0 %v8332
        %8355 = vmatprep.subr.bf16.mxu0 0
        %8356 = vmatpush1.bf16.msra.mxu0 %v8333
        %8357 = vmatprep.subr.bf16.mxu0 0
        %8358 = vmatpush1.bf16.msra.mxu0 %v8334
        %8359 = vmatprep.subr.bf16.mxu0 0
        %8360 = vmatpush1.bf16.msra.mxu0 0
        %8361 = vmatprep.subr.bf16.mxu0 0
        %8362 = vmatpush1.bf16.msra.mxu0 0
        %8363 = vmatprep.subr.bf16.mxu0 0
        %8364 = vmatpush1.bf16.msra.mxu0 0
        %8365 = vmatprep.subr.bf16.mxu0 0
        %8366 = vmatpush1.bf16.msra.mxu0 0
        %8367 = vmatprep.subr.bf16.mxu0 0
        %8368 = vmatpush1.bf16.msra.mxu0 0
        %8369 = vmatprep.subr.bf16.mxu0 0
        %8370 = vmatpush1.bf16.msra.mxu0 0
        %8371 = vmatprep.subr.bf16.mxu0 0
        %8372 = vmatpush1.bf16.msra.mxu0 0
        %8373 = vmatprep.subr.bf16.mxu0 0
        %8374 = vmatpush1.bf16.msra.mxu0 0
        %8375 = vmatprep.mubr.bf16.mxu0 0
        %8376 = vmatmul.mubr.bf16.gmra.mrb[0].mxu0 %v7861
        %v8377 = vpop.f32.mrb[0].mxu0
        %v8378 = vadd.f32 0.0, %v8377
        %v8379 = vpop.f32.mrb[0].mxu0
        %v8380 = vpop.f32.mrb[0].mxu0
        %v8381 = vadd.f32 0.0, %v8380
        %v8382 = vpop.f32.mrb[0].mxu0
        %8383 = vmatprep.mubr.bf16.mxu0 0
        %8384 = vmatmul.mubr.bf16.gmra.mrb[0].mxu0 %v7862
        %v8385 = vpop.f32.mrb[0].mxu0
        %v8386 = vadd.f32 0.0, %v8385
        %v8387 = vpop.f32.mrb[0].mxu0
        %v8388 = vpop.f32.mrb[0].mxu0
        %v8389 = vadd.f32 0.0, %v8388
        %v8390 = vpop.f32.mrb[0].mxu0
        %8391 = vmatprep.mubr.bf16.mxu0 0
        %8392 = vmatmul.mubr.bf16.gmra.mrb[0].mxu0 %v7863
        %v8393 = vpop.f32.mrb[0].mxu0
        %v8394 = vadd.f32 0.0, %v8393
        %v8395 = vpop.f32.mrb[0].mxu0
        %v8396 = vpop.f32.mrb[0].mxu0
        %v8397 = vadd.f32 0.0, %v8396
        %v8398 = vpop.f32.mrb[0].mxu0
        %8399 = vmatprep.mubr.bf16.mxu0 0
        %8400 = vmatmul.mubr.bf16.gmra.mrb[0].mxu0 %v7864
        %v8401 = vpop.f32.mrb[0].mxu0
        %v8402 = vadd.f32 0.0, %v8401
        %v8403 = vpop.f32.mrb[0].mxu0
        %v8404 = vpop.f32.mrb[0].mxu0
        %v8405 = vadd.f32 0.0, %v8404
        %v8406 = vpop.f32.mrb[0].mxu0
        %8407 = vmatprep.mubr.bf16.mxu0 0
        %8408 = vmatmul.mubr.bf16.gmra.mrb[0].mxu0 %v7865
        %v8409 = vpop.f32.mrb[0].mxu0
        %v8410 = vadd.f32 0.0, %v8409
        %v8411 = vpop.f32.mrb[0].mxu0
        %v8412 = vpop.f32.mrb[0].mxu0
        %v8413 = vadd.f32 0.0, %v8412
        %v8414 = vpop.f32.mrb[0].mxu0
        %8415 = vmatprep.mubr.bf16.mxu0 0
        %8416 = vmatmul.mubr.bf16.gmra.mrb[0].mxu0 %v7866
        %v8417 = vpop.f32.mrb[0].mxu0
        %v8418 = vadd.f32 0.0, %v8417
        %v8419 = vpop.f32.mrb[0].mxu0
        %v8420 = vpop.f32.mrb[0].mxu0
        %v8421 = vadd.f32 0.0, %v8420
        %v8422 = vpop.f32.mrb[0].mxu0
        %8423 = vmatprep.mubr.bf16.mxu0 0
        %8424 = vmatmul.mubr.bf16.gmra.mrb[0].mxu0 %v7867
        %v8425 = vpop.f32.mrb[0].mxu0
        %v8426 = vadd.f32 0.0, %v8425
        %v8427 = vpop.f32.mrb[0].mxu0
        %v8428 = vpop.f32.mrb[0].mxu0
        %v8429 = vadd.f32 0.0, %v8428
        %v8430 = vpop.f32.mrb[0].mxu0
        %8431 = vmatprep.mubr.bf16.mxu0 0
        %8432 = vmatmul.mubr.bf16.gmra.mrb[0].mxu0 %v7868
        %v8433 = vpop.f32.mrb[0].mxu0
        %v8434 = vadd.f32 0.0, %v8433
        %v8435 = vpop.f32.mrb[0].mxu0
        %v8436 = vpop.f32.mrb[0].mxu0
        %v8437 = vadd.f32 0.0, %v8436
        %v8438 = vpop.f32.mrb[0].mxu0
        %8439 = vmatprep.mubr.bf16.mxu0 0
        %8440 = vmatmul.mubr.bf16.gmra.mrb[0].mxu0 %v7869
        %v8441 = vpop.f32.mrb[0].mxu0
        %v8442 = vadd.f32 0.0, %v8441
        %v8443 = vpop.f32.mrb[0].mxu0
        %v8444 = vpop.f32.mrb[0].mxu0
        %v8445 = vadd.f32 0.0, %v8444
        %v8446 = vpop.f32.mrb[0].mxu0
        %8447 = vmatprep.mubr.bf16.mxu0 0
        %8448 = vmatmul.mubr.bf16.gmra.mrb[0].mxu0 %v7870
        %v8449 = vpop.f32.mrb[0].mxu0
        %v8450 = vadd.f32 0.0, %v8449
        %v8451 = vpop.f32.mrb[0].mxu0
        %v8452 = vpop.f32.mrb[0].mxu0
        %v8453 = vadd.f32 0.0, %v8452
        %v8454 = vpop.f32.mrb[0].mxu0
        %8455 = vmatprep.mubr.bf16.mxu0 0
        %8456 = vmatmul.mubr.bf16.gmra.mrb[0].mxu0 %v7871
        %v8457 = vpop.f32.mrb[0].mxu0
        %v8458 = vadd.f32 0.0, %v8457
        %v8459 = vpop.f32.mrb[0].mxu0
        %v8460 = vpop.f32.mrb[0].mxu0
        %v8461 = vadd.f32 0.0, %v8460
        %v8462 = vpop.f32.mrb[0].mxu0
        %8463 = vmatprep.mubr.bf16.mxu0 0
        %8464 = vmatmul.mubr.bf16.gmra.mrb[0].mxu0 %v7872
        %v8465 = vpop.f32.mrb[0].mxu0
        %v8466 = vadd.f32 0.0, %v8465
        %v8467 = vpop.f32.mrb[0].mxu0
        %v8468 = vpop.f32.mrb[0].mxu0
        %v8469 = vadd.f32 0.0, %v8468
        %v8470 = vpop.f32.mrb[0].mxu0
        %8471 = vmatprep.mubr.bf16.mxu0 0
        %8472 = vmatmul.mubr.bf16.gmra.mrb[0].mxu0 %v7873
        %v8473 = vpop.f32.mrb[0].mxu0
        %v8474 = vadd.f32 0.0, %v8473
        %v8475 = vpop.f32.mrb[0].mxu0
        %v8476 = vpop.f32.mrb[0].mxu0
        %v8477 = vadd.f32 0.0, %v8476
        %v8478 = vpop.f32.mrb[0].mxu0
        %8479 = vmatprep.mubr.bf16.mxu0 0
        %8480 = vmatmul.mubr.bf16.gmra.mrb[0].mxu0 %v7874
        %v8481 = vpop.f32.mrb[0].mxu0
        %v8482 = vadd.f32 0.0, %v8481
        %v8483 = vpop.f32.mrb[0].mxu0
        %v8484 = vpop.f32.mrb[0].mxu0
        %v8485 = vadd.f32 0.0, %v8484
        %v8486 = vpop.f32.mrb[0].mxu0
        %8487 = vmatprep.mubr.bf16.mxu0 0
        %8488 = vmatmul.mubr.bf16.gmra.mrb[0].mxu0 %v7875
        %v8489 = vpop.f32.mrb[0].mxu0
        %v8490 = vadd.f32 0.0, %v8489
        %v8491 = vpop.f32.mrb[0].mxu0
        %v8492 = vpop.f32.mrb[0].mxu0
        %v8493 = vadd.f32 0.0, %v8492
        %v8494 = vpop.f32.mrb[0].mxu0
        %8495 = vmatprep.mubr.bf16.mxu0 0
        %8496 = vmatmul.mubr.bf16.gmra.mrb[0].mxu0 %v7876
        %v8497 = vpop.f32.mrb[0].mxu0
        %v8498 = vadd.f32 0.0, %v8497
        %v8499 = vpop.f32.mrb[0].mxu0
        %v8500 = vpop.f32.mrb[0].mxu0
        %v8501 = vadd.f32 0.0, %v8500
        %v8502 = vpop.f32.mrb[0].mxu0
        %8503 = vmatprep.mubr.bf16.mxu0 0
        %8504 = vmatmul.mubr.bf16.gmra.mrb[0].mxu0 %v7877
        %v8505 = vpop.f32.mrb[0].mxu0
        %v8506 = vadd.f32 0.0, %v8505
        %v8507 = vpop.f32.mrb[0].mxu0
        %v8508 = vpop.f32.mrb[0].mxu0
        %v8509 = vadd.f32 0.0, %v8508
        %v8510 = vpop.f32.mrb[0].mxu0
        %8511 = vmatprep.mubr.bf16.mxu0 0
        %8512 = vmatmul.mubr.bf16.gmra.mrb[0].mxu0 %v7878
        %v8513 = vpop.f32.mrb[0].mxu0
        %v8514 = vadd.f32 0.0, %v8513
        %v8515 = vpop.f32.mrb[0].mxu0
        %v8516 = vpop.f32.mrb[0].mxu0
        %v8517 = vadd.f32 0.0, %v8516
        %v8518 = vpop.f32.mrb[0].mxu0
        %8519 = vmatprep.mubr.bf16.mxu0 0
        %8520 = vmatmul.mubr.bf16.gmra.mrb[0].mxu0 %v7879
        %v8521 = vpop.f32.mrb[0].mxu0
        %v8522 = vadd.f32 0.0, %v8521
        %v8523 = vpop.f32.mrb[0].mxu0
        %v8524 = vpop.f32.mrb[0].mxu0
        %v8525 = vadd.f32 0.0, %v8524
        %v8526 = vpop.f32.mrb[0].mxu0
        %8527 = vmatprep.mubr.bf16.mxu0 0
        %8528 = vmatmul.mubr.bf16.gmra.mrb[0].mxu0 %v7880
        %v8529 = vpop.f32.mrb[0].mxu0
        %v8530 = vadd.f32 0.0, %v8529
        %v8531 = vpop.f32.mrb[0].mxu0
        %v8532 = vpop.f32.mrb[0].mxu0
        %v8533 = vadd.f32 0.0, %v8532
        %v8534 = vpop.f32.mrb[0].mxu0
        %8535 = vmatprep.mubr.bf16.mxu0 0
        %8536 = vmatmul.mubr.bf16.gmra.mrb[0].mxu0 %v7881
        %v8537 = vpop.f32.mrb[0].mxu0
        %v8538 = vadd.f32 0.0, %v8537
        %v8539 = vpop.f32.mrb[0].mxu0
        %v8540 = vpop.f32.mrb[0].mxu0
        %v8541 = vadd.f32 0.0, %v8540
        %v8542 = vpop.f32.mrb[0].mxu0
        %8543 = vmatprep.mubr.bf16.mxu0 0
        %8544 = vmatmul.mubr.bf16.gmra.mrb[0].mxu0 %v7882
        %v8545 = vpop.f32.mrb[0].mxu0
        %v8546 = vadd.f32 0.0, %v8545
        %v8547 = vpop.f32.mrb[0].mxu0
        %v8548 = vpop.f32.mrb[0].mxu0
        %v8549 = vadd.f32 0.0, %v8548
        %v8550 = vpop.f32.mrb[0].mxu0
        %8551 = vmatprep.mubr.bf16.mxu0 0
        %8552 = vmatmul.mubr.bf16.gmra.mrb[0].mxu0 %v7883
        %v8553 = vpop.f32.mrb[0].mxu0
        %v8554 = vadd.f32 0.0, %v8553
        %v8555 = vpop.f32.mrb[0].mxu0
        %v8556 = vpop.f32.mrb[0].mxu0
        %v8557 = vadd.f32 0.0, %v8556
        %v8558 = vpop.f32.mrb[0].mxu0
        %8559 = vmatprep.mubr.bf16.mxu0 0
        %8560 = vmatmul.mubr.bf16.gmra.mrb[0].mxu0 %v7884
        %v8561 = vpop.f32.mrb[0].mxu0
        %v8562 = vadd.f32 0.0, %v8561
        %v8563 = vpop.f32.mrb[0].mxu0
        %v8564 = vpop.f32.mrb[0].mxu0
        %v8565 = vadd.f32 0.0, %v8564
        %v8566 = vpop.f32.mrb[0].mxu0
        %8567 = vdwg.mxu0
        %v8568 = vadd.f32 %v8277, %v8378
        %v8569 = vadd.f32 %v8276, %v8381
        %v8570 = vadd.f32 %v8275, %v8386
        %v8571 = vadd.f32 %v8274, %v8389
        %v8572 = vadd.f32 %v8273, %v8394
        %v8573 = vadd.f32 %v8272, %v8397
        %v8574 = vadd.f32 %v8271, %v8402
        %v8575 = vadd.f32 %v8270, %v8405
        %v8576 = vadd.f32 %v8269, %v8410
        %v8577 = vadd.f32 %v8268, %v8413
        %v8578 = vadd.f32 %v8267, %v8418
        %v8579 = vadd.f32 %v8266, %v8421
        %v8580 = vadd.f32 %v8265, %v8426
        %v8581 = vadd.f32 %v8264, %v8429
        %v8582 = vadd.f32 %v8263, %v8434
        %v8583 = vadd.f32 %v8262, %v8437
        %v8584 = vadd.f32 %v8261, %v8442
        %v8585 = vadd.f32 %v8260, %v8445
        %v8586 = vadd.f32 %v8259, %v8450
        %v8587 = vadd.f32 %v8258, %v8453
        %v8588 = vadd.f32 %v8257, %v8458
        %v8589 = vadd.f32 %v8256, %v8461
        %v8590 = vadd.f32 %v8255, %v8466
        %v8591 = vadd.f32 %v8254, %v8469
        %v8592 = vadd.f32 %v8253, %v8474
        %v8593 = vadd.f32 %v8252, %v8477
        %v8594 = vadd.f32 %v8251, %v8482
        %v8595 = vadd.f32 %v8250, %v8485
        %v8596 = vadd.f32 %v8249, %v8490
        %v8597 = vadd.f32 %v8248, %v8493
        %v8598 = vadd.f32 %v8247, %v8498
        %v8599 = vadd.f32 %v8246, %v8501
        %v8600 = vadd.f32 %v8245, %v8506
        %v8601 = vadd.f32 %v8244, %v8509
        %v8602 = vadd.f32 %v8243, %v8514
        %v8603 = vadd.f32 %v8242, %v8517
        %v8604 = vadd.f32 %v8241, %v8522
        %v8605 = vadd.f32 %v8240, %v8525
        %v8606 = vadd.f32 %v8239, %v8530
        %v8607 = vadd.f32 %v8238, %v8533
        %v8608 = vadd.f32 %v8237, %v8538
        %v8609 = vadd.f32 %v8236, %v8541
        %v8610 = vadd.f32 %v8235, %v8546
        %v8611 = vadd.f32 %v8234, %v8549
        %v8612 = vadd.f32 %v8233, %v8554
        %v8613 = vadd.f32 %v8232, %v8557
        %v8614 = vadd.f32 %v8231, %v8562
        %v8615 = vadd.f32 %v8230, %v8565
        %s8616 = scalar_lea.vmem [#allocation10], 512
        %v8617 = vld [vmem:[%s8616] sm:$0xf]
        %v8618 = vld [vmem:[%s8616 + $0x4] sm:$0xf]
        %v8619 = vld [vmem:[%s8616 + $0x8] sm:$0xf]
        %v8620 = vld [vmem:[%s8616 + $0xc] sm:$0xf]
        %v8621 = vld [vmem:[%s8616 + $0x10] sm:$0xf]
        %v8622 = vld [vmem:[%s8616 + $0x14] sm:$0xf]
        %v8623 = vld [vmem:[%s8616 + $0x18] sm:$0xf]
        %v8624 = vld [vmem:[%s8616 + $0x1c] sm:$0xf]
        %v8625 = vld [vmem:[%s8616 + $0x20] sm:$0xf]
        %v8626 = vld [vmem:[%s8616 + $0x24] sm:$0xf]
        %v8627 = vld [vmem:[%s8616 + $0x28] sm:$0xf]
        %v8628 = vld [vmem:[%s8616 + $0x2c] sm:$0xf]
        %v8629 = vld [vmem:[%s8616 + $0x30] sm:$0xf]
        %v8630 = vld [vmem:[%s8616 + $0x34] sm:$0xf]
        %v8631 = vld [vmem:[%s8616 + $0x38] sm:$0xf]
        %v8632 = vld [vmem:[%s8616 + $0x3c] sm:$0xf]
        %v8649 = vunpack.c.l.b16 %v8617
        %v8650 = vunpack.c.l.b16 %v8618
        %v8651 = vunpack.c.l.b16 %v8619
        %v8652 = vunpack.c.l.b16 %v8620
        %v8653 = vunpack.c.l.b16 %v8621
        %v8654 = vunpack.c.l.b16 %v8622
        %v8655 = vunpack.c.l.b16 %v8623
        %v8656 = vunpack.c.l.b16 %v8624
        %v8657 = vunpack.c.l.b16 %v8625
        %v8658 = vunpack.c.l.b16 %v8626
        %v8659 = vunpack.c.l.b16 %v8627
        %v8660 = vunpack.c.l.b16 %v8628
        %v8661 = vunpack.c.l.b16 %v8629
        %v8662 = vunpack.c.l.b16 %v8630
        %v8663 = vunpack.c.l.b16 %v8631
        %v8664 = vunpack.c.l.b16 %v8632
        %v8665 = vpack.c.b16 %v8650, %v8649
        %v8666 = vpack.c.b16 %v8652, %v8651
        %v8667 = vpack.c.b16 %v8654, %v8653
        %v8668 = vpack.c.b16 %v8656, %v8655
        %v8669 = vpack.c.b16 %v8658, %v8657
        %v8670 = vpack.c.b16 %v8660, %v8659
        %v8671 = vpack.c.b16 %v8662, %v8661
        %v8672 = vpack.c.b16 %v8664, %v8663
        %8681 = vmatprep.subr.bf16.mxu0 0
        %8682 = vmatpush1.bf16.msra.mxu0 %v8665
        %8683 = vmatprep.subr.bf16.mxu0 0
        %8684 = vmatpush1.bf16.msra.mxu0 %v8666
        %8685 = vmatprep.subr.bf16.mxu0 0
        %8686 = vmatpush1.bf16.msra.mxu0 %v8667
        %8687 = vmatprep.subr.bf16.mxu0 0
        %8688 = vmatpush1.bf16.msra.mxu0 %v8668
        %8689 = vmatprep.subr.bf16.mxu0 0
        %8690 = vmatpush1.bf16.msra.mxu0 %v8669
        %8691 = vmatprep.subr.bf16.mxu0 0
        %8692 = vmatpush1.bf16.msra.mxu0 %v8670
        %8693 = vmatprep.subr.bf16.mxu0 0
        %8694 = vmatpush1.bf16.msra.mxu0 %v8671
        %8695 = vmatprep.subr.bf16.mxu0 0
        %8696 = vmatpush1.bf16.msra.mxu0 %v8672
        %8697 = vmatprep.subr.bf16.mxu0 0
        %8698 = vmatpush1.bf16.msra.mxu0 0
        %8699 = vmatprep.subr.bf16.mxu0 0
        %8700 = vmatpush1.bf16.msra.mxu0 0
        %8701 = vmatprep.subr.bf16.mxu0 0
        %8702 = vmatpush1.bf16.msra.mxu0 0
        %8703 = vmatprep.subr.bf16.mxu0 0
        %8704 = vmatpush1.bf16.msra.mxu0 0
        %8705 = vmatprep.subr.bf16.mxu0 0
        %8706 = vmatpush1.bf16.msra.mxu0 0
        %8707 = vmatprep.subr.bf16.mxu0 0
        %8708 = vmatpush1.bf16.msra.mxu0 0
        %8709 = vmatprep.subr.bf16.mxu0 0
        %8710 = vmatpush1.bf16.msra.mxu0 0
        %8711 = vmatprep.subr.bf16.mxu0 0
        %8712 = vmatpush1.bf16.msra.mxu0 0
        %8713 = vmatprep.mubr.bf16.mxu0 0
        %8714 = vmatmul.mubr.bf16.gmra.mrb[0].mxu0 %v7861
        %v8715 = vpop.f32.mrb[0].mxu0
        %v8716 = vadd.f32 0.0, %v8715
        %v8717 = vpop.f32.mrb[0].mxu0
        %v8718 = vpop.f32.mrb[0].mxu0
        %v8719 = vadd.f32 0.0, %v8718
        %v8720 = vpop.f32.mrb[0].mxu0
        %8721 = vmatprep.mubr.bf16.mxu0 0
        %8722 = vmatmul.mubr.bf16.gmra.mrb[0].mxu0 %v7862
        %v8723 = vpop.f32.mrb[0].mxu0
        %v8724 = vadd.f32 0.0, %v8723
        %v8725 = vpop.f32.mrb[0].mxu0
        %v8726 = vpop.f32.mrb[0].mxu0
        %v8727 = vadd.f32 0.0, %v8726
        %v8728 = vpop.f32.mrb[0].mxu0
        %8729 = vmatprep.mubr.bf16.mxu0 0
        %8730 = vmatmul.mubr.bf16.gmra.mrb[0].mxu0 %v7863
        %v8731 = vpop.f32.mrb[0].mxu0
        %v8732 = vadd.f32 0.0, %v8731
        %v8733 = vpop.f32.mrb[0].mxu0
        %v8734 = vpop.f32.mrb[0].mxu0
        %v8735 = vadd.f32 0.0, %v8734
        %v8736 = vpop.f32.mrb[0].mxu0
        %8737 = vmatprep.mubr.bf16.mxu0 0
        %8738 = vmatmul.mubr.bf16.gmra.mrb[0].mxu0 %v7864
        %v8739 = vpop.f32.mrb[0].mxu0
        %v8740 = vadd.f32 0.0, %v8739
        %v8741 = vpop.f32.mrb[0].mxu0
        %v8742 = vpop.f32.mrb[0].mxu0
        %v8743 = vadd.f32 0.0, %v8742
        %v8744 = vpop.f32.mrb[0].mxu0
        %8745 = vmatprep.mubr.bf16.mxu0 0
        %8746 = vmatmul.mubr.bf16.gmra.mrb[0].mxu0 %v7865
        %v8747 = vpop.f32.mrb[0].mxu0
        %v8748 = vadd.f32 0.0, %v8747
        %v8749 = vpop.f32.mrb[0].mxu0
        %v8750 = vpop.f32.mrb[0].mxu0
        %v8751 = vadd.f32 0.0, %v8750
        %v8752 = vpop.f32.mrb[0].mxu0
        %8753 = vmatprep.mubr.bf16.mxu0 0
        %8754 = vmatmul.mubr.bf16.gmra.mrb[0].mxu0 %v7866
        %v8755 = vpop.f32.mrb[0].mxu0
        %v8756 = vadd.f32 0.0, %v8755
        %v8757 = vpop.f32.mrb[0].mxu0
        %v8758 = vpop.f32.mrb[0].mxu0
        %v8759 = vadd.f32 0.0, %v8758
        %v8760 = vpop.f32.mrb[0].mxu0
        %8761 = vmatprep.mubr.bf16.mxu0 0
        %8762 = vmatmul.mubr.bf16.gmra.mrb[0].mxu0 %v7867
        %v8763 = vpop.f32.mrb[0].mxu0
        %v8764 = vadd.f32 0.0, %v8763
        %v8765 = vpop.f32.mrb[0].mxu0
        %v8766 = vpop.f32.mrb[0].mxu0
        %v8767 = vadd.f32 0.0, %v8766
        %v8768 = vpop.f32.mrb[0].mxu0
        %8769 = vmatprep.mubr.bf16.mxu0 0
        %8770 = vmatmul.mubr.bf16.gmra.mrb[0].mxu0 %v7868
        %v8771 = vpop.f32.mrb[0].mxu0
        %v8772 = vadd.f32 0.0, %v8771
        %v8773 = vpop.f32.mrb[0].mxu0
        %v8774 = vpop.f32.mrb[0].mxu0
        %v8775 = vadd.f32 0.0, %v8774
        %v8776 = vpop.f32.mrb[0].mxu0
        %8777 = vmatprep.mubr.bf16.mxu0 0
        %8778 = vmatmul.mubr.bf16.gmra.mrb[0].mxu0 %v7869
        %v8779 = vpop.f32.mrb[0].mxu0
        %v8780 = vadd.f32 0.0, %v8779
        %v8781 = vpop.f32.mrb[0].mxu0
        %v8782 = vpop.f32.mrb[0].mxu0
        %v8783 = vadd.f32 0.0, %v8782
        %v8784 = vpop.f32.mrb[0].mxu0
        %8785 = vmatprep.mubr.bf16.mxu0 0
        %8786 = vmatmul.mubr.bf16.gmra.mrb[0].mxu0 %v7870
        %v8787 = vpop.f32.mrb[0].mxu0
        %v8788 = vadd.f32 0.0, %v8787
        %v8789 = vpop.f32.mrb[0].mxu0
        %v8790 = vpop.f32.mrb[0].mxu0
        %v8791 = vadd.f32 0.0, %v8790
        %v8792 = vpop.f32.mrb[0].mxu0
        %8793 = vmatprep.mubr.bf16.mxu0 0
        %8794 = vmatmul.mubr.bf16.gmra.mrb[0].mxu0 %v7871
        %v8795 = vpop.f32.mrb[0].mxu0
        %v8796 = vadd.f32 0.0, %v8795
        %v8797 = vpop.f32.mrb[0].mxu0
        %v8798 = vpop.f32.mrb[0].mxu0
        %v8799 = vadd.f32 0.0, %v8798
        %v8800 = vpop.f32.mrb[0].mxu0
        %8801 = vmatprep.mubr.bf16.mxu0 0
        %8802 = vmatmul.mubr.bf16.gmra.mrb[0].mxu0 %v7872
        %v8803 = vpop.f32.mrb[0].mxu0
        %v8804 = vadd.f32 0.0, %v8803
        %v8805 = vpop.f32.mrb[0].mxu0
        %v8806 = vpop.f32.mrb[0].mxu0
        %v8807 = vadd.f32 0.0, %v8806
        %v8808 = vpop.f32.mrb[0].mxu0
        %8809 = vmatprep.mubr.bf16.mxu0 0
        %8810 = vmatmul.mubr.bf16.gmra.mrb[0].mxu0 %v7873
        %v8811 = vpop.f32.mrb[0].mxu0
        %v8812 = vadd.f32 0.0, %v8811
        %v8813 = vpop.f32.mrb[0].mxu0
        %v8814 = vpop.f32.mrb[0].mxu0
        %v8815 = vadd.f32 0.0, %v8814
        %v8816 = vpop.f32.mrb[0].mxu0
        %8817 = vmatprep.mubr.bf16.mxu0 0
        %8818 = vmatmul.mubr.bf16.gmra.mrb[0].mxu0 %v7874
        %v8819 = vpop.f32.mrb[0].mxu0
        %v8820 = vadd.f32 0.0, %v8819
        %v8821 = vpop.f32.mrb[0].mxu0
        %v8822 = vpop.f32.mrb[0].mxu0
        %v8823 = vadd.f32 0.0, %v8822
        %v8824 = vpop.f32.mrb[0].mxu0
        %8825 = vmatprep.mubr.bf16.mxu0 0
        %8826 = vmatmul.mubr.bf16.gmra.mrb[0].mxu0 %v7875
        %v8827 = vpop.f32.mrb[0].mxu0
        %v8828 = vadd.f32 0.0, %v8827
        %v8829 = vpop.f32.mrb[0].mxu0
        %v8830 = vpop.f32.mrb[0].mxu0
        %v8831 = vadd.f32 0.0, %v8830
        %v8832 = vpop.f32.mrb[0].mxu0
        %8833 = vmatprep.mubr.bf16.mxu0 0
        %8834 = vmatmul.mubr.bf16.gmra.mrb[0].mxu0 %v7876
        %v8835 = vpop.f32.mrb[0].mxu0
        %v8836 = vadd.f32 0.0, %v8835
        %v8837 = vpop.f32.mrb[0].mxu0
        %v8838 = vpop.f32.mrb[0].mxu0
        %v8839 = vadd.f32 0.0, %v8838
        %v8840 = vpop.f32.mrb[0].mxu0
        %8841 = vmatprep.mubr.bf16.mxu0 0
        %8842 = vmatmul.mubr.bf16.gmra.mrb[0].mxu0 %v7877
        %v8843 = vpop.f32.mrb[0].mxu0
        %v8844 = vadd.f32 0.0, %v8843
        %v8845 = vpop.f32.mrb[0].mxu0
        %v8846 = vpop.f32.mrb[0].mxu0
        %v8847 = vadd.f32 0.0, %v8846
        %v8848 = vpop.f32.mrb[0].mxu0
        %8849 = vmatprep.mubr.bf16.mxu0 0
        %8850 = vmatmul.mubr.bf16.gmra.mrb[0].mxu0 %v7878
        %v8851 = vpop.f32.mrb[0].mxu0
        %v8852 = vadd.f32 0.0, %v8851
        %v8853 = vpop.f32.mrb[0].mxu0
        %v8854 = vpop.f32.mrb[0].mxu0
        %v8855 = vadd.f32 0.0, %v8854
        %v8856 = vpop.f32.mrb[0].mxu0
        %8857 = vmatprep.mubr.bf16.mxu0 0
        %8858 = vmatmul.mubr.bf16.gmra.mrb[0].mxu0 %v7879
        %v8859 = vpop.f32.mrb[0].mxu0
        %v8860 = vadd.f32 0.0, %v8859
        %v8861 = vpop.f32.mrb[0].mxu0
        %v8862 = vpop.f32.mrb[0].mxu0
        %v8863 = vadd.f32 0.0, %v8862
        %v8864 = vpop.f32.mrb[0].mxu0
        %8865 = vmatprep.mubr.bf16.mxu0 0
        %8866 = vmatmul.mubr.bf16.gmra.mrb[0].mxu0 %v7880
        %v8867 = vpop.f32.mrb[0].mxu0
        %v8868 = vadd.f32 0.0, %v8867
        %v8869 = vpop.f32.mrb[0].mxu0
        %v8870 = vpop.f32.mrb[0].mxu0
        %v8871 = vadd.f32 0.0, %v8870
        %v8872 = vpop.f32.mrb[0].mxu0
        %8873 = vmatprep.mubr.bf16.mxu0 0
        %8874 = vmatmul.mubr.bf16.gmra.mrb[0].mxu0 %v7881
        %v8875 = vpop.f32.mrb[0].mxu0
        %v8876 = vadd.f32 0.0, %v8875
        %v8877 = vpop.f32.mrb[0].mxu0
        %v8878 = vpop.f32.mrb[0].mxu0
        %v8879 = vadd.f32 0.0, %v8878
        %v8880 = vpop.f32.mrb[0].mxu0
        %8881 = vmatprep.mubr.bf16.mxu0 0
        %8882 = vmatmul.mubr.bf16.gmra.mrb[0].mxu0 %v7882
        %v8883 = vpop.f32.mrb[0].mxu0
        %v8884 = vadd.f32 0.0, %v8883
        %v8885 = vpop.f32.mrb[0].mxu0
        %v8886 = vpop.f32.mrb[0].mxu0
        %v8887 = vadd.f32 0.0, %v8886
        %v8888 = vpop.f32.mrb[0].mxu0
        %8889 = vmatprep.mubr.bf16.mxu0 0
        %8890 = vmatmul.mubr.bf16.gmra.mrb[0].mxu0 %v7883
        %v8891 = vpop.f32.mrb[0].mxu0
        %v8892 = vadd.f32 0.0, %v8891
        %v8893 = vpop.f32.mrb[0].mxu0
        %v8894 = vpop.f32.mrb[0].mxu0
        %v8895 = vadd.f32 0.0, %v8894
        %v8896 = vpop.f32.mrb[0].mxu0
        %8897 = vmatprep.mubr.bf16.mxu0 0
        %8898 = vmatmul.mubr.bf16.gmra.mrb[0].mxu0 %v7884
        %v8899 = vpop.f32.mrb[0].mxu0
        %v8900 = vadd.f32 0.0, %v8899
        %v8901 = vpop.f32.mrb[0].mxu0
        %v8902 = vpop.f32.mrb[0].mxu0
        %v8903 = vadd.f32 0.0, %v8902
        %v8904 = vpop.f32.mrb[0].mxu0
        %8905 = vdwg.mxu0
        %v8906 = vrot.slane %v8716, 1
        %v8907 = vrot.slane %v8719, 1
        %v8908 = vrot.slane %v8724, 1
        %v8909 = vrot.slane %v8727, 1
        %v8910 = vrot.slane %v8732, 1
        %v8911 = vrot.slane %v8735, 1
        %v8912 = vrot.slane %v8740, 1
        %v8913 = vrot.slane %v8743, 1
        %v8914 = vrot.slane %v8748, 1
        %v8915 = vrot.slane %v8751, 1
        %v8916 = vrot.slane %v8756, 1
        %v8917 = vrot.slane %v8759, 1
        %v8918 = vrot.slane %v8764, 1
        %v8919 = vrot.slane %v8767, 1
        %v8920 = vrot.slane %v8772, 1
        %v8921 = vrot.slane %v8775, 1
        %v8922 = vrot.slane %v8780, 1
        %v8923 = vrot.slane %v8783, 1
        %v8924 = vrot.slane %v8788, 1
        %v8925 = vrot.slane %v8791, 1
        %v8926 = vrot.slane %v8796, 1
        %v8927 = vrot.slane %v8799, 1
        %v8928 = vrot.slane %v8804, 1
        %v8929 = vrot.slane %v8807, 1
        %v8930 = vrot.slane %v8812, 1
        %v8931 = vrot.slane %v8815, 1
        %v8932 = vrot.slane %v8820, 1
        %v8933 = vrot.slane %v8823, 1
        %v8934 = vrot.slane %v8828, 1
        %v8935 = vrot.slane %v8831, 1
        %v8936 = vrot.slane %v8836, 1
        %v8937 = vrot.slane %v8839, 1
        %v8938 = vrot.slane %v8844, 1
        %v8939 = vrot.slane %v8847, 1
        %v8940 = vrot.slane %v8852, 1
        %v8941 = vrot.slane %v8855, 1
        %v8942 = vrot.slane %v8860, 1
        %v8943 = vrot.slane %v8863, 1
        %v8944 = vrot.slane %v8868, 1
        %v8945 = vrot.slane %v8871, 1
        %v8946 = vrot.slane %v8876, 1
        %v8947 = vrot.slane %v8879, 1
        %v8948 = vrot.slane %v8884, 1
        %v8949 = vrot.slane %v8887, 1
        %v8950 = vrot.slane %v8892, 1
        %v8951 = vrot.slane %v8895, 1
        %v8952 = vrot.slane %v8900, 1
        %v8953 = vrot.slane %v8903, 1
        %v8954 = vsel %vm821, %v8952, %v8953
        %v8955 = vsel %vm821, %v8951, %v8952
        %v8956 = vsel %vm821, %v8950, %v8951
        %v8957 = vsel %vm821, %v8949, %v8950
        %v8958 = vsel %vm821, %v8948, %v8949
        %v8959 = vsel %vm821, %v8947, %v8948
        %v8960 = vsel %vm821, %v8946, %v8947
        %v8961 = vsel %vm821, %v8945, %v8946
        %v8962 = vsel %vm821, %v8944, %v8945
        %v8963 = vsel %vm821, %v8943, %v8944
        %v8964 = vsel %vm821, %v8942, %v8943
        %v8965 = vsel %vm821, %v8941, %v8942
        %v8966 = vsel %vm821, %v8940, %v8941
        %v8967 = vsel %vm821, %v8939, %v8940
        %v8968 = vsel %vm821, %v8938, %v8939
        %v8969 = vsel %vm821, %v8937, %v8938
        %v8970 = vsel %vm821, %v8936, %v8937
        %v8971 = vsel %vm821, %v8935, %v8936
        %v8972 = vsel %vm821, %v8934, %v8935
        %v8973 = vsel %vm821, %v8933, %v8934
        %v8974 = vsel %vm821, %v8932, %v8933
        %v8975 = vsel %vm821, %v8931, %v8932
        %v8976 = vsel %vm821, %v8930, %v8931
        %v8977 = vsel %vm821, %v8929, %v8930
        %v8978 = vsel %vm821, %v8928, %v8929
        %v8979 = vsel %vm821, %v8927, %v8928
        %v8980 = vsel %vm821, %v8926, %v8927
        %v8981 = vsel %vm821, %v8925, %v8926
        %v8982 = vsel %vm821, %v8924, %v8925
        %v8983 = vsel %vm821, %v8923, %v8924
        %v8984 = vsel %vm821, %v8922, %v8923
        %v8985 = vsel %vm821, %v8921, %v8922
        %v8986 = vsel %vm821, %v8920, %v8921
        %v8987 = vsel %vm821, %v8919, %v8920
        %v8988 = vsel %vm821, %v8918, %v8919
        %v8989 = vsel %vm821, %v8917, %v8918
        %v8990 = vsel %vm821, %v8916, %v8917
        %v8991 = vsel %vm821, %v8915, %v8916
        %v8992 = vsel %vm821, %v8914, %v8915
        %v8993 = vsel %vm821, %v8913, %v8914
        %v8994 = vsel %vm821, %v8912, %v8913
        %v8995 = vsel %vm821, %v8911, %v8912
        %v8996 = vsel %vm821, %v8910, %v8911
        %v8997 = vsel %vm821, %v8909, %v8910
        %v8998 = vsel %vm821, %v8908, %v8909
        %v8999 = vsel %vm821, %v8907, %v8908
        %v9000 = vsel %vm821, %v8906, %v8907
        %v9001 = vsel %vm821, %v8953, %v8906
        %v9002 = vadd.f32 %v8568, %v9000
        %v9003 = vadd.f32 %v8569, %v8999
        %v9004 = vadd.f32 %v8570, %v8998
        %v9005 = vadd.f32 %v8571, %v8997
        %v9006 = vadd.f32 %v8572, %v8996
        %v9007 = vadd.f32 %v8573, %v8995
        %v9008 = vadd.f32 %v8574, %v8994
        %v9009 = vadd.f32 %v8575, %v8993
        %v9010 = vadd.f32 %v8576, %v8992
        %v9011 = vadd.f32 %v8577, %v8991
        %v9012 = vadd.f32 %v8578, %v8990
        %v9013 = vadd.f32 %v8579, %v8989
        %v9014 = vadd.f32 %v8580, %v8988
        %v9015 = vadd.f32 %v8581, %v8987
        %v9016 = vadd.f32 %v8582, %v8986
        %v9017 = vadd.f32 %v8583, %v8985
        %v9018 = vadd.f32 %v8584, %v8984
        %v9019 = vadd.f32 %v8585, %v8983
        %v9020 = vadd.f32 %v8586, %v8982
        %v9021 = vadd.f32 %v8587, %v8981
        %v9022 = vadd.f32 %v8588, %v8980
        %v9023 = vadd.f32 %v8589, %v8979
        %v9024 = vadd.f32 %v8590, %v8978
        %v9025 = vadd.f32 %v8591, %v8977
        %v9026 = vadd.f32 %v8592, %v8976
        %v9027 = vadd.f32 %v8593, %v8975
        %v9028 = vadd.f32 %v8594, %v8974
        %v9029 = vadd.f32 %v8595, %v8973
        %v9030 = vadd.f32 %v8596, %v8972
        %v9031 = vadd.f32 %v8597, %v8971
        %v9032 = vadd.f32 %v8598, %v8970
        %v9033 = vadd.f32 %v8599, %v8969
        %v9034 = vadd.f32 %v8600, %v8968
        %v9035 = vadd.f32 %v8601, %v8967
        %v9036 = vadd.f32 %v8602, %v8966
        %v9037 = vadd.f32 %v8603, %v8965
        %v9038 = vadd.f32 %v8604, %v8964
        %v9039 = vadd.f32 %v8605, %v8963
        %v9040 = vadd.f32 %v8606, %v8962
        %v9041 = vadd.f32 %v8607, %v8961
        %v9042 = vadd.f32 %v8608, %v8960
        %v9043 = vadd.f32 %v8609, %v8959
        %v9044 = vadd.f32 %v8610, %v8958
        %v9045 = vadd.f32 %v8611, %v8957
        %v9046 = vadd.f32 %v8612, %v8956
        %v9047 = vadd.f32 %v8613, %v8955
        %v9048 = vadd.f32 %v8614, %v8954
        %v9049 = vadd.f32 %v8615, %v9001
        %v9050 = vld [vmem:[#allocation4] sm:$0xff]
        %v9051 = vld [vmem:[#allocation4 + $0x8] sm:$0xff]
        %v9052 = vld [vmem:[#allocation4 + $0x10] sm:$0xff]
        %v9053 = vld [vmem:[#allocation4 + $0x18] sm:$0xff]
        %v9054 = vld [vmem:[#allocation4 + $0x20] sm:$0xff]
        %v9055 = vld [vmem:[#allocation4 + $0x28] sm:$0xff]
        %v9056 = vld [vmem:[#allocation4 + $0x30] sm:$0xff]
        %v9057 = vld [vmem:[#allocation4 + $0x38] sm:$0xff]
        %v9058 = vld [vmem:[#allocation4 + $0x40] sm:$0xff]
        %v9059 = vld [vmem:[#allocation4 + $0x48] sm:$0xff]
        %v9060 = vld [vmem:[#allocation4 + $0x50] sm:$0xff]
        %v9061 = vld [vmem:[#allocation4 + $0x58] sm:$0xff]
        %v9062 = vld [vmem:[#allocation4 + $0x60] sm:$0xff]
        %v9063 = vld [vmem:[#allocation4 + $0x68] sm:$0xff]
        %v9064 = vld [vmem:[#allocation4 + $0x70] sm:$0xff]
        %v9065 = vld [vmem:[#allocation4 + $0x78] sm:$0xff]
        %v9066 = vld [vmem:[#allocation4 + $0x80] sm:$0xff]
        %v9067 = vld [vmem:[#allocation4 + $0x88] sm:$0xff]
        %v9068 = vld [vmem:[#allocation4 + $0x90] sm:$0xff]
        %v9069 = vld [vmem:[#allocation4 + $0x98] sm:$0xff]
        %v9070 = vld [vmem:[#allocation4 + $0xa0] sm:$0xff]
        %v9071 = vld [vmem:[#allocation4 + $0xa8] sm:$0xff]
        %v9072 = vld [vmem:[#allocation4 + $0xb0] sm:$0xff]
        %v9073 = vld [vmem:[#allocation4 + $0xb8] sm:$0xff]
        %v9074 = vld [vmem:[#allocation4 + $0xc0] sm:$0xff]
        %v9075 = vld [vmem:[#allocation4 + $0xc8] sm:$0xff]
        %v9076 = vld [vmem:[#allocation4 + $0xd0] sm:$0xff]
        %v9077 = vld [vmem:[#allocation4 + $0xd8] sm:$0xff]
        %v9078 = vld [vmem:[#allocation4 + $0xe0] sm:$0xff]
        %v9079 = vld [vmem:[#allocation4 + $0xe8] sm:$0xff]
        %v9080 = vld [vmem:[#allocation4 + $0xf0] sm:$0xff]
        %v9081 = vld [vmem:[#allocation4 + $0xf8] sm:$0xff]
        %v9082 = vld [vmem:[#allocation4 + $0x100] sm:$0xff]
        %v9083 = vld [vmem:[#allocation4 + $0x108] sm:$0xff]
        %v9084 = vld [vmem:[#allocation4 + $0x110] sm:$0xff]
        %v9085 = vld [vmem:[#allocation4 + $0x118] sm:$0xff]
        %v9086 = vld [vmem:[#allocation4 + $0x120] sm:$0xff]
        %v9087 = vld [vmem:[#allocation4 + $0x128] sm:$0xff]
        %v9088 = vld [vmem:[#allocation4 + $0x130] sm:$0xff]
        %v9089 = vld [vmem:[#allocation4 + $0x138] sm:$0xff]
        %v9090 = vld [vmem:[#allocation4 + $0x140] sm:$0xff]
        %v9091 = vld [vmem:[#allocation4 + $0x148] sm:$0xff]
        %v9092 = vld [vmem:[#allocation4 + $0x150] sm:$0xff]
        %v9093 = vld [vmem:[#allocation4 + $0x158] sm:$0xff]
        %v9094 = vld [vmem:[#allocation4 + $0x160] sm:$0xff]
        %v9095 = vld [vmem:[#allocation4 + $0x168] sm:$0xff]
        %v9096 = vld [vmem:[#allocation4 + $0x170] sm:$0xff]
        %v9097 = vld [vmem:[#allocation4 + $0x178] sm:$0xff]
        %v9098 = vadd.f32 %v9050, %v9002
        %v9099 = vadd.f32 %v9051, %v9003
        %v9100 = vadd.f32 %v9052, %v9004
        %v9101 = vadd.f32 %v9053, %v9005
        %v9102 = vadd.f32 %v9054, %v9006
        %v9103 = vadd.f32 %v9055, %v9007
        %v9104 = vadd.f32 %v9056, %v9008
        %v9105 = vadd.f32 %v9057, %v9009
        %v9106 = vadd.f32 %v9058, %v9010
        %v9107 = vadd.f32 %v9059, %v9011
        %v9108 = vadd.f32 %v9060, %v9012
        %v9109 = vadd.f32 %v9061, %v9013
        %v9110 = vadd.f32 %v9062, %v9014
        %v9111 = vadd.f32 %v9063, %v9015
        %v9112 = vadd.f32 %v9064, %v9016
        %v9113 = vadd.f32 %v9065, %v9017
        %v9114 = vadd.f32 %v9066, %v9018
        %v9115 = vadd.f32 %v9067, %v9019
        %v9116 = vadd.f32 %v9068, %v9020
        %v9117 = vadd.f32 %v9069, %v9021
        %v9118 = vadd.f32 %v9070, %v9022
        %v9119 = vadd.f32 %v9071, %v9023
        %v9120 = vadd.f32 %v9072, %v9024
        %v9121 = vadd.f32 %v9073, %v9025
        %v9122 = vadd.f32 %v9074, %v9026
        %v9123 = vadd.f32 %v9075, %v9027
        %v9124 = vadd.f32 %v9076, %v9028
        %v9125 = vadd.f32 %v9077, %v9029
        %v9126 = vadd.f32 %v9078, %v9030
        %v9127 = vadd.f32 %v9079, %v9031
        %v9128 = vadd.f32 %v9080, %v9032
        %v9129 = vadd.f32 %v9081, %v9033
        %v9130 = vadd.f32 %v9082, %v9034
        %v9131 = vadd.f32 %v9083, %v9035
        %v9132 = vadd.f32 %v9084, %v9036
        %v9133 = vadd.f32 %v9085, %v9037
        %v9134 = vadd.f32 %v9086, %v9038
        %v9135 = vadd.f32 %v9087, %v9039
        %v9136 = vadd.f32 %v9088, %v9040
        %v9137 = vadd.f32 %v9089, %v9041
        %v9138 = vadd.f32 %v9090, %v9042
        %v9139 = vadd.f32 %v9091, %v9043
        %v9140 = vadd.f32 %v9092, %v9044
        %v9141 = vadd.f32 %v9093, %v9045
        %v9142 = vadd.f32 %v9094, %v9046
        %v9143 = vadd.f32 %v9095, %v9047
        %v9144 = vadd.f32 %v9096, %v9048
        %v9145 = vadd.f32 %v9097, %v9049
        %9146 = vst [vmem:[#allocation4] sm:$0xff] %v9098
        %9147 = vst [vmem:[#allocation4 + $0x8] sm:$0xff] %v9099
        %9148 = vst [vmem:[#allocation4 + $0x10] sm:$0xff] %v9100
        %9149 = vst [vmem:[#allocation4 + $0x18] sm:$0xff] %v9101
        %9150 = vst [vmem:[#allocation4 + $0x20] sm:$0xff] %v9102
        %9151 = vst [vmem:[#allocation4 + $0x28] sm:$0xff] %v9103
        %9152 = vst [vmem:[#allocation4 + $0x30] sm:$0xff] %v9104
        %9153 = vst [vmem:[#allocation4 + $0x38] sm:$0xff] %v9105
        %9154 = vst [vmem:[#allocation4 + $0x40] sm:$0xff] %v9106
        %9155 = vst [vmem:[#allocation4 + $0x48] sm:$0xff] %v9107
        %9156 = vst [vmem:[#allocation4 + $0x50] sm:$0xff] %v9108
        %9157 = vst [vmem:[#allocation4 + $0x58] sm:$0xff] %v9109
        %9158 = vst [vmem:[#allocation4 + $0x60] sm:$0xff] %v9110
        %9159 = vst [vmem:[#allocation4 + $0x68] sm:$0xff] %v9111
        %9160 = vst [vmem:[#allocation4 + $0x70] sm:$0xff] %v9112
        %9161 = vst [vmem:[#allocation4 + $0x78] sm:$0xff] %v9113
        %9162 = vst [vmem:[#allocation4 + $0x80] sm:$0xff] %v9114
        %9163 = vst [vmem:[#allocation4 + $0x88] sm:$0xff] %v9115
        %9164 = vst [vmem:[#allocation4 + $0x90] sm:$0xff] %v9116
        %9165 = vst [vmem:[#allocation4 + $0x98] sm:$0xff] %v9117
        %9166 = vst [vmem:[#allocation4 + $0xa0] sm:$0xff] %v9118
        %9167 = vst [vmem:[#allocation4 + $0xa8] sm:$0xff] %v9119
        %9168 = vst [vmem:[#allocation4 + $0xb0] sm:$0xff] %v9120
        %9169 = vst [vmem:[#allocation4 + $0xb8] sm:$0xff] %v9121
        %9170 = vst [vmem:[#allocation4 + $0xc0] sm:$0xff] %v9122
        %9171 = vst [vmem:[#allocation4 + $0xc8] sm:$0xff] %v9123
        %9172 = vst [vmem:[#allocation4 + $0xd0] sm:$0xff] %v9124
        %9173 = vst [vmem:[#allocation4 + $0xd8] sm:$0xff] %v9125
        %9174 = vst [vmem:[#allocation4 + $0xe0] sm:$0xff] %v9126
        %9175 = vst [vmem:[#allocation4 + $0xe8] sm:$0xff] %v9127
        %9176 = vst [vmem:[#allocation4 + $0xf0] sm:$0xff] %v9128
        %9177 = vst [vmem:[#allocation4 + $0xf8] sm:$0xff] %v9129
        %9178 = vst [vmem:[#allocation4 + $0x100] sm:$0xff] %v9130
        %9179 = vst [vmem:[#allocation4 + $0x108] sm:$0xff] %v9131
        %9180 = vst [vmem:[#allocation4 + $0x110] sm:$0xff] %v9132
        %9181 = vst [vmem:[#allocation4 + $0x118] sm:$0xff] %v9133
        %9182 = vst [vmem:[#allocation4 + $0x120] sm:$0xff] %v9134
        %9183 = vst [vmem:[#allocation4 + $0x128] sm:$0xff] %v9135
        %9184 = vst [vmem:[#allocation4 + $0x130] sm:$0xff] %v9136
        %9185 = vst [vmem:[#allocation4 + $0x138] sm:$0xff] %v9137
        %9186 = vst [vmem:[#allocation4 + $0x140] sm:$0xff] %v9138
        %9187 = vst [vmem:[#allocation4 + $0x148] sm:$0xff] %v9139
        %9188 = vst [vmem:[#allocation4 + $0x150] sm:$0xff] %v9140
        %9189 = vst [vmem:[#allocation4 + $0x158] sm:$0xff] %v9141
        %9190 = vst [vmem:[#allocation4 + $0x160] sm:$0xff] %v9142
        %9191 = vst [vmem:[#allocation4 + $0x168] sm:$0xff] %v9143
        %9192 = vst [vmem:[#allocation4 + $0x170] sm:$0xff] %v9144
        %9193 = vst [vmem:[#allocation4 + $0x178] sm:$0xff] %v9145
        %v9194 = vld [vmem:[%s1626] sm:$0xf]
        %v9195 = vld [vmem:[%s1626 + $0x4] sm:$0xf]
        %v9196 = vld [vmem:[%s1626 + $0x8] sm:$0xf]
        %v9197 = vld [vmem:[%s1626 + $0xc] sm:$0xf]
        %v9198 = vld [vmem:[%s1626 + $0x10] sm:$0xf]
        %v9199 = vld [vmem:[%s1626 + $0x14] sm:$0xf]
        %v9200 = vld [vmem:[%s1626 + $0x18] sm:$0xf]
        %v9201 = vld [vmem:[%s1626 + $0x1c] sm:$0xf]
        %v9202 = vld [vmem:[%s1626 + $0x20] sm:$0xf]
        %v9203 = vld [vmem:[%s1626 + $0x24] sm:$0xf]
        %v9204 = vld [vmem:[%s1626 + $0x28] sm:$0xf]
        %v9205 = vld [vmem:[%s1626 + $0x2c] sm:$0xf]
        %v9206 = vld [vmem:[%s1626 + $0x30] sm:$0xf]
        %v9207 = vld [vmem:[%s1626 + $0x34] sm:$0xf]
        %v9208 = vld [vmem:[%s1626 + $0x38] sm:$0xf]
        %v9209 = vld [vmem:[%s1626 + $0x3c] sm:$0xf]
        %v9210 = vld [vmem:[%s1626 + $0x40] sm:$0xf]
        %v9211 = vld [vmem:[%s1626 + $0x44] sm:$0xf]
        %v9212 = vld [vmem:[%s1626 + $0x48] sm:$0xf]
        %v9213 = vld [vmem:[%s1626 + $0x4c] sm:$0xf]
        %v9214 = vld [vmem:[%s1626 + $0x50] sm:$0xf]
        %v9215 = vld [vmem:[%s1626 + $0x54] sm:$0xf]
        %v9216 = vld [vmem:[%s1626 + $0x58] sm:$0xf]
        %v9217 = vld [vmem:[%s1626 + $0x5c] sm:$0xf]
        %v9218 = vld [vmem:[%s1626 + $0x60] sm:$0xf]
        %v9219 = vld [vmem:[%s1626 + $0x64] sm:$0xf]
        %v9220 = vld [vmem:[%s1626 + $0x68] sm:$0xf]
        %v9221 = vld [vmem:[%s1626 + $0x6c] sm:$0xf]
        %v9222 = vld [vmem:[%s1626 + $0x70] sm:$0xf]
        %v9223 = vld [vmem:[%s1626 + $0x74] sm:$0xf]
        %v9224 = vld [vmem:[%s1626 + $0x78] sm:$0xf]
        %v9225 = vld [vmem:[%s1626 + $0x7c] sm:$0xf]
        %v9226 = vld [vmem:[%s1626 + $0x80] sm:$0xf]
        %v9227 = vld [vmem:[%s1626 + $0x84] sm:$0xf]
        %v9228 = vld [vmem:[%s1626 + $0x88] sm:$0xf]
        %v9229 = vld [vmem:[%s1626 + $0x8c] sm:$0xf]
        %v9230 = vld [vmem:[%s1626 + $0x90] sm:$0xf]
        %v9231 = vld [vmem:[%s1626 + $0x94] sm:$0xf]
        %v9232 = vld [vmem:[%s1626 + $0x98] sm:$0xf]
        %v9233 = vld [vmem:[%s1626 + $0x9c] sm:$0xf]
        %v9234 = vld [vmem:[%s1626 + $0xa0] sm:$0xf]
        %v9235 = vld [vmem:[%s1626 + $0xa4] sm:$0xf]
        %v9236 = vld [vmem:[%s1626 + $0xa8] sm:$0xf]
        %v9237 = vld [vmem:[%s1626 + $0xac] sm:$0xf]
        %v9238 = vld [vmem:[%s1626 + $0xb0] sm:$0xf]
        %v9239 = vld [vmem:[%s1626 + $0xb4] sm:$0xf]
        %v9240 = vld [vmem:[%s1626 + $0xb8] sm:$0xf]
        %v9241 = vld [vmem:[%s1626 + $0xbc] sm:$0xf]
        %v9242 = vunpack.c.l.bf16 %v9194
        %v9243 = vunpack.c.l.bf16 %v9195
        %v9244 = vunpack.c.l.bf16 %v9196
        %v9245 = vunpack.c.l.bf16 %v9197
        %v9246 = vunpack.c.l.bf16 %v9198
        %v9247 = vunpack.c.l.bf16 %v9199
        %v9248 = vunpack.c.l.bf16 %v9200
        %v9249 = vunpack.c.l.bf16 %v9201
        %v9250 = vunpack.c.l.bf16 %v9202
        %v9251 = vunpack.c.l.bf16 %v9203
        %v9252 = vunpack.c.l.bf16 %v9204
        %v9253 = vunpack.c.l.bf16 %v9205
        %v9254 = vunpack.c.l.bf16 %v9206
        %v9255 = vunpack.c.l.bf16 %v9207
        %v9256 = vunpack.c.l.bf16 %v9208
        %v9257 = vunpack.c.l.bf16 %v9209
        %v9258 = vunpack.c.l.bf16 %v9210
        %v9259 = vunpack.c.l.bf16 %v9211
        %v9260 = vunpack.c.l.bf16 %v9212
        %v9261 = vunpack.c.l.bf16 %v9213
        %v9262 = vunpack.c.l.bf16 %v9214
        %v9263 = vunpack.c.l.bf16 %v9215
        %v9264 = vunpack.c.l.bf16 %v9216
        %v9265 = vunpack.c.l.bf16 %v9217
        %v9266 = vunpack.c.l.bf16 %v9218
        %v9267 = vunpack.c.l.bf16 %v9219
        %v9268 = vunpack.c.l.bf16 %v9220
        %v9269 = vunpack.c.l.bf16 %v9221
        %v9270 = vunpack.c.l.bf16 %v9222
        %v9271 = vunpack.c.l.bf16 %v9223
        %v9272 = vunpack.c.l.bf16 %v9224
        %v9273 = vunpack.c.l.bf16 %v9225
        %v9274 = vunpack.c.l.bf16 %v9226
        %v9275 = vunpack.c.l.bf16 %v9227
        %v9276 = vunpack.c.l.bf16 %v9228
        %v9277 = vunpack.c.l.bf16 %v9229
        %v9278 = vunpack.c.l.bf16 %v9230
        %v9279 = vunpack.c.l.bf16 %v9231
        %v9280 = vunpack.c.l.bf16 %v9232
        %v9281 = vunpack.c.l.bf16 %v9233
        %v9282 = vunpack.c.l.bf16 %v9234
        %v9283 = vunpack.c.l.bf16 %v9235
        %v9284 = vunpack.c.l.bf16 %v9236
        %v9285 = vunpack.c.l.bf16 %v9237
        %v9286 = vunpack.c.l.bf16 %v9238
        %v9287 = vunpack.c.l.bf16 %v9239
        %v9288 = vunpack.c.l.bf16 %v9240
        %v9289 = vunpack.c.l.bf16 %v9241
        %v9290 = vld [vmem:[#allocation4] sm:$0xff]
        %v9291 = vld [vmem:[#allocation4 + $0x8] sm:$0xff]
        %v9292 = vld [vmem:[#allocation4 + $0x10] sm:$0xff]
        %v9293 = vld [vmem:[#allocation4 + $0x18] sm:$0xff]
        %v9294 = vld [vmem:[#allocation4 + $0x20] sm:$0xff]
        %v9295 = vld [vmem:[#allocation4 + $0x28] sm:$0xff]
        %v9296 = vld [vmem:[#allocation4 + $0x30] sm:$0xff]
        %v9297 = vld [vmem:[#allocation4 + $0x38] sm:$0xff]
        %v9298 = vld [vmem:[#allocation4 + $0x40] sm:$0xff]
        %v9299 = vld [vmem:[#allocation4 + $0x48] sm:$0xff]
        %v9300 = vld [vmem:[#allocation4 + $0x50] sm:$0xff]
        %v9301 = vld [vmem:[#allocation4 + $0x58] sm:$0xff]
        %v9302 = vld [vmem:[#allocation4 + $0x60] sm:$0xff]
        %v9303 = vld [vmem:[#allocation4 + $0x68] sm:$0xff]
        %v9304 = vld [vmem:[#allocation4 + $0x70] sm:$0xff]
        %v9305 = vld [vmem:[#allocation4 + $0x78] sm:$0xff]
        %v9306 = vld [vmem:[#allocation4 + $0x80] sm:$0xff]
        %v9307 = vld [vmem:[#allocation4 + $0x88] sm:$0xff]
        %v9308 = vld [vmem:[#allocation4 + $0x90] sm:$0xff]
        %v9309 = vld [vmem:[#allocation4 + $0x98] sm:$0xff]
        %v9310 = vld [vmem:[#allocation4 + $0xa0] sm:$0xff]
        %v9311 = vld [vmem:[#allocation4 + $0xa8] sm:$0xff]
        %v9312 = vld [vmem:[#allocation4 + $0xb0] sm:$0xff]
        %v9313 = vld [vmem:[#allocation4 + $0xb8] sm:$0xff]
        %v9314 = vld [vmem:[#allocation4 + $0xc0] sm:$0xff]
        %v9315 = vld [vmem:[#allocation4 + $0xc8] sm:$0xff]
        %v9316 = vld [vmem:[#allocation4 + $0xd0] sm:$0xff]
        %v9317 = vld [vmem:[#allocation4 + $0xd8] sm:$0xff]
        %v9318 = vld [vmem:[#allocation4 + $0xe0] sm:$0xff]
        %v9319 = vld [vmem:[#allocation4 + $0xe8] sm:$0xff]
        %v9320 = vld [vmem:[#allocation4 + $0xf0] sm:$0xff]
        %v9321 = vld [vmem:[#allocation4 + $0xf8] sm:$0xff]
        %v9322 = vld [vmem:[#allocation4 + $0x100] sm:$0xff]
        %v9323 = vld [vmem:[#allocation4 + $0x108] sm:$0xff]
        %v9324 = vld [vmem:[#allocation4 + $0x110] sm:$0xff]
        %v9325 = vld [vmem:[#allocation4 + $0x118] sm:$0xff]
        %v9326 = vld [vmem:[#allocation4 + $0x120] sm:$0xff]
        %v9327 = vld [vmem:[#allocation4 + $0x128] sm:$0xff]
        %v9328 = vld [vmem:[#allocation4 + $0x130] sm:$0xff]
        %v9329 = vld [vmem:[#allocation4 + $0x138] sm:$0xff]
        %v9330 = vld [vmem:[#allocation4 + $0x140] sm:$0xff]
        %v9331 = vld [vmem:[#allocation4 + $0x148] sm:$0xff]
        %v9332 = vld [vmem:[#allocation4 + $0x150] sm:$0xff]
        %v9333 = vld [vmem:[#allocation4 + $0x158] sm:$0xff]
        %v9334 = vld [vmem:[#allocation4 + $0x160] sm:$0xff]
        %v9335 = vld [vmem:[#allocation4 + $0x168] sm:$0xff]
        %v9336 = vld [vmem:[#allocation4 + $0x170] sm:$0xff]
        %v9337 = vld [vmem:[#allocation4 + $0x178] sm:$0xff]
        %v9338 = vrot.slane %v9242, 1
        %v9339 = vrot.slane %v9243, 1
        %v9340 = vrot.slane %v9244, 1
        %v9341 = vrot.slane %v9245, 1
        %v9342 = vrot.slane %v9246, 1
        %v9343 = vrot.slane %v9247, 1
        %v9344 = vrot.slane %v9248, 1
        %v9345 = vrot.slane %v9249, 1
        %v9346 = vrot.slane %v9250, 1
        %v9347 = vrot.slane %v9251, 1
        %v9348 = vrot.slane %v9252, 1
        %v9349 = vrot.slane %v9253, 1
        %v9350 = vrot.slane %v9254, 1
        %v9351 = vrot.slane %v9255, 1
        %v9352 = vrot.slane %v9256, 1
        %v9353 = vrot.slane %v9257, 1
        %v9354 = vrot.slane %v9258, 1
        %v9355 = vrot.slane %v9259, 1
        %v9356 = vrot.slane %v9260, 1
        %v9357 = vrot.slane %v9261, 1
        %v9358 = vrot.slane %v9262, 1
        %v9359 = vrot.slane %v9263, 1
        %v9360 = vrot.slane %v9264, 1
        %v9361 = vrot.slane %v9265, 1
        %v9362 = vrot.slane %v9266, 1
        %v9363 = vrot.slane %v9267, 1
        %v9364 = vrot.slane %v9268, 1
        %v9365 = vrot.slane %v9269, 1
        %v9366 = vrot.slane %v9270, 1
        %v9367 = vrot.slane %v9271, 1
        %v9368 = vrot.slane %v9272, 1
        %v9369 = vrot.slane %v9273, 1
        %v9370 = vrot.slane %v9274, 1
        %v9371 = vrot.slane %v9275, 1
        %v9372 = vrot.slane %v9276, 1
        %v9373 = vrot.slane %v9277, 1
        %v9374 = vrot.slane %v9278, 1
        %v9375 = vrot.slane %v9279, 1
        %v9376 = vrot.slane %v9280, 1
        %v9377 = vrot.slane %v9281, 1
        %v9378 = vrot.slane %v9282, 1
        %v9379 = vrot.slane %v9283, 1
        %v9380 = vrot.slane %v9284, 1
        %v9381 = vrot.slane %v9285, 1
        %v9382 = vrot.slane %v9286, 1
        %v9383 = vrot.slane %v9287, 1
        %v9384 = vrot.slane %v9288, 1
        %v9385 = vrot.slane %v9289, 1
        %v9386 = vsel %vm821, %v9384, %v9385
        %v9387 = vsel %vm821, %v9383, %v9384
        %v9388 = vsel %vm821, %v9382, %v9383
        %v9389 = vsel %vm821, %v9381, %v9382
        %v9390 = vsel %vm821, %v9380, %v9381
        %v9391 = vsel %vm821, %v9379, %v9380
        %v9392 = vsel %vm821, %v9378, %v9379
        %v9393 = vsel %vm821, %v9377, %v9378
        %v9394 = vsel %vm821, %v9376, %v9377
        %v9395 = vsel %vm821, %v9375, %v9376
        %v9396 = vsel %vm821, %v9374, %v9375
        %v9397 = vsel %vm821, %v9373, %v9374
        %v9398 = vsel %vm821, %v9372, %v9373
        %v9399 = vsel %vm821, %v9371, %v9372
        %v9400 = vsel %vm821, %v9370, %v9371
        %v9401 = vsel %vm821, %v9369, %v9370
        %v9402 = vsel %vm821, %v9368, %v9369
        %v9403 = vsel %vm821, %v9367, %v9368
        %v9404 = vsel %vm821, %v9366, %v9367
        %v9405 = vsel %vm821, %v9365, %v9366
        %v9406 = vsel %vm821, %v9364, %v9365
        %v9407 = vsel %vm821, %v9363, %v9364
        %v9408 = vsel %vm821, %v9362, %v9363
        %v9409 = vsel %vm821, %v9361, %v9362
        %v9410 = vsel %vm821, %v9360, %v9361
        %v9411 = vsel %vm821, %v9359, %v9360
        %v9412 = vsel %vm821, %v9358, %v9359
        %v9413 = vsel %vm821, %v9357, %v9358
        %v9414 = vsel %vm821, %v9356, %v9357
        %v9415 = vsel %vm821, %v9355, %v9356
        %v9416 = vsel %vm821, %v9354, %v9355
        %v9417 = vsel %vm821, %v9353, %v9354
        %v9418 = vsel %vm821, %v9352, %v9353
        %v9419 = vsel %vm821, %v9351, %v9352
        %v9420 = vsel %vm821, %v9350, %v9351
        %v9421 = vsel %vm821, %v9349, %v9350
        %v9422 = vsel %vm821, %v9348, %v9349
        %v9423 = vsel %vm821, %v9347, %v9348
        %v9424 = vsel %vm821, %v9346, %v9347
        %v9425 = vsel %vm821, %v9345, %v9346
        %v9426 = vsel %vm821, %v9344, %v9345
        %v9427 = vsel %vm821, %v9343, %v9344
        %v9428 = vsel %vm821, %v9342, %v9343
        %v9429 = vsel %vm821, %v9341, %v9342
        %v9430 = vsel %vm821, %v9340, %v9341
        %v9431 = vsel %vm821, %v9339, %v9340
        %v9432 = vsel %vm821, %v9338, %v9339
        %v9433 = vsel %vm821, %v9385, %v9338
        %v9434 = vadd.f32 %v9290, %v9432
        %v9435 = vadd.f32 %v9291, %v9431
        %v9436 = vadd.f32 %v9292, %v9430
        %v9437 = vadd.f32 %v9293, %v9429
        %v9438 = vadd.f32 %v9294, %v9428
        %v9439 = vadd.f32 %v9295, %v9427
        %v9440 = vadd.f32 %v9296, %v9426
        %v9441 = vadd.f32 %v9297, %v9425
        %v9442 = vadd.f32 %v9298, %v9424
        %v9443 = vadd.f32 %v9299, %v9423
        %v9444 = vadd.f32 %v9300, %v9422
        %v9445 = vadd.f32 %v9301, %v9421
        %v9446 = vadd.f32 %v9302, %v9420
        %v9447 = vadd.f32 %v9303, %v9419
        %v9448 = vadd.f32 %v9304, %v9418
        %v9449 = vadd.f32 %v9305, %v9417
        %v9450 = vadd.f32 %v9306, %v9416
        %v9451 = vadd.f32 %v9307, %v9415
        %v9452 = vadd.f32 %v9308, %v9414
        %v9453 = vadd.f32 %v9309, %v9413
        %v9454 = vadd.f32 %v9310, %v9412
        %v9455 = vadd.f32 %v9311, %v9411
        %v9456 = vadd.f32 %v9312, %v9410
        %v9457 = vadd.f32 %v9313, %v9409
        %v9458 = vadd.f32 %v9314, %v9408
        %v9459 = vadd.f32 %v9315, %v9407
        %v9460 = vadd.f32 %v9316, %v9406
        %v9461 = vadd.f32 %v9317, %v9405
        %v9462 = vadd.f32 %v9318, %v9404
        %v9463 = vadd.f32 %v9319, %v9403
        %v9464 = vadd.f32 %v9320, %v9402
        %v9465 = vadd.f32 %v9321, %v9401
        %v9466 = vadd.f32 %v9322, %v9400
        %v9467 = vadd.f32 %v9323, %v9399
        %v9468 = vadd.f32 %v9324, %v9398
        %v9469 = vadd.f32 %v9325, %v9397
        %v9470 = vadd.f32 %v9326, %v9396
        %v9471 = vadd.f32 %v9327, %v9395
        %v9472 = vadd.f32 %v9328, %v9394
        %v9473 = vadd.f32 %v9329, %v9393
        %v9474 = vadd.f32 %v9330, %v9392
        %v9475 = vadd.f32 %v9331, %v9391
        %v9476 = vadd.f32 %v9332, %v9390
        %v9477 = vadd.f32 %v9333, %v9389
        %v9478 = vadd.f32 %v9334, %v9388
        %v9479 = vadd.f32 %v9335, %v9387
        %v9480 = vadd.f32 %v9336, %v9386
        %v9481 = vadd.f32 %v9337, %v9433
        %9482 = vst [vmem:[#allocation4] sm:$0xff] %v9434
        %9483 = vst [vmem:[#allocation4 + $0x8] sm:$0xff] %v9435
        %9484 = vst [vmem:[#allocation4 + $0x10] sm:$0xff] %v9436
        %9485 = vst [vmem:[#allocation4 + $0x18] sm:$0xff] %v9437
        %9486 = vst [vmem:[#allocation4 + $0x20] sm:$0xff] %v9438
        %9487 = vst [vmem:[#allocation4 + $0x28] sm:$0xff] %v9439
        %9488 = vst [vmem:[#allocation4 + $0x30] sm:$0xff] %v9440
        %9489 = vst [vmem:[#allocation4 + $0x38] sm:$0xff] %v9441
        %9490 = vst [vmem:[#allocation4 + $0x40] sm:$0xff] %v9442
        %9491 = vst [vmem:[#allocation4 + $0x48] sm:$0xff] %v9443
        %9492 = vst [vmem:[#allocation4 + $0x50] sm:$0xff] %v9444
        %9493 = vst [vmem:[#allocation4 + $0x58] sm:$0xff] %v9445
        %9494 = vst [vmem:[#allocation4 + $0x60] sm:$0xff] %v9446
        %9495 = vst [vmem:[#allocation4 + $0x68] sm:$0xff] %v9447
        %9496 = vst [vmem:[#allocation4 + $0x70] sm:$0xff] %v9448
        %9497 = vst [vmem:[#allocation4 + $0x78] sm:$0xff] %v9449
        %9498 = vst [vmem:[#allocation4 + $0x80] sm:$0xff] %v9450
        %9499 = vst [vmem:[#allocation4 + $0x88] sm:$0xff] %v9451
        %9500 = vst [vmem:[#allocation4 + $0x90] sm:$0xff] %v9452
        %9501 = vst [vmem:[#allocation4 + $0x98] sm:$0xff] %v9453
        %9502 = vst [vmem:[#allocation4 + $0xa0] sm:$0xff] %v9454
        %9503 = vst [vmem:[#allocation4 + $0xa8] sm:$0xff] %v9455
        %9504 = vst [vmem:[#allocation4 + $0xb0] sm:$0xff] %v9456
        %9505 = vst [vmem:[#allocation4 + $0xb8] sm:$0xff] %v9457
        %9506 = vst [vmem:[#allocation4 + $0xc0] sm:$0xff] %v9458
        %9507 = vst [vmem:[#allocation4 + $0xc8] sm:$0xff] %v9459
        %9508 = vst [vmem:[#allocation4 + $0xd0] sm:$0xff] %v9460
        %9509 = vst [vmem:[#allocation4 + $0xd8] sm:$0xff] %v9461
        %9510 = vst [vmem:[#allocation4 + $0xe0] sm:$0xff] %v9462
        %9511 = vst [vmem:[#allocation4 + $0xe8] sm:$0xff] %v9463
        %9512 = vst [vmem:[#allocation4 + $0xf0] sm:$0xff] %v9464
        %9513 = vst [vmem:[#allocation4 + $0xf8] sm:$0xff] %v9465
        %9514 = vst [vmem:[#allocation4 + $0x100] sm:$0xff] %v9466
        %9515 = vst [vmem:[#allocation4 + $0x108] sm:$0xff] %v9467
        %9516 = vst [vmem:[#allocation4 + $0x110] sm:$0xff] %v9468
        %9517 = vst [vmem:[#allocation4 + $0x118] sm:$0xff] %v9469
        %9518 = vst [vmem:[#allocation4 + $0x120] sm:$0xff] %v9470
        %9519 = vst [vmem:[#allocation4 + $0x128] sm:$0xff] %v9471
        %9520 = vst [vmem:[#allocation4 + $0x130] sm:$0xff] %v9472
        %9521 = vst [vmem:[#allocation4 + $0x138] sm:$0xff] %v9473
        %9522 = vst [vmem:[#allocation4 + $0x140] sm:$0xff] %v9474
        %9523 = vst [vmem:[#allocation4 + $0x148] sm:$0xff] %v9475
        %9524 = vst [vmem:[#allocation4 + $0x150] sm:$0xff] %v9476
        %9525 = vst [vmem:[#allocation4 + $0x158] sm:$0xff] %v9477
        %9526 = vst [vmem:[#allocation4 + $0x160] sm:$0xff] %v9478
        %9527 = vst [vmem:[#allocation4 + $0x168] sm:$0xff] %v9479
        %9528 = vst [vmem:[#allocation4 + $0x170] sm:$0xff] %v9480
        %9529 = vst [vmem:[#allocation4 + $0x178] sm:$0xff] %v9481
        %v9530 = vld [vmem:[#allocation4] sm:$0xff]
        %v9531 = vld [vmem:[#allocation4 + $0x8] sm:$0xff]
        %v9532 = vld [vmem:[#allocation4 + $0x18] sm:$0xff]
        %v9533 = vld [vmem:[#allocation4 + $0x20] sm:$0xff]
        %v9534 = vld [vmem:[#allocation4 + $0x30] sm:$0xff]
        %v9535 = vld [vmem:[#allocation4 + $0x38] sm:$0xff]
        %v9536 = vld [vmem:[#allocation4 + $0x48] sm:$0xff]
        %v9537 = vld [vmem:[#allocation4 + $0x50] sm:$0xff]
        %v9538 = vld [vmem:[#allocation4 + $0x60] sm:$0xff]
        %v9539 = vld [vmem:[#allocation4 + $0x68] sm:$0xff]
        %v9540 = vld [vmem:[#allocation4 + $0x78] sm:$0xff]
        %v9541 = vld [vmem:[#allocation4 + $0x80] sm:$0xff]
        %v9542 = vld [vmem:[#allocation4 + $0x90] sm:$0xff]
        %v9543 = vld [vmem:[#allocation4 + $0x98] sm:$0xff]
        %v9544 = vld [vmem:[#allocation4 + $0xa8] sm:$0xff]
        %v9545 = vld [vmem:[#allocation4 + $0xb0] sm:$0xff]
        %v9546 = vld [vmem:[#allocation4 + $0xc0] sm:$0xff]
        %v9547 = vld [vmem:[#allocation4 + $0xc8] sm:$0xff]
        %v9548 = vld [vmem:[#allocation4 + $0xd8] sm:$0xff]
        %v9549 = vld [vmem:[#allocation4 + $0xe0] sm:$0xff]
        %v9550 = vld [vmem:[#allocation4 + $0xf0] sm:$0xff]
        %v9551 = vld [vmem:[#allocation4 + $0xf8] sm:$0xff]
        %v9552 = vld [vmem:[#allocation4 + $0x108] sm:$0xff]
        %v9553 = vld [vmem:[#allocation4 + $0x110] sm:$0xff]
        %v9554 = vld [vmem:[#allocation4 + $0x120] sm:$0xff]
        %v9555 = vld [vmem:[#allocation4 + $0x128] sm:$0xff]
        %v9556 = vld [vmem:[#allocation4 + $0x138] sm:$0xff]
        %v9557 = vld [vmem:[#allocation4 + $0x140] sm:$0xff]
        %v9558 = vld [vmem:[#allocation4 + $0x150] sm:$0xff]
        %v9559 = vld [vmem:[#allocation4 + $0x158] sm:$0xff]
        %v9560 = vld [vmem:[#allocation4 + $0x168] sm:$0xff]
        %v9561 = vld [vmem:[#allocation4 + $0x170] sm:$0xff]
        %v9562 = vld [vmem:[%s4] sm:$0x1]
        %v9564 = vlaneseq
        %v9565 = vshrl.u32 %v9564, 7
        %v9566 = vsub.s32 0, %v9565
        %v9567 = vrot.slane %v9562, %v9566
        %v9569 = vadd.f32 %v9530, %v9567
        %v9570 = vadd.f32 %v9531, %v9567
        %v9571 = vadd.f32 %v9532, %v9567
        %v9572 = vadd.f32 %v9533, %v9567
        %v9573 = vadd.f32 %v9534, %v9567
        %v9574 = vadd.f32 %v9535, %v9567
        %v9575 = vadd.f32 %v9536, %v9567
        %v9576 = vadd.f32 %v9537, %v9567
        %v9577 = vadd.f32 %v9538, %v9567
        %v9578 = vadd.f32 %v9539, %v9567
        %v9579 = vadd.f32 %v9540, %v9567
        %v9580 = vadd.f32 %v9541, %v9567
        %v9581 = vadd.f32 %v9542, %v9567
        %v9582 = vadd.f32 %v9543, %v9567
        %v9583 = vadd.f32 %v9544, %v9567
        %v9584 = vadd.f32 %v9545, %v9567
        %v9585 = vadd.f32 %v9546, %v9567
        %v9586 = vadd.f32 %v9547, %v9567
        %v9587 = vadd.f32 %v9548, %v9567
        %v9588 = vadd.f32 %v9549, %v9567
        %v9589 = vadd.f32 %v9550, %v9567
        %v9590 = vadd.f32 %v9551, %v9567
        %v9591 = vadd.f32 %v9552, %v9567
        %v9592 = vadd.f32 %v9553, %v9567
        %v9593 = vadd.f32 %v9554, %v9567
        %v9594 = vadd.f32 %v9555, %v9567
        %v9595 = vadd.f32 %v9556, %v9567
        %v9596 = vadd.f32 %v9557, %v9567
        %v9597 = vadd.f32 %v9558, %v9567
        %v9598 = vadd.f32 %v9559, %v9567
        %v9599 = vadd.f32 %v9560, %v9567
        %v9600 = vadd.f32 %v9561, %v9567
        %v9601 = vmax.f32 %v9569, 0.0
        %v9602 = vmax.f32 %v9570, 0.0
        %v9603 = vmax.f32 %v9571, 0.0
        %v9604 = vmax.f32 %v9572, 0.0
        %v9605 = vmax.f32 %v9573, 0.0
        %v9606 = vmax.f32 %v9574, 0.0
        %v9607 = vmax.f32 %v9575, 0.0
        %v9608 = vmax.f32 %v9576, 0.0
        %v9609 = vmax.f32 %v9577, 0.0
        %v9610 = vmax.f32 %v9578, 0.0
        %v9611 = vmax.f32 %v9579, 0.0
        %v9612 = vmax.f32 %v9580, 0.0
        %v9613 = vmax.f32 %v9581, 0.0
        %v9614 = vmax.f32 %v9582, 0.0
        %v9615 = vmax.f32 %v9583, 0.0
        %v9616 = vmax.f32 %v9584, 0.0
        %v9617 = vmax.f32 %v9585, 0.0
        %v9618 = vmax.f32 %v9586, 0.0
        %v9619 = vmax.f32 %v9587, 0.0
        %v9620 = vmax.f32 %v9588, 0.0
        %v9621 = vmax.f32 %v9589, 0.0
        %v9622 = vmax.f32 %v9590, 0.0
        %v9623 = vmax.f32 %v9591, 0.0
        %v9624 = vmax.f32 %v9592, 0.0
        %v9625 = vmax.f32 %v9593, 0.0
        %v9626 = vmax.f32 %v9594, 0.0
        %v9627 = vmax.f32 %v9595, 0.0
        %v9628 = vmax.f32 %v9596, 0.0
        %v9629 = vmax.f32 %v9597, 0.0
        %v9630 = vmax.f32 %v9598, 0.0
        %v9631 = vmax.f32 %v9599, 0.0
        %v9632 = vmax.f32 %v9600, 0.0
        %9633 = vst [vmem:[%s271] sm:$0xff] %v9601
        %9634 = vst [vmem:[%s271 + $0x8] sm:$0xff] %v9602
        %9635 = vst [vmem:[%s271 + $0x10] sm:$0xff] %v9603
        %9636 = vst [vmem:[%s271 + $0x18] sm:$0xff] %v9604
        %9637 = vst [vmem:[%s271 + $0x20] sm:$0xff] %v9605
        %9638 = vst [vmem:[%s271 + $0x28] sm:$0xff] %v9606
        %9639 = vst [vmem:[%s271 + $0x30] sm:$0xff] %v9607
        %9640 = vst [vmem:[%s271 + $0x38] sm:$0xff] %v9608
        %9641 = vst [vmem:[%s271 + $0x40] sm:$0xff] %v9609
        %9642 = vst [vmem:[%s271 + $0x48] sm:$0xff] %v9610
        %9643 = vst [vmem:[%s271 + $0x50] sm:$0xff] %v9611
        %9644 = vst [vmem:[%s271 + $0x58] sm:$0xff] %v9612
        %9645 = vst [vmem:[%s271 + $0x60] sm:$0xff] %v9613
        %9646 = vst [vmem:[%s271 + $0x68] sm:$0xff] %v9614
        %9647 = vst [vmem:[%s271 + $0x70] sm:$0xff] %v9615
        %9648 = vst [vmem:[%s271 + $0x78] sm:$0xff] %v9616
        %9649 = vst [vmem:[%s271 + $0x80] sm:$0xff] %v9617
        %9650 = vst [vmem:[%s271 + $0x88] sm:$0xff] %v9618
        %9651 = vst [vmem:[%s271 + $0x90] sm:$0xff] %v9619
        %9652 = vst [vmem:[%s271 + $0x98] sm:$0xff] %v9620
        %9653 = vst [vmem:[%s271 + $0xa0] sm:$0xff] %v9621
        %9654 = vst [vmem:[%s271 + $0xa8] sm:$0xff] %v9622
        %9655 = vst [vmem:[%s271 + $0xb0] sm:$0xff] %v9623
        %9656 = vst [vmem:[%s271 + $0xb8] sm:$0xff] %v9624
        %9657 = vst [vmem:[%s271 + $0xc0] sm:$0xff] %v9625
        %9658 = vst [vmem:[%s271 + $0xc8] sm:$0xff] %v9626
        %9659 = vst [vmem:[%s271 + $0xd0] sm:$0xff] %v9627
        %9660 = vst [vmem:[%s271 + $0xd8] sm:$0xff] %v9628
        %9661 = vst [vmem:[%s271 + $0xe0] sm:$0xff] %v9629
        %9662 = vst [vmem:[%s271 + $0xe8] sm:$0xff] %v9630
        %9663 = vst [vmem:[%s271 + $0xf0] sm:$0xff] %v9631
        %9664 = vst [vmem:[%s271 + $0xf8] sm:$0xff] %v9632
        %s9665 = sand.u32 %s141, 1
        %s9666 = scalar_lea.sflag [#allocation7], %s9665
        %s9667 = sand.u32 %s141, 1
        %s9668 = smul.addr %s9667, 256
        %s9669 = scalar_lea.vmem [#allocation11], %s9668
        // Predicated region
        $region53: #{tpu_custom_call.1} parent=39 // pred_check
          %p9670 = pneg %p151
        $region54: #{tpu_custom_call.1} parent=39 // pred_check_branch
          %9672 = sbr.rel (%p9670) target = $region56
        $region55: #{tpu_custom_call.1} parent=39 // pred_region
          %s9674 = ssub.s32 4096, 4096
          %9675 = vsyncadd %s9666, %s9674
          %s9676 = smul.addr %s23, 32
          %s9677 = smul.addr %s9676, 128
          %s9678 = scalar_lea.hbm %s5, %s9677
          %s9679 = sshll.u32 %s9669, 4
          %s9680 = int_to_ptr.vmem [resolvable:$true] %s9679
          %9685 = dma.vmem_to_hbm [thread:$0]  %s9680, 4096, %s9678, %s9666, 128, 128, 8
        $region56: #{tpu_custom_call.1} parent=39 // pred_fallthru
          _
      $region40: #{tpu_custom_call.1} parent=5 // pred_fallthru
        _
      %p9686 = scmp.le.s32.totalorder 2, %s18
      // Predicated region
      $region57: #{tpu_custom_call.1} parent=5 // pred_check
        %p9687 = pneg %p9686
      $region58: #{tpu_custom_call.1} parent=5 // pred_check_branch
        %9689 = sbr.rel (%p9687) target = $region60
      $region59: #{tpu_custom_call.1} parent=5 // pred_region
        %s9690 = ssub.s32 %s18, 2
        // Predicated region
        $region61: #{tpu_custom_call.1} parent=59 // pred_check
          %p9691 = pneg %p157
        $region62: #{tpu_custom_call.1} parent=59 // pred_check_branch
          %9693 = sbr.rel (%p9691) target = $region64
        $region63: #{tpu_custom_call.1} parent=59 // pred_region
          %s9694 = sand.u32 %s142, 1
          %s9695 = scalar_lea.sflag [#allocation7], %s9694
          %s9696 = sand.u32 %s142, 1
          %s9697 = smul.addr %s9696, 256
          %s9698 = scalar_lea.vmem [#allocation11], %s9697
          %9699 = dma.done %s9695, 4096
        $region64: #{tpu_custom_call.1} parent=59 // pred_fallthru
          _
      $region60: #{tpu_custom_call.1} parent=5 // pred_fallthru
        _
    $region6: #{tpu_custom_call.1} parent=1 // loop_footer
      %s22 = sadd.s32 1, %s18
    $region7: #{tpu_custom_call.1} parent=1 // loop_footer_branch
      %17 = sbr.rel target = $region3
    $region8: #{tpu_custom_call.1} parent=1 // loop_exit
      _
    %9700 = vsyncpa [#allocation6], 1
    %s9701 = scalar_lea.sflag [#allocation6], 1
    %9702 = vsyncpa %s9701, 1
    %9703 = vsyncpa [#allocation9], 1
    %9704 = vsyncpa [#allocation7], 1
    %s9705 = scalar_lea.sflag [#allocation7], 1
    %9706 = vsyncpa %s9705, 1

</llo_original>
